<compile_context>
chip_gen: v7x
topology: tpu7x:2x2x1
jax: 0.10.0
libtpu: 0.0.40
codegen_flags: <defaults>
</compile_context>

<pallas_src>
import functools

import jax
import jax.numpy as jnp
from jax import lax
from jax.experimental import pallas as pl
from jax.experimental.pallas import tpu as pltpu


def _silu(x):
    return x * (1.0 / (1.0 + jnp.exp(-x)))


# ---------------------------------------------------------------------------
# Fused encoder kernel: one grid step == one image, everything stays in VMEM.
# ---------------------------------------------------------------------------
def _fused_encoder_kernel(x_ref, w1_ref, b1_ref, w2_ref, b2_ref, w3_ref, b3_ref,
                          o_ref, h1p_ref, h2p_ref, *, hh, wh, cin, c1, cout):
    """Shapes (per grid step):
      x_ref  : (1, 4, hh+1, wh+1, cin) bf16  phase-split padded input:
               x_ref[0, 2*ry+rx, a, u, :] == pad1(x)[2a+ry, 2u+rx, :]
      w1_ref : (3,3,cin,c1) bf16 ; b1_ref: (1,c1)  f32    conv_in
      w2_ref : (3,3,c1,c1)  bf16 ; b2_ref: (1,c1)  f32    stride-2 downsample
      w3_ref : (3,3,c1,cout) bf16; b3_ref: (1,cout) f32   conv_out ∘ quant_conv (fused)
      o_ref  : (1, hh, wh, cout) f32                      moments
      h1p_ref: (4, hh+1, wh+1, c1) bf16  phase-split conv_in output, zero pad (0,1,0,1)
      h2p_ref: (hh+2, wh+2, c1)    bf16  downsample output, zero pad 1 on every side
    """
    m = hh * wh
    f32 = jnp.float32

    # Padding rows/cols of the intermediates must be zero.
    h1p_ref[...] = jnp.zeros_like(h1p_ref)
    h2p_ref[...] = jnp.zeros_like(h2p_ref)

    # ---- conv_in: 3x3, stride 1, pad 1, SiLU — computed per output phase ------------
    # h1[2a+py, 2b+px] = sum_{dy,dx} pad1(x)[2a+py+dy, 2b+px+dx] @ W1[dy,dx]
    for py in range(2):
        for px in range(2):
            acc = jnp.zeros((m, c1), f32)
            for dy in range(3):
                for dx in range(3):
                    ry, qy = (py + dy) % 2, (py + dy) // 2
                    rx, qx = (px + dx) % 2, (px + dx) // 2
                    tap = x_ref[0, 2 * ry + rx, qy:qy + hh, qx:qx + wh, :]
                    acc += jnp.dot(tap.reshape(m, cin), w1_ref[dy, dx],
                                   preferred_element_type=f32)
            acc = _silu(acc + b1_ref[...])
            h1p_ref[2 * py + px, 0:hh, 0:wh, :] = (
                acc.reshape(hh, wh, c1).astype(h1p_ref.dtype))

    # ---- downsample: 3x3, stride 2, pad (0,1,0,1), SiLU ------------------------------
    # out2[yo,xo] = sum_{dy,dx} h1pad[2yo+dy, 2xo+dx] @ W2[dy,dx]
    acc = jnp.zeros((m, c1), f32)
    for dy in range(3):
        for dx in range(3):
            ry, qy = dy % 2, dy // 2
            rx, qx = dx % 2, dx // 2
            tap = h1p_ref[2 * ry + rx, qy:qy + hh, qx:qx + wh, :]
            acc += jnp.dot(tap.reshape(m, c1), w2_ref[dy, dx],
                           preferred_element_type=f32)
    acc = _silu(acc + b2_ref[...])
    h2p_ref[1:hh + 1, 1:wh + 1, :] = acc.reshape(hh, wh, c1).astype(h2p_ref.dtype)

    # ---- conv_out (3x3, stride 1, pad 1) fused with quant_conv (1x1) -----------------
    acc = jnp.zeros((m, cout), f32)
    for dy in range(3):
        for dx in range(3):
            tap = h2p_ref[dy:dy + hh, dx:dx + wh, :]
            acc += jnp.dot(tap.reshape(m, c1), w3_ref[dy, dx],
                           preferred_element_type=f32)
    acc = acc + b3_ref[...]
    o_ref[0] = acc.reshape(hh, wh, cout).astype(o_ref.dtype)


# ---------------------------------------------------------------------------
# Wrapper: layout prep (pure permutation, no im2col blow-up) + one pallas_call.
# ---------------------------------------------------------------------------
def autoencoder_encode_pallas(x_nchw, params):
    x = jnp.transpose(x_nchw, (0, 2, 3, 1))                       # NCHW -> NHWC
    B, H, W, cin = x.shape
    assert H % 2 == 0 and W % 2 == 0
    hh, wh = H // 2, W // 2
    c1 = params["conv_in_w"].shape[-1]
    cout = params["conv_out_w"].shape[-1]

    # pad 1 (for conv_in) + space-to-depth phase split so every in-kernel slice is
    # unit-stride.  This is a 1:1 re-layout of the raw input, not an im2col expansion.
    xp = jnp.pad(x, ((0, 0), (1, 1), (1, 1), (0, 0)))
    xs = (xp.reshape(B, hh + 1, 2, wh + 1, 2, cin)
            .transpose(0, 2, 4, 1, 3, 5)                          # (B, ry, rx, a, u, c)
            .reshape(B, 4, hh + 1, wh + 1, cin)
            .astype(jnp.bfloat16))

    w1 = params["conv_in_w"].astype(jnp.bfloat16)
    b1 = params["conv_in_b"].reshape(1, c1).astype(jnp.float32)
    w2 = params["down_w"].astype(jnp.bfloat16)
    b2 = params["down_b"].reshape(1, c1).astype(jnp.float32)
    # Fuse conv_out (3x3) with quant_conv (1x1): exact algebra, drops one layer.
    wq = params["quant_w"][0, 0]                                  # (cout, cout)
    w3 = jnp.einsum("hwio,oj->hwij", params["conv_out_w"], wq).astype(jnp.bfloat16)
    b3 = (params["conv_out_b"] @ wq + params["quant_b"]).reshape(1, cout).astype(jnp.float32)

    kernel = functools.partial(_fused_encoder_kernel,
                               hh=hh, wh=wh, cin=cin, c1=c1, cout=cout)

    moments = pl.pallas_call(
        kernel,
        out_shape=jax.ShapeDtypeStruct((B, hh, wh, cout), jnp.float32),
        grid_spec=pltpu.PrefetchScalarGridSpec(
            num_scalar_prefetch=0,
            grid=(B,),
            in_specs=[
                pl.BlockSpec((1, 4, hh + 1, wh + 1, cin), lambda b: (b, 0, 0, 0, 0)),
                pl.BlockSpec((3, 3, cin, c1), lambda b: (0, 0, 0, 0)),
                pl.BlockSpec((1, c1), lambda b: (0, 0)),
                pl.BlockSpec((3, 3, c1, c1), lambda b: (0, 0, 0, 0)),
                pl.BlockSpec((1, c1), lambda b: (0, 0)),
                pl.BlockSpec((3, 3, c1, cout), lambda b: (0, 0, 0, 0)),
                pl.BlockSpec((1, cout), lambda b: (0, 0)),
            ],
            out_specs=pl.BlockSpec((1, hh, wh, cout), lambda b: (b, 0, 0, 0)),
            scratch_shapes=[
                pltpu.VMEM((4, hh + 1, wh + 1, c1), jnp.bfloat16),   # padded conv_in phases
                pltpu.VMEM((hh + 2, wh + 2, c1), jnp.bfloat16),      # padded downsample out
            ],
        ),
        compiler_params=pltpu.CompilerParams(dimension_semantics=("parallel",)),
    )(xs, w1, b1, w2, b2, w3, b3)

    moments = jnp.transpose(moments, (0, 3, 1, 2))                 # NHWC -> NCHW
    mean, logvar = jnp.split(moments, 2, axis=1)
    # TODO(synk): real encode() returns a DiagonalGaussianDistribution; we return its
    # defining tensors (mean, logvar) since objects have no tensor/Pallas equivalent.
    return mean, logvar


_encode_jit = jax.jit(autoencoder_encode_pallas)


# ---------------------------------------------------------------------------
# Deterministic synthetic AutoencoderKL encoder parameters.
# ---------------------------------------------------------------------------
def make_encoder_params(in_ch=3, hidden=32, z_ch=4, seed=0):
    keys = jax.random.split(jax.random.PRNGKey(seed), 8)

    def w_init(k, shape, fan_in):
        return jax.random.normal(k, shape, jnp.float32) / jnp.sqrt(fan_in)

    def b_init(k, n):
        return 0.1 * jax.random.normal(k, (n,), jnp.float32)

    return {
        "conv_in_w": w_init(keys[0], (3, 3, in_ch, hidden), 9 * in_ch),
        "conv_in_b": b_init(keys[4], hidden),
        "down_w": w_init(keys[1], (3, 3, hidden, hidden), 9 * hidden),
        "down_b": b_init(keys[5], hidden),
        "conv_out_w": w_init(keys[2], (3, 3, hidden, 2 * z_ch), 9 * hidden),
        "conv_out_b": b_init(keys[6], 2 * z_ch),
        "quant_w": w_init(keys[3], (1, 1, 2 * z_ch, 2 * z_ch), 2 * z_ch),
        "quant_b": b_init(keys[7], 2 * z_ch),
    }


# ---------------------------------------------------------------------------
# Pure-JAX reference (f32, unfused) for a correctness check.
# ---------------------------------------------------------------------------
def autoencoder_encode_reference(x_nchw, params):
    dn = ("NHWC", "HWIO", "NHWC")
    prec = lax.Precision.HIGHEST
    x = jnp.transpose(x_nchw, (0, 2, 3, 1)).astype(jnp.float32)
    h = lax.conv_general_dilated(x, params["conv_in_w"], (1, 1), ((1, 1), (1, 1)),
                                 dimension_numbers=dn, precision=prec) + params["conv_in_b"]
    h = h * jax.nn.sigmoid(h)
    h = lax.conv_general_dilated(h, params["down_w"], (2, 2), ((0, 1), (0, 1)),
                                 dimension_numbers=dn, precision=prec) + params["down_b"]
    h = h * jax.nn.sigmoid(h)
    h = lax.conv_general_dilated(h, params["conv_out_w"], (1, 1), ((1, 1), (1, 1)),
                                 dimension_numbers=dn, precision=prec) + params["conv_out_b"]
    m = lax.conv_general_dilated(h, params["quant_w"], (1, 1), ((0, 0), (0, 0)),
                                 dimension_numbers=dn, precision=prec) + params["quant_b"]
    m = jnp.transpose(m, (0, 3, 1, 2))
    mean, logvar = jnp.split(m, 2, axis=1)
    return mean, logvar


class AutoencoderKLWrapper:
    """JAX/Pallas port of the PyTorch wrapper: forward = encode(input_dict['values'])."""

    def __init__(self, params):
        self.params = params
        self.set = True

    def __call__(self, input_dict):
        assert self.set
        x = input_dict["values"]
        # torch.no_grad() equivalent: stop gradients through the encoder.
        return jax.lax.stop_gradient(_encode_jit(x, self.params))


if __name__ == "__main__":
    key = jax.random.PRNGKey(0)
    B, C, H, W = 2, 3, 16, 16
    x = jax.random.normal(key, (B, C, H, W), dtype=jnp.float32)

    params = make_encoder_params(in_ch=C, hidden=32, z_ch=4, seed=0)
    model = AutoencoderKLWrapper(params)

    mean, logvar = model({"values": x})
    jax.block_until_ready(mean)
    jax.block_until_ready(logvar)

    assert mean.shape == (B, 4, H // 2, W // 2), mean.shape
    assert logvar.shape == (B, 4, H // 2, W // 2), logvar.shape

    # Correctness check against a pure-JAX f32 reference (bf16 MXU operands -> loose tol).
    mean_ref, logvar_ref = autoencoder_encode_reference(x, params)
    err = float(jnp.maximum(jnp.max(jnp.abs(mean - mean_ref)),
                            jnp.max(jnp.abs(logvar - logvar_ref))))
    assert err < 0.1, f"max abs error vs reference: {err}"

    print("KERNEL_OK")
</pallas_src>

<mosaic_0001>
module attributes {stable_mosaic.version = 11 : i64} {
  func.func @_fused_encoder_kernel(%arg0: i32, %arg1: memref<1x4x9x9x3xbf16, #tpu.memory_space<vmem>>, %arg2: memref<3x3x3x32xbf16, #tpu.memory_space<vmem>>, %arg3: memref<1x32xf32, #tpu.memory_space<vmem>>, %arg4: memref<3x3x32x32xbf16, #tpu.memory_space<vmem>>, %arg5: memref<1x32xf32, #tpu.memory_space<vmem>>, %arg6: memref<3x3x32x8xbf16, #tpu.memory_space<vmem>>, %arg7: memref<1x8xf32, #tpu.memory_space<vmem>>, %arg8: memref<1x8x8x8xf32, #tpu.memory_space<vmem>>, %arg9: memref<4x9x9x32xbf16, #tpu.memory_space<vmem>>, %arg10: memref<10x10x32xbf16, #tpu.memory_space<vmem>>) attributes {dimension_semantics = [#tpu.dimension_semantics<parallel>], iteration_bounds = array<i64: 2>, scalar_prefetch = 0 : i64, scratch_operands = 2 : i64, tpu.core_type = #tpu.core_type<tc>, window_params = [{transform_indices = @transform_0, window_bounds = array<i64: 1, 4, 9, 9, 3>}, {pipeline_mode = #tpu.pipeline_mode<synchronous>, transform_indices = @transform_1, window_bounds = array<i64: 3, 3, 3, 32>}, {pipeline_mode = #tpu.pipeline_mode<synchronous>, transform_indices = @transform_2, window_bounds = array<i64: 1, 32>}, {pipeline_mode = #tpu.pipeline_mode<synchronous>, transform_indices = @transform_3, window_bounds = array<i64: 3, 3, 32, 32>}, {pipeline_mode = #tpu.pipeline_mode<synchronous>, transform_indices = @transform_4, window_bounds = array<i64: 1, 32>}, {pipeline_mode = #tpu.pipeline_mode<synchronous>, transform_indices = @transform_5, window_bounds = array<i64: 3, 3, 32, 8>}, {pipeline_mode = #tpu.pipeline_mode<synchronous>, transform_indices = @transform_6, window_bounds = array<i64: 1, 8>}, {transform_indices = @transform_7, window_bounds = array<i64: 1, 8, 8, 8>}]} {
    %cst = arith.constant 0.000000e+00 : bf16
    %0 = vector.broadcast %cst : bf16 to vector<4x9x9x32xbf16>
    %c0 = arith.constant 0 : index
    %c0_0 = arith.constant 0 : index
    %c0_1 = arith.constant 0 : index
    %c0_2 = arith.constant 0 : index
    %1 = vector.load %arg9[%c0, %c0_0, %c0_1, %c0_2] : memref<4x9x9x32xbf16, #tpu.memory_space<vmem>>, vector<4x9x9x32xbf16>
    tpu.vector_store %arg9[%c0, %c0_0, %c0_1, %c0_2], %0 {strides = array<i32>} : memref<4x9x9x32xbf16, #tpu.memory_space<vmem>>, vector<4x9x9x32xbf16>,
    %cst_3 = arith.constant 0.000000e+00 : bf16
    %2 = vector.broadcast %cst_3 : bf16 to vector<10x10x32xbf16>
    %c0_4 = arith.constant 0 : index
    %c0_5 = arith.constant 0 : index
    %c0_6 = arith.constant 0 : index
    %3 = vector.load %arg10[%c0_4, %c0_5, %c0_6] : memref<10x10x32xbf16, #tpu.memory_space<vmem>>, vector<10x10x32xbf16>
    tpu.vector_store %arg10[%c0_4, %c0_5, %c0_6], %2 {strides = array<i32>} : memref<10x10x32xbf16, #tpu.memory_space<vmem>>, vector<10x10x32xbf16>,
    %cst_7 = arith.constant 0.000000e+00 : f32
    %4 = vector.broadcast %cst_7 : f32 to vector<64x32xf32>
    %c0_8 = arith.constant 0 : index
    %c0_9 = arith.constant 0 : index
    %c0_10 = arith.constant 0 : index
    %c0_11 = arith.constant 0 : index
    %c0_12 = arith.constant 0 : index
    %5 = vector.load %arg1[%c0_8, %c0_9, %c0_10, %c0_11, %c0_12] : memref<1x4x9x9x3xbf16, #tpu.memory_space<vmem>>, vector<1x1x8x8x3xbf16>
    %6 = vector.shape_cast %5 : vector<1x1x8x8x3xbf16> to vector<8x8x3xbf16>
    %7 = vector.shape_cast %6 : vector<8x8x3xbf16> to vector<64x3xbf16>
    %c0_13 = arith.constant 0 : index
    %c0_14 = arith.constant 0 : index
    %c0_15 = arith.constant 0 : index
    %c0_16 = arith.constant 0 : index
    %8 = vector.load %arg2[%c0_13, %c0_14, %c0_15, %c0_16] : memref<3x3x3x32xbf16, #tpu.memory_space<vmem>>, vector<1x1x3x32xbf16>
    %9 = vector.shape_cast %8 : vector<1x1x3x32xbf16> to vector<3x32xbf16>
    %cst_17 = arith.constant dense<0.000000e+00> : vector<64x32xf32>
    %10 = tpu.matmul %7, %9, %cst_17 {dimension_numbers = #tpu.dot_dimension_numbers<[1], [0], [0], [1], [0, 0, 1, 1], [], []>} : vector<64x3xbf16>, vector<3x32xbf16>, vector<64x32xf32> -> vector<64x32xf32>
    %11 = arith.addf %4, %10 : vector<64x32xf32>
    %c0_18 = arith.constant 0 : index
    %c1 = arith.constant 1 : index
    %c0_19 = arith.constant 0 : index
    %c0_20 = arith.constant 0 : index
    %c0_21 = arith.constant 0 : index
    %12 = vector.load %arg1[%c0_18, %c1, %c0_19, %c0_20, %c0_21] : memref<1x4x9x9x3xbf16, #tpu.memory_space<vmem>>, vector<1x1x8x8x3xbf16>
    %13 = vector.shape_cast %12 : vector<1x1x8x8x3xbf16> to vector<8x8x3xbf16>
    %14 = vector.shape_cast %13 : vector<8x8x3xbf16> to vector<64x3xbf16>
    %c0_22 = arith.constant 0 : index
    %c1_23 = arith.constant 1 : index
    %c0_24 = arith.constant 0 : index
    %c0_25 = arith.constant 0 : index
    %15 = vector.load %arg2[%c0_22, %c1_23, %c0_24, %c0_25] : memref<3x3x3x32xbf16, #tpu.memory_space<vmem>>, vector<1x1x3x32xbf16>
    %16 = vector.shape_cast %15 : vector<1x1x3x32xbf16> to vector<3x32xbf16>
    %cst_26 = arith.constant dense<0.000000e+00> : vector<64x32xf32>
    %17 = tpu.matmul %14, %16, %cst_26 {dimension_numbers = #tpu.dot_dimension_numbers<[1], [0], [0], [1], [0, 0, 1, 1], [], []>} : vector<64x3xbf16>, vector<3x32xbf16>, vector<64x32xf32> -> vector<64x32xf32>
    %18 = arith.addf %11, %17 : vector<64x32xf32>
    %c0_27 = arith.constant 0 : index
    %c0_28 = arith.constant 0 : index
    %c0_29 = arith.constant 0 : index
    %c1_30 = arith.constant 1 : index
    %c0_31 = arith.constant 0 : index
    %19 = vector.load %arg1[%c0_27, %c0_28, %c0_29, %c1_30, %c0_31] : memref<1x4x9x9x3xbf16, #tpu.memory_space<vmem>>, vector<1x1x8x8x3xbf16>
    %20 = vector.shape_cast %19 : vector<1x1x8x8x3xbf16> to vector<8x8x3xbf16>
    %21 = vector.shape_cast %20 : vector<8x8x3xbf16> to vector<64x3xbf16>
    %c0_32 = arith.constant 0 : index
    %c2 = arith.constant 2 : index
    %c0_33 = arith.constant 0 : index
    %c0_34 = arith.constant 0 : index
    %22 = vector.load %arg2[%c0_32, %c2, %c0_33, %c0_34] : memref<3x3x3x32xbf16, #tpu.memory_space<vmem>>, vector<1x1x3x32xbf16>
    %23 = vector.shape_cast %22 : vector<1x1x3x32xbf16> to vector<3x32xbf16>
    %cst_35 = arith.constant dense<0.000000e+00> : vector<64x32xf32>
    %24 = tpu.matmul %21, %23, %cst_35 {dimension_numbers = #tpu.dot_dimension_numbers<[1], [0], [0], [1], [0, 0, 1, 1], [], []>} : vector<64x3xbf16>, vector<3x32xbf16>, vector<64x32xf32> -> vector<64x32xf32>
    %25 = arith.addf %18, %24 : vector<64x32xf32>
    %c0_36 = arith.constant 0 : index
    %c2_37 = arith.constant 2 : index
    %c0_38 = arith.constant 0 : index
    %c0_39 = arith.constant 0 : index
    %c0_40 = arith.constant 0 : index
    %26 = vector.load %arg1[%c0_36, %c2_37, %c0_38, %c0_39, %c0_40] : memref<1x4x9x9x3xbf16, #tpu.memory_space<vmem>>, vector<1x1x8x8x3xbf16>
    %27 = vector.shape_cast %26 : vector<1x1x8x8x3xbf16> to vector<8x8x3xbf16>
    %28 = vector.shape_cast %27 : vector<8x8x3xbf16> to vector<64x3xbf16>
    %c1_41 = arith.constant 1 : index
    %c0_42 = arith.constant 0 : index
    %c0_43 = arith.constant 0 : index
    %c0_44 = arith.constant 0 : index
    %29 = vector.load %arg2[%c1_41, %c0_42, %c0_43, %c0_44] : memref<3x3x3x32xbf16, #tpu.memory_space<vmem>>, vector<1x1x3x32xbf16>
    %30 = vector.shape_cast %29 : vector<1x1x3x32xbf16> to vector<3x32xbf16>
    %cst_45 = arith.constant dense<0.000000e+00> : vector<64x32xf32>
    %31 = tpu.matmul %28, %30, %cst_45 {dimension_numbers = #tpu.dot_dimension_numbers<[1], [0], [0], [1], [0, 0, 1, 1], [], []>} : vector<64x3xbf16>, vector<3x32xbf16>, vector<64x32xf32> -> vector<64x32xf32>
    %32 = arith.addf %25, %31 : vector<64x32xf32>
    %c0_46 = arith.constant 0 : index
    %c3 = arith.constant 3 : index
    %c0_47 = arith.constant 0 : index
    %c0_48 = arith.constant 0 : index
    %c0_49 = arith.constant 0 : index
    %33 = vector.load %arg1[%c0_46, %c3, %c0_47, %c0_48, %c0_49] : memref<1x4x9x9x3xbf16, #tpu.memory_space<vmem>>, vector<1x1x8x8x3xbf16>
    %34 = vector.shape_cast %33 : vector<1x1x8x8x3xbf16> to vector<8x8x3xbf16>
    %35 = vector.shape_cast %34 : vector<8x8x3xbf16> to vector<64x3xbf16>
    %c1_50 = arith.constant 1 : index
    %c1_51 = arith.constant 1 : index
    %c0_52 = arith.constant 0 : index
    %c0_53 = arith.constant 0 : index
    %36 = vector.load %arg2[%c1_50, %c1_51, %c0_52, %c0_53] : memref<3x3x3x32xbf16, #tpu.memory_space<vmem>>, vector<1x1x3x32xbf16>
    %37 = vector.shape_cast %36 : vector<1x1x3x32xbf16> to vector<3x32xbf16>
    %cst_54 = arith.constant dense<0.000000e+00> : vector<64x32xf32>
    %38 = tpu.matmul %35, %37, %cst_54 {dimension_numbers = #tpu.dot_dimension_numbers<[1], [0], [0], [1], [0, 0, 1, 1], [], []>} : vector<64x3xbf16>, vector<3x32xbf16>, vector<64x32xf32> -> vector<64x32xf32>
    %39 = arith.addf %32, %38 : vector<64x32xf32>
    %c0_55 = arith.constant 0 : index
    %c2_56 = arith.constant 2 : index
    %c0_57 = arith.constant 0 : index
    %c1_58 = arith.constant 1 : index
    %c0_59 = arith.constant 0 : index
    %40 = vector.load %arg1[%c0_55, %c2_56, %c0_57, %c1_58, %c0_59] : memref<1x4x9x9x3xbf16, #tpu.memory_space<vmem>>, vector<1x1x8x8x3xbf16>
    %41 = vector.shape_cast %40 : vector<1x1x8x8x3xbf16> to vector<8x8x3xbf16>
    %42 = vector.shape_cast %41 : vector<8x8x3xbf16> to vector<64x3xbf16>
    %c1_60 = arith.constant 1 : index
    %c2_61 = arith.constant 2 : index
    %c0_62 = arith.constant 0 : index
    %c0_63 = arith.constant 0 : index
    %43 = vector.load %arg2[%c1_60, %c2_61, %c0_62, %c0_63] : memref<3x3x3x32xbf16, #tpu.memory_space<vmem>>, vector<1x1x3x32xbf16>
    %44 = vector.shape_cast %43 : vector<1x1x3x32xbf16> to vector<3x32xbf16>
    %cst_64 = arith.constant dense<0.000000e+00> : vector<64x32xf32>
    %45 = tpu.matmul %42, %44, %cst_64 {dimension_numbers = #tpu.dot_dimension_numbers<[1], [0], [0], [1], [0, 0, 1, 1], [], []>} : vector<64x3xbf16>, vector<3x32xbf16>, vector<64x32xf32> -> vector<64x32xf32>
    %46 = arith.addf %39, %45 : vector<64x32xf32>
    %c0_65 = arith.constant 0 : index
    %c0_66 = arith.constant 0 : index
    %c1_67 = arith.constant 1 : index
    %c0_68 = arith.constant 0 : index
    %c0_69 = arith.constant 0 : index
    %47 = vector.load %arg1[%c0_65, %c0_66, %c1_67, %c0_68, %c0_69] : memref<1x4x9x9x3xbf16, #tpu.memory_space<vmem>>, vector<1x1x8x8x3xbf16>
    %48 = vector.shape_cast %47 : vector<1x1x8x8x3xbf16> to vector<8x8x3xbf16>
    %49 = vector.shape_cast %48 : vector<8x8x3xbf16> to vector<64x3xbf16>
    %c2_70 = arith.constant 2 : index
    %c0_71 = arith.constant 0 : index
    %c0_72 = arith.constant 0 : index
    %c0_73 = arith.constant 0 : index
    %50 = vector.load %arg2[%c2_70, %c0_71, %c0_72, %c0_73] : memref<3x3x3x32xbf16, #tpu.memory_space<vmem>>, vector<1x1x3x32xbf16>
    %51 = vector.shape_cast %50 : vector<1x1x3x32xbf16> to vector<3x32xbf16>
    %cst_74 = arith.constant dense<0.000000e+00> : vector<64x32xf32>
    %52 = tpu.matmul %49, %51, %cst_74 {dimension_numbers = #tpu.dot_dimension_numbers<[1], [0], [0], [1], [0, 0, 1, 1], [], []>} : vector<64x3xbf16>, vector<3x32xbf16>, vector<64x32xf32> -> vector<64x32xf32>
    %53 = arith.addf %46, %52 : vector<64x32xf32>
    %c0_75 = arith.constant 0 : index
    %c1_76 = arith.constant 1 : index
    %c1_77 = arith.constant 1 : index
    %c0_78 = arith.constant 0 : index
    %c0_79 = arith.constant 0 : index
    %54 = vector.load %arg1[%c0_75, %c1_76, %c1_77, %c0_78, %c0_79] : memref<1x4x9x9x3xbf16, #tpu.memory_space<vmem>>, vector<1x1x8x8x3xbf16>
    %55 = vector.shape_cast %54 : vector<1x1x8x8x3xbf16> to vector<8x8x3xbf16>
    %56 = vector.shape_cast %55 : vector<8x8x3xbf16> to vector<64x3xbf16>
    %c2_80 = arith.constant 2 : index
    %c1_81 = arith.constant 1 : index
    %c0_82 = arith.constant 0 : index
    %c0_83 = arith.constant 0 : index
    %57 = vector.load %arg2[%c2_80, %c1_81, %c0_82, %c0_83] : memref<3x3x3x32xbf16, #tpu.memory_space<vmem>>, vector<1x1x3x32xbf16>
    %58 = vector.shape_cast %57 : vector<1x1x3x32xbf16> to vector<3x32xbf16>
    %cst_84 = arith.constant dense<0.000000e+00> : vector<64x32xf32>
    %59 = tpu.matmul %56, %58, %cst_84 {dimension_numbers = #tpu.dot_dimension_numbers<[1], [0], [0], [1], [0, 0, 1, 1], [], []>} : vector<64x3xbf16>, vector<3x32xbf16>, vector<64x32xf32> -> vector<64x32xf32>
    %60 = arith.addf %53, %59 : vector<64x32xf32>
    %c0_85 = arith.constant 0 : index
    %c0_86 = arith.constant 0 : index
    %c1_87 = arith.constant 1 : index
    %c1_88 = arith.constant 1 : index
    %c0_89 = arith.constant 0 : index
    %61 = vector.load %arg1[%c0_85, %c0_86, %c1_87, %c1_88, %c0_89] : memref<1x4x9x9x3xbf16, #tpu.memory_space<vmem>>, vector<1x1x8x8x3xbf16>
    %62 = vector.shape_cast %61 : vector<1x1x8x8x3xbf16> to vector<8x8x3xbf16>
    %63 = vector.shape_cast %62 : vector<8x8x3xbf16> to vector<64x3xbf16>
    %c2_90 = arith.constant 2 : index
    %c2_91 = arith.constant 2 : index
    %c0_92 = arith.constant 0 : index
    %c0_93 = arith.constant 0 : index
    %64 = vector.load %arg2[%c2_90, %c2_91, %c0_92, %c0_93] : memref<3x3x3x32xbf16, #tpu.memory_space<vmem>>, vector<1x1x3x32xbf16>
    %65 = vector.shape_cast %64 : vector<1x1x3x32xbf16> to vector<3x32xbf16>
    %cst_94 = arith.constant dense<0.000000e+00> : vector<64x32xf32>
    %66 = tpu.matmul %63, %65, %cst_94 {dimension_numbers = #tpu.dot_dimension_numbers<[1], [0], [0], [1], [0, 0, 1, 1], [], []>} : vector<64x3xbf16>, vector<3x32xbf16>, vector<64x32xf32> -> vector<64x32xf32>
    %67 = arith.addf %60, %66 : vector<64x32xf32>
    %c0_95 = arith.constant 0 : index
    %c0_96 = arith.constant 0 : index
    %68 = vector.load %arg3[%c0_95, %c0_96] : memref<1x32xf32, #tpu.memory_space<vmem>>, vector<1x32xf32>
    %69 = vector.broadcast %68 : vector<1x32xf32> to vector<64x32xf32>
    %70 = arith.addf %67, %69 : vector<64x32xf32>
    %cst_97 = arith.constant 0.000000e+00 : f32
    %71 = vector.broadcast %cst_97 : f32 to vector<64x32xf32>
    %72 = arith.subf %71, %70 : vector<64x32xf32>
    %73 = math.exp %72 : vector<64x32xf32>
    %cst_98 = arith.constant 1.000000e+00 : f32
    %74 = vector.broadcast %cst_98 : f32 to vector<64x32xf32>
    %75 = arith.addf %74, %73 : vector<64x32xf32>
    %cst_99 = arith.constant 1.000000e+00 : f32
    %76 = vector.broadcast %cst_99 : f32 to vector<64x32xf32>
    %77 = arith.divf %76, %75 : vector<64x32xf32>
    %78 = arith.mulf %70, %77 : vector<64x32xf32>
    %79 = vector.shape_cast %78 : vector<64x32xf32> to vector<8x8x32xf32>
    %80 = arith.truncf %79 : vector<8x8x32xf32> to vector<8x8x32xbf16>
    %c0_100 = arith.constant 0 : index
    %c0_101 = arith.constant 0 : index
    %c0_102 = arith.constant 0 : index
    %c0_103 = arith.constant 0 : index
    %81 = vector.load %arg9[%c0_100, %c0_101, %c0_102, %c0_103] : memref<4x9x9x32xbf16, #tpu.memory_space<vmem>>, vector<1x8x8x32xbf16>
    %82 = vector.shape_cast %81 : vector<1x8x8x32xbf16> to vector<8x8x32xbf16>
    %83 = vector.shape_cast %80 : vector<8x8x32xbf16> to vector<1x8x8x32xbf16>
    tpu.vector_store %arg9[%c0_100, %c0_101, %c0_102, %c0_103], %83 {strides = array<i32>} : memref<4x9x9x32xbf16, #tpu.memory_space<vmem>>, vector<1x8x8x32xbf16>,
    %cst_104 = arith.constant 0.000000e+00 : f32
    %84 = vector.broadcast %cst_104 : f32 to vector<64x32xf32>
    %c0_105 = arith.constant 0 : index
    %c1_106 = arith.constant 1 : index
    %c0_107 = arith.constant 0 : index
    %c0_108 = arith.constant 0 : index
    %c0_109 = arith.constant 0 : index
    %85 = vector.load %arg1[%c0_105, %c1_106, %c0_107, %c0_108, %c0_109] : memref<1x4x9x9x3xbf16, #tpu.memory_space<vmem>>, vector<1x1x8x8x3xbf16>
    %86 = vector.shape_cast %85 : vector<1x1x8x8x3xbf16> to vector<8x8x3xbf16>
    %87 = vector.shape_cast %86 : vector<8x8x3xbf16> to vector<64x3xbf16>
    %c0_110 = arith.constant 0 : index
    %c0_111 = arith.constant 0 : index
    %c0_112 = arith.constant 0 : index
    %c0_113 = arith.constant 0 : index
    %88 = vector.load %arg2[%c0_110, %c0_111, %c0_112, %c0_113] : memref<3x3x3x32xbf16, #tpu.memory_space<vmem>>, vector<1x1x3x32xbf16>
    %89 = vector.shape_cast %88 : vector<1x1x3x32xbf16> to vector<3x32xbf16>
    %cst_114 = arith.constant dense<0.000000e+00> : vector<64x32xf32>
    %90 = tpu.matmul %87, %89, %cst_114 {dimension_numbers = #tpu.dot_dimension_numbers<[1], [0], [0], [1], [0, 0, 1, 1], [], []>} : vector<64x3xbf16>, vector<3x32xbf16>, vector<64x32xf32> -> vector<64x32xf32>
    %91 = arith.addf %84, %90 : vector<64x32xf32>
    %c0_115 = arith.constant 0 : index
    %c0_116 = arith.constant 0 : index
    %c0_117 = arith.constant 0 : index
    %c1_118 = arith.constant 1 : index
    %c0_119 = arith.constant 0 : index
    %92 = vector.load %arg1[%c0_115, %c0_116, %c0_117, %c1_118, %c0_119] : memref<1x4x9x9x3xbf16, #tpu.memory_space<vmem>>, vector<1x1x8x8x3xbf16>
    %93 = vector.shape_cast %92 : vector<1x1x8x8x3xbf16> to vector<8x8x3xbf16>
    %94 = vector.shape_cast %93 : vector<8x8x3xbf16> to vector<64x3xbf16>
    %c0_120 = arith.constant 0 : index
    %c1_121 = arith.constant 1 : index
    %c0_122 = arith.constant 0 : index
    %c0_123 = arith.constant 0 : index
    %95 = vector.load %arg2[%c0_120, %c1_121, %c0_122, %c0_123] : memref<3x3x3x32xbf16, #tpu.memory_space<vmem>>, vector<1x1x3x32xbf16>
    %96 = vector.shape_cast %95 : vector<1x1x3x32xbf16> to vector<3x32xbf16>
    %cst_124 = arith.constant dense<0.000000e+00> : vector<64x32xf32>
    %97 = tpu.matmul %94, %96, %cst_124 {dimension_numbers = #tpu.dot_dimension_numbers<[1], [0], [0], [1], [0, 0, 1, 1], [], []>} : vector<64x3xbf16>, vector<3x32xbf16>, vector<64x32xf32> -> vector<64x32xf32>
    %98 = arith.addf %91, %97 : vector<64x32xf32>
    %c0_125 = arith.constant 0 : index
    %c1_126 = arith.constant 1 : index
    %c0_127 = arith.constant 0 : index
    %c1_128 = arith.constant 1 : index
    %c0_129 = arith.constant 0 : index
    %99 = vector.load %arg1[%c0_125, %c1_126, %c0_127, %c1_128, %c0_129] : memref<1x4x9x9x3xbf16, #tpu.memory_space<vmem>>, vector<1x1x8x8x3xbf16>
    %100 = vector.shape_cast %99 : vector<1x1x8x8x3xbf16> to vector<8x8x3xbf16>
    %101 = vector.shape_cast %100 : vector<8x8x3xbf16> to vector<64x3xbf16>
    %c0_130 = arith.constant 0 : index
    %c2_131 = arith.constant 2 : index
    %c0_132 = arith.constant 0 : index
    %c0_133 = arith.constant 0 : index
    %102 = vector.load %arg2[%c0_130, %c2_131, %c0_132, %c0_133] : memref<3x3x3x32xbf16, #tpu.memory_space<vmem>>, vector<1x1x3x32xbf16>
    %103 = vector.shape_cast %102 : vector<1x1x3x32xbf16> to vector<3x32xbf16>
    %cst_134 = arith.constant dense<0.000000e+00> : vector<64x32xf32>
    %104 = tpu.matmul %101, %103, %cst_134 {dimension_numbers = #tpu.dot_dimension_numbers<[1], [0], [0], [1], [0, 0, 1, 1], [], []>} : vector<64x3xbf16>, vector<3x32xbf16>, vector<64x32xf32> -> vector<64x32xf32>
    %105 = arith.addf %98, %104 : vector<64x32xf32>
    %c0_135 = arith.constant 0 : index
    %c3_136 = arith.constant 3 : index
    %c0_137 = arith.constant 0 : index
    %c0_138 = arith.constant 0 : index
    %c0_139 = arith.constant 0 : index
    %106 = vector.load %arg1[%c0_135, %c3_136, %c0_137, %c0_138, %c0_139] : memref<1x4x9x9x3xbf16, #tpu.memory_space<vmem>>, vector<1x1x8x8x3xbf16>
    %107 = vector.shape_cast %106 : vector<1x1x8x8x3xbf16> to vector<8x8x3xbf16>
    %108 = vector.shape_cast %107 : vector<8x8x3xbf16> to vector<64x3xbf16>
    %c1_140 = arith.constant 1 : index
    %c0_141 = arith.constant 0 : index
    %c0_142 = arith.constant 0 : index
    %c0_143 = arith.constant 0 : index
    %109 = vector.load %arg2[%c1_140, %c0_141, %c0_142, %c0_143] : memref<3x3x3x32xbf16, #tpu.memory_space<vmem>>, vector<1x1x3x32xbf16>
    %110 = vector.shape_cast %109 : vector<1x1x3x32xbf16> to vector<3x32xbf16>
    %cst_144 = arith.constant dense<0.000000e+00> : vector<64x32xf32>
    %111 = tpu.matmul %108, %110, %cst_144 {dimension_numbers = #tpu.dot_dimension_numbers<[1], [0], [0], [1], [0, 0, 1, 1], [], []>} : vector<64x3xbf16>, vector<3x32xbf16>, vector<64x32xf32> -> vector<64x32xf32>
    %112 = arith.addf %105, %111 : vector<64x32xf32>
    %c0_145 = arith.constant 0 : index
    %c2_146 = arith.constant 2 : index
    %c0_147 = arith.constant 0 : index
    %c1_148 = arith.constant 1 : index
    %c0_149 = arith.constant 0 : index
    %113 = vector.load %arg1[%c0_145, %c2_146, %c0_147, %c1_148, %c0_149] : memref<1x4x9x9x3xbf16, #tpu.memory_space<vmem>>, vector<1x1x8x8x3xbf16>
    %114 = vector.shape_cast %113 : vector<1x1x8x8x3xbf16> to vector<8x8x3xbf16>
    %115 = vector.shape_cast %114 : vector<8x8x3xbf16> to vector<64x3xbf16>
    %c1_150 = arith.constant 1 : index
    %c1_151 = arith.constant 1 : index
    %c0_152 = arith.constant 0 : index
    %c0_153 = arith.constant 0 : index
    %116 = vector.load %arg2[%c1_150, %c1_151, %c0_152, %c0_153] : memref<3x3x3x32xbf16, #tpu.memory_space<vmem>>, vector<1x1x3x32xbf16>
    %117 = vector.shape_cast %116 : vector<1x1x3x32xbf16> to vector<3x32xbf16>
    %cst_154 = arith.constant dense<0.000000e+00> : vector<64x32xf32>
    %118 = tpu.matmul %115, %117, %cst_154 {dimension_numbers = #tpu.dot_dimension_numbers<[1], [0], [0], [1], [0, 0, 1, 1], [], []>} : vector<64x3xbf16>, vector<3x32xbf16>, vector<64x32xf32> -> vector<64x32xf32>
    %119 = arith.addf %112, %118 : vector<64x32xf32>
    %c0_155 = arith.constant 0 : index
    %c3_156 = arith.constant 3 : index
    %c0_157 = arith.constant 0 : index
    %c1_158 = arith.constant 1 : index
    %c0_159 = arith.constant 0 : index
    %120 = vector.load %arg1[%c0_155, %c3_156, %c0_157, %c1_158, %c0_159] : memref<1x4x9x9x3xbf16, #tpu.memory_space<vmem>>, vector<1x1x8x8x3xbf16>
    %121 = vector.shape_cast %120 : vector<1x1x8x8x3xbf16> to vector<8x8x3xbf16>
    %122 = vector.shape_cast %121 : vector<8x8x3xbf16> to vector<64x3xbf16>
    %c1_160 = arith.constant 1 : index
    %c2_161 = arith.constant 2 : index
    %c0_162 = arith.constant 0 : index
    %c0_163 = arith.constant 0 : index
    %123 = vector.load %arg2[%c1_160, %c2_161, %c0_162, %c0_163] : memref<3x3x3x32xbf16, #tpu.memory_space<vmem>>, vector<1x1x3x32xbf16>
    %124 = vector.shape_cast %123 : vector<1x1x3x32xbf16> to vector<3x32xbf16>
    %cst_164 = arith.constant dense<0.000000e+00> : vector<64x32xf32>
    %125 = tpu.matmul %122, %124, %cst_164 {dimension_numbers = #tpu.dot_dimension_numbers<[1], [0], [0], [1], [0, 0, 1, 1], [], []>} : vector<64x3xbf16>, vector<3x32xbf16>, vector<64x32xf32> -> vector<64x32xf32>
    %126 = arith.addf %119, %125 : vector<64x32xf32>
    %c0_165 = arith.constant 0 : index
    %c1_166 = arith.constant 1 : index
    %c1_167 = arith.constant 1 : index
    %c0_168 = arith.constant 0 : index
    %c0_169 = arith.constant 0 : index
    %127 = vector.load %arg1[%c0_165, %c1_166, %c1_167, %c0_168, %c0_169] : memref<1x4x9x9x3xbf16, #tpu.memory_space<vmem>>, vector<1x1x8x8x3xbf16>
    %128 = vector.shape_cast %127 : vector<1x1x8x8x3xbf16> to vector<8x8x3xbf16>
    %129 = vector.shape_cast %128 : vector<8x8x3xbf16> to vector<64x3xbf16>
    %c2_170 = arith.constant 2 : index
    %c0_171 = arith.constant 0 : index
    %c0_172 = arith.constant 0 : index
    %c0_173 = arith.constant 0 : index
    %130 = vector.load %arg2[%c2_170, %c0_171, %c0_172, %c0_173] : memref<3x3x3x32xbf16, #tpu.memory_space<vmem>>, vector<1x1x3x32xbf16>
    %131 = vector.shape_cast %130 : vector<1x1x3x32xbf16> to vector<3x32xbf16>
    %cst_174 = arith.constant dense<0.000000e+00> : vector<64x32xf32>
    %132 = tpu.matmul %129, %131, %cst_174 {dimension_numbers = #tpu.dot_dimension_numbers<[1], [0], [0], [1], [0, 0, 1, 1], [], []>} : vector<64x3xbf16>, vector<3x32xbf16>, vector<64x32xf32> -> vector<64x32xf32>
    %133 = arith.addf %126, %132 : vector<64x32xf32>
    %c0_175 = arith.constant 0 : index
    %c0_176 = arith.constant 0 : index
    %c1_177 = arith.constant 1 : index
    %c1_178 = arith.constant 1 : index
    %c0_179 = arith.constant 0 : index
    %134 = vector.load %arg1[%c0_175, %c0_176, %c1_177, %c1_178, %c0_179] : memref<1x4x9x9x3xbf16, #tpu.memory_space<vmem>>, vector<1x1x8x8x3xbf16>
    %135 = vector.shape_cast %134 : vector<1x1x8x8x3xbf16> to vector<8x8x3xbf16>
    %136 = vector.shape_cast %135 : vector<8x8x3xbf16> to vector<64x3xbf16>
    %c2_180 = arith.constant 2 : index
    %c1_181 = arith.constant 1 : index
    %c0_182 = arith.constant 0 : index
    %c0_183 = arith.constant 0 : index
    %137 = vector.load %arg2[%c2_180, %c1_181, %c0_182, %c0_183] : memref<3x3x3x32xbf16, #tpu.memory_space<vmem>>, vector<1x1x3x32xbf16>
    %138 = vector.shape_cast %137 : vector<1x1x3x32xbf16> to vector<3x32xbf16>
    %cst_184 = arith.constant dense<0.000000e+00> : vector<64x32xf32>
    %139 = tpu.matmul %136, %138, %cst_184 {dimension_numbers = #tpu.dot_dimension_numbers<[1], [0], [0], [1], [0, 0, 1, 1], [], []>} : vector<64x3xbf16>, vector<3x32xbf16>, vector<64x32xf32> -> vector<64x32xf32>
    %140 = arith.addf %133, %139 : vector<64x32xf32>
    %c0_185 = arith.constant 0 : index
    %c1_186 = arith.constant 1 : index
    %c1_187 = arith.constant 1 : index
    %c1_188 = arith.constant 1 : index
    %c0_189 = arith.constant 0 : index
    %141 = vector.load %arg1[%c0_185, %c1_186, %c1_187, %c1_188, %c0_189] : memref<1x4x9x9x3xbf16, #tpu.memory_space<vmem>>, vector<1x1x8x8x3xbf16>
    %142 = vector.shape_cast %141 : vector<1x1x8x8x3xbf16> to vector<8x8x3xbf16>
    %143 = vector.shape_cast %142 : vector<8x8x3xbf16> to vector<64x3xbf16>
    %c2_190 = arith.constant 2 : index
    %c2_191 = arith.constant 2 : index
    %c0_192 = arith.constant 0 : index
    %c0_193 = arith.constant 0 : index
    %144 = vector.load %arg2[%c2_190, %c2_191, %c0_192, %c0_193] : memref<3x3x3x32xbf16, #tpu.memory_space<vmem>>, vector<1x1x3x32xbf16>
    %145 = vector.shape_cast %144 : vector<1x1x3x32xbf16> to vector<3x32xbf16>
    %cst_194 = arith.constant dense<0.000000e+00> : vector<64x32xf32>
    %146 = tpu.matmul %143, %145, %cst_194 {dimension_numbers = #tpu.dot_dimension_numbers<[1], [0], [0], [1], [0, 0, 1, 1], [], []>} : vector<64x3xbf16>, vector<3x32xbf16>, vector<64x32xf32> -> vector<64x32xf32>
    %147 = arith.addf %140, %146 : vector<64x32xf32>
    %c0_195 = arith.constant 0 : index
    %c0_196 = arith.constant 0 : index
    %148 = vector.load %arg3[%c0_195, %c0_196] : memref<1x32xf32, #tpu.memory_space<vmem>>, vector<1x32xf32>
    %149 = vector.broadcast %148 : vector<1x32xf32> to vector<64x32xf32>
    %150 = arith.addf %147, %149 : vector<64x32xf32>
    %cst_197 = arith.constant 0.000000e+00 : f32
    %151 = vector.broadcast %cst_197 : f32 to vector<64x32xf32>
    %152 = arith.subf %151, %150 : vector<64x32xf32>
    %153 = math.exp %152 : vector<64x32xf32>
    %cst_198 = arith.constant 1.000000e+00 : f32
    %154 = vector.broadcast %cst_198 : f32 to vector<64x32xf32>
    %155 = arith.addf %154, %153 : vector<64x32xf32>
    %cst_199 = arith.constant 1.000000e+00 : f32
    %156 = vector.broadcast %cst_199 : f32 to vector<64x32xf32>
    %157 = arith.divf %156, %155 : vector<64x32xf32>
    %158 = arith.mulf %150, %157 : vector<64x32xf32>
    %159 = vector.shape_cast %158 : vector<64x32xf32> to vector<8x8x32xf32>
    %160 = arith.truncf %159 : vector<8x8x32xf32> to vector<8x8x32xbf16>
    %c1_200 = arith.constant 1 : index
    %c0_201 = arith.constant 0 : index
    %c0_202 = arith.constant 0 : index
    %c0_203 = arith.constant 0 : index
    %161 = vector.load %arg9[%c1_200, %c0_201, %c0_202, %c0_203] : memref<4x9x9x32xbf16, #tpu.memory_space<vmem>>, vector<1x8x8x32xbf16>
    %162 = vector.shape_cast %161 : vector<1x8x8x32xbf16> to vector<8x8x32xbf16>
    %163 = vector.shape_cast %160 : vector<8x8x32xbf16> to vector<1x8x8x32xbf16>
    tpu.vector_store %arg9[%c1_200, %c0_201, %c0_202, %c0_203], %163 {strides = array<i32>} : memref<4x9x9x32xbf16, #tpu.memory_space<vmem>>, vector<1x8x8x32xbf16>,
    %cst_204 = arith.constant 0.000000e+00 : f32
    %164 = vector.broadcast %cst_204 : f32 to vector<64x32xf32>
    %c0_205 = arith.constant 0 : index
    %c2_206 = arith.constant 2 : index
    %c0_207 = arith.constant 0 : index
    %c0_208 = arith.constant 0 : index
    %c0_209 = arith.constant 0 : index
    %165 = vector.load %arg1[%c0_205, %c2_206, %c0_207, %c0_208, %c0_209] : memref<1x4x9x9x3xbf16, #tpu.memory_space<vmem>>, vector<1x1x8x8x3xbf16>
    %166 = vector.shape_cast %165 : vector<1x1x8x8x3xbf16> to vector<8x8x3xbf16>
    %167 = vector.shape_cast %166 : vector<8x8x3xbf16> to vector<64x3xbf16>
    %c0_210 = arith.constant 0 : index
    %c0_211 = arith.constant 0 : index
    %c0_212 = arith.constant 0 : index
    %c0_213 = arith.constant 0 : index
    %168 = vector.load %arg2[%c0_210, %c0_211, %c0_212, %c0_213] : memref<3x3x3x32xbf16, #tpu.memory_space<vmem>>, vector<1x1x3x32xbf16>
    %169 = vector.shape_cast %168 : vector<1x1x3x32xbf16> to vector<3x32xbf16>
    %cst_214 = arith.constant dense<0.000000e+00> : vector<64x32xf32>
    %170 = tpu.matmul %167, %169, %cst_214 {dimension_numbers = #tpu.dot_dimension_numbers<[1], [0], [0], [1], [0, 0, 1, 1], [], []>} : vector<64x3xbf16>, vector<3x32xbf16>, vector<64x32xf32> -> vector<64x32xf32>
    %171 = arith.addf %164, %170 : vector<64x32xf32>
    %c0_215 = arith.constant 0 : index
    %c3_216 = arith.constant 3 : index
    %c0_217 = arith.constant 0 : index
    %c0_218 = arith.constant 0 : index
    %c0_219 = arith.constant 0 : index
    %172 = vector.load %arg1[%c0_215, %c3_216, %c0_217, %c0_218, %c0_219] : memref<1x4x9x9x3xbf16, #tpu.memory_space<vmem>>, vector<1x1x8x8x3xbf16>
    %173 = vector.shape_cast %172 : vector<1x1x8x8x3xbf16> to vector<8x8x3xbf16>
    %174 = vector.shape_cast %173 : vector<8x8x3xbf16> to vector<64x3xbf16>
    %c0_220 = arith.constant 0 : index
    %c1_221 = arith.constant 1 : index
    %c0_222 = arith.constant 0 : index
    %c0_223 = arith.constant 0 : index
    %175 = vector.load %arg2[%c0_220, %c1_221, %c0_222, %c0_223] : memref<3x3x3x32xbf16, #tpu.memory_space<vmem>>, vector<1x1x3x32xbf16>
    %176 = vector.shape_cast %175 : vector<1x1x3x32xbf16> to vector<3x32xbf16>
    %cst_224 = arith.constant dense<0.000000e+00> : vector<64x32xf32>
    %177 = tpu.matmul %174, %176, %cst_224 {dimension_numbers = #tpu.dot_dimension_numbers<[1], [0], [0], [1], [0, 0, 1, 1], [], []>} : vector<64x3xbf16>, vector<3x32xbf16>, vector<64x32xf32> -> vector<64x32xf32>
    %178 = arith.addf %171, %177 : vector<64x32xf32>
    %c0_225 = arith.constant 0 : index
    %c2_226 = arith.constant 2 : index
    %c0_227 = arith.constant 0 : index
    %c1_228 = arith.constant 1 : index
    %c0_229 = arith.constant 0 : index
    %179 = vector.load %arg1[%c0_225, %c2_226, %c0_227, %c1_228, %c0_229] : memref<1x4x9x9x3xbf16, #tpu.memory_space<vmem>>, vector<1x1x8x8x3xbf16>
    %180 = vector.shape_cast %179 : vector<1x1x8x8x3xbf16> to vector<8x8x3xbf16>
    %181 = vector.shape_cast %180 : vector<8x8x3xbf16> to vector<64x3xbf16>
    %c0_230 = arith.constant 0 : index
    %c2_231 = arith.constant 2 : index
    %c0_232 = arith.constant 0 : index
    %c0_233 = arith.constant 0 : index
    %182 = vector.load %arg2[%c0_230, %c2_231, %c0_232, %c0_233] : memref<3x3x3x32xbf16, #tpu.memory_space<vmem>>, vector<1x1x3x32xbf16>
    %183 = vector.shape_cast %182 : vector<1x1x3x32xbf16> to vector<3x32xbf16>
    %cst_234 = arith.constant dense<0.000000e+00> : vector<64x32xf32>
    %184 = tpu.matmul %181, %183, %cst_234 {dimension_numbers = #tpu.dot_dimension_numbers<[1], [0], [0], [1], [0, 0, 1, 1], [], []>} : vector<64x3xbf16>, vector<3x32xbf16>, vector<64x32xf32> -> vector<64x32xf32>
    %185 = arith.addf %178, %184 : vector<64x32xf32>
    %c0_235 = arith.constant 0 : index
    %c0_236 = arith.constant 0 : index
    %c1_237 = arith.constant 1 : index
    %c0_238 = arith.constant 0 : index
    %c0_239 = arith.constant 0 : index
    %186 = vector.load %arg1[%c0_235, %c0_236, %c1_237, %c0_238, %c0_239] : memref<1x4x9x9x3xbf16, #tpu.memory_space<vmem>>, vector<1x1x8x8x3xbf16>
    %187 = vector.shape_cast %186 : vector<1x1x8x8x3xbf16> to vector<8x8x3xbf16>
    %188 = vector.shape_cast %187 : vector<8x8x3xbf16> to vector<64x3xbf16>
    %c1_240 = arith.constant 1 : index
    %c0_241 = arith.constant 0 : index
    %c0_242 = arith.constant 0 : index
    %c0_243 = arith.constant 0 : index
    %189 = vector.load %arg2[%c1_240, %c0_241, %c0_242, %c0_243] : memref<3x3x3x32xbf16, #tpu.memory_space<vmem>>, vector<1x1x3x32xbf16>
    %190 = vector.shape_cast %189 : vector<1x1x3x32xbf16> to vector<3x32xbf16>
    %cst_244 = arith.constant dense<0.000000e+00> : vector<64x32xf32>
    %191 = tpu.matmul %188, %190, %cst_244 {dimension_numbers = #tpu.dot_dimension_numbers<[1], [0], [0], [1], [0, 0, 1, 1], [], []>} : vector<64x3xbf16>, vector<3x32xbf16>, vector<64x32xf32> -> vector<64x32xf32>
    %192 = arith.addf %185, %191 : vector<64x32xf32>
    %c0_245 = arith.constant 0 : index
    %c1_246 = arith.constant 1 : index
    %c1_247 = arith.constant 1 : index
    %c0_248 = arith.constant 0 : index
    %c0_249 = arith.constant 0 : index
    %193 = vector.load %arg1[%c0_245, %c1_246, %c1_247, %c0_248, %c0_249] : memref<1x4x9x9x3xbf16, #tpu.memory_space<vmem>>, vector<1x1x8x8x3xbf16>
    %194 = vector.shape_cast %193 : vector<1x1x8x8x3xbf16> to vector<8x8x3xbf16>
    %195 = vector.shape_cast %194 : vector<8x8x3xbf16> to vector<64x3xbf16>
    %c1_250 = arith.constant 1 : index
    %c1_251 = arith.constant 1 : index
    %c0_252 = arith.constant 0 : index
    %c0_253 = arith.constant 0 : index
    %196 = vector.load %arg2[%c1_250, %c1_251, %c0_252, %c0_253] : memref<3x3x3x32xbf16, #tpu.memory_space<vmem>>, vector<1x1x3x32xbf16>
    %197 = vector.shape_cast %196 : vector<1x1x3x32xbf16> to vector<3x32xbf16>
    %cst_254 = arith.constant dense<0.000000e+00> : vector<64x32xf32>
    %198 = tpu.matmul %195, %197, %cst_254 {dimension_numbers = #tpu.dot_dimension_numbers<[1], [0], [0], [1], [0, 0, 1, 1], [], []>} : vector<64x3xbf16>, vector<3x32xbf16>, vector<64x32xf32> -> vector<64x32xf32>
    %199 = arith.addf %192, %198 : vector<64x32xf32>
    %c0_255 = arith.constant 0 : index
    %c0_256 = arith.constant 0 : index
    %c1_257 = arith.constant 1 : index
    %c1_258 = arith.constant 1 : index
    %c0_259 = arith.constant 0 : index
    %200 = vector.load %arg1[%c0_255, %c0_256, %c1_257, %c1_258, %c0_259] : memref<1x4x9x9x3xbf16, #tpu.memory_space<vmem>>, vector<1x1x8x8x3xbf16>
    %201 = vector.shape_cast %200 : vector<1x1x8x8x3xbf16> to vector<8x8x3xbf16>
    %202 = vector.shape_cast %201 : vector<8x8x3xbf16> to vector<64x3xbf16>
    %c1_260 = arith.constant 1 : index
    %c2_261 = arith.constant 2 : index
    %c0_262 = arith.constant 0 : index
    %c0_263 = arith.constant 0 : index
    %203 = vector.load %arg2[%c1_260, %c2_261, %c0_262, %c0_263] : memref<3x3x3x32xbf16, #tpu.memory_space<vmem>>, vector<1x1x3x32xbf16>
    %204 = vector.shape_cast %203 : vector<1x1x3x32xbf16> to vector<3x32xbf16>
    %cst_264 = arith.constant dense<0.000000e+00> : vector<64x32xf32>
    %205 = tpu.matmul %202, %204, %cst_264 {dimension_numbers = #tpu.dot_dimension_numbers<[1], [0], [0], [1], [0, 0, 1, 1], [], []>} : vector<64x3xbf16>, vector<3x32xbf16>, vector<64x32xf32> -> vector<64x32xf32>
    %206 = arith.addf %199, %205 : vector<64x32xf32>
    %c0_265 = arith.constant 0 : index
    %c2_266 = arith.constant 2 : index
    %c1_267 = arith.constant 1 : index
    %c0_268 = arith.constant 0 : index
    %c0_269 = arith.constant 0 : index
    %207 = vector.load %arg1[%c0_265, %c2_266, %c1_267, %c0_268, %c0_269] : memref<1x4x9x9x3xbf16, #tpu.memory_space<vmem>>, vector<1x1x8x8x3xbf16>
    %208 = vector.shape_cast %207 : vector<1x1x8x8x3xbf16> to vector<8x8x3xbf16>
    %209 = vector.shape_cast %208 : vector<8x8x3xbf16> to vector<64x3xbf16>
    %c2_270 = arith.constant 2 : index
    %c0_271 = arith.constant 0 : index
    %c0_272 = arith.constant 0 : index
    %c0_273 = arith.constant 0 : index
    %210 = vector.load %arg2[%c2_270, %c0_271, %c0_272, %c0_273] : memref<3x3x3x32xbf16, #tpu.memory_space<vmem>>, vector<1x1x3x32xbf16>
    %211 = vector.shape_cast %210 : vector<1x1x3x32xbf16> to vector<3x32xbf16>
    %cst_274 = arith.constant dense<0.000000e+00> : vector<64x32xf32>
    %212 = tpu.matmul %209, %211, %cst_274 {dimension_numbers = #tpu.dot_dimension_numbers<[1], [0], [0], [1], [0, 0, 1, 1], [], []>} : vector<64x3xbf16>, vector<3x32xbf16>, vector<64x32xf32> -> vector<64x32xf32>
    %213 = arith.addf %206, %212 : vector<64x32xf32>
    %c0_275 = arith.constant 0 : index
    %c3_276 = arith.constant 3 : index
    %c1_277 = arith.constant 1 : index
    %c0_278 = arith.constant 0 : index
    %c0_279 = arith.constant 0 : index
    %214 = vector.load %arg1[%c0_275, %c3_276, %c1_277, %c0_278, %c0_279] : memref<1x4x9x9x3xbf16, #tpu.memory_space<vmem>>, vector<1x1x8x8x3xbf16>
    %215 = vector.shape_cast %214 : vector<1x1x8x8x3xbf16> to vector<8x8x3xbf16>
    %216 = vector.shape_cast %215 : vector<8x8x3xbf16> to vector<64x3xbf16>
    %c2_280 = arith.constant 2 : index
    %c1_281 = arith.constant 1 : index
    %c0_282 = arith.constant 0 : index
    %c0_283 = arith.constant 0 : index
    %217 = vector.load %arg2[%c2_280, %c1_281, %c0_282, %c0_283] : memref<3x3x3x32xbf16, #tpu.memory_space<vmem>>, vector<1x1x3x32xbf16>
    %218 = vector.shape_cast %217 : vector<1x1x3x32xbf16> to vector<3x32xbf16>
    %cst_284 = arith.constant dense<0.000000e+00> : vector<64x32xf32>
    %219 = tpu.matmul %216, %218, %cst_284 {dimension_numbers = #tpu.dot_dimension_numbers<[1], [0], [0], [1], [0, 0, 1, 1], [], []>} : vector<64x3xbf16>, vector<3x32xbf16>, vector<64x32xf32> -> vector<64x32xf32>
    %220 = arith.addf %213, %219 : vector<64x32xf32>
    %c0_285 = arith.constant 0 : index
    %c2_286 = arith.constant 2 : index
    %c1_287 = arith.constant 1 : index
    %c1_288 = arith.constant 1 : index
    %c0_289 = arith.constant 0 : index
    %221 = vector.load %arg1[%c0_285, %c2_286, %c1_287, %c1_288, %c0_289] : memref<1x4x9x9x3xbf16, #tpu.memory_space<vmem>>, vector<1x1x8x8x3xbf16>
    %222 = vector.shape_cast %221 : vector<1x1x8x8x3xbf16> to vector<8x8x3xbf16>
    %223 = vector.shape_cast %222 : vector<8x8x3xbf16> to vector<64x3xbf16>
    %c2_290 = arith.constant 2 : index
    %c2_291 = arith.constant 2 : index
    %c0_292 = arith.constant 0 : index
    %c0_293 = arith.constant 0 : index
    %224 = vector.load %arg2[%c2_290, %c2_291, %c0_292, %c0_293] : memref<3x3x3x32xbf16, #tpu.memory_space<vmem>>, vector<1x1x3x32xbf16>
    %225 = vector.shape_cast %224 : vector<1x1x3x32xbf16> to vector<3x32xbf16>
    %cst_294 = arith.constant dense<0.000000e+00> : vector<64x32xf32>
    %226 = tpu.matmul %223, %225, %cst_294 {dimension_numbers = #tpu.dot_dimension_numbers<[1], [0], [0], [1], [0, 0, 1, 1], [], []>} : vector<64x3xbf16>, vector<3x32xbf16>, vector<64x32xf32> -> vector<64x32xf32>
    %227 = arith.addf %220, %226 : vector<64x32xf32>
    %c0_295 = arith.constant 0 : index
    %c0_296 = arith.constant 0 : index
    %228 = vector.load %arg3[%c0_295, %c0_296] : memref<1x32xf32, #tpu.memory_space<vmem>>, vector<1x32xf32>
    %229 = vector.broadcast %228 : vector<1x32xf32> to vector<64x32xf32>
    %230 = arith.addf %227, %229 : vector<64x32xf32>
    %cst_297 = arith.constant 0.000000e+00 : f32
    %231 = vector.broadcast %cst_297 : f32 to vector<64x32xf32>
    %232 = arith.subf %231, %230 : vector<64x32xf32>
    %233 = math.exp %232 : vector<64x32xf32>
    %cst_298 = arith.constant 1.000000e+00 : f32
    %234 = vector.broadcast %cst_298 : f32 to vector<64x32xf32>
    %235 = arith.addf %234, %233 : vector<64x32xf32>
    %cst_299 = arith.constant 1.000000e+00 : f32
    %236 = vector.broadcast %cst_299 : f32 to vector<64x32xf32>
    %237 = arith.divf %236, %235 : vector<64x32xf32>
    %238 = arith.mulf %230, %237 : vector<64x32xf32>
    %239 = vector.shape_cast %238 : vector<64x32xf32> to vector<8x8x32xf32>
    %240 = arith.truncf %239 : vector<8x8x32xf32> to vector<8x8x32xbf16>
    %c2_300 = arith.constant 2 : index
    %c0_301 = arith.constant 0 : index
    %c0_302 = arith.constant 0 : index
    %c0_303 = arith.constant 0 : index
    %241 = vector.load %arg9[%c2_300, %c0_301, %c0_302, %c0_303] : memref<4x9x9x32xbf16, #tpu.memory_space<vmem>>, vector<1x8x8x32xbf16>
    %242 = vector.shape_cast %241 : vector<1x8x8x32xbf16> to vector<8x8x32xbf16>
    %243 = vector.shape_cast %240 : vector<8x8x32xbf16> to vector<1x8x8x32xbf16>
    tpu.vector_store %arg9[%c2_300, %c0_301, %c0_302, %c0_303], %243 {strides = array<i32>} : memref<4x9x9x32xbf16, #tpu.memory_space<vmem>>, vector<1x8x8x32xbf16>,
    %cst_304 = arith.constant 0.000000e+00 : f32
    %244 = vector.broadcast %cst_304 : f32 to vector<64x32xf32>
    %c0_305 = arith.constant 0 : index
    %c3_306 = arith.constant 3 : index
    %c0_307 = arith.constant 0 : index
    %c0_308 = arith.constant 0 : index
    %c0_309 = arith.constant 0 : index
    %245 = vector.load %arg1[%c0_305, %c3_306, %c0_307, %c0_308, %c0_309] : memref<1x4x9x9x3xbf16, #tpu.memory_space<vmem>>, vector<1x1x8x8x3xbf16>
    %246 = vector.shape_cast %245 : vector<1x1x8x8x3xbf16> to vector<8x8x3xbf16>
    %247 = vector.shape_cast %246 : vector<8x8x3xbf16> to vector<64x3xbf16>
    %c0_310 = arith.constant 0 : index
    %c0_311 = arith.constant 0 : index
    %c0_312 = arith.constant 0 : index
    %c0_313 = arith.constant 0 : index
    %248 = vector.load %arg2[%c0_310, %c0_311, %c0_312, %c0_313] : memref<3x3x3x32xbf16, #tpu.memory_space<vmem>>, vector<1x1x3x32xbf16>
    %249 = vector.shape_cast %248 : vector<1x1x3x32xbf16> to vector<3x32xbf16>
    %cst_314 = arith.constant dense<0.000000e+00> : vector<64x32xf32>
    %250 = tpu.matmul %247, %249, %cst_314 {dimension_numbers = #tpu.dot_dimension_numbers<[1], [0], [0], [1], [0, 0, 1, 1], [], []>} : vector<64x3xbf16>, vector<3x32xbf16>, vector<64x32xf32> -> vector<64x32xf32>
    %251 = arith.addf %244, %250 : vector<64x32xf32>
    %c0_315 = arith.constant 0 : index
    %c2_316 = arith.constant 2 : index
    %c0_317 = arith.constant 0 : index
    %c1_318 = arith.constant 1 : index
    %c0_319 = arith.constant 0 : index
    %252 = vector.load %arg1[%c0_315, %c2_316, %c0_317, %c1_318, %c0_319] : memref<1x4x9x9x3xbf16, #tpu.memory_space<vmem>>, vector<1x1x8x8x3xbf16>
    %253 = vector.shape_cast %252 : vector<1x1x8x8x3xbf16> to vector<8x8x3xbf16>
    %254 = vector.shape_cast %253 : vector<8x8x3xbf16> to vector<64x3xbf16>
    %c0_320 = arith.constant 0 : index
    %c1_321 = arith.constant 1 : index
    %c0_322 = arith.constant 0 : index
    %c0_323 = arith.constant 0 : index
    %255 = vector.load %arg2[%c0_320, %c1_321, %c0_322, %c0_323] : memref<3x3x3x32xbf16, #tpu.memory_space<vmem>>, vector<1x1x3x32xbf16>
    %256 = vector.shape_cast %255 : vector<1x1x3x32xbf16> to vector<3x32xbf16>
    %cst_324 = arith.constant dense<0.000000e+00> : vector<64x32xf32>
    %257 = tpu.matmul %254, %256, %cst_324 {dimension_numbers = #tpu.dot_dimension_numbers<[1], [0], [0], [1], [0, 0, 1, 1], [], []>} : vector<64x3xbf16>, vector<3x32xbf16>, vector<64x32xf32> -> vector<64x32xf32>
    %258 = arith.addf %251, %257 : vector<64x32xf32>
    %c0_325 = arith.constant 0 : index
    %c3_326 = arith.constant 3 : index
    %c0_327 = arith.constant 0 : index
    %c1_328 = arith.constant 1 : index
    %c0_329 = arith.constant 0 : index
    %259 = vector.load %arg1[%c0_325, %c3_326, %c0_327, %c1_328, %c0_329] : memref<1x4x9x9x3xbf16, #tpu.memory_space<vmem>>, vector<1x1x8x8x3xbf16>
    %260 = vector.shape_cast %259 : vector<1x1x8x8x3xbf16> to vector<8x8x3xbf16>
    %261 = vector.shape_cast %260 : vector<8x8x3xbf16> to vector<64x3xbf16>
    %c0_330 = arith.constant 0 : index
    %c2_331 = arith.constant 2 : index
    %c0_332 = arith.constant 0 : index
    %c0_333 = arith.constant 0 : index
    %262 = vector.load %arg2[%c0_330, %c2_331, %c0_332, %c0_333] : memref<3x3x3x32xbf16, #tpu.memory_space<vmem>>, vector<1x1x3x32xbf16>
    %263 = vector.shape_cast %262 : vector<1x1x3x32xbf16> to vector<3x32xbf16>
    %cst_334 = arith.constant dense<0.000000e+00> : vector<64x32xf32>
    %264 = tpu.matmul %261, %263, %cst_334 {dimension_numbers = #tpu.dot_dimension_numbers<[1], [0], [0], [1], [0, 0, 1, 1], [], []>} : vector<64x3xbf16>, vector<3x32xbf16>, vector<64x32xf32> -> vector<64x32xf32>
    %265 = arith.addf %258, %264 : vector<64x32xf32>
    %c0_335 = arith.constant 0 : index
    %c1_336 = arith.constant 1 : index
    %c1_337 = arith.constant 1 : index
    %c0_338 = arith.constant 0 : index
    %c0_339 = arith.constant 0 : index
    %266 = vector.load %arg1[%c0_335, %c1_336, %c1_337, %c0_338, %c0_339] : memref<1x4x9x9x3xbf16, #tpu.memory_space<vmem>>, vector<1x1x8x8x3xbf16>
    %267 = vector.shape_cast %266 : vector<1x1x8x8x3xbf16> to vector<8x8x3xbf16>
    %268 = vector.shape_cast %267 : vector<8x8x3xbf16> to vector<64x3xbf16>
    %c1_340 = arith.constant 1 : index
    %c0_341 = arith.constant 0 : index
    %c0_342 = arith.constant 0 : index
    %c0_343 = arith.constant 0 : index
    %269 = vector.load %arg2[%c1_340, %c0_341, %c0_342, %c0_343] : memref<3x3x3x32xbf16, #tpu.memory_space<vmem>>, vector<1x1x3x32xbf16>
    %270 = vector.shape_cast %269 : vector<1x1x3x32xbf16> to vector<3x32xbf16>
    %cst_344 = arith.constant dense<0.000000e+00> : vector<64x32xf32>
    %271 = tpu.matmul %268, %270, %cst_344 {dimension_numbers = #tpu.dot_dimension_numbers<[1], [0], [0], [1], [0, 0, 1, 1], [], []>} : vector<64x3xbf16>, vector<3x32xbf16>, vector<64x32xf32> -> vector<64x32xf32>
    %272 = arith.addf %265, %271 : vector<64x32xf32>
    %c0_345 = arith.constant 0 : index
    %c0_346 = arith.constant 0 : index
    %c1_347 = arith.constant 1 : index
    %c1_348 = arith.constant 1 : index
    %c0_349 = arith.constant 0 : index
    %273 = vector.load %arg1[%c0_345, %c0_346, %c1_347, %c1_348, %c0_349] : memref<1x4x9x9x3xbf16, #tpu.memory_space<vmem>>, vector<1x1x8x8x3xbf16>
    %274 = vector.shape_cast %273 : vector<1x1x8x8x3xbf16> to vector<8x8x3xbf16>
    %275 = vector.shape_cast %274 : vector<8x8x3xbf16> to vector<64x3xbf16>
    %c1_350 = arith.constant 1 : index
    %c1_351 = arith.constant 1 : index
    %c0_352 = arith.constant 0 : index
    %c0_353 = arith.constant 0 : index
    %276 = vector.load %arg2[%c1_350, %c1_351, %c0_352, %c0_353] : memref<3x3x3x32xbf16, #tpu.memory_space<vmem>>, vector<1x1x3x32xbf16>
    %277 = vector.shape_cast %276 : vector<1x1x3x32xbf16> to vector<3x32xbf16>
    %cst_354 = arith.constant dense<0.000000e+00> : vector<64x32xf32>
    %278 = tpu.matmul %275, %277, %cst_354 {dimension_numbers = #tpu.dot_dimension_numbers<[1], [0], [0], [1], [0, 0, 1, 1], [], []>} : vector<64x3xbf16>, vector<3x32xbf16>, vector<64x32xf32> -> vector<64x32xf32>
    %279 = arith.addf %272, %278 : vector<64x32xf32>
    %c0_355 = arith.constant 0 : index
    %c1_356 = arith.constant 1 : index
    %c1_357 = arith.constant 1 : index
    %c1_358 = arith.constant 1 : index
    %c0_359 = arith.constant 0 : index
    %280 = vector.load %arg1[%c0_355, %c1_356, %c1_357, %c1_358, %c0_359] : memref<1x4x9x9x3xbf16, #tpu.memory_space<vmem>>, vector<1x1x8x8x3xbf16>
    %281 = vector.shape_cast %280 : vector<1x1x8x8x3xbf16> to vector<8x8x3xbf16>
    %282 = vector.shape_cast %281 : vector<8x8x3xbf16> to vector<64x3xbf16>
    %c1_360 = arith.constant 1 : index
    %c2_361 = arith.constant 2 : index
    %c0_362 = arith.constant 0 : index
    %c0_363 = arith.constant 0 : index
    %283 = vector.load %arg2[%c1_360, %c2_361, %c0_362, %c0_363] : memref<3x3x3x32xbf16, #tpu.memory_space<vmem>>, vector<1x1x3x32xbf16>
    %284 = vector.shape_cast %283 : vector<1x1x3x32xbf16> to vector<3x32xbf16>
    %cst_364 = arith.constant dense<0.000000e+00> : vector<64x32xf32>
    %285 = tpu.matmul %282, %284, %cst_364 {dimension_numbers = #tpu.dot_dimension_numbers<[1], [0], [0], [1], [0, 0, 1, 1], [], []>} : vector<64x3xbf16>, vector<3x32xbf16>, vector<64x32xf32> -> vector<64x32xf32>
    %286 = arith.addf %279, %285 : vector<64x32xf32>
    %c0_365 = arith.constant 0 : index
    %c3_366 = arith.constant 3 : index
    %c1_367 = arith.constant 1 : index
    %c0_368 = arith.constant 0 : index
    %c0_369 = arith.constant 0 : index
    %287 = vector.load %arg1[%c0_365, %c3_366, %c1_367, %c0_368, %c0_369] : memref<1x4x9x9x3xbf16, #tpu.memory_space<vmem>>, vector<1x1x8x8x3xbf16>
    %288 = vector.shape_cast %287 : vector<1x1x8x8x3xbf16> to vector<8x8x3xbf16>
    %289 = vector.shape_cast %288 : vector<8x8x3xbf16> to vector<64x3xbf16>
    %c2_370 = arith.constant 2 : index
    %c0_371 = arith.constant 0 : index
    %c0_372 = arith.constant 0 : index
    %c0_373 = arith.constant 0 : index
    %290 = vector.load %arg2[%c2_370, %c0_371, %c0_372, %c0_373] : memref<3x3x3x32xbf16, #tpu.memory_space<vmem>>, vector<1x1x3x32xbf16>
    %291 = vector.shape_cast %290 : vector<1x1x3x32xbf16> to vector<3x32xbf16>
    %cst_374 = arith.constant dense<0.000000e+00> : vector<64x32xf32>
    %292 = tpu.matmul %289, %291, %cst_374 {dimension_numbers = #tpu.dot_dimension_numbers<[1], [0], [0], [1], [0, 0, 1, 1], [], []>} : vector<64x3xbf16>, vector<3x32xbf16>, vector<64x32xf32> -> vector<64x32xf32>
    %293 = arith.addf %286, %292 : vector<64x32xf32>
    %c0_375 = arith.constant 0 : index
    %c2_376 = arith.constant 2 : index
    %c1_377 = arith.constant 1 : index
    %c1_378 = arith.constant 1 : index
    %c0_379 = arith.constant 0 : index
    %294 = vector.load %arg1[%c0_375, %c2_376, %c1_377, %c1_378, %c0_379] : memref<1x4x9x9x3xbf16, #tpu.memory_space<vmem>>, vector<1x1x8x8x3xbf16>
    %295 = vector.shape_cast %294 : vector<1x1x8x8x3xbf16> to vector<8x8x3xbf16>
    %296 = vector.shape_cast %295 : vector<8x8x3xbf16> to vector<64x3xbf16>
    %c2_380 = arith.constant 2 : index
    %c1_381 = arith.constant 1 : index
    %c0_382 = arith.constant 0 : index
    %c0_383 = arith.constant 0 : index
    %297 = vector.load %arg2[%c2_380, %c1_381, %c0_382, %c0_383] : memref<3x3x3x32xbf16, #tpu.memory_space<vmem>>, vector<1x1x3x32xbf16>
    %298 = vector.shape_cast %297 : vector<1x1x3x32xbf16> to vector<3x32xbf16>
    %cst_384 = arith.constant dense<0.000000e+00> : vector<64x32xf32>
    %299 = tpu.matmul %296, %298, %cst_384 {dimension_numbers = #tpu.dot_dimension_numbers<[1], [0], [0], [1], [0, 0, 1, 1], [], []>} : vector<64x3xbf16>, vector<3x32xbf16>, vector<64x32xf32> -> vector<64x32xf32>
    %300 = arith.addf %293, %299 : vector<64x32xf32>
    %c0_385 = arith.constant 0 : index
    %c3_386 = arith.constant 3 : index
    %c1_387 = arith.constant 1 : index
    %c1_388 = arith.constant 1 : index
    %c0_389 = arith.constant 0 : index
    %301 = vector.load %arg1[%c0_385, %c3_386, %c1_387, %c1_388, %c0_389] : memref<1x4x9x9x3xbf16, #tpu.memory_space<vmem>>, vector<1x1x8x8x3xbf16>
    %302 = vector.shape_cast %301 : vector<1x1x8x8x3xbf16> to vector<8x8x3xbf16>
    %303 = vector.shape_cast %302 : vector<8x8x3xbf16> to vector<64x3xbf16>
    %c2_390 = arith.constant 2 : index
    %c2_391 = arith.constant 2 : index
    %c0_392 = arith.constant 0 : index
    %c0_393 = arith.constant 0 : index
    %304 = vector.load %arg2[%c2_390, %c2_391, %c0_392, %c0_393] : memref<3x3x3x32xbf16, #tpu.memory_space<vmem>>, vector<1x1x3x32xbf16>
    %305 = vector.shape_cast %304 : vector<1x1x3x32xbf16> to vector<3x32xbf16>
    %cst_394 = arith.constant dense<0.000000e+00> : vector<64x32xf32>
    %306 = tpu.matmul %303, %305, %cst_394 {dimension_numbers = #tpu.dot_dimension_numbers<[1], [0], [0], [1], [0, 0, 1, 1], [], []>} : vector<64x3xbf16>, vector<3x32xbf16>, vector<64x32xf32> -> vector<64x32xf32>
    %307 = arith.addf %300, %306 : vector<64x32xf32>
    %c0_395 = arith.constant 0 : index
    %c0_396 = arith.constant 0 : index
    %308 = vector.load %arg3[%c0_395, %c0_396] : memref<1x32xf32, #tpu.memory_space<vmem>>, vector<1x32xf32>
    %309 = vector.broadcast %308 : vector<1x32xf32> to vector<64x32xf32>
    %310 = arith.addf %307, %309 : vector<64x32xf32>
    %cst_397 = arith.constant 0.000000e+00 : f32
    %311 = vector.broadcast %cst_397 : f32 to vector<64x32xf32>
    %312 = arith.subf %311, %310 : vector<64x32xf32>
    %313 = math.exp %312 : vector<64x32xf32>
    %cst_398 = arith.constant 1.000000e+00 : f32
    %314 = vector.broadcast %cst_398 : f32 to vector<64x32xf32>
    %315 = arith.addf %314, %313 : vector<64x32xf32>
    %cst_399 = arith.constant 1.000000e+00 : f32
    %316 = vector.broadcast %cst_399 : f32 to vector<64x32xf32>
    %317 = arith.divf %316, %315 : vector<64x32xf32>
    %318 = arith.mulf %310, %317 : vector<64x32xf32>
    %319 = vector.shape_cast %318 : vector<64x32xf32> to vector<8x8x32xf32>
    %320 = arith.truncf %319 : vector<8x8x32xf32> to vector<8x8x32xbf16>
    %c3_400 = arith.constant 3 : index
    %c0_401 = arith.constant 0 : index
    %c0_402 = arith.constant 0 : index
    %c0_403 = arith.constant 0 : index
    %321 = vector.load %arg9[%c3_400, %c0_401, %c0_402, %c0_403] : memref<4x9x9x32xbf16, #tpu.memory_space<vmem>>, vector<1x8x8x32xbf16>
    %322 = vector.shape_cast %321 : vector<1x8x8x32xbf16> to vector<8x8x32xbf16>
    %323 = vector.shape_cast %320 : vector<8x8x32xbf16> to vector<1x8x8x32xbf16>
    tpu.vector_store %arg9[%c3_400, %c0_401, %c0_402, %c0_403], %323 {strides = array<i32>} : memref<4x9x9x32xbf16, #tpu.memory_space<vmem>>, vector<1x8x8x32xbf16>,
    %cst_404 = arith.constant 0.000000e+00 : f32
    %324 = vector.broadcast %cst_404 : f32 to vector<64x32xf32>
    %c0_405 = arith.constant 0 : index
    %c0_406 = arith.constant 0 : index
    %c0_407 = arith.constant 0 : index
    %c0_408 = arith.constant 0 : index
    %325 = vector.load %arg9[%c0_405, %c0_406, %c0_407, %c0_408] : memref<4x9x9x32xbf16, #tpu.memory_space<vmem>>, vector<1x8x8x32xbf16>
    %326 = vector.shape_cast %325 : vector<1x8x8x32xbf16> to vector<8x8x32xbf16>
    %327 = vector.shape_cast %326 : vector<8x8x32xbf16> to vector<64x32xbf16>
    %c0_409 = arith.constant 0 : index
    %c0_410 = arith.constant 0 : index
    %c0_411 = arith.constant 0 : index
    %c0_412 = arith.constant 0 : index
    %328 = vector.load %arg4[%c0_409, %c0_410, %c0_411, %c0_412] : memref<3x3x32x32xbf16, #tpu.memory_space<vmem>>, vector<1x1x32x32xbf16>
    %329 = vector.shape_cast %328 : vector<1x1x32x32xbf16> to vector<32x32xbf16>
    %cst_413 = arith.constant dense<0.000000e+00> : vector<64x32xf32>
    %330 = tpu.matmul %327, %329, %cst_413 {dimension_numbers = #tpu.dot_dimension_numbers<[1], [0], [0], [1], [0, 0, 1, 1], [], []>} : vector<64x32xbf16>, vector<32x32xbf16>, vector<64x32xf32> -> vector<64x32xf32>
    %331 = arith.addf %324, %330 : vector<64x32xf32>
    %c1_414 = arith.constant 1 : index
    %c0_415 = arith.constant 0 : index
    %c0_416 = arith.constant 0 : index
    %c0_417 = arith.constant 0 : index
    %332 = vector.load %arg9[%c1_414, %c0_415, %c0_416, %c0_417] : memref<4x9x9x32xbf16, #tpu.memory_space<vmem>>, vector<1x8x8x32xbf16>
    %333 = vector.shape_cast %332 : vector<1x8x8x32xbf16> to vector<8x8x32xbf16>
    %334 = vector.shape_cast %333 : vector<8x8x32xbf16> to vector<64x32xbf16>
    %c0_418 = arith.constant 0 : index
    %c1_419 = arith.constant 1 : index
    %c0_420 = arith.constant 0 : index
    %c0_421 = arith.constant 0 : index
    %335 = vector.load %arg4[%c0_418, %c1_419, %c0_420, %c0_421] : memref<3x3x32x32xbf16, #tpu.memory_space<vmem>>, vector<1x1x32x32xbf16>
    %336 = vector.shape_cast %335 : vector<1x1x32x32xbf16> to vector<32x32xbf16>
    %cst_422 = arith.constant dense<0.000000e+00> : vector<64x32xf32>
    %337 = tpu.matmul %334, %336, %cst_422 {dimension_numbers = #tpu.dot_dimension_numbers<[1], [0], [0], [1], [0, 0, 1, 1], [], []>} : vector<64x32xbf16>, vector<32x32xbf16>, vector<64x32xf32> -> vector<64x32xf32>
    %338 = arith.addf %331, %337 : vector<64x32xf32>
    %c0_423 = arith.constant 0 : index
    %c0_424 = arith.constant 0 : index
    %c1_425 = arith.constant 1 : index
    %c0_426 = arith.constant 0 : index
    %339 = vector.load %arg9[%c0_423, %c0_424, %c1_425, %c0_426] : memref<4x9x9x32xbf16, #tpu.memory_space<vmem>>, vector<1x8x8x32xbf16>
    %340 = vector.shape_cast %339 : vector<1x8x8x32xbf16> to vector<8x8x32xbf16>
    %341 = vector.shape_cast %340 : vector<8x8x32xbf16> to vector<64x32xbf16>
    %c0_427 = arith.constant 0 : index
    %c2_428 = arith.constant 2 : index
    %c0_429 = arith.constant 0 : index
    %c0_430 = arith.constant 0 : index
    %342 = vector.load %arg4[%c0_427, %c2_428, %c0_429, %c0_430] : memref<3x3x32x32xbf16, #tpu.memory_space<vmem>>, vector<1x1x32x32xbf16>
    %343 = vector.shape_cast %342 : vector<1x1x32x32xbf16> to vector<32x32xbf16>
    %cst_431 = arith.constant dense<0.000000e+00> : vector<64x32xf32>
    %344 = tpu.matmul %341, %343, %cst_431 {dimension_numbers = #tpu.dot_dimension_numbers<[1], [0], [0], [1], [0, 0, 1, 1], [], []>} : vector<64x32xbf16>, vector<32x32xbf16>, vector<64x32xf32> -> vector<64x32xf32>
    %345 = arith.addf %338, %344 : vector<64x32xf32>
    %c2_432 = arith.constant 2 : index
    %c0_433 = arith.constant 0 : index
    %c0_434 = arith.constant 0 : index
    %c0_435 = arith.constant 0 : index
    %346 = vector.load %arg9[%c2_432, %c0_433, %c0_434, %c0_435] : memref<4x9x9x32xbf16, #tpu.memory_space<vmem>>, vector<1x8x8x32xbf16>
    %347 = vector.shape_cast %346 : vector<1x8x8x32xbf16> to vector<8x8x32xbf16>
    %348 = vector.shape_cast %347 : vector<8x8x32xbf16> to vector<64x32xbf16>
    %c1_436 = arith.constant 1 : index
    %c0_437 = arith.constant 0 : index
    %c0_438 = arith.constant 0 : index
    %c0_439 = arith.constant 0 : index
    %349 = vector.load %arg4[%c1_436, %c0_437, %c0_438, %c0_439] : memref<3x3x32x32xbf16, #tpu.memory_space<vmem>>, vector<1x1x32x32xbf16>
    %350 = vector.shape_cast %349 : vector<1x1x32x32xbf16> to vector<32x32xbf16>
    %cst_440 = arith.constant dense<0.000000e+00> : vector<64x32xf32>
    %351 = tpu.matmul %348, %350, %cst_440 {dimension_numbers = #tpu.dot_dimension_numbers<[1], [0], [0], [1], [0, 0, 1, 1], [], []>} : vector<64x32xbf16>, vector<32x32xbf16>, vector<64x32xf32> -> vector<64x32xf32>
    %352 = arith.addf %345, %351 : vector<64x32xf32>
    %c3_441 = arith.constant 3 : index
    %c0_442 = arith.constant 0 : index
    %c0_443 = arith.constant 0 : index
    %c0_444 = arith.constant 0 : index
    %353 = vector.load %arg9[%c3_441, %c0_442, %c0_443, %c0_444] : memref<4x9x9x32xbf16, #tpu.memory_space<vmem>>, vector<1x8x8x32xbf16>
    %354 = vector.shape_cast %353 : vector<1x8x8x32xbf16> to vector<8x8x32xbf16>
    %355 = vector.shape_cast %354 : vector<8x8x32xbf16> to vector<64x32xbf16>
    %c1_445 = arith.constant 1 : index
    %c1_446 = arith.constant 1 : index
    %c0_447 = arith.constant 0 : index
    %c0_448 = arith.constant 0 : index
    %356 = vector.load %arg4[%c1_445, %c1_446, %c0_447, %c0_448] : memref<3x3x32x32xbf16, #tpu.memory_space<vmem>>, vector<1x1x32x32xbf16>
    %357 = vector.shape_cast %356 : vector<1x1x32x32xbf16> to vector<32x32xbf16>
    %cst_449 = arith.constant dense<0.000000e+00> : vector<64x32xf32>
    %358 = tpu.matmul %355, %357, %cst_449 {dimension_numbers = #tpu.dot_dimension_numbers<[1], [0], [0], [1], [0, 0, 1, 1], [], []>} : vector<64x32xbf16>, vector<32x32xbf16>, vector<64x32xf32> -> vector<64x32xf32>
    %359 = arith.addf %352, %358 : vector<64x32xf32>
    %c2_450 = arith.constant 2 : index
    %c0_451 = arith.constant 0 : index
    %c1_452 = arith.constant 1 : index
    %c0_453 = arith.constant 0 : index
    %360 = vector.load %arg9[%c2_450, %c0_451, %c1_452, %c0_453] : memref<4x9x9x32xbf16, #tpu.memory_space<vmem>>, vector<1x8x8x32xbf16>
    %361 = vector.shape_cast %360 : vector<1x8x8x32xbf16> to vector<8x8x32xbf16>
    %362 = vector.shape_cast %361 : vector<8x8x32xbf16> to vector<64x32xbf16>
    %c1_454 = arith.constant 1 : index
    %c2_455 = arith.constant 2 : index
    %c0_456 = arith.constant 0 : index
    %c0_457 = arith.constant 0 : index
    %363 = vector.load %arg4[%c1_454, %c2_455, %c0_456, %c0_457] : memref<3x3x32x32xbf16, #tpu.memory_space<vmem>>, vector<1x1x32x32xbf16>
    %364 = vector.shape_cast %363 : vector<1x1x32x32xbf16> to vector<32x32xbf16>
    %cst_458 = arith.constant dense<0.000000e+00> : vector<64x32xf32>
    %365 = tpu.matmul %362, %364, %cst_458 {dimension_numbers = #tpu.dot_dimension_numbers<[1], [0], [0], [1], [0, 0, 1, 1], [], []>} : vector<64x32xbf16>, vector<32x32xbf16>, vector<64x32xf32> -> vector<64x32xf32>
    %366 = arith.addf %359, %365 : vector<64x32xf32>
    %c0_459 = arith.constant 0 : index
    %c1_460 = arith.constant 1 : index
    %c0_461 = arith.constant 0 : index
    %c0_462 = arith.constant 0 : index
    %367 = vector.load %arg9[%c0_459, %c1_460, %c0_461, %c0_462] : memref<4x9x9x32xbf16, #tpu.memory_space<vmem>>, vector<1x8x8x32xbf16>
    %368 = vector.shape_cast %367 : vector<1x8x8x32xbf16> to vector<8x8x32xbf16>
    %369 = vector.shape_cast %368 : vector<8x8x32xbf16> to vector<64x32xbf16>
    %c2_463 = arith.constant 2 : index
    %c0_464 = arith.constant 0 : index
    %c0_465 = arith.constant 0 : index
    %c0_466 = arith.constant 0 : index
    %370 = vector.load %arg4[%c2_463, %c0_464, %c0_465, %c0_466] : memref<3x3x32x32xbf16, #tpu.memory_space<vmem>>, vector<1x1x32x32xbf16>
    %371 = vector.shape_cast %370 : vector<1x1x32x32xbf16> to vector<32x32xbf16>
    %cst_467 = arith.constant dense<0.000000e+00> : vector<64x32xf32>
    %372 = tpu.matmul %369, %371, %cst_467 {dimension_numbers = #tpu.dot_dimension_numbers<[1], [0], [0], [1], [0, 0, 1, 1], [], []>} : vector<64x32xbf16>, vector<32x32xbf16>, vector<64x32xf32> -> vector<64x32xf32>
    %373 = arith.addf %366, %372 : vector<64x32xf32>
    %c1_468 = arith.constant 1 : index
    %c1_469 = arith.constant 1 : index
    %c0_470 = arith.constant 0 : index
    %c0_471 = arith.constant 0 : index
    %374 = vector.load %arg9[%c1_468, %c1_469, %c0_470, %c0_471] : memref<4x9x9x32xbf16, #tpu.memory_space<vmem>>, vector<1x8x8x32xbf16>
    %375 = vector.shape_cast %374 : vector<1x8x8x32xbf16> to vector<8x8x32xbf16>
    %376 = vector.shape_cast %375 : vector<8x8x32xbf16> to vector<64x32xbf16>
    %c2_472 = arith.constant 2 : index
    %c1_473 = arith.constant 1 : index
    %c0_474 = arith.constant 0 : index
    %c0_475 = arith.constant 0 : index
    %377 = vector.load %arg4[%c2_472, %c1_473, %c0_474, %c0_475] : memref<3x3x32x32xbf16, #tpu.memory_space<vmem>>, vector<1x1x32x32xbf16>
    %378 = vector.shape_cast %377 : vector<1x1x32x32xbf16> to vector<32x32xbf16>
    %cst_476 = arith.constant dense<0.000000e+00> : vector<64x32xf32>
    %379 = tpu.matmul %376, %378, %cst_476 {dimension_numbers = #tpu.dot_dimension_numbers<[1], [0], [0], [1], [0, 0, 1, 1], [], []>} : vector<64x32xbf16>, vector<32x32xbf16>, vector<64x32xf32> -> vector<64x32xf32>
    %380 = arith.addf %373, %379 : vector<64x32xf32>
    %c0_477 = arith.constant 0 : index
    %c1_478 = arith.constant 1 : index
    %c1_479 = arith.constant 1 : index
    %c0_480 = arith.constant 0 : index
    %381 = vector.load %arg9[%c0_477, %c1_478, %c1_479, %c0_480] : memref<4x9x9x32xbf16, #tpu.memory_space<vmem>>, vector<1x8x8x32xbf16>
    %382 = vector.shape_cast %381 : vector<1x8x8x32xbf16> to vector<8x8x32xbf16>
    %383 = vector.shape_cast %382 : vector<8x8x32xbf16> to vector<64x32xbf16>
    %c2_481 = arith.constant 2 : index
    %c2_482 = arith.constant 2 : index
    %c0_483 = arith.constant 0 : index
    %c0_484 = arith.constant 0 : index
    %384 = vector.load %arg4[%c2_481, %c2_482, %c0_483, %c0_484] : memref<3x3x32x32xbf16, #tpu.memory_space<vmem>>, vector<1x1x32x32xbf16>
    %385 = vector.shape_cast %384 : vector<1x1x32x32xbf16> to vector<32x32xbf16>
    %cst_485 = arith.constant dense<0.000000e+00> : vector<64x32xf32>
    %386 = tpu.matmul %383, %385, %cst_485 {dimension_numbers = #tpu.dot_dimension_numbers<[1], [0], [0], [1], [0, 0, 1, 1], [], []>} : vector<64x32xbf16>, vector<32x32xbf16>, vector<64x32xf32> -> vector<64x32xf32>
    %387 = arith.addf %380, %386 : vector<64x32xf32>
    %c0_486 = arith.constant 0 : index
    %c0_487 = arith.constant 0 : index
    %388 = vector.load %arg5[%c0_486, %c0_487] : memref<1x32xf32, #tpu.memory_space<vmem>>, vector<1x32xf32>
    %389 = vector.broadcast %388 : vector<1x32xf32> to vector<64x32xf32>
    %390 = arith.addf %387, %389 : vector<64x32xf32>
    %cst_488 = arith.constant 0.000000e+00 : f32
    %391 = vector.broadcast %cst_488 : f32 to vector<64x32xf32>
    %392 = arith.subf %391, %390 : vector<64x32xf32>
    %393 = math.exp %392 : vector<64x32xf32>
    %cst_489 = arith.constant 1.000000e+00 : f32
    %394 = vector.broadcast %cst_489 : f32 to vector<64x32xf32>
    %395 = arith.addf %394, %393 : vector<64x32xf32>
    %cst_490 = arith.constant 1.000000e+00 : f32
    %396 = vector.broadcast %cst_490 : f32 to vector<64x32xf32>
    %397 = arith.divf %396, %395 : vector<64x32xf32>
    %398 = arith.mulf %390, %397 : vector<64x32xf32>
    %399 = vector.shape_cast %398 : vector<64x32xf32> to vector<8x8x32xf32>
    %400 = arith.truncf %399 : vector<8x8x32xf32> to vector<8x8x32xbf16>
    %c1_491 = arith.constant 1 : index
    %c1_492 = arith.constant 1 : index
    %c0_493 = arith.constant 0 : index
    %401 = vector.load %arg10[%c1_491, %c1_492, %c0_493] : memref<10x10x32xbf16, #tpu.memory_space<vmem>>, vector<8x8x32xbf16>
    tpu.vector_store %arg10[%c1_491, %c1_492, %c0_493], %400 {strides = array<i32>} : memref<10x10x32xbf16, #tpu.memory_space<vmem>>, vector<8x8x32xbf16>,
    %cst_494 = arith.constant 0.000000e+00 : f32
    %402 = vector.broadcast %cst_494 : f32 to vector<64x8xf32>
    %c0_495 = arith.constant 0 : index
    %c0_496 = arith.constant 0 : index
    %c0_497 = arith.constant 0 : index
    %403 = vector.load %arg10[%c0_495, %c0_496, %c0_497] : memref<10x10x32xbf16, #tpu.memory_space<vmem>>, vector<8x8x32xbf16>
    %404 = vector.shape_cast %403 : vector<8x8x32xbf16> to vector<64x32xbf16>
    %c0_498 = arith.constant 0 : index
    %c0_499 = arith.constant 0 : index
    %c0_500 = arith.constant 0 : index
    %c0_501 = arith.constant 0 : index
    %405 = vector.load %arg6[%c0_498, %c0_499, %c0_500, %c0_501] : memref<3x3x32x8xbf16, #tpu.memory_space<vmem>>, vector<1x1x32x8xbf16>
    %406 = vector.shape_cast %405 : vector<1x1x32x8xbf16> to vector<32x8xbf16>
    %cst_502 = arith.constant dense<0.000000e+00> : vector<64x8xf32>
    %407 = tpu.matmul %404, %406, %cst_502 {dimension_numbers = #tpu.dot_dimension_numbers<[1], [0], [0], [1], [0, 0, 1, 1], [], []>} : vector<64x32xbf16>, vector<32x8xbf16>, vector<64x8xf32> -> vector<64x8xf32>
    %408 = arith.addf %402, %407 : vector<64x8xf32>
    %c0_503 = arith.constant 0 : index
    %c1_504 = arith.constant 1 : index
    %c0_505 = arith.constant 0 : index
    %409 = vector.load %arg10[%c0_503, %c1_504, %c0_505] : memref<10x10x32xbf16, #tpu.memory_space<vmem>>, vector<8x8x32xbf16>
    %410 = vector.shape_cast %409 : vector<8x8x32xbf16> to vector<64x32xbf16>
    %c0_506 = arith.constant 0 : index
    %c1_507 = arith.constant 1 : index
    %c0_508 = arith.constant 0 : index
    %c0_509 = arith.constant 0 : index
    %411 = vector.load %arg6[%c0_506, %c1_507, %c0_508, %c0_509] : memref<3x3x32x8xbf16, #tpu.memory_space<vmem>>, vector<1x1x32x8xbf16>
    %412 = vector.shape_cast %411 : vector<1x1x32x8xbf16> to vector<32x8xbf16>
    %cst_510 = arith.constant dense<0.000000e+00> : vector<64x8xf32>
    %413 = tpu.matmul %410, %412, %cst_510 {dimension_numbers = #tpu.dot_dimension_numbers<[1], [0], [0], [1], [0, 0, 1, 1], [], []>} : vector<64x32xbf16>, vector<32x8xbf16>, vector<64x8xf32> -> vector<64x8xf32>
    %414 = arith.addf %408, %413 : vector<64x8xf32>
    %c0_511 = arith.constant 0 : index
    %c2_512 = arith.constant 2 : index
    %c0_513 = arith.constant 0 : index
    %415 = vector.load %arg10[%c0_511, %c2_512, %c0_513] : memref<10x10x32xbf16, #tpu.memory_space<vmem>>, vector<8x8x32xbf16>
    %416 = vector.shape_cast %415 : vector<8x8x32xbf16> to vector<64x32xbf16>
    %c0_514 = arith.constant 0 : index
    %c2_515 = arith.constant 2 : index
    %c0_516 = arith.constant 0 : index
    %c0_517 = arith.constant 0 : index
    %417 = vector.load %arg6[%c0_514, %c2_515, %c0_516, %c0_517] : memref<3x3x32x8xbf16, #tpu.memory_space<vmem>>, vector<1x1x32x8xbf16>
    %418 = vector.shape_cast %417 : vector<1x1x32x8xbf16> to vector<32x8xbf16>
    %cst_518 = arith.constant dense<0.000000e+00> : vector<64x8xf32>
    %419 = tpu.matmul %416, %418, %cst_518 {dimension_numbers = #tpu.dot_dimension_numbers<[1], [0], [0], [1], [0, 0, 1, 1], [], []>} : vector<64x32xbf16>, vector<32x8xbf16>, vector<64x8xf32> -> vector<64x8xf32>
    %420 = arith.addf %414, %419 : vector<64x8xf32>
    %c1_519 = arith.constant 1 : index
    %c0_520 = arith.constant 0 : index
    %c0_521 = arith.constant 0 : index
    %421 = vector.load %arg10[%c1_519, %c0_520, %c0_521] : memref<10x10x32xbf16, #tpu.memory_space<vmem>>, vector<8x8x32xbf16>
    %422 = vector.shape_cast %421 : vector<8x8x32xbf16> to vector<64x32xbf16>
    %c1_522 = arith.constant 1 : index
    %c0_523 = arith.constant 0 : index
    %c0_524 = arith.constant 0 : index
    %c0_525 = arith.constant 0 : index
    %423 = vector.load %arg6[%c1_522, %c0_523, %c0_524, %c0_525] : memref<3x3x32x8xbf16, #tpu.memory_space<vmem>>, vector<1x1x32x8xbf16>
    %424 = vector.shape_cast %423 : vector<1x1x32x8xbf16> to vector<32x8xbf16>
    %cst_526 = arith.constant dense<0.000000e+00> : vector<64x8xf32>
    %425 = tpu.matmul %422, %424, %cst_526 {dimension_numbers = #tpu.dot_dimension_numbers<[1], [0], [0], [1], [0, 0, 1, 1], [], []>} : vector<64x32xbf16>, vector<32x8xbf16>, vector<64x8xf32> -> vector<64x8xf32>
    %426 = arith.addf %420, %425 : vector<64x8xf32>
    %c1_527 = arith.constant 1 : index
    %c1_528 = arith.constant 1 : index
    %c0_529 = arith.constant 0 : index
    %427 = vector.load %arg10[%c1_527, %c1_528, %c0_529] : memref<10x10x32xbf16, #tpu.memory_space<vmem>>, vector<8x8x32xbf16>
    %428 = vector.shape_cast %427 : vector<8x8x32xbf16> to vector<64x32xbf16>
    %c1_530 = arith.constant 1 : index
    %c1_531 = arith.constant 1 : index
    %c0_532 = arith.constant 0 : index
    %c0_533 = arith.constant 0 : index
    %429 = vector.load %arg6[%c1_530, %c1_531, %c0_532, %c0_533] : memref<3x3x32x8xbf16, #tpu.memory_space<vmem>>, vector<1x1x32x8xbf16>
    %430 = vector.shape_cast %429 : vector<1x1x32x8xbf16> to vector<32x8xbf16>
    %cst_534 = arith.constant dense<0.000000e+00> : vector<64x8xf32>
    %431 = tpu.matmul %428, %430, %cst_534 {dimension_numbers = #tpu.dot_dimension_numbers<[1], [0], [0], [1], [0, 0, 1, 1], [], []>} : vector<64x32xbf16>, vector<32x8xbf16>, vector<64x8xf32> -> vector<64x8xf32>
    %432 = arith.addf %426, %431 : vector<64x8xf32>
    %c1_535 = arith.constant 1 : index
    %c2_536 = arith.constant 2 : index
    %c0_537 = arith.constant 0 : index
    %433 = vector.load %arg10[%c1_535, %c2_536, %c0_537] : memref<10x10x32xbf16, #tpu.memory_space<vmem>>, vector<8x8x32xbf16>
    %434 = vector.shape_cast %433 : vector<8x8x32xbf16> to vector<64x32xbf16>
    %c1_538 = arith.constant 1 : index
    %c2_539 = arith.constant 2 : index
    %c0_540 = arith.constant 0 : index
    %c0_541 = arith.constant 0 : index
    %435 = vector.load %arg6[%c1_538, %c2_539, %c0_540, %c0_541] : memref<3x3x32x8xbf16, #tpu.memory_space<vmem>>, vector<1x1x32x8xbf16>
    %436 = vector.shape_cast %435 : vector<1x1x32x8xbf16> to vector<32x8xbf16>
    %cst_542 = arith.constant dense<0.000000e+00> : vector<64x8xf32>
    %437 = tpu.matmul %434, %436, %cst_542 {dimension_numbers = #tpu.dot_dimension_numbers<[1], [0], [0], [1], [0, 0, 1, 1], [], []>} : vector<64x32xbf16>, vector<32x8xbf16>, vector<64x8xf32> -> vector<64x8xf32>
    %438 = arith.addf %432, %437 : vector<64x8xf32>
    %c2_543 = arith.constant 2 : index
    %c0_544 = arith.constant 0 : index
    %c0_545 = arith.constant 0 : index
    %439 = vector.load %arg10[%c2_543, %c0_544, %c0_545] : memref<10x10x32xbf16, #tpu.memory_space<vmem>>, vector<8x8x32xbf16>
    %440 = vector.shape_cast %439 : vector<8x8x32xbf16> to vector<64x32xbf16>
    %c2_546 = arith.constant 2 : index
    %c0_547 = arith.constant 0 : index
    %c0_548 = arith.constant 0 : index
    %c0_549 = arith.constant 0 : index
    %441 = vector.load %arg6[%c2_546, %c0_547, %c0_548, %c0_549] : memref<3x3x32x8xbf16, #tpu.memory_space<vmem>>, vector<1x1x32x8xbf16>
    %442 = vector.shape_cast %441 : vector<1x1x32x8xbf16> to vector<32x8xbf16>
    %cst_550 = arith.constant dense<0.000000e+00> : vector<64x8xf32>
    %443 = tpu.matmul %440, %442, %cst_550 {dimension_numbers = #tpu.dot_dimension_numbers<[1], [0], [0], [1], [0, 0, 1, 1], [], []>} : vector<64x32xbf16>, vector<32x8xbf16>, vector<64x8xf32> -> vector<64x8xf32>
    %444 = arith.addf %438, %443 : vector<64x8xf32>
    %c2_551 = arith.constant 2 : index
    %c1_552 = arith.constant 1 : index
    %c0_553 = arith.constant 0 : index
    %445 = vector.load %arg10[%c2_551, %c1_552, %c0_553] : memref<10x10x32xbf16, #tpu.memory_space<vmem>>, vector<8x8x32xbf16>
    %446 = vector.shape_cast %445 : vector<8x8x32xbf16> to vector<64x32xbf16>
    %c2_554 = arith.constant 2 : index
    %c1_555 = arith.constant 1 : index
    %c0_556 = arith.constant 0 : index
    %c0_557 = arith.constant 0 : index
    %447 = vector.load %arg6[%c2_554, %c1_555, %c0_556, %c0_557] : memref<3x3x32x8xbf16, #tpu.memory_space<vmem>>, vector<1x1x32x8xbf16>
    %448 = vector.shape_cast %447 : vector<1x1x32x8xbf16> to vector<32x8xbf16>
    %cst_558 = arith.constant dense<0.000000e+00> : vector<64x8xf32>
    %449 = tpu.matmul %446, %448, %cst_558 {dimension_numbers = #tpu.dot_dimension_numbers<[1], [0], [0], [1], [0, 0, 1, 1], [], []>} : vector<64x32xbf16>, vector<32x8xbf16>, vector<64x8xf32> -> vector<64x8xf32>
    %450 = arith.addf %444, %449 : vector<64x8xf32>
    %c2_559 = arith.constant 2 : index
    %c2_560 = arith.constant 2 : index
    %c0_561 = arith.constant 0 : index
    %451 = vector.load %arg10[%c2_559, %c2_560, %c0_561] : memref<10x10x32xbf16, #tpu.memory_space<vmem>>, vector<8x8x32xbf16>
    %452 = vector.shape_cast %451 : vector<8x8x32xbf16> to vector<64x32xbf16>
    %c2_562 = arith.constant 2 : index
    %c2_563 = arith.constant 2 : index
    %c0_564 = arith.constant 0 : index
    %c0_565 = arith.constant 0 : index
    %453 = vector.load %arg6[%c2_562, %c2_563, %c0_564, %c0_565] : memref<3x3x32x8xbf16, #tpu.memory_space<vmem>>, vector<1x1x32x8xbf16>
    %454 = vector.shape_cast %453 : vector<1x1x32x8xbf16> to vector<32x8xbf16>
    %cst_566 = arith.constant dense<0.000000e+00> : vector<64x8xf32>
    %455 = tpu.matmul %452, %454, %cst_566 {dimension_numbers = #tpu.dot_dimension_numbers<[1], [0], [0], [1], [0, 0, 1, 1], [], []>} : vector<64x32xbf16>, vector<32x8xbf16>, vector<64x8xf32> -> vector<64x8xf32>
    %456 = arith.addf %450, %455 : vector<64x8xf32>
    %c0_567 = arith.constant 0 : index
    %c0_568 = arith.constant 0 : index
    %457 = vector.load %arg7[%c0_567, %c0_568] : memref<1x8xf32, #tpu.memory_space<vmem>>, vector<1x8xf32>
    %458 = vector.broadcast %457 : vector<1x8xf32> to vector<64x8xf32>
    %459 = arith.addf %456, %458 : vector<64x8xf32>
    %460 = vector.shape_cast %459 : vector<64x8xf32> to vector<8x8x8xf32>
    %c0_569 = arith.constant 0 : index
    %c0_570 = arith.constant 0 : index
    %c0_571 = arith.constant 0 : index
    %c0_572 = arith.constant 0 : index
    %461 = vector.load %arg8[%c0_569, %c0_570, %c0_571, %c0_572] : memref<1x8x8x8xf32, #tpu.memory_space<vmem>>, vector<1x8x8x8xf32>
    %462 = vector.shape_cast %461 : vector<1x8x8x8xf32> to vector<8x8x8xf32>
    %463 = vector.shape_cast %460 : vector<8x8x8xf32> to vector<1x8x8x8xf32>
    tpu.vector_store %arg8[%c0_569, %c0_570, %c0_571, %c0_572], %463 {strides = array<i32>} : memref<1x8x8x8xf32, #tpu.memory_space<vmem>>, vector<1x8x8x8xf32>,
    return
  }
  func.func @transform_0(%arg0: i32) -> (i32, i32, i32, i32, i32) {
    %c0_i32 = arith.constant 0 : i32
    %c0_i32_0 = arith.constant 0 : i32
    %c0_i32_1 = arith.constant 0 : i32
    %c0_i32_2 = arith.constant 0 : i32
    %c0_i32_3 = arith.constant 0 : i32
    return %arg0, %c0_i32, %c0_i32_0, %c0_i32_1, %c0_i32_2 : i32, i32, i32, i32, i32
  }
  func.func @transform_1(%arg0: i32) -> (i32, i32, i32, i32) {
    %c0_i32 = arith.constant 0 : i32
    %c0_i32_0 = arith.constant 0 : i32
    %c0_i32_1 = arith.constant 0 : i32
    %c0_i32_2 = arith.constant 0 : i32
    %c0_i32_3 = arith.constant 0 : i32
    return %c0_i32, %c0_i32_0, %c0_i32_1, %c0_i32_2 : i32, i32, i32, i32
  }
  func.func @transform_2(%arg0: i32) -> (i32, i32) {
    %c0_i32 = arith.constant 0 : i32
    %c0_i32_0 = arith.constant 0 : i32
    %c0_i32_1 = arith.constant 0 : i32
    return %c0_i32, %c0_i32_0 : i32, i32
  }
  func.func @transform_3(%arg0: i32) -> (i32, i32, i32, i32) {
    %c0_i32 = arith.constant 0 : i32
    %c0_i32_0 = arith.constant 0 : i32
    %c0_i32_1 = arith.constant 0 : i32
    %c0_i32_2 = arith.constant 0 : i32
    %c0_i32_3 = arith.constant 0 : i32
    return %c0_i32, %c0_i32_0, %c0_i32_1, %c0_i32_2 : i32, i32, i32, i32
  }
  func.func @transform_4(%arg0: i32) -> (i32, i32) {
    %c0_i32 = arith.constant 0 : i32
    %c0_i32_0 = arith.constant 0 : i32
    %c0_i32_1 = arith.constant 0 : i32
    return %c0_i32, %c0_i32_0 : i32, i32
  }
  func.func @transform_5(%arg0: i32) -> (i32, i32, i32, i32) {
    %c0_i32 = arith.constant 0 : i32
    %c0_i32_0 = arith.constant 0 : i32
    %c0_i32_1 = arith.constant 0 : i32
    %c0_i32_2 = arith.constant 0 : i32
    %c0_i32_3 = arith.constant 0 : i32
    return %c0_i32, %c0_i32_0, %c0_i32_1, %c0_i32_2 : i32, i32, i32, i32
  }
  func.func @transform_6(%arg0: i32) -> (i32, i32) {
    %c0_i32 = arith.constant 0 : i32
    %c0_i32_0 = arith.constant 0 : i32
    %c0_i32_1 = arith.constant 0 : i32
    return %c0_i32, %c0_i32_0 : i32, i32
  }
  func.func @transform_7(%arg0: i32) -> (i32, i32, i32, i32) {
    %c0_i32 = arith.constant 0 : i32
    %c0_i32_0 = arith.constant 0 : i32
    %c0_i32_1 = arith.constant 0 : i32
    %c0_i32_2 = arith.constant 0 : i32
    return %arg0, %c0_i32, %c0_i32_0, %c0_i32_1 : i32, i32, i32, i32
  }
}

</mosaic_0001>

<llo_original>
// kernel: autoencoder_encode_pallas.1
$region0: #{autoencoder_encode_pallas.1}
  #allocation0 [shape = 'u32[]', space=smem, size = 0x4, offset = 0x4, fixed_abs, tag = 'smem constant byte address 0x4 - core index']
  #allocation1 [shape = 'u32[144,128]{1,0:T(1,128)}', space=vmem, size = 0x12000, scoped, tag = 'internal scratch']
  #allocation2 [shape = 'bf16[4,9,9,32]{3,2,1,0:T(8,128)(2,1)}', space=vmem, size = 0x24000, scoped, tag = 'scratch operand']
  #allocation3 [shape = 'bf16[10,10,32]{2,1,0:T(8,128)(2,1)}', space=vmem, size = 0xa000, scoped, tag = 'scratch operand']
  %s0 = inlined_call_operand.vmem [shape: bf16[2,4,9,9,3], index: 0, kind: input, shape index: {}]
  %s1 = inlined_call_operand.vmem [shape: bf16[3,3,3,32], index: 1, kind: input, shape index: {}]
  %s2 = inlined_call_operand.vmem [shape: f32[1,32], index: 2, kind: input, shape index: {}]
  %s3 = inlined_call_operand.vmem [shape: bf16[3,3,32,32], index: 3, kind: input, shape index: {}]
  %s4 = inlined_call_operand.vmem [shape: f32[1,32], index: 4, kind: input, shape index: {}]
  %s5 = inlined_call_operand.vmem [shape: bf16[3,3,32,8], index: 5, kind: input, shape index: {}]
  %s6 = inlined_call_operand.vmem [shape: f32[1,8], index: 6, kind: input, shape index: {}]
  %s7 = inlined_call_operand.vmem [shape: f32[2,8,8,8], index: 7, kind: output, shape index: {}]
  %s8 = sld [smem:[#allocation0]]
  $region61: #{autoencoder_encode_pallas.1} parent=0
    _
  %s10 = ssub.s32 1, %s8
  %s11 = scalar_select 0, %s10, %s8
  loop: start=0, step=1, limit=4
  $region2: #{autoencoder_encode_pallas.1} parent=0 // loop_pre_header
    _
  $region3: #{autoencoder_encode_pallas.1} parent=0 // loop_header
    %s13 = sphi 0, %s17
    %p14 = scmp.ge.s32.totalorder %s13, 4
    %s23 = sphi 0, %s25
    %s26 = sphi 0, %s23
    %s27 = sphi 0, %s26
    %s43 = sphi 0, %s27
    %s47 = sphi 0, %s47
    %s49 = sphi 0, %s47
    %s50 = sphi 0, %s49
    %s64 = sphi 0, %s50
    %s68 = sphi 0, %s68
    %s70 = sphi 0, %s68
    %s71 = sphi 0, %s70
    %s85 = sphi 0, %s71
    %s89 = sphi 0, %s89
    %s91 = sphi 0, %s89
    %s92 = sphi 0, %s91
    %s106 = sphi 0, %s92
    %s110 = sphi 0, %s110
    %s112 = sphi 0, %s110
    %s113 = sphi 0, %s112
    %s127 = sphi 0, %s113
    %s131 = sphi 0, %s131
    %s133 = sphi 0, %s131
    %s134 = sphi 0, %s133
    %s148 = sphi 0, %s134
    %s152 = sphi 0, %s152
    %s154 = sphi 0, %s152
    %s155 = sphi 0, %s154
    %s169 = sphi 0, %s155
    %s175 = sphi 0, %s177
    %s178 = sphi 0, %s175
    %s179 = sphi 0, %s178
    %s195 = sphi 0, %s179
  $region4: #{autoencoder_encode_pallas.1} parent=0 // loop_header_branch
    %16 = sbr.rel (%p14) target = $region8
  $region5: #{autoencoder_encode_pallas.1} parent=0 // loop_body
    %s18 = ssub.s32 %s13, 1
    %s19 = ssub.s32 %s13, 2
    %s20 = sadd.s32 %s13, 1
    %s21 = ssub.s32 %s13, %s20
    %p22 = scmp.eq.s32.totalorder %s21, 0
    %s24 = sadd.s32 %s23, 1
    %s25 = scalar_select %p22, %s23, %s24
    %p28 = pneg %p22
    %p29 = scmp.eq.s32.totalorder %s13, 1
    %p30 = por %p28, %p29
    %p31 = scmp.ne.s32.totalorder %s23, %s26
    %p32 = scmp.eq.s32.totalorder %s13, 0
    %p33 = por %p31, %p32
    %p34 = scmp.ne.s32.totalorder %s23, %s26
    %p35 = scmp.eq.s32.totalorder %s18, 1
    %p36 = por %p34, %p35
    %p37 = scmp.ne.s32.totalorder %s26, %s27
    %p38 = scmp.eq.s32.totalorder %s18, 0
    %p39 = por %p37, %p38
    %p40 = scmp.ne.s32.totalorder %s26, %s27
    %p41 = scmp.eq.s32.totalorder %s19, 1
    %p42 = por %p40, %p41
    %p44 = scmp.ne.s32.totalorder %s27, %s43
    %p45 = scmp.eq.s32.totalorder %s19, 0
    %p46 = por %p44, %p45
    %s48 = sadd.s32 %s47, 1
    %p51 = scmp.eq.s32.totalorder %s13, 1
    %p52 = scmp.ne.s32.totalorder %s47, %s49
    %p53 = scmp.eq.s32.totalorder %s13, 0
    %p54 = por %p52, %p53
    %p55 = scmp.ne.s32.totalorder %s47, %s49
    %p56 = scmp.eq.s32.totalorder %s18, 1
    %p57 = por %p55, %p56
    %p58 = scmp.ne.s32.totalorder %s49, %s50
    %p59 = scmp.eq.s32.totalorder %s18, 0
    %p60 = por %p58, %p59
    %p61 = scmp.ne.s32.totalorder %s49, %s50
    %p62 = scmp.eq.s32.totalorder %s19, 1
    %p63 = por %p61, %p62
    %p65 = scmp.ne.s32.totalorder %s50, %s64
    %p66 = scmp.eq.s32.totalorder %s19, 0
    %p67 = por %p65, %p66
    %s69 = sadd.s32 %s68, 1
    %p72 = scmp.eq.s32.totalorder %s13, 1
    %p73 = scmp.ne.s32.totalorder %s68, %s70
    %p74 = scmp.eq.s32.totalorder %s13, 0
    %p75 = por %p73, %p74
    %p76 = scmp.ne.s32.totalorder %s68, %s70
    %p77 = scmp.eq.s32.totalorder %s18, 1
    %p78 = por %p76, %p77
    %p79 = scmp.ne.s32.totalorder %s70, %s71
    %p80 = scmp.eq.s32.totalorder %s18, 0
    %p81 = por %p79, %p80
    %p82 = scmp.ne.s32.totalorder %s70, %s71
    %p83 = scmp.eq.s32.totalorder %s19, 1
    %p84 = por %p82, %p83
    %p86 = scmp.ne.s32.totalorder %s71, %s85
    %p87 = scmp.eq.s32.totalorder %s19, 0
    %p88 = por %p86, %p87
    %s90 = sadd.s32 %s89, 1
    %p93 = scmp.eq.s32.totalorder %s13, 1
    %p94 = scmp.ne.s32.totalorder %s89, %s91
    %p95 = scmp.eq.s32.totalorder %s13, 0
    %p96 = por %p94, %p95
    %p97 = scmp.ne.s32.totalorder %s89, %s91
    %p98 = scmp.eq.s32.totalorder %s18, 1
    %p99 = por %p97, %p98
    %p100 = scmp.ne.s32.totalorder %s91, %s92
    %p101 = scmp.eq.s32.totalorder %s18, 0
    %p102 = por %p100, %p101
    %p103 = scmp.ne.s32.totalorder %s91, %s92
    %p104 = scmp.eq.s32.totalorder %s19, 1
    %p105 = por %p103, %p104
    %p107 = scmp.ne.s32.totalorder %s92, %s106
    %p108 = scmp.eq.s32.totalorder %s19, 0
    %p109 = por %p107, %p108
    %s111 = sadd.s32 %s110, 1
    %p114 = scmp.eq.s32.totalorder %s13, 1
    %p115 = scmp.ne.s32.totalorder %s110, %s112
    %p116 = scmp.eq.s32.totalorder %s13, 0
    %p117 = por %p115, %p116
    %p118 = scmp.ne.s32.totalorder %s110, %s112
    %p119 = scmp.eq.s32.totalorder %s18, 1
    %p120 = por %p118, %p119
    %p121 = scmp.ne.s32.totalorder %s112, %s113
    %p122 = scmp.eq.s32.totalorder %s18, 0
    %p123 = por %p121, %p122
    %p124 = scmp.ne.s32.totalorder %s112, %s113
    %p125 = scmp.eq.s32.totalorder %s19, 1
    %p126 = por %p124, %p125
    %p128 = scmp.ne.s32.totalorder %s113, %s127
    %p129 = scmp.eq.s32.totalorder %s19, 0
    %p130 = por %p128, %p129
    %s132 = sadd.s32 %s131, 1
    %p135 = scmp.eq.s32.totalorder %s13, 1
    %p136 = scmp.ne.s32.totalorder %s131, %s133
    %p137 = scmp.eq.s32.totalorder %s13, 0
    %p138 = por %p136, %p137
    %p139 = scmp.ne.s32.totalorder %s131, %s133
    %p140 = scmp.eq.s32.totalorder %s18, 1
    %p141 = por %p139, %p140
    %p142 = scmp.ne.s32.totalorder %s133, %s134
    %p143 = scmp.eq.s32.totalorder %s18, 0
    %p144 = por %p142, %p143
    %p145 = scmp.ne.s32.totalorder %s133, %s134
    %p146 = scmp.eq.s32.totalorder %s19, 1
    %p147 = por %p145, %p146
    %p149 = scmp.ne.s32.totalorder %s134, %s148
    %p150 = scmp.eq.s32.totalorder %s19, 0
    %p151 = por %p149, %p150
    %s153 = sadd.s32 %s152, 1
    %p156 = scmp.eq.s32.totalorder %s13, 1
    %p157 = scmp.ne.s32.totalorder %s152, %s154
    %p158 = scmp.eq.s32.totalorder %s13, 0
    %p159 = por %p157, %p158
    %p160 = scmp.ne.s32.totalorder %s152, %s154
    %p161 = scmp.eq.s32.totalorder %s18, 1
    %p162 = por %p160, %p161
    %p163 = scmp.ne.s32.totalorder %s154, %s155
    %p164 = scmp.eq.s32.totalorder %s18, 0
    %p165 = por %p163, %p164
    %p166 = scmp.ne.s32.totalorder %s154, %s155
    %p167 = scmp.eq.s32.totalorder %s19, 1
    %p168 = por %p166, %p167
    %p170 = scmp.ne.s32.totalorder %s155, %s169
    %p171 = scmp.eq.s32.totalorder %s19, 0
    %p172 = por %p170, %p171
    %s173 = ssub.s32 %s13, %s20
    %p174 = scmp.eq.s32.totalorder %s173, 0
    %s176 = sadd.s32 %s175, 1
    %s177 = scalar_select %p174, %s175, %s176
    %p180 = pneg %p174
    %p181 = scmp.eq.s32.totalorder %s13, 1
    %p182 = por %p180, %p181
    %p183 = scmp.ne.s32.totalorder %s175, %s178
    %p184 = scmp.eq.s32.totalorder %s13, 0
    %p185 = por %p183, %p184
    %p186 = scmp.ne.s32.totalorder %s175, %s178
    %p187 = scmp.eq.s32.totalorder %s18, 1
    %p188 = por %p186, %p187
    %p189 = scmp.ne.s32.totalorder %s178, %s179
    %p190 = scmp.eq.s32.totalorder %s18, 0
    %p191 = por %p189, %p190
    %p192 = scmp.ne.s32.totalorder %s178, %s179
    %p193 = scmp.eq.s32.totalorder %s19, 1
    %p194 = por %p192, %p193
    %p196 = scmp.ne.s32.totalorder %s179, %s195
    %p197 = scmp.eq.s32.totalorder %s19, 0
    %p198 = por %p196, %p197
    %p199 = scmp.le.s32.totalorder 1, %s13
    %p200 = scmp.lt.s32.totalorder %s13, 3
    %p201 = pnand %p199, %p200
    %p202 = pneg %p201
    // Predicated region
    $region9: #{autoencoder_encode_pallas.1} parent=5 // pred_check
      _
    $region10: #{autoencoder_encode_pallas.1} parent=5 // pred_check_branch
      %204 = sbr.rel (%p201) target = $region12
    $region11: #{autoencoder_encode_pallas.1} parent=5 // pred_region
      %s205 = ssub.s32 %s13, 1
      // Predicated region
      $region13: #{autoencoder_encode_pallas.1} parent=11 // pred_check
        %p206 = pneg %p60
      $region14: #{autoencoder_encode_pallas.1} parent=11 // pred_check_branch
        %208 = sbr.rel (%p206) target = $region16
      $region15: #{autoencoder_encode_pallas.1} parent=11 // pred_region
        _
      $region16: #{autoencoder_encode_pallas.1} parent=11 // pred_fallthru
        _
      // Predicated region
      $region17: #{autoencoder_encode_pallas.1} parent=11 // pred_check
        %p209 = pneg %p81
      $region18: #{autoencoder_encode_pallas.1} parent=11 // pred_check_branch
        %211 = sbr.rel (%p209) target = $region20
      $region19: #{autoencoder_encode_pallas.1} parent=11 // pred_region
        _
      $region20: #{autoencoder_encode_pallas.1} parent=11 // pred_fallthru
        _
      // Predicated region
      $region21: #{autoencoder_encode_pallas.1} parent=11 // pred_check
        %p212 = pneg %p102
      $region22: #{autoencoder_encode_pallas.1} parent=11 // pred_check_branch
        %214 = sbr.rel (%p212) target = $region24
      $region23: #{autoencoder_encode_pallas.1} parent=11 // pred_region
        _
      $region24: #{autoencoder_encode_pallas.1} parent=11 // pred_fallthru
        _
      // Predicated region
      $region25: #{autoencoder_encode_pallas.1} parent=11 // pred_check
        %p215 = pneg %p123
      $region26: #{autoencoder_encode_pallas.1} parent=11 // pred_check_branch
        %217 = sbr.rel (%p215) target = $region28
      $region27: #{autoencoder_encode_pallas.1} parent=11 // pred_region
        _
      $region28: #{autoencoder_encode_pallas.1} parent=11 // pred_fallthru
        _
      // Predicated region
      $region29: #{autoencoder_encode_pallas.1} parent=11 // pred_check
        %p218 = pneg %p144
      $region30: #{autoencoder_encode_pallas.1} parent=11 // pred_check_branch
        %220 = sbr.rel (%p218) target = $region32
      $region31: #{autoencoder_encode_pallas.1} parent=11 // pred_region
        _
      $region32: #{autoencoder_encode_pallas.1} parent=11 // pred_fallthru
        _
      // Predicated region
      $region33: #{autoencoder_encode_pallas.1} parent=11 // pred_check
        %p221 = pneg %p165
      $region34: #{autoencoder_encode_pallas.1} parent=11 // pred_check_branch
        %223 = sbr.rel (%p221) target = $region36
      $region35: #{autoencoder_encode_pallas.1} parent=11 // pred_region
        _
      $region36: #{autoencoder_encode_pallas.1} parent=11 // pred_fallthru
        _
    $region12: #{autoencoder_encode_pallas.1} parent=5 // pred_fallthru
      _
    %p224 = scmp.lt.s32.totalorder %s13, 2
    // Predicated region
    $region37: #{autoencoder_encode_pallas.1} parent=5 // pred_check
      %p225 = pneg %p224
    $region38: #{autoencoder_encode_pallas.1} parent=5 // pred_check_branch
      %227 = sbr.rel (%p225) target = $region40
    $region39: #{autoencoder_encode_pallas.1} parent=5 // pred_region
      // Predicated region
      $region41: #{autoencoder_encode_pallas.1} parent=39 // pred_check
        %p228 = pneg %p33
      $region42: #{autoencoder_encode_pallas.1} parent=39 // pred_check_branch
        %230 = sbr.rel (%p228) target = $region44
      $region43: #{autoencoder_encode_pallas.1} parent=39 // pred_region
        %p231 = scmp.lt.s32.totalorder %s13, 1
        %s232 = scalar_select %p231, %s13, 1
        %s233 = smul.addr %s232, 72
        %s234 = smul.addr %s233, 4
        %s235 = scalar_lea.vmem %s0, %s234
      $region44: #{autoencoder_encode_pallas.1} parent=39 // pred_fallthru
        _
    $region40: #{autoencoder_encode_pallas.1} parent=5 // pred_fallthru
      _
    %p236 = scmp.le.s32.totalorder 1, %s13
    %p237 = scmp.lt.s32.totalorder %s13, 3
    %p238 = pnand %p236, %p237
    %p239 = pneg %p238
    // Predicated region
    $region45: #{autoencoder_encode_pallas.1} parent=5 // pred_check
      _
    $region46: #{autoencoder_encode_pallas.1} parent=5 // pred_check_branch
      %241 = sbr.rel (%p238) target = $region48
    $region47: #{autoencoder_encode_pallas.1} parent=5 // pred_region
      %s242 = ssub.s32 %s13, 1
      %p243 = scmp.lt.s32.totalorder %s18, 1
      %s244 = scalar_select %p243, %s18, 1
      %s245 = smul.addr %s244, 72
      %s246 = smul.addr %s245, 4
      %s247 = scalar_lea.vmem %s0, %s246
      %p248 = pneg %p39
      %p249 = pneg %p36
      %p250 = pneg %p60
      %p251 = pneg %p57
      %p252 = pneg %p81
      %p253 = pneg %p78
      %p254 = pneg %p102
      %p255 = pneg %p99
      %p256 = pneg %p123
      %p257 = pneg %p120
      %p258 = pneg %p144
      %p259 = pneg %p141
      %p260 = pneg %p165
      %p261 = pneg %p162
      %p262 = pneg %p191
      %p263 = pneg %p188
      %p264 = scmp.lt.s32.totalorder %s18, 1
      %s265 = scalar_select %p264, %s18, 1
      %s266 = smul.addr %s265, 8
      %s267 = smul.addr %s266, 8
      %s268 = scalar_lea.vmem %s7, %s267
      %p269 = scmp.lt.s32.totalorder %s18, 1
      %s270 = scalar_select %p269, %s18, 1
      %s271 = smul.addr %s270, 72
      %s272 = smul.addr %s271, 4
      %s273 = scalar_lea.vmem %s0, %s272
      %p274 = scmp.lt.s32.totalorder %s18, 1
      %s275 = scalar_select %p274, %s18, 1
      %s276 = smul.addr %s275, 8
      %s277 = smul.addr %s276, 8
      %s278 = scalar_lea.vmem %s7, %s277
      %vm280 = vcmask 257024
      %281 = vst.msk [vmem:[#allocation2] sm:$0xf] %vm280, 0
      %vm282 = vcmask 253952
      %vm283 = vsmask.f32 256
      %vm284 = vmand %vm282, %vm283
      %v285 = vld [vmem:[#allocation2 + $0x4] sm:$0x1]
      %v286 = vsel %vm284, 0, %v285
      %287 = vst [vmem:[#allocation2 + $0x4] sm:$0x1] %v286
      %288 = vst.msk [vmem:[#allocation2 + $0x8] sm:$0xf] %vm280, 0
      %v289 = vld [vmem:[#allocation2 + $0xc] sm:$0x1]
      %v290 = vsel %vm284, 0, %v289
      %291 = vst [vmem:[#allocation2 + $0xc] sm:$0x1] %v290
      %292 = vst.msk [vmem:[#allocation2 + $0x10] sm:$0xf] %vm280, 0
      %v293 = vld [vmem:[#allocation2 + $0x14] sm:$0x1]
      %v294 = vsel %vm284, 0, %v293
      %295 = vst [vmem:[#allocation2 + $0x14] sm:$0x1] %v294
      %296 = vst.msk [vmem:[#allocation2 + $0x18] sm:$0xf] %vm280, 0
      %v297 = vld [vmem:[#allocation2 + $0x1c] sm:$0x1]
      %v298 = vsel %vm284, 0, %v297
      %299 = vst [vmem:[#allocation2 + $0x1c] sm:$0x1] %v298
      %300 = vst.msk [vmem:[#allocation2 + $0x20] sm:$0xf] %vm280, 0
      %v301 = vld [vmem:[#allocation2 + $0x24] sm:$0x1]
      %v302 = vsel %vm284, 0, %v301
      %303 = vst [vmem:[#allocation2 + $0x24] sm:$0x1] %v302
      %304 = vst.msk [vmem:[#allocation2 + $0x28] sm:$0xf] %vm280, 0
      %v305 = vld [vmem:[#allocation2 + $0x2c] sm:$0x1]
      %v306 = vsel %vm284, 0, %v305
      %307 = vst [vmem:[#allocation2 + $0x2c] sm:$0x1] %v306
      %308 = vst.msk [vmem:[#allocation2 + $0x30] sm:$0xf] %vm280, 0
      %v309 = vld [vmem:[#allocation2 + $0x34] sm:$0x1]
      %v310 = vsel %vm284, 0, %v309
      %311 = vst [vmem:[#allocation2 + $0x34] sm:$0x1] %v310
      %312 = vst.msk [vmem:[#allocation2 + $0x38] sm:$0xf] %vm280, 0
      %v313 = vld [vmem:[#allocation2 + $0x3c] sm:$0x1]
      %v314 = vsel %vm284, 0, %v313
      %315 = vst [vmem:[#allocation2 + $0x3c] sm:$0x1] %v314
      %316 = vst.msk [vmem:[#allocation2 + $0x40] sm:$0xf] %vm280, 0
      %v317 = vld [vmem:[#allocation2 + $0x44] sm:$0x1]
      %v318 = vsel %vm284, 0, %v317
      %319 = vst [vmem:[#allocation2 + $0x44] sm:$0x1] %v318
      %320 = vst.msk [vmem:[#allocation2 + $0x48] sm:$0xf] %vm280, 0
      %v321 = vld [vmem:[#allocation2 + $0x4c] sm:$0x1]
      %v322 = vsel %vm284, 0, %v321
      %323 = vst [vmem:[#allocation2 + $0x4c] sm:$0x1] %v322
      %324 = vst.msk [vmem:[#allocation2 + $0x50] sm:$0xf] %vm280, 0
      %v325 = vld [vmem:[#allocation2 + $0x54] sm:$0x1]
      %v326 = vsel %vm284, 0, %v325
      %327 = vst [vmem:[#allocation2 + $0x54] sm:$0x1] %v326
      %328 = vst.msk [vmem:[#allocation2 + $0x58] sm:$0xf] %vm280, 0
      %v329 = vld [vmem:[#allocation2 + $0x5c] sm:$0x1]
      %v330 = vsel %vm284, 0, %v329
      %331 = vst [vmem:[#allocation2 + $0x5c] sm:$0x1] %v330
      %332 = vst.msk [vmem:[#allocation2 + $0x60] sm:$0xf] %vm280, 0
      %v333 = vld [vmem:[#allocation2 + $0x64] sm:$0x1]
      %v334 = vsel %vm284, 0, %v333
      %335 = vst [vmem:[#allocation2 + $0x64] sm:$0x1] %v334
      %336 = vst.msk [vmem:[#allocation2 + $0x68] sm:$0xf] %vm280, 0
      %v337 = vld [vmem:[#allocation2 + $0x6c] sm:$0x1]
      %v338 = vsel %vm284, 0, %v337
      %339 = vst [vmem:[#allocation2 + $0x6c] sm:$0x1] %v338
      %340 = vst.msk [vmem:[#allocation2 + $0x70] sm:$0xf] %vm280, 0
      %v341 = vld [vmem:[#allocation2 + $0x74] sm:$0x1]
      %v342 = vsel %vm284, 0, %v341
      %343 = vst [vmem:[#allocation2 + $0x74] sm:$0x1] %v342
      %344 = vst.msk [vmem:[#allocation2 + $0x78] sm:$0xf] %vm280, 0
      %v345 = vld [vmem:[#allocation2 + $0x7c] sm:$0x1]
      %v346 = vsel %vm284, 0, %v345
      %347 = vst [vmem:[#allocation2 + $0x7c] sm:$0x1] %v346
      %348 = vst.msk [vmem:[#allocation2 + $0x80] sm:$0xf] %vm280, 0
      %v349 = vld [vmem:[#allocation2 + $0x84] sm:$0x1]
      %v350 = vsel %vm284, 0, %v349
      %351 = vst [vmem:[#allocation2 + $0x84] sm:$0x1] %v350
      %352 = vst.msk [vmem:[#allocation2 + $0x88] sm:$0xf] %vm280, 0
      %v353 = vld [vmem:[#allocation2 + $0x8c] sm:$0x1]
      %v354 = vsel %vm284, 0, %v353
      %355 = vst [vmem:[#allocation2 + $0x8c] sm:$0x1] %v354
      %356 = vst.msk [vmem:[#allocation2 + $0x90] sm:$0xf] %vm280, 0
      %v357 = vld [vmem:[#allocation2 + $0x94] sm:$0x1]
      %v358 = vsel %vm284, 0, %v357
      %359 = vst [vmem:[#allocation2 + $0x94] sm:$0x1] %v358
      %360 = vst.msk [vmem:[#allocation2 + $0x98] sm:$0xf] %vm280, 0
      %v361 = vld [vmem:[#allocation2 + $0x9c] sm:$0x1]
      %v362 = vsel %vm284, 0, %v361
      %363 = vst [vmem:[#allocation2 + $0x9c] sm:$0x1] %v362
      %364 = vst.msk [vmem:[#allocation2 + $0xa0] sm:$0xf] %vm280, 0
      %v365 = vld [vmem:[#allocation2 + $0xa4] sm:$0x1]
      %v366 = vsel %vm284, 0, %v365
      %367 = vst [vmem:[#allocation2 + $0xa4] sm:$0x1] %v366
      %368 = vst.msk [vmem:[#allocation2 + $0xa8] sm:$0xf] %vm280, 0
      %v369 = vld [vmem:[#allocation2 + $0xac] sm:$0x1]
      %v370 = vsel %vm284, 0, %v369
      %371 = vst [vmem:[#allocation2 + $0xac] sm:$0x1] %v370
      %372 = vst.msk [vmem:[#allocation2 + $0xb0] sm:$0xf] %vm280, 0
      %v373 = vld [vmem:[#allocation2 + $0xb4] sm:$0x1]
      %v374 = vsel %vm284, 0, %v373
      %375 = vst [vmem:[#allocation2 + $0xb4] sm:$0x1] %v374
      %376 = vst.msk [vmem:[#allocation2 + $0xb8] sm:$0xf] %vm280, 0
      %v377 = vld [vmem:[#allocation2 + $0xbc] sm:$0x1]
      %v378 = vsel %vm284, 0, %v377
      %379 = vst [vmem:[#allocation2 + $0xbc] sm:$0x1] %v378
      %380 = vst.msk [vmem:[#allocation2 + $0xc0] sm:$0xf] %vm280, 0
      %v381 = vld [vmem:[#allocation2 + $0xc4] sm:$0x1]
      %v382 = vsel %vm284, 0, %v381
      %383 = vst [vmem:[#allocation2 + $0xc4] sm:$0x1] %v382
      %384 = vst.msk [vmem:[#allocation2 + $0xc8] sm:$0xf] %vm280, 0
      %v385 = vld [vmem:[#allocation2 + $0xcc] sm:$0x1]
      %v386 = vsel %vm284, 0, %v385
      %387 = vst [vmem:[#allocation2 + $0xcc] sm:$0x1] %v386
      %388 = vst.msk [vmem:[#allocation2 + $0xd0] sm:$0xf] %vm280, 0
      %v389 = vld [vmem:[#allocation2 + $0xd4] sm:$0x1]
      %v390 = vsel %vm284, 0, %v389
      %391 = vst [vmem:[#allocation2 + $0xd4] sm:$0x1] %v390
      %392 = vst.msk [vmem:[#allocation2 + $0xd8] sm:$0xf] %vm280, 0
      %v393 = vld [vmem:[#allocation2 + $0xdc] sm:$0x1]
      %v394 = vsel %vm284, 0, %v393
      %395 = vst [vmem:[#allocation2 + $0xdc] sm:$0x1] %v394
      %396 = vst.msk [vmem:[#allocation2 + $0xe0] sm:$0xf] %vm280, 0
      %v397 = vld [vmem:[#allocation2 + $0xe4] sm:$0x1]
      %v398 = vsel %vm284, 0, %v397
      %399 = vst [vmem:[#allocation2 + $0xe4] sm:$0x1] %v398
      %400 = vst.msk [vmem:[#allocation2 + $0xe8] sm:$0xf] %vm280, 0
      %v401 = vld [vmem:[#allocation2 + $0xec] sm:$0x1]
      %v402 = vsel %vm284, 0, %v401
      %403 = vst [vmem:[#allocation2 + $0xec] sm:$0x1] %v402
      %404 = vst.msk [vmem:[#allocation2 + $0xf0] sm:$0xf] %vm280, 0
      %v405 = vld [vmem:[#allocation2 + $0xf4] sm:$0x1]
      %v406 = vsel %vm284, 0, %v405
      %407 = vst [vmem:[#allocation2 + $0xf4] sm:$0x1] %v406
      %408 = vst.msk [vmem:[#allocation2 + $0xf8] sm:$0xf] %vm280, 0
      %v409 = vld [vmem:[#allocation2 + $0xfc] sm:$0x1]
      %v410 = vsel %vm284, 0, %v409
      %411 = vst [vmem:[#allocation2 + $0xfc] sm:$0x1] %v410
      %412 = vst.msk [vmem:[#allocation2 + $0x100] sm:$0xf] %vm280, 0
      %v413 = vld [vmem:[#allocation2 + $0x104] sm:$0x1]
      %v414 = vsel %vm284, 0, %v413
      %415 = vst [vmem:[#allocation2 + $0x104] sm:$0x1] %v414
      %416 = vst.msk [vmem:[#allocation2 + $0x108] sm:$0xf] %vm280, 0
      %v417 = vld [vmem:[#allocation2 + $0x10c] sm:$0x1]
      %v418 = vsel %vm284, 0, %v417
      %419 = vst [vmem:[#allocation2 + $0x10c] sm:$0x1] %v418
      %420 = vst.msk [vmem:[#allocation2 + $0x110] sm:$0xf] %vm280, 0
      %v421 = vld [vmem:[#allocation2 + $0x114] sm:$0x1]
      %v422 = vsel %vm284, 0, %v421
      %423 = vst [vmem:[#allocation2 + $0x114] sm:$0x1] %v422
      %424 = vst.msk [vmem:[#allocation2 + $0x118] sm:$0xf] %vm280, 0
      %v425 = vld [vmem:[#allocation2 + $0x11c] sm:$0x1]
      %v426 = vsel %vm284, 0, %v425
      %427 = vst [vmem:[#allocation2 + $0x11c] sm:$0x1] %v426
      %428 = vst.msk [vmem:[#allocation3] sm:$0xf] %vm280, 0
      %vm429 = vcmask 253952
      %430 = vst.msk [vmem:[#allocation3 + $0x4] sm:$0x1] %vm429, 0
      %431 = vst.msk [vmem:[#allocation3 + $0x8] sm:$0xf] %vm280, 0
      %432 = vst.msk [vmem:[#allocation3 + $0xc] sm:$0x1] %vm429, 0
      %433 = vst.msk [vmem:[#allocation3 + $0x10] sm:$0xf] %vm280, 0
      %434 = vst.msk [vmem:[#allocation3 + $0x14] sm:$0x1] %vm429, 0
      %435 = vst.msk [vmem:[#allocation3 + $0x18] sm:$0xf] %vm280, 0
      %436 = vst.msk [vmem:[#allocation3 + $0x1c] sm:$0x1] %vm429, 0
      %437 = vst.msk [vmem:[#allocation3 + $0x20] sm:$0xf] %vm280, 0
      %438 = vst.msk [vmem:[#allocation3 + $0x24] sm:$0x1] %vm429, 0
      %439 = vst.msk [vmem:[#allocation3 + $0x28] sm:$0xf] %vm280, 0
      %440 = vst.msk [vmem:[#allocation3 + $0x2c] sm:$0x1] %vm429, 0
      %441 = vst.msk [vmem:[#allocation3 + $0x30] sm:$0xf] %vm280, 0
      %442 = vst.msk [vmem:[#allocation3 + $0x34] sm:$0x1] %vm429, 0
      %443 = vst.msk [vmem:[#allocation3 + $0x38] sm:$0xf] %vm280, 0
      %444 = vst.msk [vmem:[#allocation3 + $0x3c] sm:$0x1] %vm429, 0
      %445 = vst.msk [vmem:[#allocation3 + $0x40] sm:$0xf] %vm280, 0
      %446 = vst.msk [vmem:[#allocation3 + $0x44] sm:$0x1] %vm429, 0
      %447 = vst.msk [vmem:[#allocation3 + $0x48] sm:$0xf] %vm280, 0
      %448 = vst.msk [vmem:[#allocation3 + $0x4c] sm:$0x1] %vm429, 0
      %v449 = vld [vmem:[%s273] sm:$0xf]
      %v450 = vld [vmem:[%s273 + $0x8] sm:$0xf]
      %v451 = vld [vmem:[%s273 + $0x10] sm:$0xf]
      %v452 = vld [vmem:[%s273 + $0x18] sm:$0xf]
      %v453 = vld [vmem:[%s273 + $0x20] sm:$0xf]
      %v454 = vld [vmem:[%s273 + $0x28] sm:$0xf]
      %v455 = vld [vmem:[%s273 + $0x30] sm:$0xf]
      %v456 = vld [vmem:[%s273 + $0x38] sm:$0xf]
      %v457 = vld [vmem:[%s1] sm:$0x3]
      %s458 = scalar_lea.vmem %s273, 72
      %v459 = vld [vmem:[%s458] sm:$0xf]
      %v460 = vld [vmem:[%s458 + $0x8] sm:$0xf]
      %v461 = vld [vmem:[%s458 + $0x10] sm:$0xf]
      %v462 = vld [vmem:[%s458 + $0x18] sm:$0xf]
      %v463 = vld [vmem:[%s458 + $0x20] sm:$0xf]
      %v464 = vld [vmem:[%s458 + $0x28] sm:$0xf]
      %v465 = vld [vmem:[%s458 + $0x30] sm:$0xf]
      %v466 = vld [vmem:[%s458 + $0x38] sm:$0xf]
      %s467 = scalar_lea.vmem %s1, 2
      %v468 = vld [vmem:[%s467] sm:$0x3]
      %v477 = vunpack.c.l.b16 %v459
      %v478 = vunpack.c.l.b16 %v460
      %v479 = vunpack.c.l.b16 %v461
      %v480 = vunpack.c.l.b16 %v462
      %v481 = vunpack.c.l.b16 %v463
      %v482 = vunpack.c.l.b16 %v464
      %v483 = vunpack.c.l.b16 %v465
      %v484 = vunpack.c.l.b16 %v466
      %v485 = vpack.c.b16 %v478, %v477
      %v486 = vpack.c.b16 %v480, %v479
      %v487 = vpack.c.b16 %v482, %v481
      %v488 = vpack.c.b16 %v484, %v483
      %vm489 = vcmask 23552
      %v491 = vsel %vm489, %v485, 0
      %v494 = vsel %vm489, %v486, 0
      %v497 = vsel %vm489, %v487, 0
      %v500 = vsel %vm489, %v488, 0
      %vm502 = vcmask 1040384
      %vm503 = vcmask 1041408
      %v504 = vsel %vm502, 4294967295, 65535
      %v505 = vsel %vm503, %v504, 0
      %v507 = vand.u32 %v468, %v505
      %509 = vmatprep.subr.bf16.mxu0 0
      %510 = vmatpush1.bf16.msra.mxu0 %v507
      %511 = vmatprep.subr.bf16.mxu0 0
      %512 = vmatpush1.bf16.msra.mxu0 0
      %513 = vmatprep.subr.bf16.mxu0 0
      %514 = vmatpush1.bf16.msra.mxu0 0
      %515 = vmatprep.subr.bf16.mxu0 0
      %516 = vmatpush1.bf16.msra.mxu0 0
      %517 = vmatprep.subr.bf16.mxu0 0
      %518 = vmatpush1.bf16.msra.mxu0 0
      %519 = vmatprep.subr.bf16.mxu0 0
      %520 = vmatpush1.bf16.msra.mxu0 0
      %521 = vmatprep.subr.bf16.mxu0 0
      %522 = vmatpush1.bf16.msra.mxu0 0
      %523 = vmatprep.subr.bf16.mxu0 0
      %524 = vmatpush1.bf16.msra.mxu0 0
      %525 = vmatprep.subr.bf16.mxu0 0
      %526 = vmatpush1.bf16.msra.mxu0 0
      %527 = vmatprep.subr.bf16.mxu0 0
      %528 = vmatpush1.bf16.msra.mxu0 0
      %529 = vmatprep.subr.bf16.mxu0 0
      %530 = vmatpush1.bf16.msra.mxu0 0
      %531 = vmatprep.subr.bf16.mxu0 0
      %532 = vmatpush1.bf16.msra.mxu0 0
      %533 = vmatprep.subr.bf16.mxu0 0
      %534 = vmatpush1.bf16.msra.mxu0 0
      %535 = vmatprep.subr.bf16.mxu0 0
      %536 = vmatpush1.bf16.msra.mxu0 0
      %537 = vmatprep.subr.bf16.mxu0 0
      %538 = vmatpush1.bf16.msra.mxu0 0
      %539 = vmatprep.subr.bf16.mxu0 0
      %540 = vmatpush1.bf16.msra.mxu0 0
      %541 = vmatprep.mubr.bf16.mxu0 0
      %542 = vmatmul.mubr.bf16.gmra.mrb[0].mxu0 %v491
      %v543 = vpop.f32.mrb[0].mxu0
      %v544 = vadd.f32 0.0, %v543
      %v545 = vpop.f32.mrb[0].mxu0
      %v546 = vpop.f32.mrb[0].mxu0
      %v547 = vadd.f32 0.0, %v546
      %v548 = vpop.f32.mrb[0].mxu0
      %549 = vmatprep.mubr.bf16.mxu0 0
      %550 = vmatmul.mubr.bf16.gmra.mrb[0].mxu0 %v494
      %v551 = vpop.f32.mrb[0].mxu0
      %v552 = vadd.f32 0.0, %v551
      %v553 = vpop.f32.mrb[0].mxu0
      %v554 = vpop.f32.mrb[0].mxu0
      %v555 = vadd.f32 0.0, %v554
      %v556 = vpop.f32.mrb[0].mxu0
      %557 = vmatprep.mubr.bf16.mxu0 0
      %558 = vmatmul.mubr.bf16.gmra.mrb[0].mxu0 %v497
      %v559 = vpop.f32.mrb[0].mxu0
      %v560 = vadd.f32 0.0, %v559
      %v561 = vpop.f32.mrb[0].mxu0
      %v562 = vpop.f32.mrb[0].mxu0
      %v563 = vadd.f32 0.0, %v562
      %v564 = vpop.f32.mrb[0].mxu0
      %565 = vmatprep.mubr.bf16.mxu0 0
      %566 = vmatmul.mubr.bf16.gmra.mrb[0].mxu0 %v500
      %v567 = vpop.f32.mrb[0].mxu0
      %v568 = vadd.f32 0.0, %v567
      %v569 = vpop.f32.mrb[0].mxu0
      %v570 = vpop.f32.mrb[0].mxu0
      %v571 = vadd.f32 0.0, %v570
      %v572 = vpop.f32.mrb[0].mxu0
      %573 = vdwg.mxu0
      %v582 = vunpack.c.l.b16 %v449
      %v583 = vunpack.c.l.b16 %v450
      %v584 = vunpack.c.l.b16 %v451
      %v585 = vunpack.c.l.b16 %v452
      %v586 = vunpack.c.l.b16 %v453
      %v587 = vunpack.c.l.b16 %v454
      %v588 = vunpack.c.l.b16 %v455
      %v589 = vunpack.c.l.b16 %v456
      %v590 = vpack.c.b16 %v583, %v582
      %v591 = vpack.c.b16 %v585, %v584
      %v592 = vpack.c.b16 %v587, %v586
      %v593 = vpack.c.b16 %v589, %v588
      %v595 = vsel %vm489, %v590, 0
      %v598 = vsel %vm489, %v591, 0
      %v601 = vsel %vm489, %v592, 0
      %v604 = vsel %vm489, %v593, 0
      %v607 = vand.u32 %v457, %v505
      %609 = vmatprep.subr.bf16.mxu0 0
      %610 = vmatpush1.bf16.msra.mxu0 %v607
      %611 = vmatprep.subr.bf16.mxu0 0
      %612 = vmatpush1.bf16.msra.mxu0 0
      %613 = vmatprep.subr.bf16.mxu0 0
      %614 = vmatpush1.bf16.msra.mxu0 0
      %615 = vmatprep.subr.bf16.mxu0 0
      %616 = vmatpush1.bf16.msra.mxu0 0
      %617 = vmatprep.subr.bf16.mxu0 0
      %618 = vmatpush1.bf16.msra.mxu0 0
      %619 = vmatprep.subr.bf16.mxu0 0
      %620 = vmatpush1.bf16.msra.mxu0 0
      %621 = vmatprep.subr.bf16.mxu0 0
      %622 = vmatpush1.bf16.msra.mxu0 0
      %623 = vmatprep.subr.bf16.mxu0 0
      %624 = vmatpush1.bf16.msra.mxu0 0
      %625 = vmatprep.subr.bf16.mxu0 0
      %626 = vmatpush1.bf16.msra.mxu0 0
      %627 = vmatprep.subr.bf16.mxu0 0
      %628 = vmatpush1.bf16.msra.mxu0 0
      %629 = vmatprep.subr.bf16.mxu0 0
      %630 = vmatpush1.bf16.msra.mxu0 0
      %631 = vmatprep.subr.bf16.mxu0 0
      %632 = vmatpush1.bf16.msra.mxu0 0
      %633 = vmatprep.subr.bf16.mxu0 0
      %634 = vmatpush1.bf16.msra.mxu0 0
      %635 = vmatprep.subr.bf16.mxu0 0
      %636 = vmatpush1.bf16.msra.mxu0 0
      %637 = vmatprep.subr.bf16.mxu0 0
      %638 = vmatpush1.bf16.msra.mxu0 0
      %639 = vmatprep.subr.bf16.mxu0 0
      %640 = vmatpush1.bf16.msra.mxu0 0
      %641 = vmatprep.mubr.bf16.mxu0 0
      %642 = vmatmul.mubr.bf16.gmra.mrb[0].mxu0 %v595
      %v643 = vpop.f32.mrb[0].mxu0
      %v644 = vadd.f32 %v544, %v643
      %v645 = vpop.f32.mrb[0].mxu0
      %v646 = vpop.f32.mrb[0].mxu0
      %v647 = vadd.f32 %v547, %v646
      %v648 = vpop.f32.mrb[0].mxu0
      %649 = vmatprep.mubr.bf16.mxu0 0
      %650 = vmatmul.mubr.bf16.gmra.mrb[0].mxu0 %v598
      %v651 = vpop.f32.mrb[0].mxu0
      %v652 = vadd.f32 %v552, %v651
      %v653 = vpop.f32.mrb[0].mxu0
      %v654 = vpop.f32.mrb[0].mxu0
      %v655 = vadd.f32 %v555, %v654
      %v656 = vpop.f32.mrb[0].mxu0
      %657 = vmatprep.mubr.bf16.mxu0 0
      %658 = vmatmul.mubr.bf16.gmra.mrb[0].mxu0 %v601
      %v659 = vpop.f32.mrb[0].mxu0
      %v660 = vadd.f32 %v560, %v659
      %v661 = vpop.f32.mrb[0].mxu0
      %v662 = vpop.f32.mrb[0].mxu0
      %v663 = vadd.f32 %v563, %v662
      %v664 = vpop.f32.mrb[0].mxu0
      %665 = vmatprep.mubr.bf16.mxu0 0
      %666 = vmatmul.mubr.bf16.gmra.mrb[0].mxu0 %v604
      %v667 = vpop.f32.mrb[0].mxu0
      %v668 = vadd.f32 %v568, %v667
      %v669 = vpop.f32.mrb[0].mxu0
      %v670 = vpop.f32.mrb[0].mxu0
      %v671 = vadd.f32 %v571, %v670
      %v672 = vpop.f32.mrb[0].mxu0
      %673 = vdwg.mxu0
      %v674 = vld [vmem:[%s273] sm:$0xf]
      %v675 = vld [vmem:[%s273 + $0x4] sm:$0x1]
      %v676 = vld [vmem:[%s273 + $0x8] sm:$0xf]
      %v677 = vld [vmem:[%s273 + $0xc] sm:$0x1]
      %v678 = vld [vmem:[%s273 + $0x10] sm:$0xf]
      %v679 = vld [vmem:[%s273 + $0x14] sm:$0x1]
      %v680 = vld [vmem:[%s273 + $0x18] sm:$0xf]
      %v681 = vld [vmem:[%s273 + $0x1c] sm:$0x1]
      %v682 = vld [vmem:[%s273 + $0x20] sm:$0xf]
      %v683 = vld [vmem:[%s273 + $0x24] sm:$0x1]
      %v684 = vld [vmem:[%s273 + $0x28] sm:$0xf]
      %v685 = vld [vmem:[%s273 + $0x2c] sm:$0x1]
      %v686 = vld [vmem:[%s273 + $0x30] sm:$0xf]
      %v687 = vld [vmem:[%s273 + $0x34] sm:$0x1]
      %v688 = vld [vmem:[%s273 + $0x38] sm:$0xf]
      %v689 = vld [vmem:[%s273 + $0x3c] sm:$0x1]
      %vm690 = vsmask.f32 3328
      %vm691 = vsmask.f32 7440
      %vm692 = vmor %vm690, %vm691
      %v694 = vshrl.u32 %v674, 16
      %v696 = vrot.slane %v694, 4
      %v697 = vshll.u32 %v674, 16
      %v699 = vrot.slane %v697, 5
      %v700 = vor.u32 %v696, %v699
      %v701 = vrot.slane %v700, 4
      %v703 = vshll.u32 %v675, 16
      %v705 = vrot.slane %v703, 5
      %v706 = vsel %vm692, %v701, %v705
      %v708 = vshrl.u32 %v676, 16
      %v710 = vrot.slane %v708, 4
      %v711 = vshll.u32 %v676, 16
      %v713 = vrot.slane %v711, 5
      %v714 = vor.u32 %v710, %v713
      %v715 = vrot.slane %v714, 4
      %v717 = vshll.u32 %v677, 16
      %v719 = vrot.slane %v717, 5
      %v720 = vsel %vm692, %v715, %v719
      %v722 = vshrl.u32 %v678, 16
      %v724 = vrot.slane %v722, 4
      %v725 = vshll.u32 %v678, 16
      %v727 = vrot.slane %v725, 5
      %v728 = vor.u32 %v724, %v727
      %v729 = vrot.slane %v728, 4
      %v731 = vshll.u32 %v679, 16
      %v733 = vrot.slane %v731, 5
      %v734 = vsel %vm692, %v729, %v733
      %v736 = vshrl.u32 %v680, 16
      %v738 = vrot.slane %v736, 4
      %v739 = vshll.u32 %v680, 16
      %v741 = vrot.slane %v739, 5
      %v742 = vor.u32 %v738, %v741
      %v743 = vrot.slane %v742, 4
      %v745 = vshll.u32 %v681, 16
      %v747 = vrot.slane %v745, 5
      %v748 = vsel %vm692, %v743, %v747
      %v750 = vshrl.u32 %v682, 16
      %v752 = vrot.slane %v750, 4
      %v753 = vshll.u32 %v682, 16
      %v755 = vrot.slane %v753, 5
      %v756 = vor.u32 %v752, %v755
      %v757 = vrot.slane %v756, 4
      %v759 = vshll.u32 %v683, 16
      %v761 = vrot.slane %v759, 5
      %v762 = vsel %vm692, %v757, %v761
      %v764 = vshrl.u32 %v684, 16
      %v766 = vrot.slane %v764, 4
      %v767 = vshll.u32 %v684, 16
      %v769 = vrot.slane %v767, 5
      %v770 = vor.u32 %v766, %v769
      %v771 = vrot.slane %v770, 4
      %v773 = vshll.u32 %v685, 16
      %v775 = vrot.slane %v773, 5
      %v776 = vsel %vm692, %v771, %v775
      %v778 = vshrl.u32 %v686, 16
      %v780 = vrot.slane %v778, 4
      %v781 = vshll.u32 %v686, 16
      %v783 = vrot.slane %v781, 5
      %v784 = vor.u32 %v780, %v783
      %v785 = vrot.slane %v784, 4
      %v787 = vshll.u32 %v687, 16
      %v789 = vrot.slane %v787, 5
      %v790 = vsel %vm692, %v785, %v789
      %v792 = vshrl.u32 %v688, 16
      %v794 = vrot.slane %v792, 4
      %v795 = vshll.u32 %v688, 16
      %v797 = vrot.slane %v795, 5
      %v798 = vor.u32 %v794, %v797
      %v799 = vrot.slane %v798, 4
      %v801 = vshll.u32 %v689, 16
      %v803 = vrot.slane %v801, 5
      %v804 = vsel %vm692, %v799, %v803
      %s805 = scalar_lea.vmem %s1, 4
      %v806 = vld [vmem:[%s805] sm:$0x3]
      %v807 = vunpack.c.l.b16 %v706
      %v808 = vunpack.c.l.b16 %v720
      %v809 = vunpack.c.l.b16 %v734
      %v810 = vunpack.c.l.b16 %v748
      %v811 = vunpack.c.l.b16 %v762
      %v812 = vunpack.c.l.b16 %v776
      %v813 = vunpack.c.l.b16 %v790
      %v814 = vunpack.c.l.b16 %v804
      %v815 = vpack.c.b16 %v808, %v807
      %v816 = vpack.c.b16 %v810, %v809
      %v817 = vpack.c.b16 %v812, %v811
      %v818 = vpack.c.b16 %v814, %v813
      %v820 = vsel %vm489, %v815, 0
      %v823 = vsel %vm489, %v816, 0
      %v826 = vsel %vm489, %v817, 0
      %v829 = vsel %vm489, %v818, 0
      %v832 = vand.u32 %v806, %v505
      %834 = vmatprep.subr.bf16.mxu0 0
      %835 = vmatpush1.bf16.msra.mxu0 %v832
      %836 = vmatprep.subr.bf16.mxu0 0
      %837 = vmatpush1.bf16.msra.mxu0 0
      %838 = vmatprep.subr.bf16.mxu0 0
      %839 = vmatpush1.bf16.msra.mxu0 0
      %840 = vmatprep.subr.bf16.mxu0 0
      %841 = vmatpush1.bf16.msra.mxu0 0
      %842 = vmatprep.subr.bf16.mxu0 0
      %843 = vmatpush1.bf16.msra.mxu0 0
      %844 = vmatprep.subr.bf16.mxu0 0
      %845 = vmatpush1.bf16.msra.mxu0 0
      %846 = vmatprep.subr.bf16.mxu0 0
      %847 = vmatpush1.bf16.msra.mxu0 0
      %848 = vmatprep.subr.bf16.mxu0 0
      %849 = vmatpush1.bf16.msra.mxu0 0
      %850 = vmatprep.subr.bf16.mxu0 0
      %851 = vmatpush1.bf16.msra.mxu0 0
      %852 = vmatprep.subr.bf16.mxu0 0
      %853 = vmatpush1.bf16.msra.mxu0 0
      %854 = vmatprep.subr.bf16.mxu0 0
      %855 = vmatpush1.bf16.msra.mxu0 0
      %856 = vmatprep.subr.bf16.mxu0 0
      %857 = vmatpush1.bf16.msra.mxu0 0
      %858 = vmatprep.subr.bf16.mxu0 0
      %859 = vmatpush1.bf16.msra.mxu0 0
      %860 = vmatprep.subr.bf16.mxu0 0
      %861 = vmatpush1.bf16.msra.mxu0 0
      %862 = vmatprep.subr.bf16.mxu0 0
      %863 = vmatpush1.bf16.msra.mxu0 0
      %864 = vmatprep.subr.bf16.mxu0 0
      %865 = vmatpush1.bf16.msra.mxu0 0
      %866 = vmatprep.mubr.bf16.mxu0 0
      %867 = vmatmul.mubr.bf16.gmra.mrb[0].mxu0 %v820
      %v868 = vpop.f32.mrb[0].mxu0
      %v869 = vadd.f32 0.0, %v868
      %v870 = vpop.f32.mrb[0].mxu0
      %v871 = vpop.f32.mrb[0].mxu0
      %v872 = vadd.f32 0.0, %v871
      %v873 = vpop.f32.mrb[0].mxu0
      %874 = vmatprep.mubr.bf16.mxu0 0
      %875 = vmatmul.mubr.bf16.gmra.mrb[0].mxu0 %v823
      %v876 = vpop.f32.mrb[0].mxu0
      %v877 = vadd.f32 0.0, %v876
      %v878 = vpop.f32.mrb[0].mxu0
      %v879 = vpop.f32.mrb[0].mxu0
      %v880 = vadd.f32 0.0, %v879
      %v881 = vpop.f32.mrb[0].mxu0
      %882 = vmatprep.mubr.bf16.mxu0 0
      %883 = vmatmul.mubr.bf16.gmra.mrb[0].mxu0 %v826
      %v884 = vpop.f32.mrb[0].mxu0
      %v885 = vadd.f32 0.0, %v884
      %v886 = vpop.f32.mrb[0].mxu0
      %v887 = vpop.f32.mrb[0].mxu0
      %v888 = vadd.f32 0.0, %v887
      %v889 = vpop.f32.mrb[0].mxu0
      %890 = vmatprep.mubr.bf16.mxu0 0
      %891 = vmatmul.mubr.bf16.gmra.mrb[0].mxu0 %v829
      %v892 = vpop.f32.mrb[0].mxu0
      %v893 = vadd.f32 0.0, %v892
      %v894 = vpop.f32.mrb[0].mxu0
      %v895 = vpop.f32.mrb[0].mxu0
      %v896 = vadd.f32 0.0, %v895
      %v897 = vpop.f32.mrb[0].mxu0
      %898 = vdwg.mxu0
      %v899 = vadd.f32 %v644, %v869
      %v900 = vadd.f32 %v647, %v872
      %v901 = vadd.f32 %v652, %v877
      %v902 = vadd.f32 %v655, %v880
      %v903 = vadd.f32 %v660, %v885
      %v904 = vadd.f32 %v663, %v888
      %v905 = vadd.f32 %v668, %v893
      %v906 = vadd.f32 %v671, %v896
      %s907 = scalar_lea.vmem %s273, 144
      %v908 = vld [vmem:[%s907] sm:$0xf]
      %v909 = vld [vmem:[%s907 + $0x8] sm:$0xf]
      %v910 = vld [vmem:[%s907 + $0x10] sm:$0xf]
      %v911 = vld [vmem:[%s907 + $0x18] sm:$0xf]
      %v912 = vld [vmem:[%s907 + $0x20] sm:$0xf]
      %v913 = vld [vmem:[%s907 + $0x28] sm:$0xf]
      %v914 = vld [vmem:[%s907 + $0x30] sm:$0xf]
      %v915 = vld [vmem:[%s907 + $0x38] sm:$0xf]
      %s916 = scalar_lea.vmem %s1, 6
      %v917 = vld [vmem:[%s916] sm:$0x3]
      %v926 = vunpack.c.l.b16 %v908
      %v927 = vunpack.c.l.b16 %v909
      %v928 = vunpack.c.l.b16 %v910
      %v929 = vunpack.c.l.b16 %v911
      %v930 = vunpack.c.l.b16 %v912
      %v931 = vunpack.c.l.b16 %v913
      %v932 = vunpack.c.l.b16 %v914
      %v933 = vunpack.c.l.b16 %v915
      %v934 = vpack.c.b16 %v927, %v926
      %v935 = vpack.c.b16 %v929, %v928
      %v936 = vpack.c.b16 %v931, %v930
      %v937 = vpack.c.b16 %v933, %v932
      %v939 = vsel %vm489, %v934, 0
      %v942 = vsel %vm489, %v935, 0
      %v945 = vsel %vm489, %v936, 0
      %v948 = vsel %vm489, %v937, 0
      %v951 = vand.u32 %v917, %v505
      %953 = vmatprep.subr.bf16.mxu0 0
      %954 = vmatpush1.bf16.msra.mxu0 %v951
      %955 = vmatprep.subr.bf16.mxu0 0
      %956 = vmatpush1.bf16.msra.mxu0 0
      %957 = vmatprep.subr.bf16.mxu0 0
      %958 = vmatpush1.bf16.msra.mxu0 0
      %959 = vmatprep.subr.bf16.mxu0 0
      %960 = vmatpush1.bf16.msra.mxu0 0
      %961 = vmatprep.subr.bf16.mxu0 0
      %962 = vmatpush1.bf16.msra.mxu0 0
      %963 = vmatprep.subr.bf16.mxu0 0
      %964 = vmatpush1.bf16.msra.mxu0 0
      %965 = vmatprep.subr.bf16.mxu0 0
      %966 = vmatpush1.bf16.msra.mxu0 0
      %967 = vmatprep.subr.bf16.mxu0 0
      %968 = vmatpush1.bf16.msra.mxu0 0
      %969 = vmatprep.subr.bf16.mxu0 0
      %970 = vmatpush1.bf16.msra.mxu0 0
      %971 = vmatprep.subr.bf16.mxu0 0
      %972 = vmatpush1.bf16.msra.mxu0 0
      %973 = vmatprep.subr.bf16.mxu0 0
      %974 = vmatpush1.bf16.msra.mxu0 0
      %975 = vmatprep.subr.bf16.mxu0 0
      %976 = vmatpush1.bf16.msra.mxu0 0
      %977 = vmatprep.subr.bf16.mxu0 0
      %978 = vmatpush1.bf16.msra.mxu0 0
      %979 = vmatprep.subr.bf16.mxu0 0
      %980 = vmatpush1.bf16.msra.mxu0 0
      %981 = vmatprep.subr.bf16.mxu0 0
      %982 = vmatpush1.bf16.msra.mxu0 0
      %983 = vmatprep.subr.bf16.mxu0 0
      %984 = vmatpush1.bf16.msra.mxu0 0
      %985 = vmatprep.mubr.bf16.mxu0 0
      %986 = vmatmul.mubr.bf16.gmra.mrb[0].mxu0 %v939
      %v987 = vpop.f32.mrb[0].mxu0
      %v988 = vadd.f32 0.0, %v987
      %v989 = vpop.f32.mrb[0].mxu0
      %v990 = vpop.f32.mrb[0].mxu0
      %v991 = vadd.f32 0.0, %v990
      %v992 = vpop.f32.mrb[0].mxu0
      %993 = vmatprep.mubr.bf16.mxu0 0
      %994 = vmatmul.mubr.bf16.gmra.mrb[0].mxu0 %v942
      %v995 = vpop.f32.mrb[0].mxu0
      %v996 = vadd.f32 0.0, %v995
      %v997 = vpop.f32.mrb[0].mxu0
      %v998 = vpop.f32.mrb[0].mxu0
      %v999 = vadd.f32 0.0, %v998
      %v1000 = vpop.f32.mrb[0].mxu0
      %1001 = vmatprep.mubr.bf16.mxu0 0
      %1002 = vmatmul.mubr.bf16.gmra.mrb[0].mxu0 %v945
      %v1003 = vpop.f32.mrb[0].mxu0
      %v1004 = vadd.f32 0.0, %v1003
      %v1005 = vpop.f32.mrb[0].mxu0
      %v1006 = vpop.f32.mrb[0].mxu0
      %v1007 = vadd.f32 0.0, %v1006
      %v1008 = vpop.f32.mrb[0].mxu0
      %1009 = vmatprep.mubr.bf16.mxu0 0
      %1010 = vmatmul.mubr.bf16.gmra.mrb[0].mxu0 %v948
      %v1011 = vpop.f32.mrb[0].mxu0
      %v1012 = vadd.f32 0.0, %v1011
      %v1013 = vpop.f32.mrb[0].mxu0
      %v1014 = vpop.f32.mrb[0].mxu0
      %v1015 = vadd.f32 0.0, %v1014
      %v1016 = vpop.f32.mrb[0].mxu0
      %1017 = vdwg.mxu0
      %v1018 = vadd.f32 %v899, %v988
      %v1019 = vadd.f32 %v900, %v991
      %v1020 = vadd.f32 %v901, %v996
      %v1021 = vadd.f32 %v902, %v999
      %v1022 = vadd.f32 %v903, %v1004
      %v1023 = vadd.f32 %v904, %v1007
      %v1024 = vadd.f32 %v905, %v1012
      %v1025 = vadd.f32 %v906, %v1015
      %s1026 = scalar_lea.vmem %s273, 216
      %v1027 = vld [vmem:[%s1026] sm:$0xf]
      %v1028 = vld [vmem:[%s1026 + $0x8] sm:$0xf]
      %v1029 = vld [vmem:[%s1026 + $0x10] sm:$0xf]
      %v1030 = vld [vmem:[%s1026 + $0x18] sm:$0xf]
      %v1031 = vld [vmem:[%s1026 + $0x20] sm:$0xf]
      %v1032 = vld [vmem:[%s1026 + $0x28] sm:$0xf]
      %v1033 = vld [vmem:[%s1026 + $0x30] sm:$0xf]
      %v1034 = vld [vmem:[%s1026 + $0x38] sm:$0xf]
      %s1035 = scalar_lea.vmem %s1, 8
      %v1036 = vld [vmem:[%s1035] sm:$0x3]
      %v1045 = vunpack.c.l.b16 %v1027
      %v1046 = vunpack.c.l.b16 %v1028
      %v1047 = vunpack.c.l.b16 %v1029
      %v1048 = vunpack.c.l.b16 %v1030
      %v1049 = vunpack.c.l.b16 %v1031
      %v1050 = vunpack.c.l.b16 %v1032
      %v1051 = vunpack.c.l.b16 %v1033
      %v1052 = vunpack.c.l.b16 %v1034
      %v1053 = vpack.c.b16 %v1046, %v1045
      %v1054 = vpack.c.b16 %v1048, %v1047
      %v1055 = vpack.c.b16 %v1050, %v1049
      %v1056 = vpack.c.b16 %v1052, %v1051
      %v1058 = vsel %vm489, %v1053, 0
      %v1061 = vsel %vm489, %v1054, 0
      %v1064 = vsel %vm489, %v1055, 0
      %v1067 = vsel %vm489, %v1056, 0
      %v1070 = vand.u32 %v1036, %v505
      %1072 = vmatprep.subr.bf16.mxu0 0
      %1073 = vmatpush1.bf16.msra.mxu0 %v1070
      %1074 = vmatprep.subr.bf16.mxu0 0
      %1075 = vmatpush1.bf16.msra.mxu0 0
      %1076 = vmatprep.subr.bf16.mxu0 0
      %1077 = vmatpush1.bf16.msra.mxu0 0
      %1078 = vmatprep.subr.bf16.mxu0 0
      %1079 = vmatpush1.bf16.msra.mxu0 0
      %1080 = vmatprep.subr.bf16.mxu0 0
      %1081 = vmatpush1.bf16.msra.mxu0 0
      %1082 = vmatprep.subr.bf16.mxu0 0
      %1083 = vmatpush1.bf16.msra.mxu0 0
      %1084 = vmatprep.subr.bf16.mxu0 0
      %1085 = vmatpush1.bf16.msra.mxu0 0
      %1086 = vmatprep.subr.bf16.mxu0 0
      %1087 = vmatpush1.bf16.msra.mxu0 0
      %1088 = vmatprep.subr.bf16.mxu0 0
      %1089 = vmatpush1.bf16.msra.mxu0 0
      %1090 = vmatprep.subr.bf16.mxu0 0
      %1091 = vmatpush1.bf16.msra.mxu0 0
      %1092 = vmatprep.subr.bf16.mxu0 0
      %1093 = vmatpush1.bf16.msra.mxu0 0
      %1094 = vmatprep.subr.bf16.mxu0 0
      %1095 = vmatpush1.bf16.msra.mxu0 0
      %1096 = vmatprep.subr.bf16.mxu0 0
      %1097 = vmatpush1.bf16.msra.mxu0 0
      %1098 = vmatprep.subr.bf16.mxu0 0
      %1099 = vmatpush1.bf16.msra.mxu0 0
      %1100 = vmatprep.subr.bf16.mxu0 0
      %1101 = vmatpush1.bf16.msra.mxu0 0
      %1102 = vmatprep.subr.bf16.mxu0 0
      %1103 = vmatpush1.bf16.msra.mxu0 0
      %1104 = vmatprep.mubr.bf16.mxu0 0
      %1105 = vmatmul.mubr.bf16.gmra.mrb[0].mxu0 %v1058
      %v1106 = vpop.f32.mrb[0].mxu0
      %v1107 = vadd.f32 0.0, %v1106
      %v1108 = vpop.f32.mrb[0].mxu0
      %v1109 = vpop.f32.mrb[0].mxu0
      %v1110 = vadd.f32 0.0, %v1109
      %v1111 = vpop.f32.mrb[0].mxu0
      %1112 = vmatprep.mubr.bf16.mxu0 0
      %1113 = vmatmul.mubr.bf16.gmra.mrb[0].mxu0 %v1061
      %v1114 = vpop.f32.mrb[0].mxu0
      %v1115 = vadd.f32 0.0, %v1114
      %v1116 = vpop.f32.mrb[0].mxu0
      %v1117 = vpop.f32.mrb[0].mxu0
      %v1118 = vadd.f32 0.0, %v1117
      %v1119 = vpop.f32.mrb[0].mxu0
      %1120 = vmatprep.mubr.bf16.mxu0 0
      %1121 = vmatmul.mubr.bf16.gmra.mrb[0].mxu0 %v1064
      %v1122 = vpop.f32.mrb[0].mxu0
      %v1123 = vadd.f32 0.0, %v1122
      %v1124 = vpop.f32.mrb[0].mxu0
      %v1125 = vpop.f32.mrb[0].mxu0
      %v1126 = vadd.f32 0.0, %v1125
      %v1127 = vpop.f32.mrb[0].mxu0
      %1128 = vmatprep.mubr.bf16.mxu0 0
      %1129 = vmatmul.mubr.bf16.gmra.mrb[0].mxu0 %v1067
      %v1130 = vpop.f32.mrb[0].mxu0
      %v1131 = vadd.f32 0.0, %v1130
      %v1132 = vpop.f32.mrb[0].mxu0
      %v1133 = vpop.f32.mrb[0].mxu0
      %v1134 = vadd.f32 0.0, %v1133
      %v1135 = vpop.f32.mrb[0].mxu0
      %1136 = vdwg.mxu0
      %v1137 = vadd.f32 %v1018, %v1107
      %v1138 = vadd.f32 %v1019, %v1110
      %v1139 = vadd.f32 %v1020, %v1115
      %v1140 = vadd.f32 %v1021, %v1118
      %v1141 = vadd.f32 %v1022, %v1123
      %v1142 = vadd.f32 %v1023, %v1126
      %v1143 = vadd.f32 %v1024, %v1131
      %v1144 = vadd.f32 %v1025, %v1134
      %v1145 = vld [vmem:[%s907] sm:$0xf]
      %v1146 = vld [vmem:[%s907 + $0x4] sm:$0x1]
      %v1147 = vld [vmem:[%s907 + $0x8] sm:$0xf]
      %v1148 = vld [vmem:[%s907 + $0xc] sm:$0x1]
      %v1149 = vld [vmem:[%s907 + $0x10] sm:$0xf]
      %v1150 = vld [vmem:[%s907 + $0x14] sm:$0x1]
      %v1151 = vld [vmem:[%s907 + $0x18] sm:$0xf]
      %v1152 = vld [vmem:[%s907 + $0x1c] sm:$0x1]
      %v1153 = vld [vmem:[%s907 + $0x20] sm:$0xf]
      %v1154 = vld [vmem:[%s907 + $0x24] sm:$0x1]
      %v1155 = vld [vmem:[%s907 + $0x28] sm:$0xf]
      %v1156 = vld [vmem:[%s907 + $0x2c] sm:$0x1]
      %v1157 = vld [vmem:[%s907 + $0x30] sm:$0xf]
      %v1158 = vld [vmem:[%s907 + $0x34] sm:$0x1]
      %v1159 = vld [vmem:[%s907 + $0x38] sm:$0xf]
      %v1160 = vld [vmem:[%s907 + $0x3c] sm:$0x1]
      %v1162 = vshrl.u32 %v1145, 16
      %v1164 = vrot.slane %v1162, 4
      %v1165 = vshll.u32 %v1145, 16
      %v1167 = vrot.slane %v1165, 5
      %v1168 = vor.u32 %v1164, %v1167
      %v1169 = vrot.slane %v1168, 4
      %v1171 = vshll.u32 %v1146, 16
      %v1173 = vrot.slane %v1171, 5
      %v1174 = vsel %vm692, %v1169, %v1173
      %v1176 = vshrl.u32 %v1147, 16
      %v1178 = vrot.slane %v1176, 4
      %v1179 = vshll.u32 %v1147, 16
      %v1181 = vrot.slane %v1179, 5
      %v1182 = vor.u32 %v1178, %v1181
      %v1183 = vrot.slane %v1182, 4
      %v1185 = vshll.u32 %v1148, 16
      %v1187 = vrot.slane %v1185, 5
      %v1188 = vsel %vm692, %v1183, %v1187
      %v1190 = vshrl.u32 %v1149, 16
      %v1192 = vrot.slane %v1190, 4
      %v1193 = vshll.u32 %v1149, 16
      %v1195 = vrot.slane %v1193, 5
      %v1196 = vor.u32 %v1192, %v1195
      %v1197 = vrot.slane %v1196, 4
      %v1199 = vshll.u32 %v1150, 16
      %v1201 = vrot.slane %v1199, 5
      %v1202 = vsel %vm692, %v1197, %v1201
      %v1204 = vshrl.u32 %v1151, 16
      %v1206 = vrot.slane %v1204, 4
      %v1207 = vshll.u32 %v1151, 16
      %v1209 = vrot.slane %v1207, 5
      %v1210 = vor.u32 %v1206, %v1209
      %v1211 = vrot.slane %v1210, 4
      %v1213 = vshll.u32 %v1152, 16
      %v1215 = vrot.slane %v1213, 5
      %v1216 = vsel %vm692, %v1211, %v1215
      %v1218 = vshrl.u32 %v1153, 16
      %v1220 = vrot.slane %v1218, 4
      %v1221 = vshll.u32 %v1153, 16
      %v1223 = vrot.slane %v1221, 5
      %v1224 = vor.u32 %v1220, %v1223
      %v1225 = vrot.slane %v1224, 4
      %v1227 = vshll.u32 %v1154, 16
      %v1229 = vrot.slane %v1227, 5
      %v1230 = vsel %vm692, %v1225, %v1229
      %v1232 = vshrl.u32 %v1155, 16
      %v1234 = vrot.slane %v1232, 4
      %v1235 = vshll.u32 %v1155, 16
      %v1237 = vrot.slane %v1235, 5
      %v1238 = vor.u32 %v1234, %v1237
      %v1239 = vrot.slane %v1238, 4
      %v1241 = vshll.u32 %v1156, 16
      %v1243 = vrot.slane %v1241, 5
      %v1244 = vsel %vm692, %v1239, %v1243
      %v1246 = vshrl.u32 %v1157, 16
      %v1248 = vrot.slane %v1246, 4
      %v1249 = vshll.u32 %v1157, 16
      %v1251 = vrot.slane %v1249, 5
      %v1252 = vor.u32 %v1248, %v1251
      %v1253 = vrot.slane %v1252, 4
      %v1255 = vshll.u32 %v1158, 16
      %v1257 = vrot.slane %v1255, 5
      %v1258 = vsel %vm692, %v1253, %v1257
      %v1260 = vshrl.u32 %v1159, 16
      %v1262 = vrot.slane %v1260, 4
      %v1263 = vshll.u32 %v1159, 16
      %v1265 = vrot.slane %v1263, 5
      %v1266 = vor.u32 %v1262, %v1265
      %v1267 = vrot.slane %v1266, 4
      %v1269 = vshll.u32 %v1160, 16
      %v1271 = vrot.slane %v1269, 5
      %v1272 = vsel %vm692, %v1267, %v1271
      %s1273 = scalar_lea.vmem %s1, 10
      %v1274 = vld [vmem:[%s1273] sm:$0x3]
      %v1275 = vunpack.c.l.b16 %v1174
      %v1276 = vunpack.c.l.b16 %v1188
      %v1277 = vunpack.c.l.b16 %v1202
      %v1278 = vunpack.c.l.b16 %v1216
      %v1279 = vunpack.c.l.b16 %v1230
      %v1280 = vunpack.c.l.b16 %v1244
      %v1281 = vunpack.c.l.b16 %v1258
      %v1282 = vunpack.c.l.b16 %v1272
      %v1283 = vpack.c.b16 %v1276, %v1275
      %v1284 = vpack.c.b16 %v1278, %v1277
      %v1285 = vpack.c.b16 %v1280, %v1279
      %v1286 = vpack.c.b16 %v1282, %v1281
      %v1288 = vsel %vm489, %v1283, 0
      %v1291 = vsel %vm489, %v1284, 0
      %v1294 = vsel %vm489, %v1285, 0
      %v1297 = vsel %vm489, %v1286, 0
      %v1300 = vand.u32 %v1274, %v505
      %1302 = vmatprep.subr.bf16.mxu0 0
      %1303 = vmatpush1.bf16.msra.mxu0 %v1300
      %1304 = vmatprep.subr.bf16.mxu0 0
      %1305 = vmatpush1.bf16.msra.mxu0 0
      %1306 = vmatprep.subr.bf16.mxu0 0
      %1307 = vmatpush1.bf16.msra.mxu0 0
      %1308 = vmatprep.subr.bf16.mxu0 0
      %1309 = vmatpush1.bf16.msra.mxu0 0
      %1310 = vmatprep.subr.bf16.mxu0 0
      %1311 = vmatpush1.bf16.msra.mxu0 0
      %1312 = vmatprep.subr.bf16.mxu0 0
      %1313 = vmatpush1.bf16.msra.mxu0 0
      %1314 = vmatprep.subr.bf16.mxu0 0
      %1315 = vmatpush1.bf16.msra.mxu0 0
      %1316 = vmatprep.subr.bf16.mxu0 0
      %1317 = vmatpush1.bf16.msra.mxu0 0
      %1318 = vmatprep.subr.bf16.mxu0 0
      %1319 = vmatpush1.bf16.msra.mxu0 0
      %1320 = vmatprep.subr.bf16.mxu0 0
      %1321 = vmatpush1.bf16.msra.mxu0 0
      %1322 = vmatprep.subr.bf16.mxu0 0
      %1323 = vmatpush1.bf16.msra.mxu0 0
      %1324 = vmatprep.subr.bf16.mxu0 0
      %1325 = vmatpush1.bf16.msra.mxu0 0
      %1326 = vmatprep.subr.bf16.mxu0 0
      %1327 = vmatpush1.bf16.msra.mxu0 0
      %1328 = vmatprep.subr.bf16.mxu0 0
      %1329 = vmatpush1.bf16.msra.mxu0 0
      %1330 = vmatprep.subr.bf16.mxu0 0
      %1331 = vmatpush1.bf16.msra.mxu0 0
      %1332 = vmatprep.subr.bf16.mxu0 0
      %1333 = vmatpush1.bf16.msra.mxu0 0
      %1334 = vmatprep.mubr.bf16.mxu0 0
      %1335 = vmatmul.mubr.bf16.gmra.mrb[0].mxu0 %v1288
      %v1336 = vpop.f32.mrb[0].mxu0
      %v1337 = vadd.f32 0.0, %v1336
      %v1338 = vpop.f32.mrb[0].mxu0
      %v1339 = vpop.f32.mrb[0].mxu0
      %v1340 = vadd.f32 0.0, %v1339
      %v1341 = vpop.f32.mrb[0].mxu0
      %1342 = vmatprep.mubr.bf16.mxu0 0
      %1343 = vmatmul.mubr.bf16.gmra.mrb[0].mxu0 %v1291
      %v1344 = vpop.f32.mrb[0].mxu0
      %v1345 = vadd.f32 0.0, %v1344
      %v1346 = vpop.f32.mrb[0].mxu0
      %v1347 = vpop.f32.mrb[0].mxu0
      %v1348 = vadd.f32 0.0, %v1347
      %v1349 = vpop.f32.mrb[0].mxu0
      %1350 = vmatprep.mubr.bf16.mxu0 0
      %1351 = vmatmul.mubr.bf16.gmra.mrb[0].mxu0 %v1294
      %v1352 = vpop.f32.mrb[0].mxu0
      %v1353 = vadd.f32 0.0, %v1352
      %v1354 = vpop.f32.mrb[0].mxu0
      %v1355 = vpop.f32.mrb[0].mxu0
      %v1356 = vadd.f32 0.0, %v1355
      %v1357 = vpop.f32.mrb[0].mxu0
      %1358 = vmatprep.mubr.bf16.mxu0 0
      %1359 = vmatmul.mubr.bf16.gmra.mrb[0].mxu0 %v1297
      %v1360 = vpop.f32.mrb[0].mxu0
      %v1361 = vadd.f32 0.0, %v1360
      %v1362 = vpop.f32.mrb[0].mxu0
      %v1363 = vpop.f32.mrb[0].mxu0
      %v1364 = vadd.f32 0.0, %v1363
      %v1365 = vpop.f32.mrb[0].mxu0
      %1366 = vdwg.mxu0
      %v1367 = vadd.f32 %v1137, %v1337
      %v1368 = vadd.f32 %v1138, %v1340
      %v1369 = vadd.f32 %v1139, %v1345
      %v1370 = vadd.f32 %v1140, %v1348
      %v1371 = vadd.f32 %v1141, %v1353
      %v1372 = vadd.f32 %v1142, %v1356
      %v1373 = vadd.f32 %v1143, %v1361
      %v1374 = vadd.f32 %v1144, %v1364
      %s1375 = scalar_lea.vmem %s273, 8
      %v1376 = vld [vmem:[%s1375] sm:$0xf]
      %v1377 = vld [vmem:[%s1375 + $0x8] sm:$0xf]
      %v1378 = vld [vmem:[%s1375 + $0x10] sm:$0xf]
      %v1379 = vld [vmem:[%s1375 + $0x18] sm:$0xf]
      %v1380 = vld [vmem:[%s1375 + $0x20] sm:$0xf]
      %v1381 = vld [vmem:[%s1375 + $0x28] sm:$0xf]
      %v1382 = vld [vmem:[%s1375 + $0x30] sm:$0xf]
      %v1383 = vld [vmem:[%s1375 + $0x38] sm:$0xf]
      %s1384 = scalar_lea.vmem %s1, 12
      %v1385 = vld [vmem:[%s1384] sm:$0x3]
      %v1394 = vunpack.c.l.b16 %v1376
      %v1395 = vunpack.c.l.b16 %v1377
      %v1396 = vunpack.c.l.b16 %v1378
      %v1397 = vunpack.c.l.b16 %v1379
      %v1398 = vunpack.c.l.b16 %v1380
      %v1399 = vunpack.c.l.b16 %v1381
      %v1400 = vunpack.c.l.b16 %v1382
      %v1401 = vunpack.c.l.b16 %v1383
      %v1402 = vpack.c.b16 %v1395, %v1394
      %v1403 = vpack.c.b16 %v1397, %v1396
      %v1404 = vpack.c.b16 %v1399, %v1398
      %v1405 = vpack.c.b16 %v1401, %v1400
      %v1407 = vsel %vm489, %v1402, 0
      %v1410 = vsel %vm489, %v1403, 0
      %v1413 = vsel %vm489, %v1404, 0
      %v1416 = vsel %vm489, %v1405, 0
      %v1419 = vand.u32 %v1385, %v505
      %1421 = vmatprep.subr.bf16.mxu0 0
      %1422 = vmatpush1.bf16.msra.mxu0 %v1419
      %1423 = vmatprep.subr.bf16.mxu0 0
      %1424 = vmatpush1.bf16.msra.mxu0 0
      %1425 = vmatprep.subr.bf16.mxu0 0
      %1426 = vmatpush1.bf16.msra.mxu0 0
      %1427 = vmatprep.subr.bf16.mxu0 0
      %1428 = vmatpush1.bf16.msra.mxu0 0
      %1429 = vmatprep.subr.bf16.mxu0 0
      %1430 = vmatpush1.bf16.msra.mxu0 0
      %1431 = vmatprep.subr.bf16.mxu0 0
      %1432 = vmatpush1.bf16.msra.mxu0 0
      %1433 = vmatprep.subr.bf16.mxu0 0
      %1434 = vmatpush1.bf16.msra.mxu0 0
      %1435 = vmatprep.subr.bf16.mxu0 0
      %1436 = vmatpush1.bf16.msra.mxu0 0
      %1437 = vmatprep.subr.bf16.mxu0 0
      %1438 = vmatpush1.bf16.msra.mxu0 0
      %1439 = vmatprep.subr.bf16.mxu0 0
      %1440 = vmatpush1.bf16.msra.mxu0 0
      %1441 = vmatprep.subr.bf16.mxu0 0
      %1442 = vmatpush1.bf16.msra.mxu0 0
      %1443 = vmatprep.subr.bf16.mxu0 0
      %1444 = vmatpush1.bf16.msra.mxu0 0
      %1445 = vmatprep.subr.bf16.mxu0 0
      %1446 = vmatpush1.bf16.msra.mxu0 0
      %1447 = vmatprep.subr.bf16.mxu0 0
      %1448 = vmatpush1.bf16.msra.mxu0 0
      %1449 = vmatprep.subr.bf16.mxu0 0
      %1450 = vmatpush1.bf16.msra.mxu0 0
      %1451 = vmatprep.subr.bf16.mxu0 0
      %1452 = vmatpush1.bf16.msra.mxu0 0
      %1453 = vmatprep.mubr.bf16.mxu0 0
      %1454 = vmatmul.mubr.bf16.gmra.mrb[0].mxu0 %v1407
      %v1455 = vpop.f32.mrb[0].mxu0
      %v1456 = vadd.f32 0.0, %v1455
      %v1457 = vpop.f32.mrb[0].mxu0
      %v1458 = vpop.f32.mrb[0].mxu0
      %v1459 = vadd.f32 0.0, %v1458
      %v1460 = vpop.f32.mrb[0].mxu0
      %1461 = vmatprep.mubr.bf16.mxu0 0
      %1462 = vmatmul.mubr.bf16.gmra.mrb[0].mxu0 %v1410
      %v1463 = vpop.f32.mrb[0].mxu0
      %v1464 = vadd.f32 0.0, %v1463
      %v1465 = vpop.f32.mrb[0].mxu0
      %v1466 = vpop.f32.mrb[0].mxu0
      %v1467 = vadd.f32 0.0, %v1466
      %v1468 = vpop.f32.mrb[0].mxu0
      %1469 = vmatprep.mubr.bf16.mxu0 0
      %1470 = vmatmul.mubr.bf16.gmra.mrb[0].mxu0 %v1413
      %v1471 = vpop.f32.mrb[0].mxu0
      %v1472 = vadd.f32 0.0, %v1471
      %v1473 = vpop.f32.mrb[0].mxu0
      %v1474 = vpop.f32.mrb[0].mxu0
      %v1475 = vadd.f32 0.0, %v1474
      %v1476 = vpop.f32.mrb[0].mxu0
      %1477 = vmatprep.mubr.bf16.mxu0 0
      %1478 = vmatmul.mubr.bf16.gmra.mrb[0].mxu0 %v1416
      %v1479 = vpop.f32.mrb[0].mxu0
      %v1480 = vadd.f32 0.0, %v1479
      %v1481 = vpop.f32.mrb[0].mxu0
      %v1482 = vpop.f32.mrb[0].mxu0
      %v1483 = vadd.f32 0.0, %v1482
      %v1484 = vpop.f32.mrb[0].mxu0
      %1485 = vdwg.mxu0
      %v1486 = vadd.f32 %v1367, %v1456
      %v1487 = vadd.f32 %v1368, %v1459
      %v1488 = vadd.f32 %v1369, %v1464
      %v1489 = vadd.f32 %v1370, %v1467
      %v1490 = vadd.f32 %v1371, %v1472
      %v1491 = vadd.f32 %v1372, %v1475
      %v1492 = vadd.f32 %v1373, %v1480
      %v1493 = vadd.f32 %v1374, %v1483
      %s1494 = scalar_lea.vmem %s273, 80
      %v1495 = vld [vmem:[%s1494] sm:$0xf]
      %v1496 = vld [vmem:[%s1494 + $0x8] sm:$0xf]
      %v1497 = vld [vmem:[%s1494 + $0x10] sm:$0xf]
      %v1498 = vld [vmem:[%s1494 + $0x18] sm:$0xf]
      %v1499 = vld [vmem:[%s1494 + $0x20] sm:$0xf]
      %v1500 = vld [vmem:[%s1494 + $0x28] sm:$0xf]
      %v1501 = vld [vmem:[%s1494 + $0x30] sm:$0xf]
      %v1502 = vld [vmem:[%s1494 + $0x38] sm:$0xf]
      %s1503 = scalar_lea.vmem %s1, 14
      %v1504 = vld [vmem:[%s1503] sm:$0x3]
      %v1513 = vunpack.c.l.b16 %v1495
      %v1514 = vunpack.c.l.b16 %v1496
      %v1515 = vunpack.c.l.b16 %v1497
      %v1516 = vunpack.c.l.b16 %v1498
      %v1517 = vunpack.c.l.b16 %v1499
      %v1518 = vunpack.c.l.b16 %v1500
      %v1519 = vunpack.c.l.b16 %v1501
      %v1520 = vunpack.c.l.b16 %v1502
      %v1521 = vpack.c.b16 %v1514, %v1513
      %v1522 = vpack.c.b16 %v1516, %v1515
      %v1523 = vpack.c.b16 %v1518, %v1517
      %v1524 = vpack.c.b16 %v1520, %v1519
      %v1526 = vsel %vm489, %v1521, 0
      %v1529 = vsel %vm489, %v1522, 0
      %v1532 = vsel %vm489, %v1523, 0
      %v1535 = vsel %vm489, %v1524, 0
      %v1538 = vand.u32 %v1504, %v505
      %1540 = vmatprep.subr.bf16.mxu0 0
      %1541 = vmatpush1.bf16.msra.mxu0 %v1538
      %1542 = vmatprep.subr.bf16.mxu0 0
      %1543 = vmatpush1.bf16.msra.mxu0 0
      %1544 = vmatprep.subr.bf16.mxu0 0
      %1545 = vmatpush1.bf16.msra.mxu0 0
      %1546 = vmatprep.subr.bf16.mxu0 0
      %1547 = vmatpush1.bf16.msra.mxu0 0
      %1548 = vmatprep.subr.bf16.mxu0 0
      %1549 = vmatpush1.bf16.msra.mxu0 0
      %1550 = vmatprep.subr.bf16.mxu0 0
      %1551 = vmatpush1.bf16.msra.mxu0 0
      %1552 = vmatprep.subr.bf16.mxu0 0
      %1553 = vmatpush1.bf16.msra.mxu0 0
      %1554 = vmatprep.subr.bf16.mxu0 0
      %1555 = vmatpush1.bf16.msra.mxu0 0
      %1556 = vmatprep.subr.bf16.mxu0 0
      %1557 = vmatpush1.bf16.msra.mxu0 0
      %1558 = vmatprep.subr.bf16.mxu0 0
      %1559 = vmatpush1.bf16.msra.mxu0 0
      %1560 = vmatprep.subr.bf16.mxu0 0
      %1561 = vmatpush1.bf16.msra.mxu0 0
      %1562 = vmatprep.subr.bf16.mxu0 0
      %1563 = vmatpush1.bf16.msra.mxu0 0
      %1564 = vmatprep.subr.bf16.mxu0 0
      %1565 = vmatpush1.bf16.msra.mxu0 0
      %1566 = vmatprep.subr.bf16.mxu0 0
      %1567 = vmatpush1.bf16.msra.mxu0 0
      %1568 = vmatprep.subr.bf16.mxu0 0
      %1569 = vmatpush1.bf16.msra.mxu0 0
      %1570 = vmatprep.subr.bf16.mxu0 0
      %1571 = vmatpush1.bf16.msra.mxu0 0
      %1572 = vmatprep.mubr.bf16.mxu0 0
      %1573 = vmatmul.mubr.bf16.gmra.mrb[0].mxu0 %v1526
      %v1574 = vpop.f32.mrb[0].mxu0
      %v1575 = vadd.f32 0.0, %v1574
      %v1576 = vpop.f32.mrb[0].mxu0
      %v1577 = vpop.f32.mrb[0].mxu0
      %v1578 = vadd.f32 0.0, %v1577
      %v1579 = vpop.f32.mrb[0].mxu0
      %1580 = vmatprep.mubr.bf16.mxu0 0
      %1581 = vmatmul.mubr.bf16.gmra.mrb[0].mxu0 %v1529
      %v1582 = vpop.f32.mrb[0].mxu0
      %v1583 = vadd.f32 0.0, %v1582
      %v1584 = vpop.f32.mrb[0].mxu0
      %v1585 = vpop.f32.mrb[0].mxu0
      %v1586 = vadd.f32 0.0, %v1585
      %v1587 = vpop.f32.mrb[0].mxu0
      %1588 = vmatprep.mubr.bf16.mxu0 0
      %1589 = vmatmul.mubr.bf16.gmra.mrb[0].mxu0 %v1532
      %v1590 = vpop.f32.mrb[0].mxu0
      %v1591 = vadd.f32 0.0, %v1590
      %v1592 = vpop.f32.mrb[0].mxu0
      %v1593 = vpop.f32.mrb[0].mxu0
      %v1594 = vadd.f32 0.0, %v1593
      %v1595 = vpop.f32.mrb[0].mxu0
      %1596 = vmatprep.mubr.bf16.mxu0 0
      %1597 = vmatmul.mubr.bf16.gmra.mrb[0].mxu0 %v1535
      %v1598 = vpop.f32.mrb[0].mxu0
      %v1599 = vadd.f32 0.0, %v1598
      %v1600 = vpop.f32.mrb[0].mxu0
      %v1601 = vpop.f32.mrb[0].mxu0
      %v1602 = vadd.f32 0.0, %v1601
      %v1603 = vpop.f32.mrb[0].mxu0
      %1604 = vdwg.mxu0
      %v1605 = vadd.f32 %v1486, %v1575
      %v1606 = vadd.f32 %v1487, %v1578
      %v1607 = vadd.f32 %v1488, %v1583
      %v1608 = vadd.f32 %v1489, %v1586
      %v1609 = vadd.f32 %v1490, %v1591
      %v1610 = vadd.f32 %v1491, %v1594
      %v1611 = vadd.f32 %v1492, %v1599
      %v1612 = vadd.f32 %v1493, %v1602
      %v1613 = vld [vmem:[%s1375] sm:$0xf]
      %v1614 = vld [vmem:[%s1375 + $0x4] sm:$0x1]
      %v1615 = vld [vmem:[%s1375 + $0x8] sm:$0xf]
      %v1616 = vld [vmem:[%s1375 + $0xc] sm:$0x1]
      %v1617 = vld [vmem:[%s1375 + $0x10] sm:$0xf]
      %v1618 = vld [vmem:[%s1375 + $0x14] sm:$0x1]
      %v1619 = vld [vmem:[%s1375 + $0x18] sm:$0xf]
      %v1620 = vld [vmem:[%s1375 + $0x1c] sm:$0x1]
      %v1621 = vld [vmem:[%s1375 + $0x20] sm:$0xf]
      %v1622 = vld [vmem:[%s1375 + $0x24] sm:$0x1]
      %v1623 = vld [vmem:[%s1375 + $0x28] sm:$0xf]
      %v1624 = vld [vmem:[%s1375 + $0x2c] sm:$0x1]
      %v1625 = vld [vmem:[%s1375 + $0x30] sm:$0xf]
      %v1626 = vld [vmem:[%s1375 + $0x34] sm:$0x1]
      %v1627 = vld [vmem:[%s1375 + $0x38] sm:$0xf]
      %v1628 = vld [vmem:[%s1375 + $0x3c] sm:$0x1]
      %v1630 = vshrl.u32 %v1613, 16
      %v1632 = vrot.slane %v1630, 4
      %v1633 = vshll.u32 %v1613, 16
      %v1635 = vrot.slane %v1633, 5
      %v1636 = vor.u32 %v1632, %v1635
      %v1637 = vrot.slane %v1636, 4
      %v1639 = vshll.u32 %v1614, 16
      %v1641 = vrot.slane %v1639, 5
      %v1642 = vsel %vm692, %v1637, %v1641
      %v1644 = vshrl.u32 %v1615, 16
      %v1646 = vrot.slane %v1644, 4
      %v1647 = vshll.u32 %v1615, 16
      %v1649 = vrot.slane %v1647, 5
      %v1650 = vor.u32 %v1646, %v1649
      %v1651 = vrot.slane %v1650, 4
      %v1653 = vshll.u32 %v1616, 16
      %v1655 = vrot.slane %v1653, 5
      %v1656 = vsel %vm692, %v1651, %v1655
      %v1658 = vshrl.u32 %v1617, 16
      %v1660 = vrot.slane %v1658, 4
      %v1661 = vshll.u32 %v1617, 16
      %v1663 = vrot.slane %v1661, 5
      %v1664 = vor.u32 %v1660, %v1663
      %v1665 = vrot.slane %v1664, 4
      %v1667 = vshll.u32 %v1618, 16
      %v1669 = vrot.slane %v1667, 5
      %v1670 = vsel %vm692, %v1665, %v1669
      %v1672 = vshrl.u32 %v1619, 16
      %v1674 = vrot.slane %v1672, 4
      %v1675 = vshll.u32 %v1619, 16
      %v1677 = vrot.slane %v1675, 5
      %v1678 = vor.u32 %v1674, %v1677
      %v1679 = vrot.slane %v1678, 4
      %v1681 = vshll.u32 %v1620, 16
      %v1683 = vrot.slane %v1681, 5
      %v1684 = vsel %vm692, %v1679, %v1683
      %v1686 = vshrl.u32 %v1621, 16
      %v1688 = vrot.slane %v1686, 4
      %v1689 = vshll.u32 %v1621, 16
      %v1691 = vrot.slane %v1689, 5
      %v1692 = vor.u32 %v1688, %v1691
      %v1693 = vrot.slane %v1692, 4
      %v1695 = vshll.u32 %v1622, 16
      %v1697 = vrot.slane %v1695, 5
      %v1698 = vsel %vm692, %v1693, %v1697
      %v1700 = vshrl.u32 %v1623, 16
      %v1702 = vrot.slane %v1700, 4
      %v1703 = vshll.u32 %v1623, 16
      %v1705 = vrot.slane %v1703, 5
      %v1706 = vor.u32 %v1702, %v1705
      %v1707 = vrot.slane %v1706, 4
      %v1709 = vshll.u32 %v1624, 16
      %v1711 = vrot.slane %v1709, 5
      %v1712 = vsel %vm692, %v1707, %v1711
      %v1714 = vshrl.u32 %v1625, 16
      %v1716 = vrot.slane %v1714, 4
      %v1717 = vshll.u32 %v1625, 16
      %v1719 = vrot.slane %v1717, 5
      %v1720 = vor.u32 %v1716, %v1719
      %v1721 = vrot.slane %v1720, 4
      %v1723 = vshll.u32 %v1626, 16
      %v1725 = vrot.slane %v1723, 5
      %v1726 = vsel %vm692, %v1721, %v1725
      %v1728 = vshrl.u32 %v1627, 16
      %v1730 = vrot.slane %v1728, 4
      %v1731 = vshll.u32 %v1627, 16
      %v1733 = vrot.slane %v1731, 5
      %v1734 = vor.u32 %v1730, %v1733
      %v1735 = vrot.slane %v1734, 4
      %v1737 = vshll.u32 %v1628, 16
      %v1739 = vrot.slane %v1737, 5
      %v1740 = vsel %vm692, %v1735, %v1739
      %s1741 = scalar_lea.vmem %s1, 16
      %v1742 = vld [vmem:[%s1741] sm:$0x3]
      %v1743 = vunpack.c.l.b16 %v1642
      %v1744 = vunpack.c.l.b16 %v1656
      %v1745 = vunpack.c.l.b16 %v1670
      %v1746 = vunpack.c.l.b16 %v1684
      %v1747 = vunpack.c.l.b16 %v1698
      %v1748 = vunpack.c.l.b16 %v1712
      %v1749 = vunpack.c.l.b16 %v1726
      %v1750 = vunpack.c.l.b16 %v1740
      %v1751 = vpack.c.b16 %v1744, %v1743
      %v1752 = vpack.c.b16 %v1746, %v1745
      %v1753 = vpack.c.b16 %v1748, %v1747
      %v1754 = vpack.c.b16 %v1750, %v1749
      %v1756 = vsel %vm489, %v1751, 0
      %v1759 = vsel %vm489, %v1752, 0
      %v1762 = vsel %vm489, %v1753, 0
      %v1765 = vsel %vm489, %v1754, 0
      %v1768 = vand.u32 %v1742, %v505
      %1770 = vmatprep.subr.bf16.mxu0 0
      %1771 = vmatpush1.bf16.msra.mxu0 %v1768
      %1772 = vmatprep.subr.bf16.mxu0 0
      %1773 = vmatpush1.bf16.msra.mxu0 0
      %1774 = vmatprep.subr.bf16.mxu0 0
      %1775 = vmatpush1.bf16.msra.mxu0 0
      %1776 = vmatprep.subr.bf16.mxu0 0
      %1777 = vmatpush1.bf16.msra.mxu0 0
      %1778 = vmatprep.subr.bf16.mxu0 0
      %1779 = vmatpush1.bf16.msra.mxu0 0
      %1780 = vmatprep.subr.bf16.mxu0 0
      %1781 = vmatpush1.bf16.msra.mxu0 0
      %1782 = vmatprep.subr.bf16.mxu0 0
      %1783 = vmatpush1.bf16.msra.mxu0 0
      %1784 = vmatprep.subr.bf16.mxu0 0
      %1785 = vmatpush1.bf16.msra.mxu0 0
      %1786 = vmatprep.subr.bf16.mxu0 0
      %1787 = vmatpush1.bf16.msra.mxu0 0
      %1788 = vmatprep.subr.bf16.mxu0 0
      %1789 = vmatpush1.bf16.msra.mxu0 0
      %1790 = vmatprep.subr.bf16.mxu0 0
      %1791 = vmatpush1.bf16.msra.mxu0 0
      %1792 = vmatprep.subr.bf16.mxu0 0
      %1793 = vmatpush1.bf16.msra.mxu0 0
      %1794 = vmatprep.subr.bf16.mxu0 0
      %1795 = vmatpush1.bf16.msra.mxu0 0
      %1796 = vmatprep.subr.bf16.mxu0 0
      %1797 = vmatpush1.bf16.msra.mxu0 0
      %1798 = vmatprep.subr.bf16.mxu0 0
      %1799 = vmatpush1.bf16.msra.mxu0 0
      %1800 = vmatprep.subr.bf16.mxu0 0
      %1801 = vmatpush1.bf16.msra.mxu0 0
      %1802 = vmatprep.mubr.bf16.mxu0 0
      %1803 = vmatmul.mubr.bf16.gmra.mrb[0].mxu0 %v1756
      %v1804 = vpop.f32.mrb[0].mxu0
      %v1805 = vadd.f32 0.0, %v1804
      %v1806 = vpop.f32.mrb[0].mxu0
      %v1807 = vpop.f32.mrb[0].mxu0
      %v1808 = vadd.f32 0.0, %v1807
      %v1809 = vpop.f32.mrb[0].mxu0
      %1810 = vmatprep.mubr.bf16.mxu0 0
      %1811 = vmatmul.mubr.bf16.gmra.mrb[0].mxu0 %v1759
      %v1812 = vpop.f32.mrb[0].mxu0
      %v1813 = vadd.f32 0.0, %v1812
      %v1814 = vpop.f32.mrb[0].mxu0
      %v1815 = vpop.f32.mrb[0].mxu0
      %v1816 = vadd.f32 0.0, %v1815
      %v1817 = vpop.f32.mrb[0].mxu0
      %1818 = vmatprep.mubr.bf16.mxu0 0
      %1819 = vmatmul.mubr.bf16.gmra.mrb[0].mxu0 %v1762
      %v1820 = vpop.f32.mrb[0].mxu0
      %v1821 = vadd.f32 0.0, %v1820
      %v1822 = vpop.f32.mrb[0].mxu0
      %v1823 = vpop.f32.mrb[0].mxu0
      %v1824 = vadd.f32 0.0, %v1823
      %v1825 = vpop.f32.mrb[0].mxu0
      %1826 = vmatprep.mubr.bf16.mxu0 0
      %1827 = vmatmul.mubr.bf16.gmra.mrb[0].mxu0 %v1765
      %v1828 = vpop.f32.mrb[0].mxu0
      %v1829 = vadd.f32 0.0, %v1828
      %v1830 = vpop.f32.mrb[0].mxu0
      %v1831 = vpop.f32.mrb[0].mxu0
      %v1832 = vadd.f32 0.0, %v1831
      %v1833 = vpop.f32.mrb[0].mxu0
      %1834 = vdwg.mxu0
      %v1835 = vadd.f32 %v1605, %v1805
      %v1836 = vadd.f32 %v1606, %v1808
      %v1837 = vadd.f32 %v1607, %v1813
      %v1838 = vadd.f32 %v1608, %v1816
      %v1839 = vadd.f32 %v1609, %v1821
      %v1840 = vadd.f32 %v1610, %v1824
      %v1841 = vadd.f32 %v1611, %v1829
      %v1842 = vadd.f32 %v1612, %v1832
      %v1843 = vld [vmem:[%s2] sm:$0x1]
      %v1845 = vlaneseq
      %v1846 = vshrl.u32 %v1845, 7
      %v1847 = vsub.s32 0, %v1846
      %v1848 = vrot.slane %v1843, %v1847
      %v1850 = vadd.f32 %v1835, %v1848
      %v1851 = vadd.f32 %v1836, %v1848
      %v1852 = vadd.f32 %v1837, %v1848
      %v1853 = vadd.f32 %v1838, %v1848
      %v1854 = vadd.f32 %v1839, %v1848
      %v1855 = vadd.f32 %v1840, %v1848
      %v1856 = vadd.f32 %v1841, %v1848
      %v1857 = vadd.f32 %v1842, %v1848
      %v1858 = vsub.f32 0.0, %v1850
      %v1859 = vsub.f32 0.0, %v1851
      %v1860 = vsub.f32 0.0, %v1852
      %v1861 = vsub.f32 0.0, %v1853
      %v1862 = vsub.f32 0.0, %v1854
      %v1863 = vsub.f32 0.0, %v1855
      %v1864 = vsub.f32 0.0, %v1856
      %v1865 = vsub.f32 0.0, %v1857
      %v1866 = vmul.f32 %v1858, 1.442695
      %v1867 = vpow.pop %v1866
      %v1868 = vmul.f32 %v1859, 1.442695
      %v1869 = vpow.pop %v1868
      %v1870 = vmul.f32 %v1860, 1.442695
      %v1871 = vpow.pop %v1870
      %v1872 = vmul.f32 %v1861, 1.442695
      %v1873 = vpow.pop %v1872
      %v1874 = vmul.f32 %v1862, 1.442695
      %v1875 = vpow.pop %v1874
      %v1876 = vmul.f32 %v1863, 1.442695
      %v1877 = vpow.pop %v1876
      %v1878 = vmul.f32 %v1864, 1.442695
      %v1879 = vpow.pop %v1878
      %v1880 = vmul.f32 %v1865, 1.442695
      %v1881 = vpow.pop %v1880
      %v1882 = vadd.f32 %v1867, 1.0
      %v1883 = vadd.f32 %v1869, 1.0
      %v1884 = vadd.f32 %v1871, 1.0
      %v1885 = vadd.f32 %v1873, 1.0
      %v1886 = vadd.f32 %v1875, 1.0
      %v1887 = vadd.f32 %v1877, 1.0
      %v1888 = vadd.f32 %v1879, 1.0
      %v1889 = vadd.f32 %v1881, 1.0
      %v1890 = vrcp.pop %v1882
      %v1891 = vmul.f32 1.0, %v1890
      %v1892 = vrcp.pop %v1883
      %v1893 = vmul.f32 1.0, %v1892
      %v1894 = vrcp.pop %v1884
      %v1895 = vmul.f32 1.0, %v1894
      %v1896 = vrcp.pop %v1885
      %v1897 = vmul.f32 1.0, %v1896
      %v1898 = vrcp.pop %v1886
      %v1899 = vmul.f32 1.0, %v1898
      %v1900 = vrcp.pop %v1887
      %v1901 = vmul.f32 1.0, %v1900
      %v1902 = vrcp.pop %v1888
      %v1903 = vmul.f32 1.0, %v1902
      %v1904 = vrcp.pop %v1889
      %v1905 = vmul.f32 1.0, %v1904
      %v1906 = vmul.f32 %v1850, %v1891
      %v1907 = vmul.f32 %v1851, %v1893
      %v1908 = vmul.f32 %v1852, %v1895
      %v1909 = vmul.f32 %v1853, %v1897
      %v1910 = vmul.f32 %v1854, %v1899
      %v1911 = vmul.f32 %v1855, %v1901
      %v1912 = vmul.f32 %v1856, %v1903
      %v1913 = vmul.f32 %v1857, %v1905
      %v1914 = vpack.c.bf16 %v1906, %v1906
      %v1915 = vpack.c.bf16 %v1907, %v1907
      %v1916 = vpack.c.bf16 %v1908, %v1908
      %v1917 = vpack.c.bf16 %v1909, %v1909
      %v1918 = vpack.c.bf16 %v1910, %v1910
      %v1919 = vpack.c.bf16 %v1911, %v1911
      %v1920 = vpack.c.bf16 %v1912, %v1912
      %v1921 = vpack.c.bf16 %v1913, %v1913
      %1922 = vst.msk [vmem:[#allocation2] sm:$0xf] %vm280, %v1914
      %1923 = vst.msk [vmem:[#allocation2 + $0x8] sm:$0xf] %vm280, %v1915
      %1924 = vst.msk [vmem:[#allocation2 + $0x10] sm:$0xf] %vm280, %v1916
      %1925 = vst.msk [vmem:[#allocation2 + $0x18] sm:$0xf] %vm280, %v1917
      %1926 = vst.msk [vmem:[#allocation2 + $0x20] sm:$0xf] %vm280, %v1918
      %1927 = vst.msk [vmem:[#allocation2 + $0x28] sm:$0xf] %vm280, %v1919
      %1928 = vst.msk [vmem:[#allocation2 + $0x30] sm:$0xf] %vm280, %v1920
      %1929 = vst.msk [vmem:[#allocation2 + $0x38] sm:$0xf] %vm280, %v1921
      %v1930 = vld [vmem:[%s458] sm:$0xf]
      %v1931 = vld [vmem:[%s458 + $0x8] sm:$0xf]
      %v1932 = vld [vmem:[%s458 + $0x10] sm:$0xf]
      %v1933 = vld [vmem:[%s458 + $0x18] sm:$0xf]
      %v1934 = vld [vmem:[%s458 + $0x20] sm:$0xf]
      %v1935 = vld [vmem:[%s458 + $0x28] sm:$0xf]
      %v1936 = vld [vmem:[%s458 + $0x30] sm:$0xf]
      %v1937 = vld [vmem:[%s458 + $0x38] sm:$0xf]
      %v1938 = vld [vmem:[%s1] sm:$0x3]
      %v1939 = vld [vmem:[%s273] sm:$0xf]
      %v1940 = vld [vmem:[%s273 + $0x4] sm:$0x1]
      %v1941 = vld [vmem:[%s273 + $0x8] sm:$0xf]
      %v1942 = vld [vmem:[%s273 + $0xc] sm:$0x1]
      %v1943 = vld [vmem:[%s273 + $0x10] sm:$0xf]
      %v1944 = vld [vmem:[%s273 + $0x14] sm:$0x1]
      %v1945 = vld [vmem:[%s273 + $0x18] sm:$0xf]
      %v1946 = vld [vmem:[%s273 + $0x1c] sm:$0x1]
      %v1947 = vld [vmem:[%s273 + $0x20] sm:$0xf]
      %v1948 = vld [vmem:[%s273 + $0x24] sm:$0x1]
      %v1949 = vld [vmem:[%s273 + $0x28] sm:$0xf]
      %v1950 = vld [vmem:[%s273 + $0x2c] sm:$0x1]
      %v1951 = vld [vmem:[%s273 + $0x30] sm:$0xf]
      %v1952 = vld [vmem:[%s273 + $0x34] sm:$0x1]
      %v1953 = vld [vmem:[%s273 + $0x38] sm:$0xf]
      %v1954 = vld [vmem:[%s273 + $0x3c] sm:$0x1]
      %v1956 = vshrl.u32 %v1939, 16
      %v1958 = vrot.slane %v1956, 4
      %v1959 = vshll.u32 %v1939, 16
      %v1961 = vrot.slane %v1959, 5
      %v1962 = vor.u32 %v1958, %v1961
      %v1963 = vrot.slane %v1962, 4
      %v1965 = vshll.u32 %v1940, 16
      %v1967 = vrot.slane %v1965, 5
      %v1968 = vsel %vm692, %v1963, %v1967
      %v1970 = vshrl.u32 %v1941, 16
      %v1972 = vrot.slane %v1970, 4
      %v1973 = vshll.u32 %v1941, 16
      %v1975 = vrot.slane %v1973, 5
      %v1976 = vor.u32 %v1972, %v1975
      %v1977 = vrot.slane %v1976, 4
      %v1979 = vshll.u32 %v1942, 16
      %v1981 = vrot.slane %v1979, 5
      %v1982 = vsel %vm692, %v1977, %v1981
      %v1984 = vshrl.u32 %v1943, 16
      %v1986 = vrot.slane %v1984, 4
      %v1987 = vshll.u32 %v1943, 16
      %v1989 = vrot.slane %v1987, 5
      %v1990 = vor.u32 %v1986, %v1989
      %v1991 = vrot.slane %v1990, 4
      %v1993 = vshll.u32 %v1944, 16
      %v1995 = vrot.slane %v1993, 5
      %v1996 = vsel %vm692, %v1991, %v1995
      %v1998 = vshrl.u32 %v1945, 16
      %v2000 = vrot.slane %v1998, 4
      %v2001 = vshll.u32 %v1945, 16
      %v2003 = vrot.slane %v2001, 5
      %v2004 = vor.u32 %v2000, %v2003
      %v2005 = vrot.slane %v2004, 4
      %v2007 = vshll.u32 %v1946, 16
      %v2009 = vrot.slane %v2007, 5
      %v2010 = vsel %vm692, %v2005, %v2009
      %v2012 = vshrl.u32 %v1947, 16
      %v2014 = vrot.slane %v2012, 4
      %v2015 = vshll.u32 %v1947, 16
      %v2017 = vrot.slane %v2015, 5
      %v2018 = vor.u32 %v2014, %v2017
      %v2019 = vrot.slane %v2018, 4
      %v2021 = vshll.u32 %v1948, 16
      %v2023 = vrot.slane %v2021, 5
      %v2024 = vsel %vm692, %v2019, %v2023
      %v2026 = vshrl.u32 %v1949, 16
      %v2028 = vrot.slane %v2026, 4
      %v2029 = vshll.u32 %v1949, 16
      %v2031 = vrot.slane %v2029, 5
      %v2032 = vor.u32 %v2028, %v2031
      %v2033 = vrot.slane %v2032, 4
      %v2035 = vshll.u32 %v1950, 16
      %v2037 = vrot.slane %v2035, 5
      %v2038 = vsel %vm692, %v2033, %v2037
      %v2040 = vshrl.u32 %v1951, 16
      %v2042 = vrot.slane %v2040, 4
      %v2043 = vshll.u32 %v1951, 16
      %v2045 = vrot.slane %v2043, 5
      %v2046 = vor.u32 %v2042, %v2045
      %v2047 = vrot.slane %v2046, 4
      %v2049 = vshll.u32 %v1952, 16
      %v2051 = vrot.slane %v2049, 5
      %v2052 = vsel %vm692, %v2047, %v2051
      %v2054 = vshrl.u32 %v1953, 16
      %v2056 = vrot.slane %v2054, 4
      %v2057 = vshll.u32 %v1953, 16
      %v2059 = vrot.slane %v2057, 5
      %v2060 = vor.u32 %v2056, %v2059
      %v2061 = vrot.slane %v2060, 4
      %v2063 = vshll.u32 %v1954, 16
      %v2065 = vrot.slane %v2063, 5
      %v2066 = vsel %vm692, %v2061, %v2065
      %v2067 = vld [vmem:[%s467] sm:$0x3]
      %v2068 = vunpack.c.l.b16 %v1968
      %v2069 = vunpack.c.l.b16 %v1982
      %v2070 = vunpack.c.l.b16 %v1996
      %v2071 = vunpack.c.l.b16 %v2010
      %v2072 = vunpack.c.l.b16 %v2024
      %v2073 = vunpack.c.l.b16 %v2038
      %v2074 = vunpack.c.l.b16 %v2052
      %v2075 = vunpack.c.l.b16 %v2066
      %v2076 = vpack.c.b16 %v2069, %v2068
      %v2077 = vpack.c.b16 %v2071, %v2070
      %v2078 = vpack.c.b16 %v2073, %v2072
      %v2079 = vpack.c.b16 %v2075, %v2074
      %v2081 = vsel %vm489, %v2076, 0
      %v2084 = vsel %vm489, %v2077, 0
      %v2087 = vsel %vm489, %v2078, 0
      %v2090 = vsel %vm489, %v2079, 0
      %v2093 = vand.u32 %v2067, %v505
      %2095 = vmatprep.subr.bf16.mxu0 0
      %2096 = vmatpush1.bf16.msra.mxu0 %v2093
      %2097 = vmatprep.subr.bf16.mxu0 0
      %2098 = vmatpush1.bf16.msra.mxu0 0
      %2099 = vmatprep.subr.bf16.mxu0 0
      %2100 = vmatpush1.bf16.msra.mxu0 0
      %2101 = vmatprep.subr.bf16.mxu0 0
      %2102 = vmatpush1.bf16.msra.mxu0 0
      %2103 = vmatprep.subr.bf16.mxu0 0
      %2104 = vmatpush1.bf16.msra.mxu0 0
      %2105 = vmatprep.subr.bf16.mxu0 0
      %2106 = vmatpush1.bf16.msra.mxu0 0
      %2107 = vmatprep.subr.bf16.mxu0 0
      %2108 = vmatpush1.bf16.msra.mxu0 0
      %2109 = vmatprep.subr.bf16.mxu0 0
      %2110 = vmatpush1.bf16.msra.mxu0 0
      %2111 = vmatprep.subr.bf16.mxu0 0
      %2112 = vmatpush1.bf16.msra.mxu0 0
      %2113 = vmatprep.subr.bf16.mxu0 0
      %2114 = vmatpush1.bf16.msra.mxu0 0
      %2115 = vmatprep.subr.bf16.mxu0 0
      %2116 = vmatpush1.bf16.msra.mxu0 0
      %2117 = vmatprep.subr.bf16.mxu0 0
      %2118 = vmatpush1.bf16.msra.mxu0 0
      %2119 = vmatprep.subr.bf16.mxu0 0
      %2120 = vmatpush1.bf16.msra.mxu0 0
      %2121 = vmatprep.subr.bf16.mxu0 0
      %2122 = vmatpush1.bf16.msra.mxu0 0
      %2123 = vmatprep.subr.bf16.mxu0 0
      %2124 = vmatpush1.bf16.msra.mxu0 0
      %2125 = vmatprep.subr.bf16.mxu0 0
      %2126 = vmatpush1.bf16.msra.mxu0 0
      %2127 = vmatprep.mubr.bf16.mxu0 0
      %2128 = vmatmul.mubr.bf16.gmra.mrb[0].mxu0 %v2081
      %v2129 = vpop.f32.mrb[0].mxu0
      %v2130 = vadd.f32 0.0, %v2129
      %v2131 = vpop.f32.mrb[0].mxu0
      %v2132 = vpop.f32.mrb[0].mxu0
      %v2133 = vadd.f32 0.0, %v2132
      %v2134 = vpop.f32.mrb[0].mxu0
      %2135 = vmatprep.mubr.bf16.mxu0 0
      %2136 = vmatmul.mubr.bf16.gmra.mrb[0].mxu0 %v2084
      %v2137 = vpop.f32.mrb[0].mxu0
      %v2138 = vadd.f32 0.0, %v2137
      %v2139 = vpop.f32.mrb[0].mxu0
      %v2140 = vpop.f32.mrb[0].mxu0
      %v2141 = vadd.f32 0.0, %v2140
      %v2142 = vpop.f32.mrb[0].mxu0
      %2143 = vmatprep.mubr.bf16.mxu0 0
      %2144 = vmatmul.mubr.bf16.gmra.mrb[0].mxu0 %v2087
      %v2145 = vpop.f32.mrb[0].mxu0
      %v2146 = vadd.f32 0.0, %v2145
      %v2147 = vpop.f32.mrb[0].mxu0
      %v2148 = vpop.f32.mrb[0].mxu0
      %v2149 = vadd.f32 0.0, %v2148
      %v2150 = vpop.f32.mrb[0].mxu0
      %2151 = vmatprep.mubr.bf16.mxu0 0
      %2152 = vmatmul.mubr.bf16.gmra.mrb[0].mxu0 %v2090
      %v2153 = vpop.f32.mrb[0].mxu0
      %v2154 = vadd.f32 0.0, %v2153
      %v2155 = vpop.f32.mrb[0].mxu0
      %v2156 = vpop.f32.mrb[0].mxu0
      %v2157 = vadd.f32 0.0, %v2156
      %v2158 = vpop.f32.mrb[0].mxu0
      %2159 = vdwg.mxu0
      %v2168 = vunpack.c.l.b16 %v1930
      %v2169 = vunpack.c.l.b16 %v1931
      %v2170 = vunpack.c.l.b16 %v1932
      %v2171 = vunpack.c.l.b16 %v1933
      %v2172 = vunpack.c.l.b16 %v1934
      %v2173 = vunpack.c.l.b16 %v1935
      %v2174 = vunpack.c.l.b16 %v1936
      %v2175 = vunpack.c.l.b16 %v1937
      %v2176 = vpack.c.b16 %v2169, %v2168
      %v2177 = vpack.c.b16 %v2171, %v2170
      %v2178 = vpack.c.b16 %v2173, %v2172
      %v2179 = vpack.c.b16 %v2175, %v2174
      %v2181 = vsel %vm489, %v2176, 0
      %v2184 = vsel %vm489, %v2177, 0
      %v2187 = vsel %vm489, %v2178, 0
      %v2190 = vsel %vm489, %v2179, 0
      %v2193 = vand.u32 %v1938, %v505
      %2195 = vmatprep.subr.bf16.mxu0 0
      %2196 = vmatpush1.bf16.msra.mxu0 %v2193
      %2197 = vmatprep.subr.bf16.mxu0 0
      %2198 = vmatpush1.bf16.msra.mxu0 0
      %2199 = vmatprep.subr.bf16.mxu0 0
      %2200 = vmatpush1.bf16.msra.mxu0 0
      %2201 = vmatprep.subr.bf16.mxu0 0
      %2202 = vmatpush1.bf16.msra.mxu0 0
      %2203 = vmatprep.subr.bf16.mxu0 0
      %2204 = vmatpush1.bf16.msra.mxu0 0
      %2205 = vmatprep.subr.bf16.mxu0 0
      %2206 = vmatpush1.bf16.msra.mxu0 0
      %2207 = vmatprep.subr.bf16.mxu0 0
      %2208 = vmatpush1.bf16.msra.mxu0 0
      %2209 = vmatprep.subr.bf16.mxu0 0
      %2210 = vmatpush1.bf16.msra.mxu0 0
      %2211 = vmatprep.subr.bf16.mxu0 0
      %2212 = vmatpush1.bf16.msra.mxu0 0
      %2213 = vmatprep.subr.bf16.mxu0 0
      %2214 = vmatpush1.bf16.msra.mxu0 0
      %2215 = vmatprep.subr.bf16.mxu0 0
      %2216 = vmatpush1.bf16.msra.mxu0 0
      %2217 = vmatprep.subr.bf16.mxu0 0
      %2218 = vmatpush1.bf16.msra.mxu0 0
      %2219 = vmatprep.subr.bf16.mxu0 0
      %2220 = vmatpush1.bf16.msra.mxu0 0
      %2221 = vmatprep.subr.bf16.mxu0 0
      %2222 = vmatpush1.bf16.msra.mxu0 0
      %2223 = vmatprep.subr.bf16.mxu0 0
      %2224 = vmatpush1.bf16.msra.mxu0 0
      %2225 = vmatprep.subr.bf16.mxu0 0
      %2226 = vmatpush1.bf16.msra.mxu0 0
      %2227 = vmatprep.mubr.bf16.mxu0 0
      %2228 = vmatmul.mubr.bf16.gmra.mrb[0].mxu0 %v2181
      %v2229 = vpop.f32.mrb[0].mxu0
      %v2230 = vadd.f32 %v2130, %v2229
      %v2231 = vpop.f32.mrb[0].mxu0
      %v2232 = vpop.f32.mrb[0].mxu0
      %v2233 = vadd.f32 %v2133, %v2232
      %v2234 = vpop.f32.mrb[0].mxu0
      %2235 = vmatprep.mubr.bf16.mxu0 0
      %2236 = vmatmul.mubr.bf16.gmra.mrb[0].mxu0 %v2184
      %v2237 = vpop.f32.mrb[0].mxu0
      %v2238 = vadd.f32 %v2138, %v2237
      %v2239 = vpop.f32.mrb[0].mxu0
      %v2240 = vpop.f32.mrb[0].mxu0
      %v2241 = vadd.f32 %v2141, %v2240
      %v2242 = vpop.f32.mrb[0].mxu0
      %2243 = vmatprep.mubr.bf16.mxu0 0
      %2244 = vmatmul.mubr.bf16.gmra.mrb[0].mxu0 %v2187
      %v2245 = vpop.f32.mrb[0].mxu0
      %v2246 = vadd.f32 %v2146, %v2245
      %v2247 = vpop.f32.mrb[0].mxu0
      %v2248 = vpop.f32.mrb[0].mxu0
      %v2249 = vadd.f32 %v2149, %v2248
      %v2250 = vpop.f32.mrb[0].mxu0
      %2251 = vmatprep.mubr.bf16.mxu0 0
      %2252 = vmatmul.mubr.bf16.gmra.mrb[0].mxu0 %v2190
      %v2253 = vpop.f32.mrb[0].mxu0
      %v2254 = vadd.f32 %v2154, %v2253
      %v2255 = vpop.f32.mrb[0].mxu0
      %v2256 = vpop.f32.mrb[0].mxu0
      %v2257 = vadd.f32 %v2157, %v2256
      %v2258 = vpop.f32.mrb[0].mxu0
      %2259 = vdwg.mxu0
      %v2260 = vld [vmem:[%s458] sm:$0xf]
      %v2261 = vld [vmem:[%s458 + $0x4] sm:$0x1]
      %v2262 = vld [vmem:[%s458 + $0x8] sm:$0xf]
      %v2263 = vld [vmem:[%s458 + $0xc] sm:$0x1]
      %v2264 = vld [vmem:[%s458 + $0x10] sm:$0xf]
      %v2265 = vld [vmem:[%s458 + $0x14] sm:$0x1]
      %v2266 = vld [vmem:[%s458 + $0x18] sm:$0xf]
      %v2267 = vld [vmem:[%s458 + $0x1c] sm:$0x1]
      %v2268 = vld [vmem:[%s458 + $0x20] sm:$0xf]
      %v2269 = vld [vmem:[%s458 + $0x24] sm:$0x1]
      %v2270 = vld [vmem:[%s458 + $0x28] sm:$0xf]
      %v2271 = vld [vmem:[%s458 + $0x2c] sm:$0x1]
      %v2272 = vld [vmem:[%s458 + $0x30] sm:$0xf]
      %v2273 = vld [vmem:[%s458 + $0x34] sm:$0x1]
      %v2274 = vld [vmem:[%s458 + $0x38] sm:$0xf]
      %v2275 = vld [vmem:[%s458 + $0x3c] sm:$0x1]
      %v2277 = vshrl.u32 %v2260, 16
      %v2279 = vrot.slane %v2277, 4
      %v2280 = vshll.u32 %v2260, 16
      %v2282 = vrot.slane %v2280, 5
      %v2283 = vor.u32 %v2279, %v2282
      %v2284 = vrot.slane %v2283, 4
      %v2286 = vshll.u32 %v2261, 16
      %v2288 = vrot.slane %v2286, 5
      %v2289 = vsel %vm692, %v2284, %v2288
      %v2291 = vshrl.u32 %v2262, 16
      %v2293 = vrot.slane %v2291, 4
      %v2294 = vshll.u32 %v2262, 16
      %v2296 = vrot.slane %v2294, 5
      %v2297 = vor.u32 %v2293, %v2296
      %v2298 = vrot.slane %v2297, 4
      %v2300 = vshll.u32 %v2263, 16
      %v2302 = vrot.slane %v2300, 5
      %v2303 = vsel %vm692, %v2298, %v2302
      %v2305 = vshrl.u32 %v2264, 16
      %v2307 = vrot.slane %v2305, 4
      %v2308 = vshll.u32 %v2264, 16
      %v2310 = vrot.slane %v2308, 5
      %v2311 = vor.u32 %v2307, %v2310
      %v2312 = vrot.slane %v2311, 4
      %v2314 = vshll.u32 %v2265, 16
      %v2316 = vrot.slane %v2314, 5
      %v2317 = vsel %vm692, %v2312, %v2316
      %v2319 = vshrl.u32 %v2266, 16
      %v2321 = vrot.slane %v2319, 4
      %v2322 = vshll.u32 %v2266, 16
      %v2324 = vrot.slane %v2322, 5
      %v2325 = vor.u32 %v2321, %v2324
      %v2326 = vrot.slane %v2325, 4
      %v2328 = vshll.u32 %v2267, 16
      %v2330 = vrot.slane %v2328, 5
      %v2331 = vsel %vm692, %v2326, %v2330
      %v2333 = vshrl.u32 %v2268, 16
      %v2335 = vrot.slane %v2333, 4
      %v2336 = vshll.u32 %v2268, 16
      %v2338 = vrot.slane %v2336, 5
      %v2339 = vor.u32 %v2335, %v2338
      %v2340 = vrot.slane %v2339, 4
      %v2342 = vshll.u32 %v2269, 16
      %v2344 = vrot.slane %v2342, 5
      %v2345 = vsel %vm692, %v2340, %v2344
      %v2347 = vshrl.u32 %v2270, 16
      %v2349 = vrot.slane %v2347, 4
      %v2350 = vshll.u32 %v2270, 16
      %v2352 = vrot.slane %v2350, 5
      %v2353 = vor.u32 %v2349, %v2352
      %v2354 = vrot.slane %v2353, 4
      %v2356 = vshll.u32 %v2271, 16
      %v2358 = vrot.slane %v2356, 5
      %v2359 = vsel %vm692, %v2354, %v2358
      %v2361 = vshrl.u32 %v2272, 16
      %v2363 = vrot.slane %v2361, 4
      %v2364 = vshll.u32 %v2272, 16
      %v2366 = vrot.slane %v2364, 5
      %v2367 = vor.u32 %v2363, %v2366
      %v2368 = vrot.slane %v2367, 4
      %v2370 = vshll.u32 %v2273, 16
      %v2372 = vrot.slane %v2370, 5
      %v2373 = vsel %vm692, %v2368, %v2372
      %v2375 = vshrl.u32 %v2274, 16
      %v2377 = vrot.slane %v2375, 4
      %v2378 = vshll.u32 %v2274, 16
      %v2380 = vrot.slane %v2378, 5
      %v2381 = vor.u32 %v2377, %v2380
      %v2382 = vrot.slane %v2381, 4
      %v2384 = vshll.u32 %v2275, 16
      %v2386 = vrot.slane %v2384, 5
      %v2387 = vsel %vm692, %v2382, %v2386
      %v2388 = vld [vmem:[%s805] sm:$0x3]
      %v2389 = vunpack.c.l.b16 %v2289
      %v2390 = vunpack.c.l.b16 %v2303
      %v2391 = vunpack.c.l.b16 %v2317
      %v2392 = vunpack.c.l.b16 %v2331
      %v2393 = vunpack.c.l.b16 %v2345
      %v2394 = vunpack.c.l.b16 %v2359
      %v2395 = vunpack.c.l.b16 %v2373
      %v2396 = vunpack.c.l.b16 %v2387
      %v2397 = vpack.c.b16 %v2390, %v2389
      %v2398 = vpack.c.b16 %v2392, %v2391
      %v2399 = vpack.c.b16 %v2394, %v2393
      %v2400 = vpack.c.b16 %v2396, %v2395
      %v2402 = vsel %vm489, %v2397, 0
      %v2405 = vsel %vm489, %v2398, 0
      %v2408 = vsel %vm489, %v2399, 0
      %v2411 = vsel %vm489, %v2400, 0
      %v2414 = vand.u32 %v2388, %v505
      %2416 = vmatprep.subr.bf16.mxu0 0
      %2417 = vmatpush1.bf16.msra.mxu0 %v2414
      %2418 = vmatprep.subr.bf16.mxu0 0
      %2419 = vmatpush1.bf16.msra.mxu0 0
      %2420 = vmatprep.subr.bf16.mxu0 0
      %2421 = vmatpush1.bf16.msra.mxu0 0
      %2422 = vmatprep.subr.bf16.mxu0 0
      %2423 = vmatpush1.bf16.msra.mxu0 0
      %2424 = vmatprep.subr.bf16.mxu0 0
      %2425 = vmatpush1.bf16.msra.mxu0 0
      %2426 = vmatprep.subr.bf16.mxu0 0
      %2427 = vmatpush1.bf16.msra.mxu0 0
      %2428 = vmatprep.subr.bf16.mxu0 0
      %2429 = vmatpush1.bf16.msra.mxu0 0
      %2430 = vmatprep.subr.bf16.mxu0 0
      %2431 = vmatpush1.bf16.msra.mxu0 0
      %2432 = vmatprep.subr.bf16.mxu0 0
      %2433 = vmatpush1.bf16.msra.mxu0 0
      %2434 = vmatprep.subr.bf16.mxu0 0
      %2435 = vmatpush1.bf16.msra.mxu0 0
      %2436 = vmatprep.subr.bf16.mxu0 0
      %2437 = vmatpush1.bf16.msra.mxu0 0
      %2438 = vmatprep.subr.bf16.mxu0 0
      %2439 = vmatpush1.bf16.msra.mxu0 0
      %2440 = vmatprep.subr.bf16.mxu0 0
      %2441 = vmatpush1.bf16.msra.mxu0 0
      %2442 = vmatprep.subr.bf16.mxu0 0
      %2443 = vmatpush1.bf16.msra.mxu0 0
      %2444 = vmatprep.subr.bf16.mxu0 0
      %2445 = vmatpush1.bf16.msra.mxu0 0
      %2446 = vmatprep.subr.bf16.mxu0 0
      %2447 = vmatpush1.bf16.msra.mxu0 0
      %2448 = vmatprep.mubr.bf16.mxu0 0
      %2449 = vmatmul.mubr.bf16.gmra.mrb[0].mxu0 %v2402
      %v2450 = vpop.f32.mrb[0].mxu0
      %v2451 = vadd.f32 0.0, %v2450
      %v2452 = vpop.f32.mrb[0].mxu0
      %v2453 = vpop.f32.mrb[0].mxu0
      %v2454 = vadd.f32 0.0, %v2453
      %v2455 = vpop.f32.mrb[0].mxu0
      %2456 = vmatprep.mubr.bf16.mxu0 0
      %2457 = vmatmul.mubr.bf16.gmra.mrb[0].mxu0 %v2405
      %v2458 = vpop.f32.mrb[0].mxu0
      %v2459 = vadd.f32 0.0, %v2458
      %v2460 = vpop.f32.mrb[0].mxu0
      %v2461 = vpop.f32.mrb[0].mxu0
      %v2462 = vadd.f32 0.0, %v2461
      %v2463 = vpop.f32.mrb[0].mxu0
      %2464 = vmatprep.mubr.bf16.mxu0 0
      %2465 = vmatmul.mubr.bf16.gmra.mrb[0].mxu0 %v2408
      %v2466 = vpop.f32.mrb[0].mxu0
      %v2467 = vadd.f32 0.0, %v2466
      %v2468 = vpop.f32.mrb[0].mxu0
      %v2469 = vpop.f32.mrb[0].mxu0
      %v2470 = vadd.f32 0.0, %v2469
      %v2471 = vpop.f32.mrb[0].mxu0
      %2472 = vmatprep.mubr.bf16.mxu0 0
      %2473 = vmatmul.mubr.bf16.gmra.mrb[0].mxu0 %v2411
      %v2474 = vpop.f32.mrb[0].mxu0
      %v2475 = vadd.f32 0.0, %v2474
      %v2476 = vpop.f32.mrb[0].mxu0
      %v2477 = vpop.f32.mrb[0].mxu0
      %v2478 = vadd.f32 0.0, %v2477
      %v2479 = vpop.f32.mrb[0].mxu0
      %2480 = vdwg.mxu0
      %v2481 = vadd.f32 %v2230, %v2451
      %v2482 = vadd.f32 %v2233, %v2454
      %v2483 = vadd.f32 %v2238, %v2459
      %v2484 = vadd.f32 %v2241, %v2462
      %v2485 = vadd.f32 %v2246, %v2467
      %v2486 = vadd.f32 %v2249, %v2470
      %v2487 = vadd.f32 %v2254, %v2475
      %v2488 = vadd.f32 %v2257, %v2478
      %v2489 = vld [vmem:[%s1026] sm:$0xf]
      %v2490 = vld [vmem:[%s1026 + $0x8] sm:$0xf]
      %v2491 = vld [vmem:[%s1026 + $0x10] sm:$0xf]
      %v2492 = vld [vmem:[%s1026 + $0x18] sm:$0xf]
      %v2493 = vld [vmem:[%s1026 + $0x20] sm:$0xf]
      %v2494 = vld [vmem:[%s1026 + $0x28] sm:$0xf]
      %v2495 = vld [vmem:[%s1026 + $0x30] sm:$0xf]
      %v2496 = vld [vmem:[%s1026 + $0x38] sm:$0xf]
      %v2497 = vld [vmem:[%s916] sm:$0x3]
      %v2506 = vunpack.c.l.b16 %v2489
      %v2507 = vunpack.c.l.b16 %v2490
      %v2508 = vunpack.c.l.b16 %v2491
      %v2509 = vunpack.c.l.b16 %v2492
      %v2510 = vunpack.c.l.b16 %v2493
      %v2511 = vunpack.c.l.b16 %v2494
      %v2512 = vunpack.c.l.b16 %v2495
      %v2513 = vunpack.c.l.b16 %v2496
      %v2514 = vpack.c.b16 %v2507, %v2506
      %v2515 = vpack.c.b16 %v2509, %v2508
      %v2516 = vpack.c.b16 %v2511, %v2510
      %v2517 = vpack.c.b16 %v2513, %v2512
      %v2519 = vsel %vm489, %v2514, 0
      %v2522 = vsel %vm489, %v2515, 0
      %v2525 = vsel %vm489, %v2516, 0
      %v2528 = vsel %vm489, %v2517, 0
      %v2531 = vand.u32 %v2497, %v505
      %2533 = vmatprep.subr.bf16.mxu0 0
      %2534 = vmatpush1.bf16.msra.mxu0 %v2531
      %2535 = vmatprep.subr.bf16.mxu0 0
      %2536 = vmatpush1.bf16.msra.mxu0 0
      %2537 = vmatprep.subr.bf16.mxu0 0
      %2538 = vmatpush1.bf16.msra.mxu0 0
      %2539 = vmatprep.subr.bf16.mxu0 0
      %2540 = vmatpush1.bf16.msra.mxu0 0
      %2541 = vmatprep.subr.bf16.mxu0 0
      %2542 = vmatpush1.bf16.msra.mxu0 0
      %2543 = vmatprep.subr.bf16.mxu0 0
      %2544 = vmatpush1.bf16.msra.mxu0 0
      %2545 = vmatprep.subr.bf16.mxu0 0
      %2546 = vmatpush1.bf16.msra.mxu0 0
      %2547 = vmatprep.subr.bf16.mxu0 0
      %2548 = vmatpush1.bf16.msra.mxu0 0
      %2549 = vmatprep.subr.bf16.mxu0 0
      %2550 = vmatpush1.bf16.msra.mxu0 0
      %2551 = vmatprep.subr.bf16.mxu0 0
      %2552 = vmatpush1.bf16.msra.mxu0 0
      %2553 = vmatprep.subr.bf16.mxu0 0
      %2554 = vmatpush1.bf16.msra.mxu0 0
      %2555 = vmatprep.subr.bf16.mxu0 0
      %2556 = vmatpush1.bf16.msra.mxu0 0
      %2557 = vmatprep.subr.bf16.mxu0 0
      %2558 = vmatpush1.bf16.msra.mxu0 0
      %2559 = vmatprep.subr.bf16.mxu0 0
      %2560 = vmatpush1.bf16.msra.mxu0 0
      %2561 = vmatprep.subr.bf16.mxu0 0
      %2562 = vmatpush1.bf16.msra.mxu0 0
      %2563 = vmatprep.subr.bf16.mxu0 0
      %2564 = vmatpush1.bf16.msra.mxu0 0
      %2565 = vmatprep.mubr.bf16.mxu0 0
      %2566 = vmatmul.mubr.bf16.gmra.mrb[0].mxu0 %v2519
      %v2567 = vpop.f32.mrb[0].mxu0
      %v2568 = vadd.f32 0.0, %v2567
      %v2569 = vpop.f32.mrb[0].mxu0
      %v2570 = vpop.f32.mrb[0].mxu0
      %v2571 = vadd.f32 0.0, %v2570
      %v2572 = vpop.f32.mrb[0].mxu0
      %2573 = vmatprep.mubr.bf16.mxu0 0
      %2574 = vmatmul.mubr.bf16.gmra.mrb[0].mxu0 %v2522
      %v2575 = vpop.f32.mrb[0].mxu0
      %v2576 = vadd.f32 0.0, %v2575
      %v2577 = vpop.f32.mrb[0].mxu0
      %v2578 = vpop.f32.mrb[0].mxu0
      %v2579 = vadd.f32 0.0, %v2578
      %v2580 = vpop.f32.mrb[0].mxu0
      %2581 = vmatprep.mubr.bf16.mxu0 0
      %2582 = vmatmul.mubr.bf16.gmra.mrb[0].mxu0 %v2525
      %v2583 = vpop.f32.mrb[0].mxu0
      %v2584 = vadd.f32 0.0, %v2583
      %v2585 = vpop.f32.mrb[0].mxu0
      %v2586 = vpop.f32.mrb[0].mxu0
      %v2587 = vadd.f32 0.0, %v2586
      %v2588 = vpop.f32.mrb[0].mxu0
      %2589 = vmatprep.mubr.bf16.mxu0 0
      %2590 = vmatmul.mubr.bf16.gmra.mrb[0].mxu0 %v2528
      %v2591 = vpop.f32.mrb[0].mxu0
      %v2592 = vadd.f32 0.0, %v2591
      %v2593 = vpop.f32.mrb[0].mxu0
      %v2594 = vpop.f32.mrb[0].mxu0
      %v2595 = vadd.f32 0.0, %v2594
      %v2596 = vpop.f32.mrb[0].mxu0
      %2597 = vdwg.mxu0
      %v2598 = vadd.f32 %v2481, %v2568
      %v2599 = vadd.f32 %v2482, %v2571
      %v2600 = vadd.f32 %v2483, %v2576
      %v2601 = vadd.f32 %v2484, %v2579
      %v2602 = vadd.f32 %v2485, %v2584
      %v2603 = vadd.f32 %v2486, %v2587
      %v2604 = vadd.f32 %v2487, %v2592
      %v2605 = vadd.f32 %v2488, %v2595
      %v2606 = vld [vmem:[%s907] sm:$0xf]
      %v2607 = vld [vmem:[%s907 + $0x4] sm:$0x1]
      %v2608 = vld [vmem:[%s907 + $0x8] sm:$0xf]
      %v2609 = vld [vmem:[%s907 + $0xc] sm:$0x1]
      %v2610 = vld [vmem:[%s907 + $0x10] sm:$0xf]
      %v2611 = vld [vmem:[%s907 + $0x14] sm:$0x1]
      %v2612 = vld [vmem:[%s907 + $0x18] sm:$0xf]
      %v2613 = vld [vmem:[%s907 + $0x1c] sm:$0x1]
      %v2614 = vld [vmem:[%s907 + $0x20] sm:$0xf]
      %v2615 = vld [vmem:[%s907 + $0x24] sm:$0x1]
      %v2616 = vld [vmem:[%s907 + $0x28] sm:$0xf]
      %v2617 = vld [vmem:[%s907 + $0x2c] sm:$0x1]
      %v2618 = vld [vmem:[%s907 + $0x30] sm:$0xf]
      %v2619 = vld [vmem:[%s907 + $0x34] sm:$0x1]
      %v2620 = vld [vmem:[%s907 + $0x38] sm:$0xf]
      %v2621 = vld [vmem:[%s907 + $0x3c] sm:$0x1]
      %v2623 = vshrl.u32 %v2606, 16
      %v2625 = vrot.slane %v2623, 4
      %v2626 = vshll.u32 %v2606, 16
      %v2628 = vrot.slane %v2626, 5
      %v2629 = vor.u32 %v2625, %v2628
      %v2630 = vrot.slane %v2629, 4
      %v2632 = vshll.u32 %v2607, 16
      %v2634 = vrot.slane %v2632, 5
      %v2635 = vsel %vm692, %v2630, %v2634
      %v2637 = vshrl.u32 %v2608, 16
      %v2639 = vrot.slane %v2637, 4
      %v2640 = vshll.u32 %v2608, 16
      %v2642 = vrot.slane %v2640, 5
      %v2643 = vor.u32 %v2639, %v2642
      %v2644 = vrot.slane %v2643, 4
      %v2646 = vshll.u32 %v2609, 16
      %v2648 = vrot.slane %v2646, 5
      %v2649 = vsel %vm692, %v2644, %v2648
      %v2651 = vshrl.u32 %v2610, 16
      %v2653 = vrot.slane %v2651, 4
      %v2654 = vshll.u32 %v2610, 16
      %v2656 = vrot.slane %v2654, 5
      %v2657 = vor.u32 %v2653, %v2656
      %v2658 = vrot.slane %v2657, 4
      %v2660 = vshll.u32 %v2611, 16
      %v2662 = vrot.slane %v2660, 5
      %v2663 = vsel %vm692, %v2658, %v2662
      %v2665 = vshrl.u32 %v2612, 16
      %v2667 = vrot.slane %v2665, 4
      %v2668 = vshll.u32 %v2612, 16
      %v2670 = vrot.slane %v2668, 5
      %v2671 = vor.u32 %v2667, %v2670
      %v2672 = vrot.slane %v2671, 4
      %v2674 = vshll.u32 %v2613, 16
      %v2676 = vrot.slane %v2674, 5
      %v2677 = vsel %vm692, %v2672, %v2676
      %v2679 = vshrl.u32 %v2614, 16
      %v2681 = vrot.slane %v2679, 4
      %v2682 = vshll.u32 %v2614, 16
      %v2684 = vrot.slane %v2682, 5
      %v2685 = vor.u32 %v2681, %v2684
      %v2686 = vrot.slane %v2685, 4
      %v2688 = vshll.u32 %v2615, 16
      %v2690 = vrot.slane %v2688, 5
      %v2691 = vsel %vm692, %v2686, %v2690
      %v2693 = vshrl.u32 %v2616, 16
      %v2695 = vrot.slane %v2693, 4
      %v2696 = vshll.u32 %v2616, 16
      %v2698 = vrot.slane %v2696, 5
      %v2699 = vor.u32 %v2695, %v2698
      %v2700 = vrot.slane %v2699, 4
      %v2702 = vshll.u32 %v2617, 16
      %v2704 = vrot.slane %v2702, 5
      %v2705 = vsel %vm692, %v2700, %v2704
      %v2707 = vshrl.u32 %v2618, 16
      %v2709 = vrot.slane %v2707, 4
      %v2710 = vshll.u32 %v2618, 16
      %v2712 = vrot.slane %v2710, 5
      %v2713 = vor.u32 %v2709, %v2712
      %v2714 = vrot.slane %v2713, 4
      %v2716 = vshll.u32 %v2619, 16
      %v2718 = vrot.slane %v2716, 5
      %v2719 = vsel %vm692, %v2714, %v2718
      %v2721 = vshrl.u32 %v2620, 16
      %v2723 = vrot.slane %v2721, 4
      %v2724 = vshll.u32 %v2620, 16
      %v2726 = vrot.slane %v2724, 5
      %v2727 = vor.u32 %v2723, %v2726
      %v2728 = vrot.slane %v2727, 4
      %v2730 = vshll.u32 %v2621, 16
      %v2732 = vrot.slane %v2730, 5
      %v2733 = vsel %vm692, %v2728, %v2732
      %v2734 = vld [vmem:[%s1035] sm:$0x3]
      %v2735 = vunpack.c.l.b16 %v2635
      %v2736 = vunpack.c.l.b16 %v2649
      %v2737 = vunpack.c.l.b16 %v2663
      %v2738 = vunpack.c.l.b16 %v2677
      %v2739 = vunpack.c.l.b16 %v2691
      %v2740 = vunpack.c.l.b16 %v2705
      %v2741 = vunpack.c.l.b16 %v2719
      %v2742 = vunpack.c.l.b16 %v2733
      %v2743 = vpack.c.b16 %v2736, %v2735
      %v2744 = vpack.c.b16 %v2738, %v2737
      %v2745 = vpack.c.b16 %v2740, %v2739
      %v2746 = vpack.c.b16 %v2742, %v2741
      %v2748 = vsel %vm489, %v2743, 0
      %v2751 = vsel %vm489, %v2744, 0
      %v2754 = vsel %vm489, %v2745, 0
      %v2757 = vsel %vm489, %v2746, 0
      %v2760 = vand.u32 %v2734, %v505
      %2762 = vmatprep.subr.bf16.mxu0 0
      %2763 = vmatpush1.bf16.msra.mxu0 %v2760
      %2764 = vmatprep.subr.bf16.mxu0 0
      %2765 = vmatpush1.bf16.msra.mxu0 0
      %2766 = vmatprep.subr.bf16.mxu0 0
      %2767 = vmatpush1.bf16.msra.mxu0 0
      %2768 = vmatprep.subr.bf16.mxu0 0
      %2769 = vmatpush1.bf16.msra.mxu0 0
      %2770 = vmatprep.subr.bf16.mxu0 0
      %2771 = vmatpush1.bf16.msra.mxu0 0
      %2772 = vmatprep.subr.bf16.mxu0 0
      %2773 = vmatpush1.bf16.msra.mxu0 0
      %2774 = vmatprep.subr.bf16.mxu0 0
      %2775 = vmatpush1.bf16.msra.mxu0 0
      %2776 = vmatprep.subr.bf16.mxu0 0
      %2777 = vmatpush1.bf16.msra.mxu0 0
      %2778 = vmatprep.subr.bf16.mxu0 0
      %2779 = vmatpush1.bf16.msra.mxu0 0
      %2780 = vmatprep.subr.bf16.mxu0 0
      %2781 = vmatpush1.bf16.msra.mxu0 0
      %2782 = vmatprep.subr.bf16.mxu0 0
      %2783 = vmatpush1.bf16.msra.mxu0 0
      %2784 = vmatprep.subr.bf16.mxu0 0
      %2785 = vmatpush1.bf16.msra.mxu0 0
      %2786 = vmatprep.subr.bf16.mxu0 0
      %2787 = vmatpush1.bf16.msra.mxu0 0
      %2788 = vmatprep.subr.bf16.mxu0 0
      %2789 = vmatpush1.bf16.msra.mxu0 0
      %2790 = vmatprep.subr.bf16.mxu0 0
      %2791 = vmatpush1.bf16.msra.mxu0 0
      %2792 = vmatprep.subr.bf16.mxu0 0
      %2793 = vmatpush1.bf16.msra.mxu0 0
      %2794 = vmatprep.mubr.bf16.mxu0 0
      %2795 = vmatmul.mubr.bf16.gmra.mrb[0].mxu0 %v2748
      %v2796 = vpop.f32.mrb[0].mxu0
      %v2797 = vadd.f32 0.0, %v2796
      %v2798 = vpop.f32.mrb[0].mxu0
      %v2799 = vpop.f32.mrb[0].mxu0
      %v2800 = vadd.f32 0.0, %v2799
      %v2801 = vpop.f32.mrb[0].mxu0
      %2802 = vmatprep.mubr.bf16.mxu0 0
      %2803 = vmatmul.mubr.bf16.gmra.mrb[0].mxu0 %v2751
      %v2804 = vpop.f32.mrb[0].mxu0
      %v2805 = vadd.f32 0.0, %v2804
      %v2806 = vpop.f32.mrb[0].mxu0
      %v2807 = vpop.f32.mrb[0].mxu0
      %v2808 = vadd.f32 0.0, %v2807
      %v2809 = vpop.f32.mrb[0].mxu0
      %2810 = vmatprep.mubr.bf16.mxu0 0
      %2811 = vmatmul.mubr.bf16.gmra.mrb[0].mxu0 %v2754
      %v2812 = vpop.f32.mrb[0].mxu0
      %v2813 = vadd.f32 0.0, %v2812
      %v2814 = vpop.f32.mrb[0].mxu0
      %v2815 = vpop.f32.mrb[0].mxu0
      %v2816 = vadd.f32 0.0, %v2815
      %v2817 = vpop.f32.mrb[0].mxu0
      %2818 = vmatprep.mubr.bf16.mxu0 0
      %2819 = vmatmul.mubr.bf16.gmra.mrb[0].mxu0 %v2757
      %v2820 = vpop.f32.mrb[0].mxu0
      %v2821 = vadd.f32 0.0, %v2820
      %v2822 = vpop.f32.mrb[0].mxu0
      %v2823 = vpop.f32.mrb[0].mxu0
      %v2824 = vadd.f32 0.0, %v2823
      %v2825 = vpop.f32.mrb[0].mxu0
      %2826 = vdwg.mxu0
      %v2827 = vadd.f32 %v2598, %v2797
      %v2828 = vadd.f32 %v2599, %v2800
      %v2829 = vadd.f32 %v2600, %v2805
      %v2830 = vadd.f32 %v2601, %v2808
      %v2831 = vadd.f32 %v2602, %v2813
      %v2832 = vadd.f32 %v2603, %v2816
      %v2833 = vadd.f32 %v2604, %v2821
      %v2834 = vadd.f32 %v2605, %v2824
      %v2835 = vld [vmem:[%s1026] sm:$0xf]
      %v2836 = vld [vmem:[%s1026 + $0x4] sm:$0x1]
      %v2837 = vld [vmem:[%s1026 + $0x8] sm:$0xf]
      %v2838 = vld [vmem:[%s1026 + $0xc] sm:$0x1]
      %v2839 = vld [vmem:[%s1026 + $0x10] sm:$0xf]
      %v2840 = vld [vmem:[%s1026 + $0x14] sm:$0x1]
      %v2841 = vld [vmem:[%s1026 + $0x18] sm:$0xf]
      %v2842 = vld [vmem:[%s1026 + $0x1c] sm:$0x1]
      %v2843 = vld [vmem:[%s1026 + $0x20] sm:$0xf]
      %v2844 = vld [vmem:[%s1026 + $0x24] sm:$0x1]
      %v2845 = vld [vmem:[%s1026 + $0x28] sm:$0xf]
      %v2846 = vld [vmem:[%s1026 + $0x2c] sm:$0x1]
      %v2847 = vld [vmem:[%s1026 + $0x30] sm:$0xf]
      %v2848 = vld [vmem:[%s1026 + $0x34] sm:$0x1]
      %v2849 = vld [vmem:[%s1026 + $0x38] sm:$0xf]
      %v2850 = vld [vmem:[%s1026 + $0x3c] sm:$0x1]
      %v2852 = vshrl.u32 %v2835, 16
      %v2854 = vrot.slane %v2852, 4
      %v2855 = vshll.u32 %v2835, 16
      %v2857 = vrot.slane %v2855, 5
      %v2858 = vor.u32 %v2854, %v2857
      %v2859 = vrot.slane %v2858, 4
      %v2861 = vshll.u32 %v2836, 16
      %v2863 = vrot.slane %v2861, 5
      %v2864 = vsel %vm692, %v2859, %v2863
      %v2866 = vshrl.u32 %v2837, 16
      %v2868 = vrot.slane %v2866, 4
      %v2869 = vshll.u32 %v2837, 16
      %v2871 = vrot.slane %v2869, 5
      %v2872 = vor.u32 %v2868, %v2871
      %v2873 = vrot.slane %v2872, 4
      %v2875 = vshll.u32 %v2838, 16
      %v2877 = vrot.slane %v2875, 5
      %v2878 = vsel %vm692, %v2873, %v2877
      %v2880 = vshrl.u32 %v2839, 16
      %v2882 = vrot.slane %v2880, 4
      %v2883 = vshll.u32 %v2839, 16
      %v2885 = vrot.slane %v2883, 5
      %v2886 = vor.u32 %v2882, %v2885
      %v2887 = vrot.slane %v2886, 4
      %v2889 = vshll.u32 %v2840, 16
      %v2891 = vrot.slane %v2889, 5
      %v2892 = vsel %vm692, %v2887, %v2891
      %v2894 = vshrl.u32 %v2841, 16
      %v2896 = vrot.slane %v2894, 4
      %v2897 = vshll.u32 %v2841, 16
      %v2899 = vrot.slane %v2897, 5
      %v2900 = vor.u32 %v2896, %v2899
      %v2901 = vrot.slane %v2900, 4
      %v2903 = vshll.u32 %v2842, 16
      %v2905 = vrot.slane %v2903, 5
      %v2906 = vsel %vm692, %v2901, %v2905
      %v2908 = vshrl.u32 %v2843, 16
      %v2910 = vrot.slane %v2908, 4
      %v2911 = vshll.u32 %v2843, 16
      %v2913 = vrot.slane %v2911, 5
      %v2914 = vor.u32 %v2910, %v2913
      %v2915 = vrot.slane %v2914, 4
      %v2917 = vshll.u32 %v2844, 16
      %v2919 = vrot.slane %v2917, 5
      %v2920 = vsel %vm692, %v2915, %v2919
      %v2922 = vshrl.u32 %v2845, 16
      %v2924 = vrot.slane %v2922, 4
      %v2925 = vshll.u32 %v2845, 16
      %v2927 = vrot.slane %v2925, 5
      %v2928 = vor.u32 %v2924, %v2927
      %v2929 = vrot.slane %v2928, 4
      %v2931 = vshll.u32 %v2846, 16
      %v2933 = vrot.slane %v2931, 5
      %v2934 = vsel %vm692, %v2929, %v2933
      %v2936 = vshrl.u32 %v2847, 16
      %v2938 = vrot.slane %v2936, 4
      %v2939 = vshll.u32 %v2847, 16
      %v2941 = vrot.slane %v2939, 5
      %v2942 = vor.u32 %v2938, %v2941
      %v2943 = vrot.slane %v2942, 4
      %v2945 = vshll.u32 %v2848, 16
      %v2947 = vrot.slane %v2945, 5
      %v2948 = vsel %vm692, %v2943, %v2947
      %v2950 = vshrl.u32 %v2849, 16
      %v2952 = vrot.slane %v2950, 4
      %v2953 = vshll.u32 %v2849, 16
      %v2955 = vrot.slane %v2953, 5
      %v2956 = vor.u32 %v2952, %v2955
      %v2957 = vrot.slane %v2956, 4
      %v2959 = vshll.u32 %v2850, 16
      %v2961 = vrot.slane %v2959, 5
      %v2962 = vsel %vm692, %v2957, %v2961
      %v2963 = vld [vmem:[%s1273] sm:$0x3]
      %v2964 = vunpack.c.l.b16 %v2864
      %v2965 = vunpack.c.l.b16 %v2878
      %v2966 = vunpack.c.l.b16 %v2892
      %v2967 = vunpack.c.l.b16 %v2906
      %v2968 = vunpack.c.l.b16 %v2920
      %v2969 = vunpack.c.l.b16 %v2934
      %v2970 = vunpack.c.l.b16 %v2948
      %v2971 = vunpack.c.l.b16 %v2962
      %v2972 = vpack.c.b16 %v2965, %v2964
      %v2973 = vpack.c.b16 %v2967, %v2966
      %v2974 = vpack.c.b16 %v2969, %v2968
      %v2975 = vpack.c.b16 %v2971, %v2970
      %v2977 = vsel %vm489, %v2972, 0
      %v2980 = vsel %vm489, %v2973, 0
      %v2983 = vsel %vm489, %v2974, 0
      %v2986 = vsel %vm489, %v2975, 0
      %v2989 = vand.u32 %v2963, %v505
      %2991 = vmatprep.subr.bf16.mxu0 0
      %2992 = vmatpush1.bf16.msra.mxu0 %v2989
      %2993 = vmatprep.subr.bf16.mxu0 0
      %2994 = vmatpush1.bf16.msra.mxu0 0
      %2995 = vmatprep.subr.bf16.mxu0 0
      %2996 = vmatpush1.bf16.msra.mxu0 0
      %2997 = vmatprep.subr.bf16.mxu0 0
      %2998 = vmatpush1.bf16.msra.mxu0 0
      %2999 = vmatprep.subr.bf16.mxu0 0
      %3000 = vmatpush1.bf16.msra.mxu0 0
      %3001 = vmatprep.subr.bf16.mxu0 0
      %3002 = vmatpush1.bf16.msra.mxu0 0
      %3003 = vmatprep.subr.bf16.mxu0 0
      %3004 = vmatpush1.bf16.msra.mxu0 0
      %3005 = vmatprep.subr.bf16.mxu0 0
      %3006 = vmatpush1.bf16.msra.mxu0 0
      %3007 = vmatprep.subr.bf16.mxu0 0
      %3008 = vmatpush1.bf16.msra.mxu0 0
      %3009 = vmatprep.subr.bf16.mxu0 0
      %3010 = vmatpush1.bf16.msra.mxu0 0
      %3011 = vmatprep.subr.bf16.mxu0 0
      %3012 = vmatpush1.bf16.msra.mxu0 0
      %3013 = vmatprep.subr.bf16.mxu0 0
      %3014 = vmatpush1.bf16.msra.mxu0 0
      %3015 = vmatprep.subr.bf16.mxu0 0
      %3016 = vmatpush1.bf16.msra.mxu0 0
      %3017 = vmatprep.subr.bf16.mxu0 0
      %3018 = vmatpush1.bf16.msra.mxu0 0
      %3019 = vmatprep.subr.bf16.mxu0 0
      %3020 = vmatpush1.bf16.msra.mxu0 0
      %3021 = vmatprep.subr.bf16.mxu0 0
      %3022 = vmatpush1.bf16.msra.mxu0 0
      %3023 = vmatprep.mubr.bf16.mxu0 0
      %3024 = vmatmul.mubr.bf16.gmra.mrb[0].mxu0 %v2977
      %v3025 = vpop.f32.mrb[0].mxu0
      %v3026 = vadd.f32 0.0, %v3025
      %v3027 = vpop.f32.mrb[0].mxu0
      %v3028 = vpop.f32.mrb[0].mxu0
      %v3029 = vadd.f32 0.0, %v3028
      %v3030 = vpop.f32.mrb[0].mxu0
      %3031 = vmatprep.mubr.bf16.mxu0 0
      %3032 = vmatmul.mubr.bf16.gmra.mrb[0].mxu0 %v2980
      %v3033 = vpop.f32.mrb[0].mxu0
      %v3034 = vadd.f32 0.0, %v3033
      %v3035 = vpop.f32.mrb[0].mxu0
      %v3036 = vpop.f32.mrb[0].mxu0
      %v3037 = vadd.f32 0.0, %v3036
      %v3038 = vpop.f32.mrb[0].mxu0
      %3039 = vmatprep.mubr.bf16.mxu0 0
      %3040 = vmatmul.mubr.bf16.gmra.mrb[0].mxu0 %v2983
      %v3041 = vpop.f32.mrb[0].mxu0
      %v3042 = vadd.f32 0.0, %v3041
      %v3043 = vpop.f32.mrb[0].mxu0
      %v3044 = vpop.f32.mrb[0].mxu0
      %v3045 = vadd.f32 0.0, %v3044
      %v3046 = vpop.f32.mrb[0].mxu0
      %3047 = vmatprep.mubr.bf16.mxu0 0
      %3048 = vmatmul.mubr.bf16.gmra.mrb[0].mxu0 %v2986
      %v3049 = vpop.f32.mrb[0].mxu0
      %v3050 = vadd.f32 0.0, %v3049
      %v3051 = vpop.f32.mrb[0].mxu0
      %v3052 = vpop.f32.mrb[0].mxu0
      %v3053 = vadd.f32 0.0, %v3052
      %v3054 = vpop.f32.mrb[0].mxu0
      %3055 = vdwg.mxu0
      %v3056 = vadd.f32 %v2827, %v3026
      %v3057 = vadd.f32 %v2828, %v3029
      %v3058 = vadd.f32 %v2829, %v3034
      %v3059 = vadd.f32 %v2830, %v3037
      %v3060 = vadd.f32 %v2831, %v3042
      %v3061 = vadd.f32 %v2832, %v3045
      %v3062 = vadd.f32 %v2833, %v3050
      %v3063 = vadd.f32 %v2834, %v3053
      %v3064 = vld [vmem:[%s1494] sm:$0xf]
      %v3065 = vld [vmem:[%s1494 + $0x8] sm:$0xf]
      %v3066 = vld [vmem:[%s1494 + $0x10] sm:$0xf]
      %v3067 = vld [vmem:[%s1494 + $0x18] sm:$0xf]
      %v3068 = vld [vmem:[%s1494 + $0x20] sm:$0xf]
      %v3069 = vld [vmem:[%s1494 + $0x28] sm:$0xf]
      %v3070 = vld [vmem:[%s1494 + $0x30] sm:$0xf]
      %v3071 = vld [vmem:[%s1494 + $0x38] sm:$0xf]
      %v3072 = vld [vmem:[%s1384] sm:$0x3]
      %v3081 = vunpack.c.l.b16 %v3064
      %v3082 = vunpack.c.l.b16 %v3065
      %v3083 = vunpack.c.l.b16 %v3066
      %v3084 = vunpack.c.l.b16 %v3067
      %v3085 = vunpack.c.l.b16 %v3068
      %v3086 = vunpack.c.l.b16 %v3069
      %v3087 = vunpack.c.l.b16 %v3070
      %v3088 = vunpack.c.l.b16 %v3071
      %v3089 = vpack.c.b16 %v3082, %v3081
      %v3090 = vpack.c.b16 %v3084, %v3083
      %v3091 = vpack.c.b16 %v3086, %v3085
      %v3092 = vpack.c.b16 %v3088, %v3087
      %v3094 = vsel %vm489, %v3089, 0
      %v3097 = vsel %vm489, %v3090, 0
      %v3100 = vsel %vm489, %v3091, 0
      %v3103 = vsel %vm489, %v3092, 0
      %v3106 = vand.u32 %v3072, %v505
      %3108 = vmatprep.subr.bf16.mxu0 0
      %3109 = vmatpush1.bf16.msra.mxu0 %v3106
      %3110 = vmatprep.subr.bf16.mxu0 0
      %3111 = vmatpush1.bf16.msra.mxu0 0
      %3112 = vmatprep.subr.bf16.mxu0 0
      %3113 = vmatpush1.bf16.msra.mxu0 0
      %3114 = vmatprep.subr.bf16.mxu0 0
      %3115 = vmatpush1.bf16.msra.mxu0 0
      %3116 = vmatprep.subr.bf16.mxu0 0
      %3117 = vmatpush1.bf16.msra.mxu0 0
      %3118 = vmatprep.subr.bf16.mxu0 0
      %3119 = vmatpush1.bf16.msra.mxu0 0
      %3120 = vmatprep.subr.bf16.mxu0 0
      %3121 = vmatpush1.bf16.msra.mxu0 0
      %3122 = vmatprep.subr.bf16.mxu0 0
      %3123 = vmatpush1.bf16.msra.mxu0 0
      %3124 = vmatprep.subr.bf16.mxu0 0
      %3125 = vmatpush1.bf16.msra.mxu0 0
      %3126 = vmatprep.subr.bf16.mxu0 0
      %3127 = vmatpush1.bf16.msra.mxu0 0
      %3128 = vmatprep.subr.bf16.mxu0 0
      %3129 = vmatpush1.bf16.msra.mxu0 0
      %3130 = vmatprep.subr.bf16.mxu0 0
      %3131 = vmatpush1.bf16.msra.mxu0 0
      %3132 = vmatprep.subr.bf16.mxu0 0
      %3133 = vmatpush1.bf16.msra.mxu0 0
      %3134 = vmatprep.subr.bf16.mxu0 0
      %3135 = vmatpush1.bf16.msra.mxu0 0
      %3136 = vmatprep.subr.bf16.mxu0 0
      %3137 = vmatpush1.bf16.msra.mxu0 0
      %3138 = vmatprep.subr.bf16.mxu0 0
      %3139 = vmatpush1.bf16.msra.mxu0 0
      %3140 = vmatprep.mubr.bf16.mxu0 0
      %3141 = vmatmul.mubr.bf16.gmra.mrb[0].mxu0 %v3094
      %v3142 = vpop.f32.mrb[0].mxu0
      %v3143 = vadd.f32 0.0, %v3142
      %v3144 = vpop.f32.mrb[0].mxu0
      %v3145 = vpop.f32.mrb[0].mxu0
      %v3146 = vadd.f32 0.0, %v3145
      %v3147 = vpop.f32.mrb[0].mxu0
      %3148 = vmatprep.mubr.bf16.mxu0 0
      %3149 = vmatmul.mubr.bf16.gmra.mrb[0].mxu0 %v3097
      %v3150 = vpop.f32.mrb[0].mxu0
      %v3151 = vadd.f32 0.0, %v3150
      %v3152 = vpop.f32.mrb[0].mxu0
      %v3153 = vpop.f32.mrb[0].mxu0
      %v3154 = vadd.f32 0.0, %v3153
      %v3155 = vpop.f32.mrb[0].mxu0
      %3156 = vmatprep.mubr.bf16.mxu0 0
      %3157 = vmatmul.mubr.bf16.gmra.mrb[0].mxu0 %v3100
      %v3158 = vpop.f32.mrb[0].mxu0
      %v3159 = vadd.f32 0.0, %v3158
      %v3160 = vpop.f32.mrb[0].mxu0
      %v3161 = vpop.f32.mrb[0].mxu0
      %v3162 = vadd.f32 0.0, %v3161
      %v3163 = vpop.f32.mrb[0].mxu0
      %3164 = vmatprep.mubr.bf16.mxu0 0
      %3165 = vmatmul.mubr.bf16.gmra.mrb[0].mxu0 %v3103
      %v3166 = vpop.f32.mrb[0].mxu0
      %v3167 = vadd.f32 0.0, %v3166
      %v3168 = vpop.f32.mrb[0].mxu0
      %v3169 = vpop.f32.mrb[0].mxu0
      %v3170 = vadd.f32 0.0, %v3169
      %v3171 = vpop.f32.mrb[0].mxu0
      %3172 = vdwg.mxu0
      %v3173 = vadd.f32 %v3056, %v3143
      %v3174 = vadd.f32 %v3057, %v3146
      %v3175 = vadd.f32 %v3058, %v3151
      %v3176 = vadd.f32 %v3059, %v3154
      %v3177 = vadd.f32 %v3060, %v3159
      %v3178 = vadd.f32 %v3061, %v3162
      %v3179 = vadd.f32 %v3062, %v3167
      %v3180 = vadd.f32 %v3063, %v3170
      %v3181 = vld [vmem:[%s1375] sm:$0xf]
      %v3182 = vld [vmem:[%s1375 + $0x4] sm:$0x1]
      %v3183 = vld [vmem:[%s1375 + $0x8] sm:$0xf]
      %v3184 = vld [vmem:[%s1375 + $0xc] sm:$0x1]
      %v3185 = vld [vmem:[%s1375 + $0x10] sm:$0xf]
      %v3186 = vld [vmem:[%s1375 + $0x14] sm:$0x1]
      %v3187 = vld [vmem:[%s1375 + $0x18] sm:$0xf]
      %v3188 = vld [vmem:[%s1375 + $0x1c] sm:$0x1]
      %v3189 = vld [vmem:[%s1375 + $0x20] sm:$0xf]
      %v3190 = vld [vmem:[%s1375 + $0x24] sm:$0x1]
      %v3191 = vld [vmem:[%s1375 + $0x28] sm:$0xf]
      %v3192 = vld [vmem:[%s1375 + $0x2c] sm:$0x1]
      %v3193 = vld [vmem:[%s1375 + $0x30] sm:$0xf]
      %v3194 = vld [vmem:[%s1375 + $0x34] sm:$0x1]
      %v3195 = vld [vmem:[%s1375 + $0x38] sm:$0xf]
      %v3196 = vld [vmem:[%s1375 + $0x3c] sm:$0x1]
      %v3198 = vshrl.u32 %v3181, 16
      %v3200 = vrot.slane %v3198, 4
      %v3201 = vshll.u32 %v3181, 16
      %v3203 = vrot.slane %v3201, 5
      %v3204 = vor.u32 %v3200, %v3203
      %v3205 = vrot.slane %v3204, 4
      %v3207 = vshll.u32 %v3182, 16
      %v3209 = vrot.slane %v3207, 5
      %v3210 = vsel %vm692, %v3205, %v3209
      %v3212 = vshrl.u32 %v3183, 16
      %v3214 = vrot.slane %v3212, 4
      %v3215 = vshll.u32 %v3183, 16
      %v3217 = vrot.slane %v3215, 5
      %v3218 = vor.u32 %v3214, %v3217
      %v3219 = vrot.slane %v3218, 4
      %v3221 = vshll.u32 %v3184, 16
      %v3223 = vrot.slane %v3221, 5
      %v3224 = vsel %vm692, %v3219, %v3223
      %v3226 = vshrl.u32 %v3185, 16
      %v3228 = vrot.slane %v3226, 4
      %v3229 = vshll.u32 %v3185, 16
      %v3231 = vrot.slane %v3229, 5
      %v3232 = vor.u32 %v3228, %v3231
      %v3233 = vrot.slane %v3232, 4
      %v3235 = vshll.u32 %v3186, 16
      %v3237 = vrot.slane %v3235, 5
      %v3238 = vsel %vm692, %v3233, %v3237
      %v3240 = vshrl.u32 %v3187, 16
      %v3242 = vrot.slane %v3240, 4
      %v3243 = vshll.u32 %v3187, 16
      %v3245 = vrot.slane %v3243, 5
      %v3246 = vor.u32 %v3242, %v3245
      %v3247 = vrot.slane %v3246, 4
      %v3249 = vshll.u32 %v3188, 16
      %v3251 = vrot.slane %v3249, 5
      %v3252 = vsel %vm692, %v3247, %v3251
      %v3254 = vshrl.u32 %v3189, 16
      %v3256 = vrot.slane %v3254, 4
      %v3257 = vshll.u32 %v3189, 16
      %v3259 = vrot.slane %v3257, 5
      %v3260 = vor.u32 %v3256, %v3259
      %v3261 = vrot.slane %v3260, 4
      %v3263 = vshll.u32 %v3190, 16
      %v3265 = vrot.slane %v3263, 5
      %v3266 = vsel %vm692, %v3261, %v3265
      %v3268 = vshrl.u32 %v3191, 16
      %v3270 = vrot.slane %v3268, 4
      %v3271 = vshll.u32 %v3191, 16
      %v3273 = vrot.slane %v3271, 5
      %v3274 = vor.u32 %v3270, %v3273
      %v3275 = vrot.slane %v3274, 4
      %v3277 = vshll.u32 %v3192, 16
      %v3279 = vrot.slane %v3277, 5
      %v3280 = vsel %vm692, %v3275, %v3279
      %v3282 = vshrl.u32 %v3193, 16
      %v3284 = vrot.slane %v3282, 4
      %v3285 = vshll.u32 %v3193, 16
      %v3287 = vrot.slane %v3285, 5
      %v3288 = vor.u32 %v3284, %v3287
      %v3289 = vrot.slane %v3288, 4
      %v3291 = vshll.u32 %v3194, 16
      %v3293 = vrot.slane %v3291, 5
      %v3294 = vsel %vm692, %v3289, %v3293
      %v3296 = vshrl.u32 %v3195, 16
      %v3298 = vrot.slane %v3296, 4
      %v3299 = vshll.u32 %v3195, 16
      %v3301 = vrot.slane %v3299, 5
      %v3302 = vor.u32 %v3298, %v3301
      %v3303 = vrot.slane %v3302, 4
      %v3305 = vshll.u32 %v3196, 16
      %v3307 = vrot.slane %v3305, 5
      %v3308 = vsel %vm692, %v3303, %v3307
      %v3309 = vld [vmem:[%s1503] sm:$0x3]
      %v3310 = vunpack.c.l.b16 %v3210
      %v3311 = vunpack.c.l.b16 %v3224
      %v3312 = vunpack.c.l.b16 %v3238
      %v3313 = vunpack.c.l.b16 %v3252
      %v3314 = vunpack.c.l.b16 %v3266
      %v3315 = vunpack.c.l.b16 %v3280
      %v3316 = vunpack.c.l.b16 %v3294
      %v3317 = vunpack.c.l.b16 %v3308
      %v3318 = vpack.c.b16 %v3311, %v3310
      %v3319 = vpack.c.b16 %v3313, %v3312
      %v3320 = vpack.c.b16 %v3315, %v3314
      %v3321 = vpack.c.b16 %v3317, %v3316
      %v3323 = vsel %vm489, %v3318, 0
      %v3326 = vsel %vm489, %v3319, 0
      %v3329 = vsel %vm489, %v3320, 0
      %v3332 = vsel %vm489, %v3321, 0
      %v3335 = vand.u32 %v3309, %v505
      %3337 = vmatprep.subr.bf16.mxu0 0
      %3338 = vmatpush1.bf16.msra.mxu0 %v3335
      %3339 = vmatprep.subr.bf16.mxu0 0
      %3340 = vmatpush1.bf16.msra.mxu0 0
      %3341 = vmatprep.subr.bf16.mxu0 0
      %3342 = vmatpush1.bf16.msra.mxu0 0
      %3343 = vmatprep.subr.bf16.mxu0 0
      %3344 = vmatpush1.bf16.msra.mxu0 0
      %3345 = vmatprep.subr.bf16.mxu0 0
      %3346 = vmatpush1.bf16.msra.mxu0 0
      %3347 = vmatprep.subr.bf16.mxu0 0
      %3348 = vmatpush1.bf16.msra.mxu0 0
      %3349 = vmatprep.subr.bf16.mxu0 0
      %3350 = vmatpush1.bf16.msra.mxu0 0
      %3351 = vmatprep.subr.bf16.mxu0 0
      %3352 = vmatpush1.bf16.msra.mxu0 0
      %3353 = vmatprep.subr.bf16.mxu0 0
      %3354 = vmatpush1.bf16.msra.mxu0 0
      %3355 = vmatprep.subr.bf16.mxu0 0
      %3356 = vmatpush1.bf16.msra.mxu0 0
      %3357 = vmatprep.subr.bf16.mxu0 0
      %3358 = vmatpush1.bf16.msra.mxu0 0
      %3359 = vmatprep.subr.bf16.mxu0 0
      %3360 = vmatpush1.bf16.msra.mxu0 0
      %3361 = vmatprep.subr.bf16.mxu0 0
      %3362 = vmatpush1.bf16.msra.mxu0 0
      %3363 = vmatprep.subr.bf16.mxu0 0
      %3364 = vmatpush1.bf16.msra.mxu0 0
      %3365 = vmatprep.subr.bf16.mxu0 0
      %3366 = vmatpush1.bf16.msra.mxu0 0
      %3367 = vmatprep.subr.bf16.mxu0 0
      %3368 = vmatpush1.bf16.msra.mxu0 0
      %3369 = vmatprep.mubr.bf16.mxu0 0
      %3370 = vmatmul.mubr.bf16.gmra.mrb[0].mxu0 %v3323
      %v3371 = vpop.f32.mrb[0].mxu0
      %v3372 = vadd.f32 0.0, %v3371
      %v3373 = vpop.f32.mrb[0].mxu0
      %v3374 = vpop.f32.mrb[0].mxu0
      %v3375 = vadd.f32 0.0, %v3374
      %v3376 = vpop.f32.mrb[0].mxu0
      %3377 = vmatprep.mubr.bf16.mxu0 0
      %3378 = vmatmul.mubr.bf16.gmra.mrb[0].mxu0 %v3326
      %v3379 = vpop.f32.mrb[0].mxu0
      %v3380 = vadd.f32 0.0, %v3379
      %v3381 = vpop.f32.mrb[0].mxu0
      %v3382 = vpop.f32.mrb[0].mxu0
      %v3383 = vadd.f32 0.0, %v3382
      %v3384 = vpop.f32.mrb[0].mxu0
      %3385 = vmatprep.mubr.bf16.mxu0 0
      %3386 = vmatmul.mubr.bf16.gmra.mrb[0].mxu0 %v3329
      %v3387 = vpop.f32.mrb[0].mxu0
      %v3388 = vadd.f32 0.0, %v3387
      %v3389 = vpop.f32.mrb[0].mxu0
      %v3390 = vpop.f32.mrb[0].mxu0
      %v3391 = vadd.f32 0.0, %v3390
      %v3392 = vpop.f32.mrb[0].mxu0
      %3393 = vmatprep.mubr.bf16.mxu0 0
      %3394 = vmatmul.mubr.bf16.gmra.mrb[0].mxu0 %v3332
      %v3395 = vpop.f32.mrb[0].mxu0
      %v3396 = vadd.f32 0.0, %v3395
      %v3397 = vpop.f32.mrb[0].mxu0
      %v3398 = vpop.f32.mrb[0].mxu0
      %v3399 = vadd.f32 0.0, %v3398
      %v3400 = vpop.f32.mrb[0].mxu0
      %3401 = vdwg.mxu0
      %v3402 = vadd.f32 %v3173, %v3372
      %v3403 = vadd.f32 %v3174, %v3375
      %v3404 = vadd.f32 %v3175, %v3380
      %v3405 = vadd.f32 %v3176, %v3383
      %v3406 = vadd.f32 %v3177, %v3388
      %v3407 = vadd.f32 %v3178, %v3391
      %v3408 = vadd.f32 %v3179, %v3396
      %v3409 = vadd.f32 %v3180, %v3399
      %v3410 = vld [vmem:[%s1494] sm:$0xf]
      %v3411 = vld [vmem:[%s1494 + $0x4] sm:$0x1]
      %v3412 = vld [vmem:[%s1494 + $0x8] sm:$0xf]
      %v3413 = vld [vmem:[%s1494 + $0xc] sm:$0x1]
      %v3414 = vld [vmem:[%s1494 + $0x10] sm:$0xf]
      %v3415 = vld [vmem:[%s1494 + $0x14] sm:$0x1]
      %v3416 = vld [vmem:[%s1494 + $0x18] sm:$0xf]
      %v3417 = vld [vmem:[%s1494 + $0x1c] sm:$0x1]
      %v3418 = vld [vmem:[%s1494 + $0x20] sm:$0xf]
      %v3419 = vld [vmem:[%s1494 + $0x24] sm:$0x1]
      %v3420 = vld [vmem:[%s1494 + $0x28] sm:$0xf]
      %v3421 = vld [vmem:[%s1494 + $0x2c] sm:$0x1]
      %v3422 = vld [vmem:[%s1494 + $0x30] sm:$0xf]
      %v3423 = vld [vmem:[%s1494 + $0x34] sm:$0x1]
      %v3424 = vld [vmem:[%s1494 + $0x38] sm:$0xf]
      %v3425 = vld [vmem:[%s1494 + $0x3c] sm:$0x1]
      %v3427 = vshrl.u32 %v3410, 16
      %v3429 = vrot.slane %v3427, 4
      %v3430 = vshll.u32 %v3410, 16
      %v3432 = vrot.slane %v3430, 5
      %v3433 = vor.u32 %v3429, %v3432
      %v3434 = vrot.slane %v3433, 4
      %v3436 = vshll.u32 %v3411, 16
      %v3438 = vrot.slane %v3436, 5
      %v3439 = vsel %vm692, %v3434, %v3438
      %v3441 = vshrl.u32 %v3412, 16
      %v3443 = vrot.slane %v3441, 4
      %v3444 = vshll.u32 %v3412, 16
      %v3446 = vrot.slane %v3444, 5
      %v3447 = vor.u32 %v3443, %v3446
      %v3448 = vrot.slane %v3447, 4
      %v3450 = vshll.u32 %v3413, 16
      %v3452 = vrot.slane %v3450, 5
      %v3453 = vsel %vm692, %v3448, %v3452
      %v3455 = vshrl.u32 %v3414, 16
      %v3457 = vrot.slane %v3455, 4
      %v3458 = vshll.u32 %v3414, 16
      %v3460 = vrot.slane %v3458, 5
      %v3461 = vor.u32 %v3457, %v3460
      %v3462 = vrot.slane %v3461, 4
      %v3464 = vshll.u32 %v3415, 16
      %v3466 = vrot.slane %v3464, 5
      %v3467 = vsel %vm692, %v3462, %v3466
      %v3469 = vshrl.u32 %v3416, 16
      %v3471 = vrot.slane %v3469, 4
      %v3472 = vshll.u32 %v3416, 16
      %v3474 = vrot.slane %v3472, 5
      %v3475 = vor.u32 %v3471, %v3474
      %v3476 = vrot.slane %v3475, 4
      %v3478 = vshll.u32 %v3417, 16
      %v3480 = vrot.slane %v3478, 5
      %v3481 = vsel %vm692, %v3476, %v3480
      %v3483 = vshrl.u32 %v3418, 16
      %v3485 = vrot.slane %v3483, 4
      %v3486 = vshll.u32 %v3418, 16
      %v3488 = vrot.slane %v3486, 5
      %v3489 = vor.u32 %v3485, %v3488
      %v3490 = vrot.slane %v3489, 4
      %v3492 = vshll.u32 %v3419, 16
      %v3494 = vrot.slane %v3492, 5
      %v3495 = vsel %vm692, %v3490, %v3494
      %v3497 = vshrl.u32 %v3420, 16
      %v3499 = vrot.slane %v3497, 4
      %v3500 = vshll.u32 %v3420, 16
      %v3502 = vrot.slane %v3500, 5
      %v3503 = vor.u32 %v3499, %v3502
      %v3504 = vrot.slane %v3503, 4
      %v3506 = vshll.u32 %v3421, 16
      %v3508 = vrot.slane %v3506, 5
      %v3509 = vsel %vm692, %v3504, %v3508
      %v3511 = vshrl.u32 %v3422, 16
      %v3513 = vrot.slane %v3511, 4
      %v3514 = vshll.u32 %v3422, 16
      %v3516 = vrot.slane %v3514, 5
      %v3517 = vor.u32 %v3513, %v3516
      %v3518 = vrot.slane %v3517, 4
      %v3520 = vshll.u32 %v3423, 16
      %v3522 = vrot.slane %v3520, 5
      %v3523 = vsel %vm692, %v3518, %v3522
      %v3525 = vshrl.u32 %v3424, 16
      %v3527 = vrot.slane %v3525, 4
      %v3528 = vshll.u32 %v3424, 16
      %v3530 = vrot.slane %v3528, 5
      %v3531 = vor.u32 %v3527, %v3530
      %v3532 = vrot.slane %v3531, 4
      %v3534 = vshll.u32 %v3425, 16
      %v3536 = vrot.slane %v3534, 5
      %v3537 = vsel %vm692, %v3532, %v3536
      %v3538 = vld [vmem:[%s1741] sm:$0x3]
      %v3539 = vunpack.c.l.b16 %v3439
      %v3540 = vunpack.c.l.b16 %v3453
      %v3541 = vunpack.c.l.b16 %v3467
      %v3542 = vunpack.c.l.b16 %v3481
      %v3543 = vunpack.c.l.b16 %v3495
      %v3544 = vunpack.c.l.b16 %v3509
      %v3545 = vunpack.c.l.b16 %v3523
      %v3546 = vunpack.c.l.b16 %v3537
      %v3547 = vpack.c.b16 %v3540, %v3539
      %v3548 = vpack.c.b16 %v3542, %v3541
      %v3549 = vpack.c.b16 %v3544, %v3543
      %v3550 = vpack.c.b16 %v3546, %v3545
      %v3552 = vsel %vm489, %v3547, 0
      %v3555 = vsel %vm489, %v3548, 0
      %v3558 = vsel %vm489, %v3549, 0
      %v3561 = vsel %vm489, %v3550, 0
      %v3564 = vand.u32 %v3538, %v505
      %3566 = vmatprep.subr.bf16.mxu0 0
      %3567 = vmatpush1.bf16.msra.mxu0 %v3564
      %3568 = vmatprep.subr.bf16.mxu0 0
      %3569 = vmatpush1.bf16.msra.mxu0 0
      %3570 = vmatprep.subr.bf16.mxu0 0
      %3571 = vmatpush1.bf16.msra.mxu0 0
      %3572 = vmatprep.subr.bf16.mxu0 0
      %3573 = vmatpush1.bf16.msra.mxu0 0
      %3574 = vmatprep.subr.bf16.mxu0 0
      %3575 = vmatpush1.bf16.msra.mxu0 0
      %3576 = vmatprep.subr.bf16.mxu0 0
      %3577 = vmatpush1.bf16.msra.mxu0 0
      %3578 = vmatprep.subr.bf16.mxu0 0
      %3579 = vmatpush1.bf16.msra.mxu0 0
      %3580 = vmatprep.subr.bf16.mxu0 0
      %3581 = vmatpush1.bf16.msra.mxu0 0
      %3582 = vmatprep.subr.bf16.mxu0 0
      %3583 = vmatpush1.bf16.msra.mxu0 0
      %3584 = vmatprep.subr.bf16.mxu0 0
      %3585 = vmatpush1.bf16.msra.mxu0 0
      %3586 = vmatprep.subr.bf16.mxu0 0
      %3587 = vmatpush1.bf16.msra.mxu0 0
      %3588 = vmatprep.subr.bf16.mxu0 0
      %3589 = vmatpush1.bf16.msra.mxu0 0
      %3590 = vmatprep.subr.bf16.mxu0 0
      %3591 = vmatpush1.bf16.msra.mxu0 0
      %3592 = vmatprep.subr.bf16.mxu0 0
      %3593 = vmatpush1.bf16.msra.mxu0 0
      %3594 = vmatprep.subr.bf16.mxu0 0
      %3595 = vmatpush1.bf16.msra.mxu0 0
      %3596 = vmatprep.subr.bf16.mxu0 0
      %3597 = vmatpush1.bf16.msra.mxu0 0
      %3598 = vmatprep.mubr.bf16.mxu0 0
      %3599 = vmatmul.mubr.bf16.gmra.mrb[0].mxu0 %v3552
      %v3600 = vpop.f32.mrb[0].mxu0
      %v3601 = vadd.f32 0.0, %v3600
      %v3602 = vpop.f32.mrb[0].mxu0
      %v3603 = vpop.f32.mrb[0].mxu0
      %v3604 = vadd.f32 0.0, %v3603
      %v3605 = vpop.f32.mrb[0].mxu0
      %3606 = vmatprep.mubr.bf16.mxu0 0
      %3607 = vmatmul.mubr.bf16.gmra.mrb[0].mxu0 %v3555
      %v3608 = vpop.f32.mrb[0].mxu0
      %v3609 = vadd.f32 0.0, %v3608
      %v3610 = vpop.f32.mrb[0].mxu0
      %v3611 = vpop.f32.mrb[0].mxu0
      %v3612 = vadd.f32 0.0, %v3611
      %v3613 = vpop.f32.mrb[0].mxu0
      %3614 = vmatprep.mubr.bf16.mxu0 0
      %3615 = vmatmul.mubr.bf16.gmra.mrb[0].mxu0 %v3558
      %v3616 = vpop.f32.mrb[0].mxu0
      %v3617 = vadd.f32 0.0, %v3616
      %v3618 = vpop.f32.mrb[0].mxu0
      %v3619 = vpop.f32.mrb[0].mxu0
      %v3620 = vadd.f32 0.0, %v3619
      %v3621 = vpop.f32.mrb[0].mxu0
      %3622 = vmatprep.mubr.bf16.mxu0 0
      %3623 = vmatmul.mubr.bf16.gmra.mrb[0].mxu0 %v3561
      %v3624 = vpop.f32.mrb[0].mxu0
      %v3625 = vadd.f32 0.0, %v3624
      %v3626 = vpop.f32.mrb[0].mxu0
      %v3627 = vpop.f32.mrb[0].mxu0
      %v3628 = vadd.f32 0.0, %v3627
      %v3629 = vpop.f32.mrb[0].mxu0
      %3630 = vdwg.mxu0
      %v3631 = vadd.f32 %v3402, %v3601
      %v3632 = vadd.f32 %v3403, %v3604
      %v3633 = vadd.f32 %v3404, %v3609
      %v3634 = vadd.f32 %v3405, %v3612
      %v3635 = vadd.f32 %v3406, %v3617
      %v3636 = vadd.f32 %v3407, %v3620
      %v3637 = vadd.f32 %v3408, %v3625
      %v3638 = vadd.f32 %v3409, %v3628
      %v3639 = vld [vmem:[%s2] sm:$0x1]
      %v3641 = vlaneseq
      %v3642 = vshrl.u32 %v3641, 7
      %v3643 = vsub.s32 0, %v3642
      %v3644 = vrot.slane %v3639, %v3643
      %v3646 = vadd.f32 %v3631, %v3644
      %v3647 = vadd.f32 %v3632, %v3644
      %v3648 = vadd.f32 %v3633, %v3644
      %v3649 = vadd.f32 %v3634, %v3644
      %v3650 = vadd.f32 %v3635, %v3644
      %v3651 = vadd.f32 %v3636, %v3644
      %v3652 = vadd.f32 %v3637, %v3644
      %v3653 = vadd.f32 %v3638, %v3644
      %v3654 = vsub.f32 0.0, %v3646
      %v3655 = vsub.f32 0.0, %v3647
      %v3656 = vsub.f32 0.0, %v3648
      %v3657 = vsub.f32 0.0, %v3649
      %v3658 = vsub.f32 0.0, %v3650
      %v3659 = vsub.f32 0.0, %v3651
      %v3660 = vsub.f32 0.0, %v3652
      %v3661 = vsub.f32 0.0, %v3653
      %v3662 = vmul.f32 %v3654, 1.442695
      %v3663 = vpow.pop %v3662
      %v3664 = vmul.f32 %v3655, 1.442695
      %v3665 = vpow.pop %v3664
      %v3666 = vmul.f32 %v3656, 1.442695
      %v3667 = vpow.pop %v3666
      %v3668 = vmul.f32 %v3657, 1.442695
      %v3669 = vpow.pop %v3668
      %v3670 = vmul.f32 %v3658, 1.442695
      %v3671 = vpow.pop %v3670
      %v3672 = vmul.f32 %v3659, 1.442695
      %v3673 = vpow.pop %v3672
      %v3674 = vmul.f32 %v3660, 1.442695
      %v3675 = vpow.pop %v3674
      %v3676 = vmul.f32 %v3661, 1.442695
      %v3677 = vpow.pop %v3676
      %v3678 = vadd.f32 %v3663, 1.0
      %v3679 = vadd.f32 %v3665, 1.0
      %v3680 = vadd.f32 %v3667, 1.0
      %v3681 = vadd.f32 %v3669, 1.0
      %v3682 = vadd.f32 %v3671, 1.0
      %v3683 = vadd.f32 %v3673, 1.0
      %v3684 = vadd.f32 %v3675, 1.0
      %v3685 = vadd.f32 %v3677, 1.0
      %v3686 = vrcp.pop %v3678
      %v3687 = vmul.f32 1.0, %v3686
      %v3688 = vrcp.pop %v3679
      %v3689 = vmul.f32 1.0, %v3688
      %v3690 = vrcp.pop %v3680
      %v3691 = vmul.f32 1.0, %v3690
      %v3692 = vrcp.pop %v3681
      %v3693 = vmul.f32 1.0, %v3692
      %v3694 = vrcp.pop %v3682
      %v3695 = vmul.f32 1.0, %v3694
      %v3696 = vrcp.pop %v3683
      %v3697 = vmul.f32 1.0, %v3696
      %v3698 = vrcp.pop %v3684
      %v3699 = vmul.f32 1.0, %v3698
      %v3700 = vrcp.pop %v3685
      %v3701 = vmul.f32 1.0, %v3700
      %v3702 = vmul.f32 %v3646, %v3687
      %v3703 = vmul.f32 %v3647, %v3689
      %v3704 = vmul.f32 %v3648, %v3691
      %v3705 = vmul.f32 %v3649, %v3693
      %v3706 = vmul.f32 %v3650, %v3695
      %v3707 = vmul.f32 %v3651, %v3697
      %v3708 = vmul.f32 %v3652, %v3699
      %v3709 = vmul.f32 %v3653, %v3701
      %v3710 = vpack.c.bf16 %v3702, %v3702
      %v3711 = vpack.c.bf16 %v3703, %v3703
      %v3712 = vpack.c.bf16 %v3704, %v3704
      %v3713 = vpack.c.bf16 %v3705, %v3705
      %v3714 = vpack.c.bf16 %v3706, %v3706
      %v3715 = vpack.c.bf16 %v3707, %v3707
      %v3716 = vpack.c.bf16 %v3708, %v3708
      %v3717 = vpack.c.bf16 %v3709, %v3709
      %s3718 = scalar_lea.vmem [#allocation2], 72
      %3719 = vst.msk [vmem:[%s3718] sm:$0xf] %vm280, %v3710
      %3720 = vst.msk [vmem:[%s3718 + $0x8] sm:$0xf] %vm280, %v3711
      %3721 = vst.msk [vmem:[%s3718 + $0x10] sm:$0xf] %vm280, %v3712
      %3722 = vst.msk [vmem:[%s3718 + $0x18] sm:$0xf] %vm280, %v3713
      %3723 = vst.msk [vmem:[%s3718 + $0x20] sm:$0xf] %vm280, %v3714
      %3724 = vst.msk [vmem:[%s3718 + $0x28] sm:$0xf] %vm280, %v3715
      %3725 = vst.msk [vmem:[%s3718 + $0x30] sm:$0xf] %vm280, %v3716
      %3726 = vst.msk [vmem:[%s3718 + $0x38] sm:$0xf] %vm280, %v3717
      %v3727 = vld [vmem:[%s907] sm:$0xf]
      %v3728 = vld [vmem:[%s907 + $0x8] sm:$0xf]
      %v3729 = vld [vmem:[%s907 + $0x10] sm:$0xf]
      %v3730 = vld [vmem:[%s907 + $0x18] sm:$0xf]
      %v3731 = vld [vmem:[%s907 + $0x20] sm:$0xf]
      %v3732 = vld [vmem:[%s907 + $0x28] sm:$0xf]
      %v3733 = vld [vmem:[%s907 + $0x30] sm:$0xf]
      %v3734 = vld [vmem:[%s907 + $0x38] sm:$0xf]
      %v3735 = vld [vmem:[%s1] sm:$0x3]
      %v3736 = vld [vmem:[%s1026] sm:$0xf]
      %v3737 = vld [vmem:[%s1026 + $0x8] sm:$0xf]
      %v3738 = vld [vmem:[%s1026 + $0x10] sm:$0xf]
      %v3739 = vld [vmem:[%s1026 + $0x18] sm:$0xf]
      %v3740 = vld [vmem:[%s1026 + $0x20] sm:$0xf]
      %v3741 = vld [vmem:[%s1026 + $0x28] sm:$0xf]
      %v3742 = vld [vmem:[%s1026 + $0x30] sm:$0xf]
      %v3743 = vld [vmem:[%s1026 + $0x38] sm:$0xf]
      %v3744 = vld [vmem:[%s467] sm:$0x3]
      %v3753 = vunpack.c.l.b16 %v3736
      %v3754 = vunpack.c.l.b16 %v3737
      %v3755 = vunpack.c.l.b16 %v3738
      %v3756 = vunpack.c.l.b16 %v3739
      %v3757 = vunpack.c.l.b16 %v3740
      %v3758 = vunpack.c.l.b16 %v3741
      %v3759 = vunpack.c.l.b16 %v3742
      %v3760 = vunpack.c.l.b16 %v3743
      %v3761 = vpack.c.b16 %v3754, %v3753
      %v3762 = vpack.c.b16 %v3756, %v3755
      %v3763 = vpack.c.b16 %v3758, %v3757
      %v3764 = vpack.c.b16 %v3760, %v3759
      %v3766 = vsel %vm489, %v3761, 0
      %v3769 = vsel %vm489, %v3762, 0
      %v3772 = vsel %vm489, %v3763, 0
      %v3775 = vsel %vm489, %v3764, 0
      %v3778 = vand.u32 %v3744, %v505
      %3780 = vmatprep.subr.bf16.mxu0 0
      %3781 = vmatpush1.bf16.msra.mxu0 %v3778
      %3782 = vmatprep.subr.bf16.mxu0 0
      %3783 = vmatpush1.bf16.msra.mxu0 0
      %3784 = vmatprep.subr.bf16.mxu0 0
      %3785 = vmatpush1.bf16.msra.mxu0 0
      %3786 = vmatprep.subr.bf16.mxu0 0
      %3787 = vmatpush1.bf16.msra.mxu0 0
      %3788 = vmatprep.subr.bf16.mxu0 0
      %3789 = vmatpush1.bf16.msra.mxu0 0
      %3790 = vmatprep.subr.bf16.mxu0 0
      %3791 = vmatpush1.bf16.msra.mxu0 0
      %3792 = vmatprep.subr.bf16.mxu0 0
      %3793 = vmatpush1.bf16.msra.mxu0 0
      %3794 = vmatprep.subr.bf16.mxu0 0
      %3795 = vmatpush1.bf16.msra.mxu0 0
      %3796 = vmatprep.subr.bf16.mxu0 0
      %3797 = vmatpush1.bf16.msra.mxu0 0
      %3798 = vmatprep.subr.bf16.mxu0 0
      %3799 = vmatpush1.bf16.msra.mxu0 0
      %3800 = vmatprep.subr.bf16.mxu0 0
      %3801 = vmatpush1.bf16.msra.mxu0 0
      %3802 = vmatprep.subr.bf16.mxu0 0
      %3803 = vmatpush1.bf16.msra.mxu0 0
      %3804 = vmatprep.subr.bf16.mxu0 0
      %3805 = vmatpush1.bf16.msra.mxu0 0
      %3806 = vmatprep.subr.bf16.mxu0 0
      %3807 = vmatpush1.bf16.msra.mxu0 0
      %3808 = vmatprep.subr.bf16.mxu0 0
      %3809 = vmatpush1.bf16.msra.mxu0 0
      %3810 = vmatprep.subr.bf16.mxu0 0
      %3811 = vmatpush1.bf16.msra.mxu0 0
      %3812 = vmatprep.mubr.bf16.mxu0 0
      %3813 = vmatmul.mubr.bf16.gmra.mrb[0].mxu0 %v3766
      %v3814 = vpop.f32.mrb[0].mxu0
      %v3815 = vadd.f32 0.0, %v3814
      %v3816 = vpop.f32.mrb[0].mxu0
      %v3817 = vpop.f32.mrb[0].mxu0
      %v3818 = vadd.f32 0.0, %v3817
      %v3819 = vpop.f32.mrb[0].mxu0
      %3820 = vmatprep.mubr.bf16.mxu0 0
      %3821 = vmatmul.mubr.bf16.gmra.mrb[0].mxu0 %v3769
      %v3822 = vpop.f32.mrb[0].mxu0
      %v3823 = vadd.f32 0.0, %v3822
      %v3824 = vpop.f32.mrb[0].mxu0
      %v3825 = vpop.f32.mrb[0].mxu0
      %v3826 = vadd.f32 0.0, %v3825
      %v3827 = vpop.f32.mrb[0].mxu0
      %3828 = vmatprep.mubr.bf16.mxu0 0
      %3829 = vmatmul.mubr.bf16.gmra.mrb[0].mxu0 %v3772
      %v3830 = vpop.f32.mrb[0].mxu0
      %v3831 = vadd.f32 0.0, %v3830
      %v3832 = vpop.f32.mrb[0].mxu0
      %v3833 = vpop.f32.mrb[0].mxu0
      %v3834 = vadd.f32 0.0, %v3833
      %v3835 = vpop.f32.mrb[0].mxu0
      %3836 = vmatprep.mubr.bf16.mxu0 0
      %3837 = vmatmul.mubr.bf16.gmra.mrb[0].mxu0 %v3775
      %v3838 = vpop.f32.mrb[0].mxu0
      %v3839 = vadd.f32 0.0, %v3838
      %v3840 = vpop.f32.mrb[0].mxu0
      %v3841 = vpop.f32.mrb[0].mxu0
      %v3842 = vadd.f32 0.0, %v3841
      %v3843 = vpop.f32.mrb[0].mxu0
      %3844 = vdwg.mxu0
      %v3853 = vunpack.c.l.b16 %v3727
      %v3854 = vunpack.c.l.b16 %v3728
      %v3855 = vunpack.c.l.b16 %v3729
      %v3856 = vunpack.c.l.b16 %v3730
      %v3857 = vunpack.c.l.b16 %v3731
      %v3858 = vunpack.c.l.b16 %v3732
      %v3859 = vunpack.c.l.b16 %v3733
      %v3860 = vunpack.c.l.b16 %v3734
      %v3861 = vpack.c.b16 %v3854, %v3853
      %v3862 = vpack.c.b16 %v3856, %v3855
      %v3863 = vpack.c.b16 %v3858, %v3857
      %v3864 = vpack.c.b16 %v3860, %v3859
      %v3866 = vsel %vm489, %v3861, 0
      %v3869 = vsel %vm489, %v3862, 0
      %v3872 = vsel %vm489, %v3863, 0
      %v3875 = vsel %vm489, %v3864, 0
      %v3878 = vand.u32 %v3735, %v505
      %3880 = vmatprep.subr.bf16.mxu0 0
      %3881 = vmatpush1.bf16.msra.mxu0 %v3878
      %3882 = vmatprep.subr.bf16.mxu0 0
      %3883 = vmatpush1.bf16.msra.mxu0 0
      %3884 = vmatprep.subr.bf16.mxu0 0
      %3885 = vmatpush1.bf16.msra.mxu0 0
      %3886 = vmatprep.subr.bf16.mxu0 0
      %3887 = vmatpush1.bf16.msra.mxu0 0
      %3888 = vmatprep.subr.bf16.mxu0 0
      %3889 = vmatpush1.bf16.msra.mxu0 0
      %3890 = vmatprep.subr.bf16.mxu0 0
      %3891 = vmatpush1.bf16.msra.mxu0 0
      %3892 = vmatprep.subr.bf16.mxu0 0
      %3893 = vmatpush1.bf16.msra.mxu0 0
      %3894 = vmatprep.subr.bf16.mxu0 0
      %3895 = vmatpush1.bf16.msra.mxu0 0
      %3896 = vmatprep.subr.bf16.mxu0 0
      %3897 = vmatpush1.bf16.msra.mxu0 0
      %3898 = vmatprep.subr.bf16.mxu0 0
      %3899 = vmatpush1.bf16.msra.mxu0 0
      %3900 = vmatprep.subr.bf16.mxu0 0
      %3901 = vmatpush1.bf16.msra.mxu0 0
      %3902 = vmatprep.subr.bf16.mxu0 0
      %3903 = vmatpush1.bf16.msra.mxu0 0
      %3904 = vmatprep.subr.bf16.mxu0 0
      %3905 = vmatpush1.bf16.msra.mxu0 0
      %3906 = vmatprep.subr.bf16.mxu0 0
      %3907 = vmatpush1.bf16.msra.mxu0 0
      %3908 = vmatprep.subr.bf16.mxu0 0
      %3909 = vmatpush1.bf16.msra.mxu0 0
      %3910 = vmatprep.subr.bf16.mxu0 0
      %3911 = vmatpush1.bf16.msra.mxu0 0
      %3912 = vmatprep.mubr.bf16.mxu0 0
      %3913 = vmatmul.mubr.bf16.gmra.mrb[0].mxu0 %v3866
      %v3914 = vpop.f32.mrb[0].mxu0
      %v3915 = vadd.f32 %v3815, %v3914
      %v3916 = vpop.f32.mrb[0].mxu0
      %v3917 = vpop.f32.mrb[0].mxu0
      %v3918 = vadd.f32 %v3818, %v3917
      %v3919 = vpop.f32.mrb[0].mxu0
      %3920 = vmatprep.mubr.bf16.mxu0 0
      %3921 = vmatmul.mubr.bf16.gmra.mrb[0].mxu0 %v3869
      %v3922 = vpop.f32.mrb[0].mxu0
      %v3923 = vadd.f32 %v3823, %v3922
      %v3924 = vpop.f32.mrb[0].mxu0
      %v3925 = vpop.f32.mrb[0].mxu0
      %v3926 = vadd.f32 %v3826, %v3925
      %v3927 = vpop.f32.mrb[0].mxu0
      %3928 = vmatprep.mubr.bf16.mxu0 0
      %3929 = vmatmul.mubr.bf16.gmra.mrb[0].mxu0 %v3872
      %v3930 = vpop.f32.mrb[0].mxu0
      %v3931 = vadd.f32 %v3831, %v3930
      %v3932 = vpop.f32.mrb[0].mxu0
      %v3933 = vpop.f32.mrb[0].mxu0
      %v3934 = vadd.f32 %v3834, %v3933
      %v3935 = vpop.f32.mrb[0].mxu0
      %3936 = vmatprep.mubr.bf16.mxu0 0
      %3937 = vmatmul.mubr.bf16.gmra.mrb[0].mxu0 %v3875
      %v3938 = vpop.f32.mrb[0].mxu0
      %v3939 = vadd.f32 %v3839, %v3938
      %v3940 = vpop.f32.mrb[0].mxu0
      %v3941 = vpop.f32.mrb[0].mxu0
      %v3942 = vadd.f32 %v3842, %v3941
      %v3943 = vpop.f32.mrb[0].mxu0
      %3944 = vdwg.mxu0
      %v3945 = vld [vmem:[%s907] sm:$0xf]
      %v3946 = vld [vmem:[%s907 + $0x4] sm:$0x1]
      %v3947 = vld [vmem:[%s907 + $0x8] sm:$0xf]
      %v3948 = vld [vmem:[%s907 + $0xc] sm:$0x1]
      %v3949 = vld [vmem:[%s907 + $0x10] sm:$0xf]
      %v3950 = vld [vmem:[%s907 + $0x14] sm:$0x1]
      %v3951 = vld [vmem:[%s907 + $0x18] sm:$0xf]
      %v3952 = vld [vmem:[%s907 + $0x1c] sm:$0x1]
      %v3953 = vld [vmem:[%s907 + $0x20] sm:$0xf]
      %v3954 = vld [vmem:[%s907 + $0x24] sm:$0x1]
      %v3955 = vld [vmem:[%s907 + $0x28] sm:$0xf]
      %v3956 = vld [vmem:[%s907 + $0x2c] sm:$0x1]
      %v3957 = vld [vmem:[%s907 + $0x30] sm:$0xf]
      %v3958 = vld [vmem:[%s907 + $0x34] sm:$0x1]
      %v3959 = vld [vmem:[%s907 + $0x38] sm:$0xf]
      %v3960 = vld [vmem:[%s907 + $0x3c] sm:$0x1]
      %v3962 = vshrl.u32 %v3945, 16
      %v3964 = vrot.slane %v3962, 4
      %v3965 = vshll.u32 %v3945, 16
      %v3967 = vrot.slane %v3965, 5
      %v3968 = vor.u32 %v3964, %v3967
      %v3969 = vrot.slane %v3968, 4
      %v3971 = vshll.u32 %v3946, 16
      %v3973 = vrot.slane %v3971, 5
      %v3974 = vsel %vm692, %v3969, %v3973
      %v3976 = vshrl.u32 %v3947, 16
      %v3978 = vrot.slane %v3976, 4
      %v3979 = vshll.u32 %v3947, 16
      %v3981 = vrot.slane %v3979, 5
      %v3982 = vor.u32 %v3978, %v3981
      %v3983 = vrot.slane %v3982, 4
      %v3985 = vshll.u32 %v3948, 16
      %v3987 = vrot.slane %v3985, 5
      %v3988 = vsel %vm692, %v3983, %v3987
      %v3990 = vshrl.u32 %v3949, 16
      %v3992 = vrot.slane %v3990, 4
      %v3993 = vshll.u32 %v3949, 16
      %v3995 = vrot.slane %v3993, 5
      %v3996 = vor.u32 %v3992, %v3995
      %v3997 = vrot.slane %v3996, 4
      %v3999 = vshll.u32 %v3950, 16
      %v4001 = vrot.slane %v3999, 5
      %v4002 = vsel %vm692, %v3997, %v4001
      %v4004 = vshrl.u32 %v3951, 16
      %v4006 = vrot.slane %v4004, 4
      %v4007 = vshll.u32 %v3951, 16
      %v4009 = vrot.slane %v4007, 5
      %v4010 = vor.u32 %v4006, %v4009
      %v4011 = vrot.slane %v4010, 4
      %v4013 = vshll.u32 %v3952, 16
      %v4015 = vrot.slane %v4013, 5
      %v4016 = vsel %vm692, %v4011, %v4015
      %v4018 = vshrl.u32 %v3953, 16
      %v4020 = vrot.slane %v4018, 4
      %v4021 = vshll.u32 %v3953, 16
      %v4023 = vrot.slane %v4021, 5
      %v4024 = vor.u32 %v4020, %v4023
      %v4025 = vrot.slane %v4024, 4
      %v4027 = vshll.u32 %v3954, 16
      %v4029 = vrot.slane %v4027, 5
      %v4030 = vsel %vm692, %v4025, %v4029
      %v4032 = vshrl.u32 %v3955, 16
      %v4034 = vrot.slane %v4032, 4
      %v4035 = vshll.u32 %v3955, 16
      %v4037 = vrot.slane %v4035, 5
      %v4038 = vor.u32 %v4034, %v4037
      %v4039 = vrot.slane %v4038, 4
      %v4041 = vshll.u32 %v3956, 16
      %v4043 = vrot.slane %v4041, 5
      %v4044 = vsel %vm692, %v4039, %v4043
      %v4046 = vshrl.u32 %v3957, 16
      %v4048 = vrot.slane %v4046, 4
      %v4049 = vshll.u32 %v3957, 16
      %v4051 = vrot.slane %v4049, 5
      %v4052 = vor.u32 %v4048, %v4051
      %v4053 = vrot.slane %v4052, 4
      %v4055 = vshll.u32 %v3958, 16
      %v4057 = vrot.slane %v4055, 5
      %v4058 = vsel %vm692, %v4053, %v4057
      %v4060 = vshrl.u32 %v3959, 16
      %v4062 = vrot.slane %v4060, 4
      %v4063 = vshll.u32 %v3959, 16
      %v4065 = vrot.slane %v4063, 5
      %v4066 = vor.u32 %v4062, %v4065
      %v4067 = vrot.slane %v4066, 4
      %v4069 = vshll.u32 %v3960, 16
      %v4071 = vrot.slane %v4069, 5
      %v4072 = vsel %vm692, %v4067, %v4071
      %v4073 = vld [vmem:[%s805] sm:$0x3]
      %v4074 = vunpack.c.l.b16 %v3974
      %v4075 = vunpack.c.l.b16 %v3988
      %v4076 = vunpack.c.l.b16 %v4002
      %v4077 = vunpack.c.l.b16 %v4016
      %v4078 = vunpack.c.l.b16 %v4030
      %v4079 = vunpack.c.l.b16 %v4044
      %v4080 = vunpack.c.l.b16 %v4058
      %v4081 = vunpack.c.l.b16 %v4072
      %v4082 = vpack.c.b16 %v4075, %v4074
      %v4083 = vpack.c.b16 %v4077, %v4076
      %v4084 = vpack.c.b16 %v4079, %v4078
      %v4085 = vpack.c.b16 %v4081, %v4080
      %v4087 = vsel %vm489, %v4082, 0
      %v4090 = vsel %vm489, %v4083, 0
      %v4093 = vsel %vm489, %v4084, 0
      %v4096 = vsel %vm489, %v4085, 0
      %v4099 = vand.u32 %v4073, %v505
      %4101 = vmatprep.subr.bf16.mxu0 0
      %4102 = vmatpush1.bf16.msra.mxu0 %v4099
      %4103 = vmatprep.subr.bf16.mxu0 0
      %4104 = vmatpush1.bf16.msra.mxu0 0
      %4105 = vmatprep.subr.bf16.mxu0 0
      %4106 = vmatpush1.bf16.msra.mxu0 0
      %4107 = vmatprep.subr.bf16.mxu0 0
      %4108 = vmatpush1.bf16.msra.mxu0 0
      %4109 = vmatprep.subr.bf16.mxu0 0
      %4110 = vmatpush1.bf16.msra.mxu0 0
      %4111 = vmatprep.subr.bf16.mxu0 0
      %4112 = vmatpush1.bf16.msra.mxu0 0
      %4113 = vmatprep.subr.bf16.mxu0 0
      %4114 = vmatpush1.bf16.msra.mxu0 0
      %4115 = vmatprep.subr.bf16.mxu0 0
      %4116 = vmatpush1.bf16.msra.mxu0 0
      %4117 = vmatprep.subr.bf16.mxu0 0
      %4118 = vmatpush1.bf16.msra.mxu0 0
      %4119 = vmatprep.subr.bf16.mxu0 0
      %4120 = vmatpush1.bf16.msra.mxu0 0
      %4121 = vmatprep.subr.bf16.mxu0 0
      %4122 = vmatpush1.bf16.msra.mxu0 0
      %4123 = vmatprep.subr.bf16.mxu0 0
      %4124 = vmatpush1.bf16.msra.mxu0 0
      %4125 = vmatprep.subr.bf16.mxu0 0
      %4126 = vmatpush1.bf16.msra.mxu0 0
      %4127 = vmatprep.subr.bf16.mxu0 0
      %4128 = vmatpush1.bf16.msra.mxu0 0
      %4129 = vmatprep.subr.bf16.mxu0 0
      %4130 = vmatpush1.bf16.msra.mxu0 0
      %4131 = vmatprep.subr.bf16.mxu0 0
      %4132 = vmatpush1.bf16.msra.mxu0 0
      %4133 = vmatprep.mubr.bf16.mxu0 0
      %4134 = vmatmul.mubr.bf16.gmra.mrb[0].mxu0 %v4087
      %v4135 = vpop.f32.mrb[0].mxu0
      %v4136 = vadd.f32 0.0, %v4135
      %v4137 = vpop.f32.mrb[0].mxu0
      %v4138 = vpop.f32.mrb[0].mxu0
      %v4139 = vadd.f32 0.0, %v4138
      %v4140 = vpop.f32.mrb[0].mxu0
      %4141 = vmatprep.mubr.bf16.mxu0 0
      %4142 = vmatmul.mubr.bf16.gmra.mrb[0].mxu0 %v4090
      %v4143 = vpop.f32.mrb[0].mxu0
      %v4144 = vadd.f32 0.0, %v4143
      %v4145 = vpop.f32.mrb[0].mxu0
      %v4146 = vpop.f32.mrb[0].mxu0
      %v4147 = vadd.f32 0.0, %v4146
      %v4148 = vpop.f32.mrb[0].mxu0
      %4149 = vmatprep.mubr.bf16.mxu0 0
      %4150 = vmatmul.mubr.bf16.gmra.mrb[0].mxu0 %v4093
      %v4151 = vpop.f32.mrb[0].mxu0
      %v4152 = vadd.f32 0.0, %v4151
      %v4153 = vpop.f32.mrb[0].mxu0
      %v4154 = vpop.f32.mrb[0].mxu0
      %v4155 = vadd.f32 0.0, %v4154
      %v4156 = vpop.f32.mrb[0].mxu0
      %4157 = vmatprep.mubr.bf16.mxu0 0
      %4158 = vmatmul.mubr.bf16.gmra.mrb[0].mxu0 %v4096
      %v4159 = vpop.f32.mrb[0].mxu0
      %v4160 = vadd.f32 0.0, %v4159
      %v4161 = vpop.f32.mrb[0].mxu0
      %v4162 = vpop.f32.mrb[0].mxu0
      %v4163 = vadd.f32 0.0, %v4162
      %v4164 = vpop.f32.mrb[0].mxu0
      %4165 = vdwg.mxu0
      %v4166 = vadd.f32 %v3915, %v4136
      %v4167 = vadd.f32 %v3918, %v4139
      %v4168 = vadd.f32 %v3923, %v4144
      %v4169 = vadd.f32 %v3926, %v4147
      %v4170 = vadd.f32 %v3931, %v4152
      %v4171 = vadd.f32 %v3934, %v4155
      %v4172 = vadd.f32 %v3939, %v4160
      %v4173 = vadd.f32 %v3942, %v4163
      %v4174 = vld [vmem:[%s1375] sm:$0xf]
      %v4175 = vld [vmem:[%s1375 + $0x8] sm:$0xf]
      %v4176 = vld [vmem:[%s1375 + $0x10] sm:$0xf]
      %v4177 = vld [vmem:[%s1375 + $0x18] sm:$0xf]
      %v4178 = vld [vmem:[%s1375 + $0x20] sm:$0xf]
      %v4179 = vld [vmem:[%s1375 + $0x28] sm:$0xf]
      %v4180 = vld [vmem:[%s1375 + $0x30] sm:$0xf]
      %v4181 = vld [vmem:[%s1375 + $0x38] sm:$0xf]
      %v4182 = vld [vmem:[%s916] sm:$0x3]
      %v4191 = vunpack.c.l.b16 %v4174
      %v4192 = vunpack.c.l.b16 %v4175
      %v4193 = vunpack.c.l.b16 %v4176
      %v4194 = vunpack.c.l.b16 %v4177
      %v4195 = vunpack.c.l.b16 %v4178
      %v4196 = vunpack.c.l.b16 %v4179
      %v4197 = vunpack.c.l.b16 %v4180
      %v4198 = vunpack.c.l.b16 %v4181
      %v4199 = vpack.c.b16 %v4192, %v4191
      %v4200 = vpack.c.b16 %v4194, %v4193
      %v4201 = vpack.c.b16 %v4196, %v4195
      %v4202 = vpack.c.b16 %v4198, %v4197
      %v4204 = vsel %vm489, %v4199, 0
      %v4207 = vsel %vm489, %v4200, 0
      %v4210 = vsel %vm489, %v4201, 0
      %v4213 = vsel %vm489, %v4202, 0
      %v4216 = vand.u32 %v4182, %v505
      %4218 = vmatprep.subr.bf16.mxu0 0
      %4219 = vmatpush1.bf16.msra.mxu0 %v4216
      %4220 = vmatprep.subr.bf16.mxu0 0
      %4221 = vmatpush1.bf16.msra.mxu0 0
      %4222 = vmatprep.subr.bf16.mxu0 0
      %4223 = vmatpush1.bf16.msra.mxu0 0
      %4224 = vmatprep.subr.bf16.mxu0 0
      %4225 = vmatpush1.bf16.msra.mxu0 0
      %4226 = vmatprep.subr.bf16.mxu0 0
      %4227 = vmatpush1.bf16.msra.mxu0 0
      %4228 = vmatprep.subr.bf16.mxu0 0
      %4229 = vmatpush1.bf16.msra.mxu0 0
      %4230 = vmatprep.subr.bf16.mxu0 0
      %4231 = vmatpush1.bf16.msra.mxu0 0
      %4232 = vmatprep.subr.bf16.mxu0 0
      %4233 = vmatpush1.bf16.msra.mxu0 0
      %4234 = vmatprep.subr.bf16.mxu0 0
      %4235 = vmatpush1.bf16.msra.mxu0 0
      %4236 = vmatprep.subr.bf16.mxu0 0
      %4237 = vmatpush1.bf16.msra.mxu0 0
      %4238 = vmatprep.subr.bf16.mxu0 0
      %4239 = vmatpush1.bf16.msra.mxu0 0
      %4240 = vmatprep.subr.bf16.mxu0 0
      %4241 = vmatpush1.bf16.msra.mxu0 0
      %4242 = vmatprep.subr.bf16.mxu0 0
      %4243 = vmatpush1.bf16.msra.mxu0 0
      %4244 = vmatprep.subr.bf16.mxu0 0
      %4245 = vmatpush1.bf16.msra.mxu0 0
      %4246 = vmatprep.subr.bf16.mxu0 0
      %4247 = vmatpush1.bf16.msra.mxu0 0
      %4248 = vmatprep.subr.bf16.mxu0 0
      %4249 = vmatpush1.bf16.msra.mxu0 0
      %4250 = vmatprep.mubr.bf16.mxu0 0
      %4251 = vmatmul.mubr.bf16.gmra.mrb[0].mxu0 %v4204
      %v4252 = vpop.f32.mrb[0].mxu0
      %v4253 = vadd.f32 0.0, %v4252
      %v4254 = vpop.f32.mrb[0].mxu0
      %v4255 = vpop.f32.mrb[0].mxu0
      %v4256 = vadd.f32 0.0, %v4255
      %v4257 = vpop.f32.mrb[0].mxu0
      %4258 = vmatprep.mubr.bf16.mxu0 0
      %4259 = vmatmul.mubr.bf16.gmra.mrb[0].mxu0 %v4207
      %v4260 = vpop.f32.mrb[0].mxu0
      %v4261 = vadd.f32 0.0, %v4260
      %v4262 = vpop.f32.mrb[0].mxu0
      %v4263 = vpop.f32.mrb[0].mxu0
      %v4264 = vadd.f32 0.0, %v4263
      %v4265 = vpop.f32.mrb[0].mxu0
      %4266 = vmatprep.mubr.bf16.mxu0 0
      %4267 = vmatmul.mubr.bf16.gmra.mrb[0].mxu0 %v4210
      %v4268 = vpop.f32.mrb[0].mxu0
      %v4269 = vadd.f32 0.0, %v4268
      %v4270 = vpop.f32.mrb[0].mxu0
      %v4271 = vpop.f32.mrb[0].mxu0
      %v4272 = vadd.f32 0.0, %v4271
      %v4273 = vpop.f32.mrb[0].mxu0
      %4274 = vmatprep.mubr.bf16.mxu0 0
      %4275 = vmatmul.mubr.bf16.gmra.mrb[0].mxu0 %v4213
      %v4276 = vpop.f32.mrb[0].mxu0
      %v4277 = vadd.f32 0.0, %v4276
      %v4278 = vpop.f32.mrb[0].mxu0
      %v4279 = vpop.f32.mrb[0].mxu0
      %v4280 = vadd.f32 0.0, %v4279
      %v4281 = vpop.f32.mrb[0].mxu0
      %4282 = vdwg.mxu0
      %v4283 = vadd.f32 %v4166, %v4253
      %v4284 = vadd.f32 %v4167, %v4256
      %v4285 = vadd.f32 %v4168, %v4261
      %v4286 = vadd.f32 %v4169, %v4264
      %v4287 = vadd.f32 %v4170, %v4269
      %v4288 = vadd.f32 %v4171, %v4272
      %v4289 = vadd.f32 %v4172, %v4277
      %v4290 = vadd.f32 %v4173, %v4280
      %v4291 = vld [vmem:[%s1494] sm:$0xf]
      %v4292 = vld [vmem:[%s1494 + $0x8] sm:$0xf]
      %v4293 = vld [vmem:[%s1494 + $0x10] sm:$0xf]
      %v4294 = vld [vmem:[%s1494 + $0x18] sm:$0xf]
      %v4295 = vld [vmem:[%s1494 + $0x20] sm:$0xf]
      %v4296 = vld [vmem:[%s1494 + $0x28] sm:$0xf]
      %v4297 = vld [vmem:[%s1494 + $0x30] sm:$0xf]
      %v4298 = vld [vmem:[%s1494 + $0x38] sm:$0xf]
      %v4299 = vld [vmem:[%s1035] sm:$0x3]
      %v4308 = vunpack.c.l.b16 %v4291
      %v4309 = vunpack.c.l.b16 %v4292
      %v4310 = vunpack.c.l.b16 %v4293
      %v4311 = vunpack.c.l.b16 %v4294
      %v4312 = vunpack.c.l.b16 %v4295
      %v4313 = vunpack.c.l.b16 %v4296
      %v4314 = vunpack.c.l.b16 %v4297
      %v4315 = vunpack.c.l.b16 %v4298
      %v4316 = vpack.c.b16 %v4309, %v4308
      %v4317 = vpack.c.b16 %v4311, %v4310
      %v4318 = vpack.c.b16 %v4313, %v4312
      %v4319 = vpack.c.b16 %v4315, %v4314
      %v4321 = vsel %vm489, %v4316, 0
      %v4324 = vsel %vm489, %v4317, 0
      %v4327 = vsel %vm489, %v4318, 0
      %v4330 = vsel %vm489, %v4319, 0
      %v4333 = vand.u32 %v4299, %v505
      %4335 = vmatprep.subr.bf16.mxu0 0
      %4336 = vmatpush1.bf16.msra.mxu0 %v4333
      %4337 = vmatprep.subr.bf16.mxu0 0
      %4338 = vmatpush1.bf16.msra.mxu0 0
      %4339 = vmatprep.subr.bf16.mxu0 0
      %4340 = vmatpush1.bf16.msra.mxu0 0
      %4341 = vmatprep.subr.bf16.mxu0 0
      %4342 = vmatpush1.bf16.msra.mxu0 0
      %4343 = vmatprep.subr.bf16.mxu0 0
      %4344 = vmatpush1.bf16.msra.mxu0 0
      %4345 = vmatprep.subr.bf16.mxu0 0
      %4346 = vmatpush1.bf16.msra.mxu0 0
      %4347 = vmatprep.subr.bf16.mxu0 0
      %4348 = vmatpush1.bf16.msra.mxu0 0
      %4349 = vmatprep.subr.bf16.mxu0 0
      %4350 = vmatpush1.bf16.msra.mxu0 0
      %4351 = vmatprep.subr.bf16.mxu0 0
      %4352 = vmatpush1.bf16.msra.mxu0 0
      %4353 = vmatprep.subr.bf16.mxu0 0
      %4354 = vmatpush1.bf16.msra.mxu0 0
      %4355 = vmatprep.subr.bf16.mxu0 0
      %4356 = vmatpush1.bf16.msra.mxu0 0
      %4357 = vmatprep.subr.bf16.mxu0 0
      %4358 = vmatpush1.bf16.msra.mxu0 0
      %4359 = vmatprep.subr.bf16.mxu0 0
      %4360 = vmatpush1.bf16.msra.mxu0 0
      %4361 = vmatprep.subr.bf16.mxu0 0
      %4362 = vmatpush1.bf16.msra.mxu0 0
      %4363 = vmatprep.subr.bf16.mxu0 0
      %4364 = vmatpush1.bf16.msra.mxu0 0
      %4365 = vmatprep.subr.bf16.mxu0 0
      %4366 = vmatpush1.bf16.msra.mxu0 0
      %4367 = vmatprep.mubr.bf16.mxu0 0
      %4368 = vmatmul.mubr.bf16.gmra.mrb[0].mxu0 %v4321
      %v4369 = vpop.f32.mrb[0].mxu0
      %v4370 = vadd.f32 0.0, %v4369
      %v4371 = vpop.f32.mrb[0].mxu0
      %v4372 = vpop.f32.mrb[0].mxu0
      %v4373 = vadd.f32 0.0, %v4372
      %v4374 = vpop.f32.mrb[0].mxu0
      %4375 = vmatprep.mubr.bf16.mxu0 0
      %4376 = vmatmul.mubr.bf16.gmra.mrb[0].mxu0 %v4324
      %v4377 = vpop.f32.mrb[0].mxu0
      %v4378 = vadd.f32 0.0, %v4377
      %v4379 = vpop.f32.mrb[0].mxu0
      %v4380 = vpop.f32.mrb[0].mxu0
      %v4381 = vadd.f32 0.0, %v4380
      %v4382 = vpop.f32.mrb[0].mxu0
      %4383 = vmatprep.mubr.bf16.mxu0 0
      %4384 = vmatmul.mubr.bf16.gmra.mrb[0].mxu0 %v4327
      %v4385 = vpop.f32.mrb[0].mxu0
      %v4386 = vadd.f32 0.0, %v4385
      %v4387 = vpop.f32.mrb[0].mxu0
      %v4388 = vpop.f32.mrb[0].mxu0
      %v4389 = vadd.f32 0.0, %v4388
      %v4390 = vpop.f32.mrb[0].mxu0
      %4391 = vmatprep.mubr.bf16.mxu0 0
      %4392 = vmatmul.mubr.bf16.gmra.mrb[0].mxu0 %v4330
      %v4393 = vpop.f32.mrb[0].mxu0
      %v4394 = vadd.f32 0.0, %v4393
      %v4395 = vpop.f32.mrb[0].mxu0
      %v4396 = vpop.f32.mrb[0].mxu0
      %v4397 = vadd.f32 0.0, %v4396
      %v4398 = vpop.f32.mrb[0].mxu0
      %4399 = vdwg.mxu0
      %v4400 = vadd.f32 %v4283, %v4370
      %v4401 = vadd.f32 %v4284, %v4373
      %v4402 = vadd.f32 %v4285, %v4378
      %v4403 = vadd.f32 %v4286, %v4381
      %v4404 = vadd.f32 %v4287, %v4386
      %v4405 = vadd.f32 %v4288, %v4389
      %v4406 = vadd.f32 %v4289, %v4394
      %v4407 = vadd.f32 %v4290, %v4397
      %v4408 = vld [vmem:[%s1375] sm:$0xf]
      %v4409 = vld [vmem:[%s1375 + $0x4] sm:$0x1]
      %v4410 = vld [vmem:[%s1375 + $0x8] sm:$0xf]
      %v4411 = vld [vmem:[%s1375 + $0xc] sm:$0x1]
      %v4412 = vld [vmem:[%s1375 + $0x10] sm:$0xf]
      %v4413 = vld [vmem:[%s1375 + $0x14] sm:$0x1]
      %v4414 = vld [vmem:[%s1375 + $0x18] sm:$0xf]
      %v4415 = vld [vmem:[%s1375 + $0x1c] sm:$0x1]
      %v4416 = vld [vmem:[%s1375 + $0x20] sm:$0xf]
      %v4417 = vld [vmem:[%s1375 + $0x24] sm:$0x1]
      %v4418 = vld [vmem:[%s1375 + $0x28] sm:$0xf]
      %v4419 = vld [vmem:[%s1375 + $0x2c] sm:$0x1]
      %v4420 = vld [vmem:[%s1375 + $0x30] sm:$0xf]
      %v4421 = vld [vmem:[%s1375 + $0x34] sm:$0x1]
      %v4422 = vld [vmem:[%s1375 + $0x38] sm:$0xf]
      %v4423 = vld [vmem:[%s1375 + $0x3c] sm:$0x1]
      %v4425 = vshrl.u32 %v4408, 16
      %v4427 = vrot.slane %v4425, 4
      %v4428 = vshll.u32 %v4408, 16
      %v4430 = vrot.slane %v4428, 5
      %v4431 = vor.u32 %v4427, %v4430
      %v4432 = vrot.slane %v4431, 4
      %v4434 = vshll.u32 %v4409, 16
      %v4436 = vrot.slane %v4434, 5
      %v4437 = vsel %vm692, %v4432, %v4436
      %v4439 = vshrl.u32 %v4410, 16
      %v4441 = vrot.slane %v4439, 4
      %v4442 = vshll.u32 %v4410, 16
      %v4444 = vrot.slane %v4442, 5
      %v4445 = vor.u32 %v4441, %v4444
      %v4446 = vrot.slane %v4445, 4
      %v4448 = vshll.u32 %v4411, 16
      %v4450 = vrot.slane %v4448, 5
      %v4451 = vsel %vm692, %v4446, %v4450
      %v4453 = vshrl.u32 %v4412, 16
      %v4455 = vrot.slane %v4453, 4
      %v4456 = vshll.u32 %v4412, 16
      %v4458 = vrot.slane %v4456, 5
      %v4459 = vor.u32 %v4455, %v4458
      %v4460 = vrot.slane %v4459, 4
      %v4462 = vshll.u32 %v4413, 16
      %v4464 = vrot.slane %v4462, 5
      %v4465 = vsel %vm692, %v4460, %v4464
      %v4467 = vshrl.u32 %v4414, 16
      %v4469 = vrot.slane %v4467, 4
      %v4470 = vshll.u32 %v4414, 16
      %v4472 = vrot.slane %v4470, 5
      %v4473 = vor.u32 %v4469, %v4472
      %v4474 = vrot.slane %v4473, 4
      %v4476 = vshll.u32 %v4415, 16
      %v4478 = vrot.slane %v4476, 5
      %v4479 = vsel %vm692, %v4474, %v4478
      %v4481 = vshrl.u32 %v4416, 16
      %v4483 = vrot.slane %v4481, 4
      %v4484 = vshll.u32 %v4416, 16
      %v4486 = vrot.slane %v4484, 5
      %v4487 = vor.u32 %v4483, %v4486
      %v4488 = vrot.slane %v4487, 4
      %v4490 = vshll.u32 %v4417, 16
      %v4492 = vrot.slane %v4490, 5
      %v4493 = vsel %vm692, %v4488, %v4492
      %v4495 = vshrl.u32 %v4418, 16
      %v4497 = vrot.slane %v4495, 4
      %v4498 = vshll.u32 %v4418, 16
      %v4500 = vrot.slane %v4498, 5
      %v4501 = vor.u32 %v4497, %v4500
      %v4502 = vrot.slane %v4501, 4
      %v4504 = vshll.u32 %v4419, 16
      %v4506 = vrot.slane %v4504, 5
      %v4507 = vsel %vm692, %v4502, %v4506
      %v4509 = vshrl.u32 %v4420, 16
      %v4511 = vrot.slane %v4509, 4
      %v4512 = vshll.u32 %v4420, 16
      %v4514 = vrot.slane %v4512, 5
      %v4515 = vor.u32 %v4511, %v4514
      %v4516 = vrot.slane %v4515, 4
      %v4518 = vshll.u32 %v4421, 16
      %v4520 = vrot.slane %v4518, 5
      %v4521 = vsel %vm692, %v4516, %v4520
      %v4523 = vshrl.u32 %v4422, 16
      %v4525 = vrot.slane %v4523, 4
      %v4526 = vshll.u32 %v4422, 16
      %v4528 = vrot.slane %v4526, 5
      %v4529 = vor.u32 %v4525, %v4528
      %v4530 = vrot.slane %v4529, 4
      %v4532 = vshll.u32 %v4423, 16
      %v4534 = vrot.slane %v4532, 5
      %v4535 = vsel %vm692, %v4530, %v4534
      %v4536 = vld [vmem:[%s1273] sm:$0x3]
      %v4537 = vunpack.c.l.b16 %v4437
      %v4538 = vunpack.c.l.b16 %v4451
      %v4539 = vunpack.c.l.b16 %v4465
      %v4540 = vunpack.c.l.b16 %v4479
      %v4541 = vunpack.c.l.b16 %v4493
      %v4542 = vunpack.c.l.b16 %v4507
      %v4543 = vunpack.c.l.b16 %v4521
      %v4544 = vunpack.c.l.b16 %v4535
      %v4545 = vpack.c.b16 %v4538, %v4537
      %v4546 = vpack.c.b16 %v4540, %v4539
      %v4547 = vpack.c.b16 %v4542, %v4541
      %v4548 = vpack.c.b16 %v4544, %v4543
      %v4550 = vsel %vm489, %v4545, 0
      %v4553 = vsel %vm489, %v4546, 0
      %v4556 = vsel %vm489, %v4547, 0
      %v4559 = vsel %vm489, %v4548, 0
      %v4562 = vand.u32 %v4536, %v505
      %4564 = vmatprep.subr.bf16.mxu0 0
      %4565 = vmatpush1.bf16.msra.mxu0 %v4562
      %4566 = vmatprep.subr.bf16.mxu0 0
      %4567 = vmatpush1.bf16.msra.mxu0 0
      %4568 = vmatprep.subr.bf16.mxu0 0
      %4569 = vmatpush1.bf16.msra.mxu0 0
      %4570 = vmatprep.subr.bf16.mxu0 0
      %4571 = vmatpush1.bf16.msra.mxu0 0
      %4572 = vmatprep.subr.bf16.mxu0 0
      %4573 = vmatpush1.bf16.msra.mxu0 0
      %4574 = vmatprep.subr.bf16.mxu0 0
      %4575 = vmatpush1.bf16.msra.mxu0 0
      %4576 = vmatprep.subr.bf16.mxu0 0
      %4577 = vmatpush1.bf16.msra.mxu0 0
      %4578 = vmatprep.subr.bf16.mxu0 0
      %4579 = vmatpush1.bf16.msra.mxu0 0
      %4580 = vmatprep.subr.bf16.mxu0 0
      %4581 = vmatpush1.bf16.msra.mxu0 0
      %4582 = vmatprep.subr.bf16.mxu0 0
      %4583 = vmatpush1.bf16.msra.mxu0 0
      %4584 = vmatprep.subr.bf16.mxu0 0
      %4585 = vmatpush1.bf16.msra.mxu0 0
      %4586 = vmatprep.subr.bf16.mxu0 0
      %4587 = vmatpush1.bf16.msra.mxu0 0
      %4588 = vmatprep.subr.bf16.mxu0 0
      %4589 = vmatpush1.bf16.msra.mxu0 0
      %4590 = vmatprep.subr.bf16.mxu0 0
      %4591 = vmatpush1.bf16.msra.mxu0 0
      %4592 = vmatprep.subr.bf16.mxu0 0
      %4593 = vmatpush1.bf16.msra.mxu0 0
      %4594 = vmatprep.subr.bf16.mxu0 0
      %4595 = vmatpush1.bf16.msra.mxu0 0
      %4596 = vmatprep.mubr.bf16.mxu0 0
      %4597 = vmatmul.mubr.bf16.gmra.mrb[0].mxu0 %v4550
      %v4598 = vpop.f32.mrb[0].mxu0
      %v4599 = vadd.f32 0.0, %v4598
      %v4600 = vpop.f32.mrb[0].mxu0
      %v4601 = vpop.f32.mrb[0].mxu0
      %v4602 = vadd.f32 0.0, %v4601
      %v4603 = vpop.f32.mrb[0].mxu0
      %4604 = vmatprep.mubr.bf16.mxu0 0
      %4605 = vmatmul.mubr.bf16.gmra.mrb[0].mxu0 %v4553
      %v4606 = vpop.f32.mrb[0].mxu0
      %v4607 = vadd.f32 0.0, %v4606
      %v4608 = vpop.f32.mrb[0].mxu0
      %v4609 = vpop.f32.mrb[0].mxu0
      %v4610 = vadd.f32 0.0, %v4609
      %v4611 = vpop.f32.mrb[0].mxu0
      %4612 = vmatprep.mubr.bf16.mxu0 0
      %4613 = vmatmul.mubr.bf16.gmra.mrb[0].mxu0 %v4556
      %v4614 = vpop.f32.mrb[0].mxu0
      %v4615 = vadd.f32 0.0, %v4614
      %v4616 = vpop.f32.mrb[0].mxu0
      %v4617 = vpop.f32.mrb[0].mxu0
      %v4618 = vadd.f32 0.0, %v4617
      %v4619 = vpop.f32.mrb[0].mxu0
      %4620 = vmatprep.mubr.bf16.mxu0 0
      %4621 = vmatmul.mubr.bf16.gmra.mrb[0].mxu0 %v4559
      %v4622 = vpop.f32.mrb[0].mxu0
      %v4623 = vadd.f32 0.0, %v4622
      %v4624 = vpop.f32.mrb[0].mxu0
      %v4625 = vpop.f32.mrb[0].mxu0
      %v4626 = vadd.f32 0.0, %v4625
      %v4627 = vpop.f32.mrb[0].mxu0
      %4628 = vdwg.mxu0
      %v4629 = vadd.f32 %v4400, %v4599
      %v4630 = vadd.f32 %v4401, %v4602
      %v4631 = vadd.f32 %v4402, %v4607
      %v4632 = vadd.f32 %v4403, %v4610
      %v4633 = vadd.f32 %v4404, %v4615
      %v4634 = vadd.f32 %v4405, %v4618
      %v4635 = vadd.f32 %v4406, %v4623
      %v4636 = vadd.f32 %v4407, %v4626
      %s4637 = scalar_lea.vmem %s273, 152
      %v4638 = vld [vmem:[%s4637] sm:$0xf]
      %v4639 = vld [vmem:[%s4637 + $0x8] sm:$0xf]
      %v4640 = vld [vmem:[%s4637 + $0x10] sm:$0xf]
      %v4641 = vld [vmem:[%s4637 + $0x18] sm:$0xf]
      %v4642 = vld [vmem:[%s4637 + $0x20] sm:$0xf]
      %v4643 = vld [vmem:[%s4637 + $0x28] sm:$0xf]
      %v4644 = vld [vmem:[%s4637 + $0x30] sm:$0xf]
      %v4645 = vld [vmem:[%s4637 + $0x38] sm:$0xf]
      %v4646 = vld [vmem:[%s1384] sm:$0x3]
      %v4655 = vunpack.c.l.b16 %v4638
      %v4656 = vunpack.c.l.b16 %v4639
      %v4657 = vunpack.c.l.b16 %v4640
      %v4658 = vunpack.c.l.b16 %v4641
      %v4659 = vunpack.c.l.b16 %v4642
      %v4660 = vunpack.c.l.b16 %v4643
      %v4661 = vunpack.c.l.b16 %v4644
      %v4662 = vunpack.c.l.b16 %v4645
      %v4663 = vpack.c.b16 %v4656, %v4655
      %v4664 = vpack.c.b16 %v4658, %v4657
      %v4665 = vpack.c.b16 %v4660, %v4659
      %v4666 = vpack.c.b16 %v4662, %v4661
      %v4668 = vsel %vm489, %v4663, 0
      %v4671 = vsel %vm489, %v4664, 0
      %v4674 = vsel %vm489, %v4665, 0
      %v4677 = vsel %vm489, %v4666, 0
      %v4680 = vand.u32 %v4646, %v505
      %4682 = vmatprep.subr.bf16.mxu0 0
      %4683 = vmatpush1.bf16.msra.mxu0 %v4680
      %4684 = vmatprep.subr.bf16.mxu0 0
      %4685 = vmatpush1.bf16.msra.mxu0 0
      %4686 = vmatprep.subr.bf16.mxu0 0
      %4687 = vmatpush1.bf16.msra.mxu0 0
      %4688 = vmatprep.subr.bf16.mxu0 0
      %4689 = vmatpush1.bf16.msra.mxu0 0
      %4690 = vmatprep.subr.bf16.mxu0 0
      %4691 = vmatpush1.bf16.msra.mxu0 0
      %4692 = vmatprep.subr.bf16.mxu0 0
      %4693 = vmatpush1.bf16.msra.mxu0 0
      %4694 = vmatprep.subr.bf16.mxu0 0
      %4695 = vmatpush1.bf16.msra.mxu0 0
      %4696 = vmatprep.subr.bf16.mxu0 0
      %4697 = vmatpush1.bf16.msra.mxu0 0
      %4698 = vmatprep.subr.bf16.mxu0 0
      %4699 = vmatpush1.bf16.msra.mxu0 0
      %4700 = vmatprep.subr.bf16.mxu0 0
      %4701 = vmatpush1.bf16.msra.mxu0 0
      %4702 = vmatprep.subr.bf16.mxu0 0
      %4703 = vmatpush1.bf16.msra.mxu0 0
      %4704 = vmatprep.subr.bf16.mxu0 0
      %4705 = vmatpush1.bf16.msra.mxu0 0
      %4706 = vmatprep.subr.bf16.mxu0 0
      %4707 = vmatpush1.bf16.msra.mxu0 0
      %4708 = vmatprep.subr.bf16.mxu0 0
      %4709 = vmatpush1.bf16.msra.mxu0 0
      %4710 = vmatprep.subr.bf16.mxu0 0
      %4711 = vmatpush1.bf16.msra.mxu0 0
      %4712 = vmatprep.subr.bf16.mxu0 0
      %4713 = vmatpush1.bf16.msra.mxu0 0
      %4714 = vmatprep.mubr.bf16.mxu0 0
      %4715 = vmatmul.mubr.bf16.gmra.mrb[0].mxu0 %v4668
      %v4716 = vpop.f32.mrb[0].mxu0
      %v4717 = vadd.f32 0.0, %v4716
      %v4718 = vpop.f32.mrb[0].mxu0
      %v4719 = vpop.f32.mrb[0].mxu0
      %v4720 = vadd.f32 0.0, %v4719
      %v4721 = vpop.f32.mrb[0].mxu0
      %4722 = vmatprep.mubr.bf16.mxu0 0
      %4723 = vmatmul.mubr.bf16.gmra.mrb[0].mxu0 %v4671
      %v4724 = vpop.f32.mrb[0].mxu0
      %v4725 = vadd.f32 0.0, %v4724
      %v4726 = vpop.f32.mrb[0].mxu0
      %v4727 = vpop.f32.mrb[0].mxu0
      %v4728 = vadd.f32 0.0, %v4727
      %v4729 = vpop.f32.mrb[0].mxu0
      %4730 = vmatprep.mubr.bf16.mxu0 0
      %4731 = vmatmul.mubr.bf16.gmra.mrb[0].mxu0 %v4674
      %v4732 = vpop.f32.mrb[0].mxu0
      %v4733 = vadd.f32 0.0, %v4732
      %v4734 = vpop.f32.mrb[0].mxu0
      %v4735 = vpop.f32.mrb[0].mxu0
      %v4736 = vadd.f32 0.0, %v4735
      %v4737 = vpop.f32.mrb[0].mxu0
      %4738 = vmatprep.mubr.bf16.mxu0 0
      %4739 = vmatmul.mubr.bf16.gmra.mrb[0].mxu0 %v4677
      %v4740 = vpop.f32.mrb[0].mxu0
      %v4741 = vadd.f32 0.0, %v4740
      %v4742 = vpop.f32.mrb[0].mxu0
      %v4743 = vpop.f32.mrb[0].mxu0
      %v4744 = vadd.f32 0.0, %v4743
      %v4745 = vpop.f32.mrb[0].mxu0
      %4746 = vdwg.mxu0
      %v4747 = vadd.f32 %v4629, %v4717
      %v4748 = vadd.f32 %v4630, %v4720
      %v4749 = vadd.f32 %v4631, %v4725
      %v4750 = vadd.f32 %v4632, %v4728
      %v4751 = vadd.f32 %v4633, %v4733
      %v4752 = vadd.f32 %v4634, %v4736
      %v4753 = vadd.f32 %v4635, %v4741
      %v4754 = vadd.f32 %v4636, %v4744
      %s4755 = scalar_lea.vmem %s273, 224
      %v4756 = vld [vmem:[%s4755] sm:$0xf]
      %v4757 = vld [vmem:[%s4755 + $0x8] sm:$0xf]
      %v4758 = vld [vmem:[%s4755 + $0x10] sm:$0xf]
      %v4759 = vld [vmem:[%s4755 + $0x18] sm:$0xf]
      %v4760 = vld [vmem:[%s4755 + $0x20] sm:$0xf]
      %v4761 = vld [vmem:[%s4755 + $0x28] sm:$0xf]
      %v4762 = vld [vmem:[%s4755 + $0x30] sm:$0xf]
      %v4763 = vld [vmem:[%s4755 + $0x38] sm:$0xf]
      %v4764 = vld [vmem:[%s1503] sm:$0x3]
      %v4773 = vunpack.c.l.b16 %v4756
      %v4774 = vunpack.c.l.b16 %v4757
      %v4775 = vunpack.c.l.b16 %v4758
      %v4776 = vunpack.c.l.b16 %v4759
      %v4777 = vunpack.c.l.b16 %v4760
      %v4778 = vunpack.c.l.b16 %v4761
      %v4779 = vunpack.c.l.b16 %v4762
      %v4780 = vunpack.c.l.b16 %v4763
      %v4781 = vpack.c.b16 %v4774, %v4773
      %v4782 = vpack.c.b16 %v4776, %v4775
      %v4783 = vpack.c.b16 %v4778, %v4777
      %v4784 = vpack.c.b16 %v4780, %v4779
      %v4786 = vsel %vm489, %v4781, 0
      %v4789 = vsel %vm489, %v4782, 0
      %v4792 = vsel %vm489, %v4783, 0
      %v4795 = vsel %vm489, %v4784, 0
      %v4798 = vand.u32 %v4764, %v505
      %4800 = vmatprep.subr.bf16.mxu0 0
      %4801 = vmatpush1.bf16.msra.mxu0 %v4798
      %4802 = vmatprep.subr.bf16.mxu0 0
      %4803 = vmatpush1.bf16.msra.mxu0 0
      %4804 = vmatprep.subr.bf16.mxu0 0
      %4805 = vmatpush1.bf16.msra.mxu0 0
      %4806 = vmatprep.subr.bf16.mxu0 0
      %4807 = vmatpush1.bf16.msra.mxu0 0
      %4808 = vmatprep.subr.bf16.mxu0 0
      %4809 = vmatpush1.bf16.msra.mxu0 0
      %4810 = vmatprep.subr.bf16.mxu0 0
      %4811 = vmatpush1.bf16.msra.mxu0 0
      %4812 = vmatprep.subr.bf16.mxu0 0
      %4813 = vmatpush1.bf16.msra.mxu0 0
      %4814 = vmatprep.subr.bf16.mxu0 0
      %4815 = vmatpush1.bf16.msra.mxu0 0
      %4816 = vmatprep.subr.bf16.mxu0 0
      %4817 = vmatpush1.bf16.msra.mxu0 0
      %4818 = vmatprep.subr.bf16.mxu0 0
      %4819 = vmatpush1.bf16.msra.mxu0 0
      %4820 = vmatprep.subr.bf16.mxu0 0
      %4821 = vmatpush1.bf16.msra.mxu0 0
      %4822 = vmatprep.subr.bf16.mxu0 0
      %4823 = vmatpush1.bf16.msra.mxu0 0
      %4824 = vmatprep.subr.bf16.mxu0 0
      %4825 = vmatpush1.bf16.msra.mxu0 0
      %4826 = vmatprep.subr.bf16.mxu0 0
      %4827 = vmatpush1.bf16.msra.mxu0 0
      %4828 = vmatprep.subr.bf16.mxu0 0
      %4829 = vmatpush1.bf16.msra.mxu0 0
      %4830 = vmatprep.subr.bf16.mxu0 0
      %4831 = vmatpush1.bf16.msra.mxu0 0
      %4832 = vmatprep.mubr.bf16.mxu0 0
      %4833 = vmatmul.mubr.bf16.gmra.mrb[0].mxu0 %v4786
      %v4834 = vpop.f32.mrb[0].mxu0
      %v4835 = vadd.f32 0.0, %v4834
      %v4836 = vpop.f32.mrb[0].mxu0
      %v4837 = vpop.f32.mrb[0].mxu0
      %v4838 = vadd.f32 0.0, %v4837
      %v4839 = vpop.f32.mrb[0].mxu0
      %4840 = vmatprep.mubr.bf16.mxu0 0
      %4841 = vmatmul.mubr.bf16.gmra.mrb[0].mxu0 %v4789
      %v4842 = vpop.f32.mrb[0].mxu0
      %v4843 = vadd.f32 0.0, %v4842
      %v4844 = vpop.f32.mrb[0].mxu0
      %v4845 = vpop.f32.mrb[0].mxu0
      %v4846 = vadd.f32 0.0, %v4845
      %v4847 = vpop.f32.mrb[0].mxu0
      %4848 = vmatprep.mubr.bf16.mxu0 0
      %4849 = vmatmul.mubr.bf16.gmra.mrb[0].mxu0 %v4792
      %v4850 = vpop.f32.mrb[0].mxu0
      %v4851 = vadd.f32 0.0, %v4850
      %v4852 = vpop.f32.mrb[0].mxu0
      %v4853 = vpop.f32.mrb[0].mxu0
      %v4854 = vadd.f32 0.0, %v4853
      %v4855 = vpop.f32.mrb[0].mxu0
      %4856 = vmatprep.mubr.bf16.mxu0 0
      %4857 = vmatmul.mubr.bf16.gmra.mrb[0].mxu0 %v4795
      %v4858 = vpop.f32.mrb[0].mxu0
      %v4859 = vadd.f32 0.0, %v4858
      %v4860 = vpop.f32.mrb[0].mxu0
      %v4861 = vpop.f32.mrb[0].mxu0
      %v4862 = vadd.f32 0.0, %v4861
      %v4863 = vpop.f32.mrb[0].mxu0
      %4864 = vdwg.mxu0
      %v4865 = vadd.f32 %v4747, %v4835
      %v4866 = vadd.f32 %v4748, %v4838
      %v4867 = vadd.f32 %v4749, %v4843
      %v4868 = vadd.f32 %v4750, %v4846
      %v4869 = vadd.f32 %v4751, %v4851
      %v4870 = vadd.f32 %v4752, %v4854
      %v4871 = vadd.f32 %v4753, %v4859
      %v4872 = vadd.f32 %v4754, %v4862
      %v4873 = vld [vmem:[%s4637] sm:$0xf]
      %v4874 = vld [vmem:[%s4637 + $0x4] sm:$0x1]
      %v4875 = vld [vmem:[%s4637 + $0x8] sm:$0xf]
      %v4876 = vld [vmem:[%s4637 + $0xc] sm:$0x1]
      %v4877 = vld [vmem:[%s4637 + $0x10] sm:$0xf]
      %v4878 = vld [vmem:[%s4637 + $0x14] sm:$0x1]
      %v4879 = vld [vmem:[%s4637 + $0x18] sm:$0xf]
      %v4880 = vld [vmem:[%s4637 + $0x1c] sm:$0x1]
      %v4881 = vld [vmem:[%s4637 + $0x20] sm:$0xf]
      %v4882 = vld [vmem:[%s4637 + $0x24] sm:$0x1]
      %v4883 = vld [vmem:[%s4637 + $0x28] sm:$0xf]
      %v4884 = vld [vmem:[%s4637 + $0x2c] sm:$0x1]
      %v4885 = vld [vmem:[%s4637 + $0x30] sm:$0xf]
      %v4886 = vld [vmem:[%s4637 + $0x34] sm:$0x1]
      %v4887 = vld [vmem:[%s4637 + $0x38] sm:$0xf]
      %v4888 = vld [vmem:[%s4637 + $0x3c] sm:$0x1]
      %v4890 = vshrl.u32 %v4873, 16
      %v4892 = vrot.slane %v4890, 4
      %v4893 = vshll.u32 %v4873, 16
      %v4895 = vrot.slane %v4893, 5
      %v4896 = vor.u32 %v4892, %v4895
      %v4897 = vrot.slane %v4896, 4
      %v4899 = vshll.u32 %v4874, 16
      %v4901 = vrot.slane %v4899, 5
      %v4902 = vsel %vm692, %v4897, %v4901
      %v4904 = vshrl.u32 %v4875, 16
      %v4906 = vrot.slane %v4904, 4
      %v4907 = vshll.u32 %v4875, 16
      %v4909 = vrot.slane %v4907, 5
      %v4910 = vor.u32 %v4906, %v4909
      %v4911 = vrot.slane %v4910, 4
      %v4913 = vshll.u32 %v4876, 16
      %v4915 = vrot.slane %v4913, 5
      %v4916 = vsel %vm692, %v4911, %v4915
      %v4918 = vshrl.u32 %v4877, 16
      %v4920 = vrot.slane %v4918, 4
      %v4921 = vshll.u32 %v4877, 16
      %v4923 = vrot.slane %v4921, 5
      %v4924 = vor.u32 %v4920, %v4923
      %v4925 = vrot.slane %v4924, 4
      %v4927 = vshll.u32 %v4878, 16
      %v4929 = vrot.slane %v4927, 5
      %v4930 = vsel %vm692, %v4925, %v4929
      %v4932 = vshrl.u32 %v4879, 16
      %v4934 = vrot.slane %v4932, 4
      %v4935 = vshll.u32 %v4879, 16
      %v4937 = vrot.slane %v4935, 5
      %v4938 = vor.u32 %v4934, %v4937
      %v4939 = vrot.slane %v4938, 4
      %v4941 = vshll.u32 %v4880, 16
      %v4943 = vrot.slane %v4941, 5
      %v4944 = vsel %vm692, %v4939, %v4943
      %v4946 = vshrl.u32 %v4881, 16
      %v4948 = vrot.slane %v4946, 4
      %v4949 = vshll.u32 %v4881, 16
      %v4951 = vrot.slane %v4949, 5
      %v4952 = vor.u32 %v4948, %v4951
      %v4953 = vrot.slane %v4952, 4
      %v4955 = vshll.u32 %v4882, 16
      %v4957 = vrot.slane %v4955, 5
      %v4958 = vsel %vm692, %v4953, %v4957
      %v4960 = vshrl.u32 %v4883, 16
      %v4962 = vrot.slane %v4960, 4
      %v4963 = vshll.u32 %v4883, 16
      %v4965 = vrot.slane %v4963, 5
      %v4966 = vor.u32 %v4962, %v4965
      %v4967 = vrot.slane %v4966, 4
      %v4969 = vshll.u32 %v4884, 16
      %v4971 = vrot.slane %v4969, 5
      %v4972 = vsel %vm692, %v4967, %v4971
      %v4974 = vshrl.u32 %v4885, 16
      %v4976 = vrot.slane %v4974, 4
      %v4977 = vshll.u32 %v4885, 16
      %v4979 = vrot.slane %v4977, 5
      %v4980 = vor.u32 %v4976, %v4979
      %v4981 = vrot.slane %v4980, 4
      %v4983 = vshll.u32 %v4886, 16
      %v4985 = vrot.slane %v4983, 5
      %v4986 = vsel %vm692, %v4981, %v4985
      %v4988 = vshrl.u32 %v4887, 16
      %v4990 = vrot.slane %v4988, 4
      %v4991 = vshll.u32 %v4887, 16
      %v4993 = vrot.slane %v4991, 5
      %v4994 = vor.u32 %v4990, %v4993
      %v4995 = vrot.slane %v4994, 4
      %v4997 = vshll.u32 %v4888, 16
      %v4999 = vrot.slane %v4997, 5
      %v5000 = vsel %vm692, %v4995, %v4999
      %v5001 = vld [vmem:[%s1741] sm:$0x3]
      %v5002 = vunpack.c.l.b16 %v4902
      %v5003 = vunpack.c.l.b16 %v4916
      %v5004 = vunpack.c.l.b16 %v4930
      %v5005 = vunpack.c.l.b16 %v4944
      %v5006 = vunpack.c.l.b16 %v4958
      %v5007 = vunpack.c.l.b16 %v4972
      %v5008 = vunpack.c.l.b16 %v4986
      %v5009 = vunpack.c.l.b16 %v5000
      %v5010 = vpack.c.b16 %v5003, %v5002
      %v5011 = vpack.c.b16 %v5005, %v5004
      %v5012 = vpack.c.b16 %v5007, %v5006
      %v5013 = vpack.c.b16 %v5009, %v5008
      %v5015 = vsel %vm489, %v5010, 0
      %v5018 = vsel %vm489, %v5011, 0
      %v5021 = vsel %vm489, %v5012, 0
      %v5024 = vsel %vm489, %v5013, 0
      %v5027 = vand.u32 %v5001, %v505
      %5029 = vmatprep.subr.bf16.mxu0 0
      %5030 = vmatpush1.bf16.msra.mxu0 %v5027
      %5031 = vmatprep.subr.bf16.mxu0 0
      %5032 = vmatpush1.bf16.msra.mxu0 0
      %5033 = vmatprep.subr.bf16.mxu0 0
      %5034 = vmatpush1.bf16.msra.mxu0 0
      %5035 = vmatprep.subr.bf16.mxu0 0
      %5036 = vmatpush1.bf16.msra.mxu0 0
      %5037 = vmatprep.subr.bf16.mxu0 0
      %5038 = vmatpush1.bf16.msra.mxu0 0
      %5039 = vmatprep.subr.bf16.mxu0 0
      %5040 = vmatpush1.bf16.msra.mxu0 0
      %5041 = vmatprep.subr.bf16.mxu0 0
      %5042 = vmatpush1.bf16.msra.mxu0 0
      %5043 = vmatprep.subr.bf16.mxu0 0
      %5044 = vmatpush1.bf16.msra.mxu0 0
      %5045 = vmatprep.subr.bf16.mxu0 0
      %5046 = vmatpush1.bf16.msra.mxu0 0
      %5047 = vmatprep.subr.bf16.mxu0 0
      %5048 = vmatpush1.bf16.msra.mxu0 0
      %5049 = vmatprep.subr.bf16.mxu0 0
      %5050 = vmatpush1.bf16.msra.mxu0 0
      %5051 = vmatprep.subr.bf16.mxu0 0
      %5052 = vmatpush1.bf16.msra.mxu0 0
      %5053 = vmatprep.subr.bf16.mxu0 0
      %5054 = vmatpush1.bf16.msra.mxu0 0
      %5055 = vmatprep.subr.bf16.mxu0 0
      %5056 = vmatpush1.bf16.msra.mxu0 0
      %5057 = vmatprep.subr.bf16.mxu0 0
      %5058 = vmatpush1.bf16.msra.mxu0 0
      %5059 = vmatprep.subr.bf16.mxu0 0
      %5060 = vmatpush1.bf16.msra.mxu0 0
      %5061 = vmatprep.mubr.bf16.mxu0 0
      %5062 = vmatmul.mubr.bf16.gmra.mrb[0].mxu0 %v5015
      %v5063 = vpop.f32.mrb[0].mxu0
      %v5064 = vadd.f32 0.0, %v5063
      %v5065 = vpop.f32.mrb[0].mxu0
      %v5066 = vpop.f32.mrb[0].mxu0
      %v5067 = vadd.f32 0.0, %v5066
      %v5068 = vpop.f32.mrb[0].mxu0
      %5069 = vmatprep.mubr.bf16.mxu0 0
      %5070 = vmatmul.mubr.bf16.gmra.mrb[0].mxu0 %v5018
      %v5071 = vpop.f32.mrb[0].mxu0
      %v5072 = vadd.f32 0.0, %v5071
      %v5073 = vpop.f32.mrb[0].mxu0
      %v5074 = vpop.f32.mrb[0].mxu0
      %v5075 = vadd.f32 0.0, %v5074
      %v5076 = vpop.f32.mrb[0].mxu0
      %5077 = vmatprep.mubr.bf16.mxu0 0
      %5078 = vmatmul.mubr.bf16.gmra.mrb[0].mxu0 %v5021
      %v5079 = vpop.f32.mrb[0].mxu0
      %v5080 = vadd.f32 0.0, %v5079
      %v5081 = vpop.f32.mrb[0].mxu0
      %v5082 = vpop.f32.mrb[0].mxu0
      %v5083 = vadd.f32 0.0, %v5082
      %v5084 = vpop.f32.mrb[0].mxu0
      %5085 = vmatprep.mubr.bf16.mxu0 0
      %5086 = vmatmul.mubr.bf16.gmra.mrb[0].mxu0 %v5024
      %v5087 = vpop.f32.mrb[0].mxu0
      %v5088 = vadd.f32 0.0, %v5087
      %v5089 = vpop.f32.mrb[0].mxu0
      %v5090 = vpop.f32.mrb[0].mxu0
      %v5091 = vadd.f32 0.0, %v5090
      %v5092 = vpop.f32.mrb[0].mxu0
      %5093 = vdwg.mxu0
      %v5094 = vadd.f32 %v4865, %v5064
      %v5095 = vadd.f32 %v4866, %v5067
      %v5096 = vadd.f32 %v4867, %v5072
      %v5097 = vadd.f32 %v4868, %v5075
      %v5098 = vadd.f32 %v4869, %v5080
      %v5099 = vadd.f32 %v4870, %v5083
      %v5100 = vadd.f32 %v4871, %v5088
      %v5101 = vadd.f32 %v4872, %v5091
      %v5102 = vld [vmem:[%s2] sm:$0x1]
      %v5104 = vlaneseq
      %v5105 = vshrl.u32 %v5104, 7
      %v5106 = vsub.s32 0, %v5105
      %v5107 = vrot.slane %v5102, %v5106
      %v5109 = vadd.f32 %v5094, %v5107
      %v5110 = vadd.f32 %v5095, %v5107
      %v5111 = vadd.f32 %v5096, %v5107
      %v5112 = vadd.f32 %v5097, %v5107
      %v5113 = vadd.f32 %v5098, %v5107
      %v5114 = vadd.f32 %v5099, %v5107
      %v5115 = vadd.f32 %v5100, %v5107
      %v5116 = vadd.f32 %v5101, %v5107
      %v5117 = vsub.f32 0.0, %v5109
      %v5118 = vsub.f32 0.0, %v5110
      %v5119 = vsub.f32 0.0, %v5111
      %v5120 = vsub.f32 0.0, %v5112
      %v5121 = vsub.f32 0.0, %v5113
      %v5122 = vsub.f32 0.0, %v5114
      %v5123 = vsub.f32 0.0, %v5115
      %v5124 = vsub.f32 0.0, %v5116
      %v5125 = vmul.f32 %v5117, 1.442695
      %v5126 = vpow.pop %v5125
      %v5127 = vmul.f32 %v5118, 1.442695
      %v5128 = vpow.pop %v5127
      %v5129 = vmul.f32 %v5119, 1.442695
      %v5130 = vpow.pop %v5129
      %v5131 = vmul.f32 %v5120, 1.442695
      %v5132 = vpow.pop %v5131
      %v5133 = vmul.f32 %v5121, 1.442695
      %v5134 = vpow.pop %v5133
      %v5135 = vmul.f32 %v5122, 1.442695
      %v5136 = vpow.pop %v5135
      %v5137 = vmul.f32 %v5123, 1.442695
      %v5138 = vpow.pop %v5137
      %v5139 = vmul.f32 %v5124, 1.442695
      %v5140 = vpow.pop %v5139
      %v5141 = vadd.f32 %v5126, 1.0
      %v5142 = vadd.f32 %v5128, 1.0
      %v5143 = vadd.f32 %v5130, 1.0
      %v5144 = vadd.f32 %v5132, 1.0
      %v5145 = vadd.f32 %v5134, 1.0
      %v5146 = vadd.f32 %v5136, 1.0
      %v5147 = vadd.f32 %v5138, 1.0
      %v5148 = vadd.f32 %v5140, 1.0
      %v5149 = vrcp.pop %v5141
      %v5150 = vmul.f32 1.0, %v5149
      %v5151 = vrcp.pop %v5142
      %v5152 = vmul.f32 1.0, %v5151
      %v5153 = vrcp.pop %v5143
      %v5154 = vmul.f32 1.0, %v5153
      %v5155 = vrcp.pop %v5144
      %v5156 = vmul.f32 1.0, %v5155
      %v5157 = vrcp.pop %v5145
      %v5158 = vmul.f32 1.0, %v5157
      %v5159 = vrcp.pop %v5146
      %v5160 = vmul.f32 1.0, %v5159
      %v5161 = vrcp.pop %v5147
      %v5162 = vmul.f32 1.0, %v5161
      %v5163 = vrcp.pop %v5148
      %v5164 = vmul.f32 1.0, %v5163
      %v5165 = vmul.f32 %v5109, %v5150
      %v5166 = vmul.f32 %v5110, %v5152
      %v5167 = vmul.f32 %v5111, %v5154
      %v5168 = vmul.f32 %v5112, %v5156
      %v5169 = vmul.f32 %v5113, %v5158
      %v5170 = vmul.f32 %v5114, %v5160
      %v5171 = vmul.f32 %v5115, %v5162
      %v5172 = vmul.f32 %v5116, %v5164
      %v5173 = vpack.c.bf16 %v5165, %v5165
      %v5174 = vpack.c.bf16 %v5166, %v5166
      %v5175 = vpack.c.bf16 %v5167, %v5167
      %v5176 = vpack.c.bf16 %v5168, %v5168
      %v5177 = vpack.c.bf16 %v5169, %v5169
      %v5178 = vpack.c.bf16 %v5170, %v5170
      %v5179 = vpack.c.bf16 %v5171, %v5171
      %v5180 = vpack.c.bf16 %v5172, %v5172
      %s5181 = scalar_lea.vmem [#allocation2], 144
      %5182 = vst.msk [vmem:[%s5181] sm:$0xf] %vm280, %v5173
      %5183 = vst.msk [vmem:[%s5181 + $0x8] sm:$0xf] %vm280, %v5174
      %5184 = vst.msk [vmem:[%s5181 + $0x10] sm:$0xf] %vm280, %v5175
      %5185 = vst.msk [vmem:[%s5181 + $0x18] sm:$0xf] %vm280, %v5176
      %5186 = vst.msk [vmem:[%s5181 + $0x20] sm:$0xf] %vm280, %v5177
      %5187 = vst.msk [vmem:[%s5181 + $0x28] sm:$0xf] %vm280, %v5178
      %5188 = vst.msk [vmem:[%s5181 + $0x30] sm:$0xf] %vm280, %v5179
      %5189 = vst.msk [vmem:[%s5181 + $0x38] sm:$0xf] %vm280, %v5180
      %v5190 = vld [vmem:[%s1026] sm:$0xf]
      %v5191 = vld [vmem:[%s1026 + $0x8] sm:$0xf]
      %v5192 = vld [vmem:[%s1026 + $0x10] sm:$0xf]
      %v5193 = vld [vmem:[%s1026 + $0x18] sm:$0xf]
      %v5194 = vld [vmem:[%s1026 + $0x20] sm:$0xf]
      %v5195 = vld [vmem:[%s1026 + $0x28] sm:$0xf]
      %v5196 = vld [vmem:[%s1026 + $0x30] sm:$0xf]
      %v5197 = vld [vmem:[%s1026 + $0x38] sm:$0xf]
      %v5198 = vld [vmem:[%s1] sm:$0x3]
      %v5199 = vld [vmem:[%s907] sm:$0xf]
      %v5200 = vld [vmem:[%s907 + $0x4] sm:$0x1]
      %v5201 = vld [vmem:[%s907 + $0x8] sm:$0xf]
      %v5202 = vld [vmem:[%s907 + $0xc] sm:$0x1]
      %v5203 = vld [vmem:[%s907 + $0x10] sm:$0xf]
      %v5204 = vld [vmem:[%s907 + $0x14] sm:$0x1]
      %v5205 = vld [vmem:[%s907 + $0x18] sm:$0xf]
      %v5206 = vld [vmem:[%s907 + $0x1c] sm:$0x1]
      %v5207 = vld [vmem:[%s907 + $0x20] sm:$0xf]
      %v5208 = vld [vmem:[%s907 + $0x24] sm:$0x1]
      %v5209 = vld [vmem:[%s907 + $0x28] sm:$0xf]
      %v5210 = vld [vmem:[%s907 + $0x2c] sm:$0x1]
      %v5211 = vld [vmem:[%s907 + $0x30] sm:$0xf]
      %v5212 = vld [vmem:[%s907 + $0x34] sm:$0x1]
      %v5213 = vld [vmem:[%s907 + $0x38] sm:$0xf]
      %v5214 = vld [vmem:[%s907 + $0x3c] sm:$0x1]
      %v5216 = vshrl.u32 %v5199, 16
      %v5218 = vrot.slane %v5216, 4
      %v5219 = vshll.u32 %v5199, 16
      %v5221 = vrot.slane %v5219, 5
      %v5222 = vor.u32 %v5218, %v5221
      %v5223 = vrot.slane %v5222, 4
      %v5225 = vshll.u32 %v5200, 16
      %v5227 = vrot.slane %v5225, 5
      %v5228 = vsel %vm692, %v5223, %v5227
      %v5230 = vshrl.u32 %v5201, 16
      %v5232 = vrot.slane %v5230, 4
      %v5233 = vshll.u32 %v5201, 16
      %v5235 = vrot.slane %v5233, 5
      %v5236 = vor.u32 %v5232, %v5235
      %v5237 = vrot.slane %v5236, 4
      %v5239 = vshll.u32 %v5202, 16
      %v5241 = vrot.slane %v5239, 5
      %v5242 = vsel %vm692, %v5237, %v5241
      %v5244 = vshrl.u32 %v5203, 16
      %v5246 = vrot.slane %v5244, 4
      %v5247 = vshll.u32 %v5203, 16
      %v5249 = vrot.slane %v5247, 5
      %v5250 = vor.u32 %v5246, %v5249
      %v5251 = vrot.slane %v5250, 4
      %v5253 = vshll.u32 %v5204, 16
      %v5255 = vrot.slane %v5253, 5
      %v5256 = vsel %vm692, %v5251, %v5255
      %v5258 = vshrl.u32 %v5205, 16
      %v5260 = vrot.slane %v5258, 4
      %v5261 = vshll.u32 %v5205, 16
      %v5263 = vrot.slane %v5261, 5
      %v5264 = vor.u32 %v5260, %v5263
      %v5265 = vrot.slane %v5264, 4
      %v5267 = vshll.u32 %v5206, 16
      %v5269 = vrot.slane %v5267, 5
      %v5270 = vsel %vm692, %v5265, %v5269
      %v5272 = vshrl.u32 %v5207, 16
      %v5274 = vrot.slane %v5272, 4
      %v5275 = vshll.u32 %v5207, 16
      %v5277 = vrot.slane %v5275, 5
      %v5278 = vor.u32 %v5274, %v5277
      %v5279 = vrot.slane %v5278, 4
      %v5281 = vshll.u32 %v5208, 16
      %v5283 = vrot.slane %v5281, 5
      %v5284 = vsel %vm692, %v5279, %v5283
      %v5286 = vshrl.u32 %v5209, 16
      %v5288 = vrot.slane %v5286, 4
      %v5289 = vshll.u32 %v5209, 16
      %v5291 = vrot.slane %v5289, 5
      %v5292 = vor.u32 %v5288, %v5291
      %v5293 = vrot.slane %v5292, 4
      %v5295 = vshll.u32 %v5210, 16
      %v5297 = vrot.slane %v5295, 5
      %v5298 = vsel %vm692, %v5293, %v5297
      %v5300 = vshrl.u32 %v5211, 16
      %v5302 = vrot.slane %v5300, 4
      %v5303 = vshll.u32 %v5211, 16
      %v5305 = vrot.slane %v5303, 5
      %v5306 = vor.u32 %v5302, %v5305
      %v5307 = vrot.slane %v5306, 4
      %v5309 = vshll.u32 %v5212, 16
      %v5311 = vrot.slane %v5309, 5
      %v5312 = vsel %vm692, %v5307, %v5311
      %v5314 = vshrl.u32 %v5213, 16
      %v5316 = vrot.slane %v5314, 4
      %v5317 = vshll.u32 %v5213, 16
      %v5319 = vrot.slane %v5317, 5
      %v5320 = vor.u32 %v5316, %v5319
      %v5321 = vrot.slane %v5320, 4
      %v5323 = vshll.u32 %v5214, 16
      %v5325 = vrot.slane %v5323, 5
      %v5326 = vsel %vm692, %v5321, %v5325
      %v5327 = vld [vmem:[%s467] sm:$0x3]
      %v5328 = vunpack.c.l.b16 %v5228
      %v5329 = vunpack.c.l.b16 %v5242
      %v5330 = vunpack.c.l.b16 %v5256
      %v5331 = vunpack.c.l.b16 %v5270
      %v5332 = vunpack.c.l.b16 %v5284
      %v5333 = vunpack.c.l.b16 %v5298
      %v5334 = vunpack.c.l.b16 %v5312
      %v5335 = vunpack.c.l.b16 %v5326
      %v5336 = vpack.c.b16 %v5329, %v5328
      %v5337 = vpack.c.b16 %v5331, %v5330
      %v5338 = vpack.c.b16 %v5333, %v5332
      %v5339 = vpack.c.b16 %v5335, %v5334
      %v5341 = vsel %vm489, %v5336, 0
      %v5344 = vsel %vm489, %v5337, 0
      %v5347 = vsel %vm489, %v5338, 0
      %v5350 = vsel %vm489, %v5339, 0
      %v5353 = vand.u32 %v5327, %v505
      %5355 = vmatprep.subr.bf16.mxu0 0
      %5356 = vmatpush1.bf16.msra.mxu0 %v5353
      %5357 = vmatprep.subr.bf16.mxu0 0
      %5358 = vmatpush1.bf16.msra.mxu0 0
      %5359 = vmatprep.subr.bf16.mxu0 0
      %5360 = vmatpush1.bf16.msra.mxu0 0
      %5361 = vmatprep.subr.bf16.mxu0 0
      %5362 = vmatpush1.bf16.msra.mxu0 0
      %5363 = vmatprep.subr.bf16.mxu0 0
      %5364 = vmatpush1.bf16.msra.mxu0 0
      %5365 = vmatprep.subr.bf16.mxu0 0
      %5366 = vmatpush1.bf16.msra.mxu0 0
      %5367 = vmatprep.subr.bf16.mxu0 0
      %5368 = vmatpush1.bf16.msra.mxu0 0
      %5369 = vmatprep.subr.bf16.mxu0 0
      %5370 = vmatpush1.bf16.msra.mxu0 0
      %5371 = vmatprep.subr.bf16.mxu0 0
      %5372 = vmatpush1.bf16.msra.mxu0 0
      %5373 = vmatprep.subr.bf16.mxu0 0
      %5374 = vmatpush1.bf16.msra.mxu0 0
      %5375 = vmatprep.subr.bf16.mxu0 0
      %5376 = vmatpush1.bf16.msra.mxu0 0
      %5377 = vmatprep.subr.bf16.mxu0 0
      %5378 = vmatpush1.bf16.msra.mxu0 0
      %5379 = vmatprep.subr.bf16.mxu0 0
      %5380 = vmatpush1.bf16.msra.mxu0 0
      %5381 = vmatprep.subr.bf16.mxu0 0
      %5382 = vmatpush1.bf16.msra.mxu0 0
      %5383 = vmatprep.subr.bf16.mxu0 0
      %5384 = vmatpush1.bf16.msra.mxu0 0
      %5385 = vmatprep.subr.bf16.mxu0 0
      %5386 = vmatpush1.bf16.msra.mxu0 0
      %5387 = vmatprep.mubr.bf16.mxu0 0
      %5388 = vmatmul.mubr.bf16.gmra.mrb[0].mxu0 %v5341
      %v5389 = vpop.f32.mrb[0].mxu0
      %v5390 = vadd.f32 0.0, %v5389
      %v5391 = vpop.f32.mrb[0].mxu0
      %v5392 = vpop.f32.mrb[0].mxu0
      %v5393 = vadd.f32 0.0, %v5392
      %v5394 = vpop.f32.mrb[0].mxu0
      %5395 = vmatprep.mubr.bf16.mxu0 0
      %5396 = vmatmul.mubr.bf16.gmra.mrb[0].mxu0 %v5344
      %v5397 = vpop.f32.mrb[0].mxu0
      %v5398 = vadd.f32 0.0, %v5397
      %v5399 = vpop.f32.mrb[0].mxu0
      %v5400 = vpop.f32.mrb[0].mxu0
      %v5401 = vadd.f32 0.0, %v5400
      %v5402 = vpop.f32.mrb[0].mxu0
      %5403 = vmatprep.mubr.bf16.mxu0 0
      %5404 = vmatmul.mubr.bf16.gmra.mrb[0].mxu0 %v5347
      %v5405 = vpop.f32.mrb[0].mxu0
      %v5406 = vadd.f32 0.0, %v5405
      %v5407 = vpop.f32.mrb[0].mxu0
      %v5408 = vpop.f32.mrb[0].mxu0
      %v5409 = vadd.f32 0.0, %v5408
      %v5410 = vpop.f32.mrb[0].mxu0
      %5411 = vmatprep.mubr.bf16.mxu0 0
      %5412 = vmatmul.mubr.bf16.gmra.mrb[0].mxu0 %v5350
      %v5413 = vpop.f32.mrb[0].mxu0
      %v5414 = vadd.f32 0.0, %v5413
      %v5415 = vpop.f32.mrb[0].mxu0
      %v5416 = vpop.f32.mrb[0].mxu0
      %v5417 = vadd.f32 0.0, %v5416
      %v5418 = vpop.f32.mrb[0].mxu0
      %5419 = vdwg.mxu0
      %v5428 = vunpack.c.l.b16 %v5190
      %v5429 = vunpack.c.l.b16 %v5191
      %v5430 = vunpack.c.l.b16 %v5192
      %v5431 = vunpack.c.l.b16 %v5193
      %v5432 = vunpack.c.l.b16 %v5194
      %v5433 = vunpack.c.l.b16 %v5195
      %v5434 = vunpack.c.l.b16 %v5196
      %v5435 = vunpack.c.l.b16 %v5197
      %v5436 = vpack.c.b16 %v5429, %v5428
      %v5437 = vpack.c.b16 %v5431, %v5430
      %v5438 = vpack.c.b16 %v5433, %v5432
      %v5439 = vpack.c.b16 %v5435, %v5434
      %v5441 = vsel %vm489, %v5436, 0
      %v5444 = vsel %vm489, %v5437, 0
      %v5447 = vsel %vm489, %v5438, 0
      %v5450 = vsel %vm489, %v5439, 0
      %v5453 = vand.u32 %v5198, %v505
      %5455 = vmatprep.subr.bf16.mxu0 0
      %5456 = vmatpush1.bf16.msra.mxu0 %v5453
      %5457 = vmatprep.subr.bf16.mxu0 0
      %5458 = vmatpush1.bf16.msra.mxu0 0
      %5459 = vmatprep.subr.bf16.mxu0 0
      %5460 = vmatpush1.bf16.msra.mxu0 0
      %5461 = vmatprep.subr.bf16.mxu0 0
      %5462 = vmatpush1.bf16.msra.mxu0 0
      %5463 = vmatprep.subr.bf16.mxu0 0
      %5464 = vmatpush1.bf16.msra.mxu0 0
      %5465 = vmatprep.subr.bf16.mxu0 0
      %5466 = vmatpush1.bf16.msra.mxu0 0
      %5467 = vmatprep.subr.bf16.mxu0 0
      %5468 = vmatpush1.bf16.msra.mxu0 0
      %5469 = vmatprep.subr.bf16.mxu0 0
      %5470 = vmatpush1.bf16.msra.mxu0 0
      %5471 = vmatprep.subr.bf16.mxu0 0
      %5472 = vmatpush1.bf16.msra.mxu0 0
      %5473 = vmatprep.subr.bf16.mxu0 0
      %5474 = vmatpush1.bf16.msra.mxu0 0
      %5475 = vmatprep.subr.bf16.mxu0 0
      %5476 = vmatpush1.bf16.msra.mxu0 0
      %5477 = vmatprep.subr.bf16.mxu0 0
      %5478 = vmatpush1.bf16.msra.mxu0 0
      %5479 = vmatprep.subr.bf16.mxu0 0
      %5480 = vmatpush1.bf16.msra.mxu0 0
      %5481 = vmatprep.subr.bf16.mxu0 0
      %5482 = vmatpush1.bf16.msra.mxu0 0
      %5483 = vmatprep.subr.bf16.mxu0 0
      %5484 = vmatpush1.bf16.msra.mxu0 0
      %5485 = vmatprep.subr.bf16.mxu0 0
      %5486 = vmatpush1.bf16.msra.mxu0 0
      %5487 = vmatprep.mubr.bf16.mxu0 0
      %5488 = vmatmul.mubr.bf16.gmra.mrb[0].mxu0 %v5441
      %v5489 = vpop.f32.mrb[0].mxu0
      %v5490 = vadd.f32 %v5390, %v5489
      %v5491 = vpop.f32.mrb[0].mxu0
      %v5492 = vpop.f32.mrb[0].mxu0
      %v5493 = vadd.f32 %v5393, %v5492
      %v5494 = vpop.f32.mrb[0].mxu0
      %5495 = vmatprep.mubr.bf16.mxu0 0
      %5496 = vmatmul.mubr.bf16.gmra.mrb[0].mxu0 %v5444
      %v5497 = vpop.f32.mrb[0].mxu0
      %v5498 = vadd.f32 %v5398, %v5497
      %v5499 = vpop.f32.mrb[0].mxu0
      %v5500 = vpop.f32.mrb[0].mxu0
      %v5501 = vadd.f32 %v5401, %v5500
      %v5502 = vpop.f32.mrb[0].mxu0
      %5503 = vmatprep.mubr.bf16.mxu0 0
      %5504 = vmatmul.mubr.bf16.gmra.mrb[0].mxu0 %v5447
      %v5505 = vpop.f32.mrb[0].mxu0
      %v5506 = vadd.f32 %v5406, %v5505
      %v5507 = vpop.f32.mrb[0].mxu0
      %v5508 = vpop.f32.mrb[0].mxu0
      %v5509 = vadd.f32 %v5409, %v5508
      %v5510 = vpop.f32.mrb[0].mxu0
      %5511 = vmatprep.mubr.bf16.mxu0 0
      %5512 = vmatmul.mubr.bf16.gmra.mrb[0].mxu0 %v5450
      %v5513 = vpop.f32.mrb[0].mxu0
      %v5514 = vadd.f32 %v5414, %v5513
      %v5515 = vpop.f32.mrb[0].mxu0
      %v5516 = vpop.f32.mrb[0].mxu0
      %v5517 = vadd.f32 %v5417, %v5516
      %v5518 = vpop.f32.mrb[0].mxu0
      %5519 = vdwg.mxu0
      %v5520 = vld [vmem:[%s1026] sm:$0xf]
      %v5521 = vld [vmem:[%s1026 + $0x4] sm:$0x1]
      %v5522 = vld [vmem:[%s1026 + $0x8] sm:$0xf]
      %v5523 = vld [vmem:[%s1026 + $0xc] sm:$0x1]
      %v5524 = vld [vmem:[%s1026 + $0x10] sm:$0xf]
      %v5525 = vld [vmem:[%s1026 + $0x14] sm:$0x1]
      %v5526 = vld [vmem:[%s1026 + $0x18] sm:$0xf]
      %v5527 = vld [vmem:[%s1026 + $0x1c] sm:$0x1]
      %v5528 = vld [vmem:[%s1026 + $0x20] sm:$0xf]
      %v5529 = vld [vmem:[%s1026 + $0x24] sm:$0x1]
      %v5530 = vld [vmem:[%s1026 + $0x28] sm:$0xf]
      %v5531 = vld [vmem:[%s1026 + $0x2c] sm:$0x1]
      %v5532 = vld [vmem:[%s1026 + $0x30] sm:$0xf]
      %v5533 = vld [vmem:[%s1026 + $0x34] sm:$0x1]
      %v5534 = vld [vmem:[%s1026 + $0x38] sm:$0xf]
      %v5535 = vld [vmem:[%s1026 + $0x3c] sm:$0x1]
      %v5537 = vshrl.u32 %v5520, 16
      %v5539 = vrot.slane %v5537, 4
      %v5540 = vshll.u32 %v5520, 16
      %v5542 = vrot.slane %v5540, 5
      %v5543 = vor.u32 %v5539, %v5542
      %v5544 = vrot.slane %v5543, 4
      %v5546 = vshll.u32 %v5521, 16
      %v5548 = vrot.slane %v5546, 5
      %v5549 = vsel %vm692, %v5544, %v5548
      %v5551 = vshrl.u32 %v5522, 16
      %v5553 = vrot.slane %v5551, 4
      %v5554 = vshll.u32 %v5522, 16
      %v5556 = vrot.slane %v5554, 5
      %v5557 = vor.u32 %v5553, %v5556
      %v5558 = vrot.slane %v5557, 4
      %v5560 = vshll.u32 %v5523, 16
      %v5562 = vrot.slane %v5560, 5
      %v5563 = vsel %vm692, %v5558, %v5562
      %v5565 = vshrl.u32 %v5524, 16
      %v5567 = vrot.slane %v5565, 4
      %v5568 = vshll.u32 %v5524, 16
      %v5570 = vrot.slane %v5568, 5
      %v5571 = vor.u32 %v5567, %v5570
      %v5572 = vrot.slane %v5571, 4
      %v5574 = vshll.u32 %v5525, 16
      %v5576 = vrot.slane %v5574, 5
      %v5577 = vsel %vm692, %v5572, %v5576
      %v5579 = vshrl.u32 %v5526, 16
      %v5581 = vrot.slane %v5579, 4
      %v5582 = vshll.u32 %v5526, 16
      %v5584 = vrot.slane %v5582, 5
      %v5585 = vor.u32 %v5581, %v5584
      %v5586 = vrot.slane %v5585, 4
      %v5588 = vshll.u32 %v5527, 16
      %v5590 = vrot.slane %v5588, 5
      %v5591 = vsel %vm692, %v5586, %v5590
      %v5593 = vshrl.u32 %v5528, 16
      %v5595 = vrot.slane %v5593, 4
      %v5596 = vshll.u32 %v5528, 16
      %v5598 = vrot.slane %v5596, 5
      %v5599 = vor.u32 %v5595, %v5598
      %v5600 = vrot.slane %v5599, 4
      %v5602 = vshll.u32 %v5529, 16
      %v5604 = vrot.slane %v5602, 5
      %v5605 = vsel %vm692, %v5600, %v5604
      %v5607 = vshrl.u32 %v5530, 16
      %v5609 = vrot.slane %v5607, 4
      %v5610 = vshll.u32 %v5530, 16
      %v5612 = vrot.slane %v5610, 5
      %v5613 = vor.u32 %v5609, %v5612
      %v5614 = vrot.slane %v5613, 4
      %v5616 = vshll.u32 %v5531, 16
      %v5618 = vrot.slane %v5616, 5
      %v5619 = vsel %vm692, %v5614, %v5618
      %v5621 = vshrl.u32 %v5532, 16
      %v5623 = vrot.slane %v5621, 4
      %v5624 = vshll.u32 %v5532, 16
      %v5626 = vrot.slane %v5624, 5
      %v5627 = vor.u32 %v5623, %v5626
      %v5628 = vrot.slane %v5627, 4
      %v5630 = vshll.u32 %v5533, 16
      %v5632 = vrot.slane %v5630, 5
      %v5633 = vsel %vm692, %v5628, %v5632
      %v5635 = vshrl.u32 %v5534, 16
      %v5637 = vrot.slane %v5635, 4
      %v5638 = vshll.u32 %v5534, 16
      %v5640 = vrot.slane %v5638, 5
      %v5641 = vor.u32 %v5637, %v5640
      %v5642 = vrot.slane %v5641, 4
      %v5644 = vshll.u32 %v5535, 16
      %v5646 = vrot.slane %v5644, 5
      %v5647 = vsel %vm692, %v5642, %v5646
      %v5648 = vld [vmem:[%s805] sm:$0x3]
      %v5649 = vunpack.c.l.b16 %v5549
      %v5650 = vunpack.c.l.b16 %v5563
      %v5651 = vunpack.c.l.b16 %v5577
      %v5652 = vunpack.c.l.b16 %v5591
      %v5653 = vunpack.c.l.b16 %v5605
      %v5654 = vunpack.c.l.b16 %v5619
      %v5655 = vunpack.c.l.b16 %v5633
      %v5656 = vunpack.c.l.b16 %v5647
      %v5657 = vpack.c.b16 %v5650, %v5649
      %v5658 = vpack.c.b16 %v5652, %v5651
      %v5659 = vpack.c.b16 %v5654, %v5653
      %v5660 = vpack.c.b16 %v5656, %v5655
      %v5662 = vsel %vm489, %v5657, 0
      %v5665 = vsel %vm489, %v5658, 0
      %v5668 = vsel %vm489, %v5659, 0
      %v5671 = vsel %vm489, %v5660, 0
      %v5674 = vand.u32 %v5648, %v505
      %5676 = vmatprep.subr.bf16.mxu0 0
      %5677 = vmatpush1.bf16.msra.mxu0 %v5674
      %5678 = vmatprep.subr.bf16.mxu0 0
      %5679 = vmatpush1.bf16.msra.mxu0 0
      %5680 = vmatprep.subr.bf16.mxu0 0
      %5681 = vmatpush1.bf16.msra.mxu0 0
      %5682 = vmatprep.subr.bf16.mxu0 0
      %5683 = vmatpush1.bf16.msra.mxu0 0
      %5684 = vmatprep.subr.bf16.mxu0 0
      %5685 = vmatpush1.bf16.msra.mxu0 0
      %5686 = vmatprep.subr.bf16.mxu0 0
      %5687 = vmatpush1.bf16.msra.mxu0 0
      %5688 = vmatprep.subr.bf16.mxu0 0
      %5689 = vmatpush1.bf16.msra.mxu0 0
      %5690 = vmatprep.subr.bf16.mxu0 0
      %5691 = vmatpush1.bf16.msra.mxu0 0
      %5692 = vmatprep.subr.bf16.mxu0 0
      %5693 = vmatpush1.bf16.msra.mxu0 0
      %5694 = vmatprep.subr.bf16.mxu0 0
      %5695 = vmatpush1.bf16.msra.mxu0 0
      %5696 = vmatprep.subr.bf16.mxu0 0
      %5697 = vmatpush1.bf16.msra.mxu0 0
      %5698 = vmatprep.subr.bf16.mxu0 0
      %5699 = vmatpush1.bf16.msra.mxu0 0
      %5700 = vmatprep.subr.bf16.mxu0 0
      %5701 = vmatpush1.bf16.msra.mxu0 0
      %5702 = vmatprep.subr.bf16.mxu0 0
      %5703 = vmatpush1.bf16.msra.mxu0 0
      %5704 = vmatprep.subr.bf16.mxu0 0
      %5705 = vmatpush1.bf16.msra.mxu0 0
      %5706 = vmatprep.subr.bf16.mxu0 0
      %5707 = vmatpush1.bf16.msra.mxu0 0
      %5708 = vmatprep.mubr.bf16.mxu0 0
      %5709 = vmatmul.mubr.bf16.gmra.mrb[0].mxu0 %v5662
      %v5710 = vpop.f32.mrb[0].mxu0
      %v5711 = vadd.f32 0.0, %v5710
      %v5712 = vpop.f32.mrb[0].mxu0
      %v5713 = vpop.f32.mrb[0].mxu0
      %v5714 = vadd.f32 0.0, %v5713
      %v5715 = vpop.f32.mrb[0].mxu0
      %5716 = vmatprep.mubr.bf16.mxu0 0
      %5717 = vmatmul.mubr.bf16.gmra.mrb[0].mxu0 %v5665
      %v5718 = vpop.f32.mrb[0].mxu0
      %v5719 = vadd.f32 0.0, %v5718
      %v5720 = vpop.f32.mrb[0].mxu0
      %v5721 = vpop.f32.mrb[0].mxu0
      %v5722 = vadd.f32 0.0, %v5721
      %v5723 = vpop.f32.mrb[0].mxu0
      %5724 = vmatprep.mubr.bf16.mxu0 0
      %5725 = vmatmul.mubr.bf16.gmra.mrb[0].mxu0 %v5668
      %v5726 = vpop.f32.mrb[0].mxu0
      %v5727 = vadd.f32 0.0, %v5726
      %v5728 = vpop.f32.mrb[0].mxu0
      %v5729 = vpop.f32.mrb[0].mxu0
      %v5730 = vadd.f32 0.0, %v5729
      %v5731 = vpop.f32.mrb[0].mxu0
      %5732 = vmatprep.mubr.bf16.mxu0 0
      %5733 = vmatmul.mubr.bf16.gmra.mrb[0].mxu0 %v5671
      %v5734 = vpop.f32.mrb[0].mxu0
      %v5735 = vadd.f32 0.0, %v5734
      %v5736 = vpop.f32.mrb[0].mxu0
      %v5737 = vpop.f32.mrb[0].mxu0
      %v5738 = vadd.f32 0.0, %v5737
      %v5739 = vpop.f32.mrb[0].mxu0
      %5740 = vdwg.mxu0
      %v5741 = vadd.f32 %v5490, %v5711
      %v5742 = vadd.f32 %v5493, %v5714
      %v5743 = vadd.f32 %v5498, %v5719
      %v5744 = vadd.f32 %v5501, %v5722
      %v5745 = vadd.f32 %v5506, %v5727
      %v5746 = vadd.f32 %v5509, %v5730
      %v5747 = vadd.f32 %v5514, %v5735
      %v5748 = vadd.f32 %v5517, %v5738
      %v5749 = vld [vmem:[%s1494] sm:$0xf]
      %v5750 = vld [vmem:[%s1494 + $0x8] sm:$0xf]
      %v5751 = vld [vmem:[%s1494 + $0x10] sm:$0xf]
      %v5752 = vld [vmem:[%s1494 + $0x18] sm:$0xf]
      %v5753 = vld [vmem:[%s1494 + $0x20] sm:$0xf]
      %v5754 = vld [vmem:[%s1494 + $0x28] sm:$0xf]
      %v5755 = vld [vmem:[%s1494 + $0x30] sm:$0xf]
      %v5756 = vld [vmem:[%s1494 + $0x38] sm:$0xf]
      %v5757 = vld [vmem:[%s916] sm:$0x3]
      %v5766 = vunpack.c.l.b16 %v5749
      %v5767 = vunpack.c.l.b16 %v5750
      %v5768 = vunpack.c.l.b16 %v5751
      %v5769 = vunpack.c.l.b16 %v5752
      %v5770 = vunpack.c.l.b16 %v5753
      %v5771 = vunpack.c.l.b16 %v5754
      %v5772 = vunpack.c.l.b16 %v5755
      %v5773 = vunpack.c.l.b16 %v5756
      %v5774 = vpack.c.b16 %v5767, %v5766
      %v5775 = vpack.c.b16 %v5769, %v5768
      %v5776 = vpack.c.b16 %v5771, %v5770
      %v5777 = vpack.c.b16 %v5773, %v5772
      %v5779 = vsel %vm489, %v5774, 0
      %v5782 = vsel %vm489, %v5775, 0
      %v5785 = vsel %vm489, %v5776, 0
      %v5788 = vsel %vm489, %v5777, 0
      %v5791 = vand.u32 %v5757, %v505
      %5793 = vmatprep.subr.bf16.mxu0 0
      %5794 = vmatpush1.bf16.msra.mxu0 %v5791
      %5795 = vmatprep.subr.bf16.mxu0 0
      %5796 = vmatpush1.bf16.msra.mxu0 0
      %5797 = vmatprep.subr.bf16.mxu0 0
      %5798 = vmatpush1.bf16.msra.mxu0 0
      %5799 = vmatprep.subr.bf16.mxu0 0
      %5800 = vmatpush1.bf16.msra.mxu0 0
      %5801 = vmatprep.subr.bf16.mxu0 0
      %5802 = vmatpush1.bf16.msra.mxu0 0
      %5803 = vmatprep.subr.bf16.mxu0 0
      %5804 = vmatpush1.bf16.msra.mxu0 0
      %5805 = vmatprep.subr.bf16.mxu0 0
      %5806 = vmatpush1.bf16.msra.mxu0 0
      %5807 = vmatprep.subr.bf16.mxu0 0
      %5808 = vmatpush1.bf16.msra.mxu0 0
      %5809 = vmatprep.subr.bf16.mxu0 0
      %5810 = vmatpush1.bf16.msra.mxu0 0
      %5811 = vmatprep.subr.bf16.mxu0 0
      %5812 = vmatpush1.bf16.msra.mxu0 0
      %5813 = vmatprep.subr.bf16.mxu0 0
      %5814 = vmatpush1.bf16.msra.mxu0 0
      %5815 = vmatprep.subr.bf16.mxu0 0
      %5816 = vmatpush1.bf16.msra.mxu0 0
      %5817 = vmatprep.subr.bf16.mxu0 0
      %5818 = vmatpush1.bf16.msra.mxu0 0
      %5819 = vmatprep.subr.bf16.mxu0 0
      %5820 = vmatpush1.bf16.msra.mxu0 0
      %5821 = vmatprep.subr.bf16.mxu0 0
      %5822 = vmatpush1.bf16.msra.mxu0 0
      %5823 = vmatprep.subr.bf16.mxu0 0
      %5824 = vmatpush1.bf16.msra.mxu0 0
      %5825 = vmatprep.mubr.bf16.mxu0 0
      %5826 = vmatmul.mubr.bf16.gmra.mrb[0].mxu0 %v5779
      %v5827 = vpop.f32.mrb[0].mxu0
      %v5828 = vadd.f32 0.0, %v5827
      %v5829 = vpop.f32.mrb[0].mxu0
      %v5830 = vpop.f32.mrb[0].mxu0
      %v5831 = vadd.f32 0.0, %v5830
      %v5832 = vpop.f32.mrb[0].mxu0
      %5833 = vmatprep.mubr.bf16.mxu0 0
      %5834 = vmatmul.mubr.bf16.gmra.mrb[0].mxu0 %v5782
      %v5835 = vpop.f32.mrb[0].mxu0
      %v5836 = vadd.f32 0.0, %v5835
      %v5837 = vpop.f32.mrb[0].mxu0
      %v5838 = vpop.f32.mrb[0].mxu0
      %v5839 = vadd.f32 0.0, %v5838
      %v5840 = vpop.f32.mrb[0].mxu0
      %5841 = vmatprep.mubr.bf16.mxu0 0
      %5842 = vmatmul.mubr.bf16.gmra.mrb[0].mxu0 %v5785
      %v5843 = vpop.f32.mrb[0].mxu0
      %v5844 = vadd.f32 0.0, %v5843
      %v5845 = vpop.f32.mrb[0].mxu0
      %v5846 = vpop.f32.mrb[0].mxu0
      %v5847 = vadd.f32 0.0, %v5846
      %v5848 = vpop.f32.mrb[0].mxu0
      %5849 = vmatprep.mubr.bf16.mxu0 0
      %5850 = vmatmul.mubr.bf16.gmra.mrb[0].mxu0 %v5788
      %v5851 = vpop.f32.mrb[0].mxu0
      %v5852 = vadd.f32 0.0, %v5851
      %v5853 = vpop.f32.mrb[0].mxu0
      %v5854 = vpop.f32.mrb[0].mxu0
      %v5855 = vadd.f32 0.0, %v5854
      %v5856 = vpop.f32.mrb[0].mxu0
      %5857 = vdwg.mxu0
      %v5858 = vadd.f32 %v5741, %v5828
      %v5859 = vadd.f32 %v5742, %v5831
      %v5860 = vadd.f32 %v5743, %v5836
      %v5861 = vadd.f32 %v5744, %v5839
      %v5862 = vadd.f32 %v5745, %v5844
      %v5863 = vadd.f32 %v5746, %v5847
      %v5864 = vadd.f32 %v5747, %v5852
      %v5865 = vadd.f32 %v5748, %v5855
      %v5866 = vld [vmem:[%s1375] sm:$0xf]
      %v5867 = vld [vmem:[%s1375 + $0x4] sm:$0x1]
      %v5868 = vld [vmem:[%s1375 + $0x8] sm:$0xf]
      %v5869 = vld [vmem:[%s1375 + $0xc] sm:$0x1]
      %v5870 = vld [vmem:[%s1375 + $0x10] sm:$0xf]
      %v5871 = vld [vmem:[%s1375 + $0x14] sm:$0x1]
      %v5872 = vld [vmem:[%s1375 + $0x18] sm:$0xf]
      %v5873 = vld [vmem:[%s1375 + $0x1c] sm:$0x1]
      %v5874 = vld [vmem:[%s1375 + $0x20] sm:$0xf]
      %v5875 = vld [vmem:[%s1375 + $0x24] sm:$0x1]
      %v5876 = vld [vmem:[%s1375 + $0x28] sm:$0xf]
      %v5877 = vld [vmem:[%s1375 + $0x2c] sm:$0x1]
      %v5878 = vld [vmem:[%s1375 + $0x30] sm:$0xf]
      %v5879 = vld [vmem:[%s1375 + $0x34] sm:$0x1]
      %v5880 = vld [vmem:[%s1375 + $0x38] sm:$0xf]
      %v5881 = vld [vmem:[%s1375 + $0x3c] sm:$0x1]
      %v5883 = vshrl.u32 %v5866, 16
      %v5885 = vrot.slane %v5883, 4
      %v5886 = vshll.u32 %v5866, 16
      %v5888 = vrot.slane %v5886, 5
      %v5889 = vor.u32 %v5885, %v5888
      %v5890 = vrot.slane %v5889, 4
      %v5892 = vshll.u32 %v5867, 16
      %v5894 = vrot.slane %v5892, 5
      %v5895 = vsel %vm692, %v5890, %v5894
      %v5897 = vshrl.u32 %v5868, 16
      %v5899 = vrot.slane %v5897, 4
      %v5900 = vshll.u32 %v5868, 16
      %v5902 = vrot.slane %v5900, 5
      %v5903 = vor.u32 %v5899, %v5902
      %v5904 = vrot.slane %v5903, 4
      %v5906 = vshll.u32 %v5869, 16
      %v5908 = vrot.slane %v5906, 5
      %v5909 = vsel %vm692, %v5904, %v5908
      %v5911 = vshrl.u32 %v5870, 16
      %v5913 = vrot.slane %v5911, 4
      %v5914 = vshll.u32 %v5870, 16
      %v5916 = vrot.slane %v5914, 5
      %v5917 = vor.u32 %v5913, %v5916
      %v5918 = vrot.slane %v5917, 4
      %v5920 = vshll.u32 %v5871, 16
      %v5922 = vrot.slane %v5920, 5
      %v5923 = vsel %vm692, %v5918, %v5922
      %v5925 = vshrl.u32 %v5872, 16
      %v5927 = vrot.slane %v5925, 4
      %v5928 = vshll.u32 %v5872, 16
      %v5930 = vrot.slane %v5928, 5
      %v5931 = vor.u32 %v5927, %v5930
      %v5932 = vrot.slane %v5931, 4
      %v5934 = vshll.u32 %v5873, 16
      %v5936 = vrot.slane %v5934, 5
      %v5937 = vsel %vm692, %v5932, %v5936
      %v5939 = vshrl.u32 %v5874, 16
      %v5941 = vrot.slane %v5939, 4
      %v5942 = vshll.u32 %v5874, 16
      %v5944 = vrot.slane %v5942, 5
      %v5945 = vor.u32 %v5941, %v5944
      %v5946 = vrot.slane %v5945, 4
      %v5948 = vshll.u32 %v5875, 16
      %v5950 = vrot.slane %v5948, 5
      %v5951 = vsel %vm692, %v5946, %v5950
      %v5953 = vshrl.u32 %v5876, 16
      %v5955 = vrot.slane %v5953, 4
      %v5956 = vshll.u32 %v5876, 16
      %v5958 = vrot.slane %v5956, 5
      %v5959 = vor.u32 %v5955, %v5958
      %v5960 = vrot.slane %v5959, 4
      %v5962 = vshll.u32 %v5877, 16
      %v5964 = vrot.slane %v5962, 5
      %v5965 = vsel %vm692, %v5960, %v5964
      %v5967 = vshrl.u32 %v5878, 16
      %v5969 = vrot.slane %v5967, 4
      %v5970 = vshll.u32 %v5878, 16
      %v5972 = vrot.slane %v5970, 5
      %v5973 = vor.u32 %v5969, %v5972
      %v5974 = vrot.slane %v5973, 4
      %v5976 = vshll.u32 %v5879, 16
      %v5978 = vrot.slane %v5976, 5
      %v5979 = vsel %vm692, %v5974, %v5978
      %v5981 = vshrl.u32 %v5880, 16
      %v5983 = vrot.slane %v5981, 4
      %v5984 = vshll.u32 %v5880, 16
      %v5986 = vrot.slane %v5984, 5
      %v5987 = vor.u32 %v5983, %v5986
      %v5988 = vrot.slane %v5987, 4
      %v5990 = vshll.u32 %v5881, 16
      %v5992 = vrot.slane %v5990, 5
      %v5993 = vsel %vm692, %v5988, %v5992
      %v5994 = vld [vmem:[%s1035] sm:$0x3]
      %v5995 = vunpack.c.l.b16 %v5895
      %v5996 = vunpack.c.l.b16 %v5909
      %v5997 = vunpack.c.l.b16 %v5923
      %v5998 = vunpack.c.l.b16 %v5937
      %v5999 = vunpack.c.l.b16 %v5951
      %v6000 = vunpack.c.l.b16 %v5965
      %v6001 = vunpack.c.l.b16 %v5979
      %v6002 = vunpack.c.l.b16 %v5993
      %v6003 = vpack.c.b16 %v5996, %v5995
      %v6004 = vpack.c.b16 %v5998, %v5997
      %v6005 = vpack.c.b16 %v6000, %v5999
      %v6006 = vpack.c.b16 %v6002, %v6001
      %v6008 = vsel %vm489, %v6003, 0
      %v6011 = vsel %vm489, %v6004, 0
      %v6014 = vsel %vm489, %v6005, 0
      %v6017 = vsel %vm489, %v6006, 0
      %v6020 = vand.u32 %v5994, %v505
      %6022 = vmatprep.subr.bf16.mxu0 0
      %6023 = vmatpush1.bf16.msra.mxu0 %v6020
      %6024 = vmatprep.subr.bf16.mxu0 0
      %6025 = vmatpush1.bf16.msra.mxu0 0
      %6026 = vmatprep.subr.bf16.mxu0 0
      %6027 = vmatpush1.bf16.msra.mxu0 0
      %6028 = vmatprep.subr.bf16.mxu0 0
      %6029 = vmatpush1.bf16.msra.mxu0 0
      %6030 = vmatprep.subr.bf16.mxu0 0
      %6031 = vmatpush1.bf16.msra.mxu0 0
      %6032 = vmatprep.subr.bf16.mxu0 0
      %6033 = vmatpush1.bf16.msra.mxu0 0
      %6034 = vmatprep.subr.bf16.mxu0 0
      %6035 = vmatpush1.bf16.msra.mxu0 0
      %6036 = vmatprep.subr.bf16.mxu0 0
      %6037 = vmatpush1.bf16.msra.mxu0 0
      %6038 = vmatprep.subr.bf16.mxu0 0
      %6039 = vmatpush1.bf16.msra.mxu0 0
      %6040 = vmatprep.subr.bf16.mxu0 0
      %6041 = vmatpush1.bf16.msra.mxu0 0
      %6042 = vmatprep.subr.bf16.mxu0 0
      %6043 = vmatpush1.bf16.msra.mxu0 0
      %6044 = vmatprep.subr.bf16.mxu0 0
      %6045 = vmatpush1.bf16.msra.mxu0 0
      %6046 = vmatprep.subr.bf16.mxu0 0
      %6047 = vmatpush1.bf16.msra.mxu0 0
      %6048 = vmatprep.subr.bf16.mxu0 0
      %6049 = vmatpush1.bf16.msra.mxu0 0
      %6050 = vmatprep.subr.bf16.mxu0 0
      %6051 = vmatpush1.bf16.msra.mxu0 0
      %6052 = vmatprep.subr.bf16.mxu0 0
      %6053 = vmatpush1.bf16.msra.mxu0 0
      %6054 = vmatprep.mubr.bf16.mxu0 0
      %6055 = vmatmul.mubr.bf16.gmra.mrb[0].mxu0 %v6008
      %v6056 = vpop.f32.mrb[0].mxu0
      %v6057 = vadd.f32 0.0, %v6056
      %v6058 = vpop.f32.mrb[0].mxu0
      %v6059 = vpop.f32.mrb[0].mxu0
      %v6060 = vadd.f32 0.0, %v6059
      %v6061 = vpop.f32.mrb[0].mxu0
      %6062 = vmatprep.mubr.bf16.mxu0 0
      %6063 = vmatmul.mubr.bf16.gmra.mrb[0].mxu0 %v6011
      %v6064 = vpop.f32.mrb[0].mxu0
      %v6065 = vadd.f32 0.0, %v6064
      %v6066 = vpop.f32.mrb[0].mxu0
      %v6067 = vpop.f32.mrb[0].mxu0
      %v6068 = vadd.f32 0.0, %v6067
      %v6069 = vpop.f32.mrb[0].mxu0
      %6070 = vmatprep.mubr.bf16.mxu0 0
      %6071 = vmatmul.mubr.bf16.gmra.mrb[0].mxu0 %v6014
      %v6072 = vpop.f32.mrb[0].mxu0
      %v6073 = vadd.f32 0.0, %v6072
      %v6074 = vpop.f32.mrb[0].mxu0
      %v6075 = vpop.f32.mrb[0].mxu0
      %v6076 = vadd.f32 0.0, %v6075
      %v6077 = vpop.f32.mrb[0].mxu0
      %6078 = vmatprep.mubr.bf16.mxu0 0
      %6079 = vmatmul.mubr.bf16.gmra.mrb[0].mxu0 %v6017
      %v6080 = vpop.f32.mrb[0].mxu0
      %v6081 = vadd.f32 0.0, %v6080
      %v6082 = vpop.f32.mrb[0].mxu0
      %v6083 = vpop.f32.mrb[0].mxu0
      %v6084 = vadd.f32 0.0, %v6083
      %v6085 = vpop.f32.mrb[0].mxu0
      %6086 = vdwg.mxu0
      %v6087 = vadd.f32 %v5858, %v6057
      %v6088 = vadd.f32 %v5859, %v6060
      %v6089 = vadd.f32 %v5860, %v6065
      %v6090 = vadd.f32 %v5861, %v6068
      %v6091 = vadd.f32 %v5862, %v6073
      %v6092 = vadd.f32 %v5863, %v6076
      %v6093 = vadd.f32 %v5864, %v6081
      %v6094 = vadd.f32 %v5865, %v6084
      %v6095 = vld [vmem:[%s1494] sm:$0xf]
      %v6096 = vld [vmem:[%s1494 + $0x4] sm:$0x1]
      %v6097 = vld [vmem:[%s1494 + $0x8] sm:$0xf]
      %v6098 = vld [vmem:[%s1494 + $0xc] sm:$0x1]
      %v6099 = vld [vmem:[%s1494 + $0x10] sm:$0xf]
      %v6100 = vld [vmem:[%s1494 + $0x14] sm:$0x1]
      %v6101 = vld [vmem:[%s1494 + $0x18] sm:$0xf]
      %v6102 = vld [vmem:[%s1494 + $0x1c] sm:$0x1]
      %v6103 = vld [vmem:[%s1494 + $0x20] sm:$0xf]
      %v6104 = vld [vmem:[%s1494 + $0x24] sm:$0x1]
      %v6105 = vld [vmem:[%s1494 + $0x28] sm:$0xf]
      %v6106 = vld [vmem:[%s1494 + $0x2c] sm:$0x1]
      %v6107 = vld [vmem:[%s1494 + $0x30] sm:$0xf]
      %v6108 = vld [vmem:[%s1494 + $0x34] sm:$0x1]
      %v6109 = vld [vmem:[%s1494 + $0x38] sm:$0xf]
      %v6110 = vld [vmem:[%s1494 + $0x3c] sm:$0x1]
      %v6112 = vshrl.u32 %v6095, 16
      %v6114 = vrot.slane %v6112, 4
      %v6115 = vshll.u32 %v6095, 16
      %v6117 = vrot.slane %v6115, 5
      %v6118 = vor.u32 %v6114, %v6117
      %v6119 = vrot.slane %v6118, 4
      %v6121 = vshll.u32 %v6096, 16
      %v6123 = vrot.slane %v6121, 5
      %v6124 = vsel %vm692, %v6119, %v6123
      %v6126 = vshrl.u32 %v6097, 16
      %v6128 = vrot.slane %v6126, 4
      %v6129 = vshll.u32 %v6097, 16
      %v6131 = vrot.slane %v6129, 5
      %v6132 = vor.u32 %v6128, %v6131
      %v6133 = vrot.slane %v6132, 4
      %v6135 = vshll.u32 %v6098, 16
      %v6137 = vrot.slane %v6135, 5
      %v6138 = vsel %vm692, %v6133, %v6137
      %v6140 = vshrl.u32 %v6099, 16
      %v6142 = vrot.slane %v6140, 4
      %v6143 = vshll.u32 %v6099, 16
      %v6145 = vrot.slane %v6143, 5
      %v6146 = vor.u32 %v6142, %v6145
      %v6147 = vrot.slane %v6146, 4
      %v6149 = vshll.u32 %v6100, 16
      %v6151 = vrot.slane %v6149, 5
      %v6152 = vsel %vm692, %v6147, %v6151
      %v6154 = vshrl.u32 %v6101, 16
      %v6156 = vrot.slane %v6154, 4
      %v6157 = vshll.u32 %v6101, 16
      %v6159 = vrot.slane %v6157, 5
      %v6160 = vor.u32 %v6156, %v6159
      %v6161 = vrot.slane %v6160, 4
      %v6163 = vshll.u32 %v6102, 16
      %v6165 = vrot.slane %v6163, 5
      %v6166 = vsel %vm692, %v6161, %v6165
      %v6168 = vshrl.u32 %v6103, 16
      %v6170 = vrot.slane %v6168, 4
      %v6171 = vshll.u32 %v6103, 16
      %v6173 = vrot.slane %v6171, 5
      %v6174 = vor.u32 %v6170, %v6173
      %v6175 = vrot.slane %v6174, 4
      %v6177 = vshll.u32 %v6104, 16
      %v6179 = vrot.slane %v6177, 5
      %v6180 = vsel %vm692, %v6175, %v6179
      %v6182 = vshrl.u32 %v6105, 16
      %v6184 = vrot.slane %v6182, 4
      %v6185 = vshll.u32 %v6105, 16
      %v6187 = vrot.slane %v6185, 5
      %v6188 = vor.u32 %v6184, %v6187
      %v6189 = vrot.slane %v6188, 4
      %v6191 = vshll.u32 %v6106, 16
      %v6193 = vrot.slane %v6191, 5
      %v6194 = vsel %vm692, %v6189, %v6193
      %v6196 = vshrl.u32 %v6107, 16
      %v6198 = vrot.slane %v6196, 4
      %v6199 = vshll.u32 %v6107, 16
      %v6201 = vrot.slane %v6199, 5
      %v6202 = vor.u32 %v6198, %v6201
      %v6203 = vrot.slane %v6202, 4
      %v6205 = vshll.u32 %v6108, 16
      %v6207 = vrot.slane %v6205, 5
      %v6208 = vsel %vm692, %v6203, %v6207
      %v6210 = vshrl.u32 %v6109, 16
      %v6212 = vrot.slane %v6210, 4
      %v6213 = vshll.u32 %v6109, 16
      %v6215 = vrot.slane %v6213, 5
      %v6216 = vor.u32 %v6212, %v6215
      %v6217 = vrot.slane %v6216, 4
      %v6219 = vshll.u32 %v6110, 16
      %v6221 = vrot.slane %v6219, 5
      %v6222 = vsel %vm692, %v6217, %v6221
      %v6223 = vld [vmem:[%s1273] sm:$0x3]
      %v6224 = vunpack.c.l.b16 %v6124
      %v6225 = vunpack.c.l.b16 %v6138
      %v6226 = vunpack.c.l.b16 %v6152
      %v6227 = vunpack.c.l.b16 %v6166
      %v6228 = vunpack.c.l.b16 %v6180
      %v6229 = vunpack.c.l.b16 %v6194
      %v6230 = vunpack.c.l.b16 %v6208
      %v6231 = vunpack.c.l.b16 %v6222
      %v6232 = vpack.c.b16 %v6225, %v6224
      %v6233 = vpack.c.b16 %v6227, %v6226
      %v6234 = vpack.c.b16 %v6229, %v6228
      %v6235 = vpack.c.b16 %v6231, %v6230
      %v6237 = vsel %vm489, %v6232, 0
      %v6240 = vsel %vm489, %v6233, 0
      %v6243 = vsel %vm489, %v6234, 0
      %v6246 = vsel %vm489, %v6235, 0
      %v6249 = vand.u32 %v6223, %v505
      %6251 = vmatprep.subr.bf16.mxu0 0
      %6252 = vmatpush1.bf16.msra.mxu0 %v6249
      %6253 = vmatprep.subr.bf16.mxu0 0
      %6254 = vmatpush1.bf16.msra.mxu0 0
      %6255 = vmatprep.subr.bf16.mxu0 0
      %6256 = vmatpush1.bf16.msra.mxu0 0
      %6257 = vmatprep.subr.bf16.mxu0 0
      %6258 = vmatpush1.bf16.msra.mxu0 0
      %6259 = vmatprep.subr.bf16.mxu0 0
      %6260 = vmatpush1.bf16.msra.mxu0 0
      %6261 = vmatprep.subr.bf16.mxu0 0
      %6262 = vmatpush1.bf16.msra.mxu0 0
      %6263 = vmatprep.subr.bf16.mxu0 0
      %6264 = vmatpush1.bf16.msra.mxu0 0
      %6265 = vmatprep.subr.bf16.mxu0 0
      %6266 = vmatpush1.bf16.msra.mxu0 0
      %6267 = vmatprep.subr.bf16.mxu0 0
      %6268 = vmatpush1.bf16.msra.mxu0 0
      %6269 = vmatprep.subr.bf16.mxu0 0
      %6270 = vmatpush1.bf16.msra.mxu0 0
      %6271 = vmatprep.subr.bf16.mxu0 0
      %6272 = vmatpush1.bf16.msra.mxu0 0
      %6273 = vmatprep.subr.bf16.mxu0 0
      %6274 = vmatpush1.bf16.msra.mxu0 0
      %6275 = vmatprep.subr.bf16.mxu0 0
      %6276 = vmatpush1.bf16.msra.mxu0 0
      %6277 = vmatprep.subr.bf16.mxu0 0
      %6278 = vmatpush1.bf16.msra.mxu0 0
      %6279 = vmatprep.subr.bf16.mxu0 0
      %6280 = vmatpush1.bf16.msra.mxu0 0
      %6281 = vmatprep.subr.bf16.mxu0 0
      %6282 = vmatpush1.bf16.msra.mxu0 0
      %6283 = vmatprep.mubr.bf16.mxu0 0
      %6284 = vmatmul.mubr.bf16.gmra.mrb[0].mxu0 %v6237
      %v6285 = vpop.f32.mrb[0].mxu0
      %v6286 = vadd.f32 0.0, %v6285
      %v6287 = vpop.f32.mrb[0].mxu0
      %v6288 = vpop.f32.mrb[0].mxu0
      %v6289 = vadd.f32 0.0, %v6288
      %v6290 = vpop.f32.mrb[0].mxu0
      %6291 = vmatprep.mubr.bf16.mxu0 0
      %6292 = vmatmul.mubr.bf16.gmra.mrb[0].mxu0 %v6240
      %v6293 = vpop.f32.mrb[0].mxu0
      %v6294 = vadd.f32 0.0, %v6293
      %v6295 = vpop.f32.mrb[0].mxu0
      %v6296 = vpop.f32.mrb[0].mxu0
      %v6297 = vadd.f32 0.0, %v6296
      %v6298 = vpop.f32.mrb[0].mxu0
      %6299 = vmatprep.mubr.bf16.mxu0 0
      %6300 = vmatmul.mubr.bf16.gmra.mrb[0].mxu0 %v6243
      %v6301 = vpop.f32.mrb[0].mxu0
      %v6302 = vadd.f32 0.0, %v6301
      %v6303 = vpop.f32.mrb[0].mxu0
      %v6304 = vpop.f32.mrb[0].mxu0
      %v6305 = vadd.f32 0.0, %v6304
      %v6306 = vpop.f32.mrb[0].mxu0
      %6307 = vmatprep.mubr.bf16.mxu0 0
      %6308 = vmatmul.mubr.bf16.gmra.mrb[0].mxu0 %v6246
      %v6309 = vpop.f32.mrb[0].mxu0
      %v6310 = vadd.f32 0.0, %v6309
      %v6311 = vpop.f32.mrb[0].mxu0
      %v6312 = vpop.f32.mrb[0].mxu0
      %v6313 = vadd.f32 0.0, %v6312
      %v6314 = vpop.f32.mrb[0].mxu0
      %6315 = vdwg.mxu0
      %v6316 = vadd.f32 %v6087, %v6286
      %v6317 = vadd.f32 %v6088, %v6289
      %v6318 = vadd.f32 %v6089, %v6294
      %v6319 = vadd.f32 %v6090, %v6297
      %v6320 = vadd.f32 %v6091, %v6302
      %v6321 = vadd.f32 %v6092, %v6305
      %v6322 = vadd.f32 %v6093, %v6310
      %v6323 = vadd.f32 %v6094, %v6313
      %v6324 = vld [vmem:[%s4755] sm:$0xf]
      %v6325 = vld [vmem:[%s4755 + $0x8] sm:$0xf]
      %v6326 = vld [vmem:[%s4755 + $0x10] sm:$0xf]
      %v6327 = vld [vmem:[%s4755 + $0x18] sm:$0xf]
      %v6328 = vld [vmem:[%s4755 + $0x20] sm:$0xf]
      %v6329 = vld [vmem:[%s4755 + $0x28] sm:$0xf]
      %v6330 = vld [vmem:[%s4755 + $0x30] sm:$0xf]
      %v6331 = vld [vmem:[%s4755 + $0x38] sm:$0xf]
      %v6332 = vld [vmem:[%s1384] sm:$0x3]
      %v6341 = vunpack.c.l.b16 %v6324
      %v6342 = vunpack.c.l.b16 %v6325
      %v6343 = vunpack.c.l.b16 %v6326
      %v6344 = vunpack.c.l.b16 %v6327
      %v6345 = vunpack.c.l.b16 %v6328
      %v6346 = vunpack.c.l.b16 %v6329
      %v6347 = vunpack.c.l.b16 %v6330
      %v6348 = vunpack.c.l.b16 %v6331
      %v6349 = vpack.c.b16 %v6342, %v6341
      %v6350 = vpack.c.b16 %v6344, %v6343
      %v6351 = vpack.c.b16 %v6346, %v6345
      %v6352 = vpack.c.b16 %v6348, %v6347
      %v6354 = vsel %vm489, %v6349, 0
      %v6357 = vsel %vm489, %v6350, 0
      %v6360 = vsel %vm489, %v6351, 0
      %v6363 = vsel %vm489, %v6352, 0
      %v6366 = vand.u32 %v6332, %v505
      %6368 = vmatprep.subr.bf16.mxu0 0
      %6369 = vmatpush1.bf16.msra.mxu0 %v6366
      %6370 = vmatprep.subr.bf16.mxu0 0
      %6371 = vmatpush1.bf16.msra.mxu0 0
      %6372 = vmatprep.subr.bf16.mxu0 0
      %6373 = vmatpush1.bf16.msra.mxu0 0
      %6374 = vmatprep.subr.bf16.mxu0 0
      %6375 = vmatpush1.bf16.msra.mxu0 0
      %6376 = vmatprep.subr.bf16.mxu0 0
      %6377 = vmatpush1.bf16.msra.mxu0 0
      %6378 = vmatprep.subr.bf16.mxu0 0
      %6379 = vmatpush1.bf16.msra.mxu0 0
      %6380 = vmatprep.subr.bf16.mxu0 0
      %6381 = vmatpush1.bf16.msra.mxu0 0
      %6382 = vmatprep.subr.bf16.mxu0 0
      %6383 = vmatpush1.bf16.msra.mxu0 0
      %6384 = vmatprep.subr.bf16.mxu0 0
      %6385 = vmatpush1.bf16.msra.mxu0 0
      %6386 = vmatprep.subr.bf16.mxu0 0
      %6387 = vmatpush1.bf16.msra.mxu0 0
      %6388 = vmatprep.subr.bf16.mxu0 0
      %6389 = vmatpush1.bf16.msra.mxu0 0
      %6390 = vmatprep.subr.bf16.mxu0 0
      %6391 = vmatpush1.bf16.msra.mxu0 0
      %6392 = vmatprep.subr.bf16.mxu0 0
      %6393 = vmatpush1.bf16.msra.mxu0 0
      %6394 = vmatprep.subr.bf16.mxu0 0
      %6395 = vmatpush1.bf16.msra.mxu0 0
      %6396 = vmatprep.subr.bf16.mxu0 0
      %6397 = vmatpush1.bf16.msra.mxu0 0
      %6398 = vmatprep.subr.bf16.mxu0 0
      %6399 = vmatpush1.bf16.msra.mxu0 0
      %6400 = vmatprep.mubr.bf16.mxu0 0
      %6401 = vmatmul.mubr.bf16.gmra.mrb[0].mxu0 %v6354
      %v6402 = vpop.f32.mrb[0].mxu0
      %v6403 = vadd.f32 0.0, %v6402
      %v6404 = vpop.f32.mrb[0].mxu0
      %v6405 = vpop.f32.mrb[0].mxu0
      %v6406 = vadd.f32 0.0, %v6405
      %v6407 = vpop.f32.mrb[0].mxu0
      %6408 = vmatprep.mubr.bf16.mxu0 0
      %6409 = vmatmul.mubr.bf16.gmra.mrb[0].mxu0 %v6357
      %v6410 = vpop.f32.mrb[0].mxu0
      %v6411 = vadd.f32 0.0, %v6410
      %v6412 = vpop.f32.mrb[0].mxu0
      %v6413 = vpop.f32.mrb[0].mxu0
      %v6414 = vadd.f32 0.0, %v6413
      %v6415 = vpop.f32.mrb[0].mxu0
      %6416 = vmatprep.mubr.bf16.mxu0 0
      %6417 = vmatmul.mubr.bf16.gmra.mrb[0].mxu0 %v6360
      %v6418 = vpop.f32.mrb[0].mxu0
      %v6419 = vadd.f32 0.0, %v6418
      %v6420 = vpop.f32.mrb[0].mxu0
      %v6421 = vpop.f32.mrb[0].mxu0
      %v6422 = vadd.f32 0.0, %v6421
      %v6423 = vpop.f32.mrb[0].mxu0
      %6424 = vmatprep.mubr.bf16.mxu0 0
      %6425 = vmatmul.mubr.bf16.gmra.mrb[0].mxu0 %v6363
      %v6426 = vpop.f32.mrb[0].mxu0
      %v6427 = vadd.f32 0.0, %v6426
      %v6428 = vpop.f32.mrb[0].mxu0
      %v6429 = vpop.f32.mrb[0].mxu0
      %v6430 = vadd.f32 0.0, %v6429
      %v6431 = vpop.f32.mrb[0].mxu0
      %6432 = vdwg.mxu0
      %v6433 = vadd.f32 %v6316, %v6403
      %v6434 = vadd.f32 %v6317, %v6406
      %v6435 = vadd.f32 %v6318, %v6411
      %v6436 = vadd.f32 %v6319, %v6414
      %v6437 = vadd.f32 %v6320, %v6419
      %v6438 = vadd.f32 %v6321, %v6422
      %v6439 = vadd.f32 %v6322, %v6427
      %v6440 = vadd.f32 %v6323, %v6430
      %v6441 = vld [vmem:[%s4637] sm:$0xf]
      %v6442 = vld [vmem:[%s4637 + $0x4] sm:$0x1]
      %v6443 = vld [vmem:[%s4637 + $0x8] sm:$0xf]
      %v6444 = vld [vmem:[%s4637 + $0xc] sm:$0x1]
      %v6445 = vld [vmem:[%s4637 + $0x10] sm:$0xf]
      %v6446 = vld [vmem:[%s4637 + $0x14] sm:$0x1]
      %v6447 = vld [vmem:[%s4637 + $0x18] sm:$0xf]
      %v6448 = vld [vmem:[%s4637 + $0x1c] sm:$0x1]
      %v6449 = vld [vmem:[%s4637 + $0x20] sm:$0xf]
      %v6450 = vld [vmem:[%s4637 + $0x24] sm:$0x1]
      %v6451 = vld [vmem:[%s4637 + $0x28] sm:$0xf]
      %v6452 = vld [vmem:[%s4637 + $0x2c] sm:$0x1]
      %v6453 = vld [vmem:[%s4637 + $0x30] sm:$0xf]
      %v6454 = vld [vmem:[%s4637 + $0x34] sm:$0x1]
      %v6455 = vld [vmem:[%s4637 + $0x38] sm:$0xf]
      %v6456 = vld [vmem:[%s4637 + $0x3c] sm:$0x1]
      %v6458 = vshrl.u32 %v6441, 16
      %v6460 = vrot.slane %v6458, 4
      %v6461 = vshll.u32 %v6441, 16
      %v6463 = vrot.slane %v6461, 5
      %v6464 = vor.u32 %v6460, %v6463
      %v6465 = vrot.slane %v6464, 4
      %v6467 = vshll.u32 %v6442, 16
      %v6469 = vrot.slane %v6467, 5
      %v6470 = vsel %vm692, %v6465, %v6469
      %v6472 = vshrl.u32 %v6443, 16
      %v6474 = vrot.slane %v6472, 4
      %v6475 = vshll.u32 %v6443, 16
      %v6477 = vrot.slane %v6475, 5
      %v6478 = vor.u32 %v6474, %v6477
      %v6479 = vrot.slane %v6478, 4
      %v6481 = vshll.u32 %v6444, 16
      %v6483 = vrot.slane %v6481, 5
      %v6484 = vsel %vm692, %v6479, %v6483
      %v6486 = vshrl.u32 %v6445, 16
      %v6488 = vrot.slane %v6486, 4
      %v6489 = vshll.u32 %v6445, 16
      %v6491 = vrot.slane %v6489, 5
      %v6492 = vor.u32 %v6488, %v6491
      %v6493 = vrot.slane %v6492, 4
      %v6495 = vshll.u32 %v6446, 16
      %v6497 = vrot.slane %v6495, 5
      %v6498 = vsel %vm692, %v6493, %v6497
      %v6500 = vshrl.u32 %v6447, 16
      %v6502 = vrot.slane %v6500, 4
      %v6503 = vshll.u32 %v6447, 16
      %v6505 = vrot.slane %v6503, 5
      %v6506 = vor.u32 %v6502, %v6505
      %v6507 = vrot.slane %v6506, 4
      %v6509 = vshll.u32 %v6448, 16
      %v6511 = vrot.slane %v6509, 5
      %v6512 = vsel %vm692, %v6507, %v6511
      %v6514 = vshrl.u32 %v6449, 16
      %v6516 = vrot.slane %v6514, 4
      %v6517 = vshll.u32 %v6449, 16
      %v6519 = vrot.slane %v6517, 5
      %v6520 = vor.u32 %v6516, %v6519
      %v6521 = vrot.slane %v6520, 4
      %v6523 = vshll.u32 %v6450, 16
      %v6525 = vrot.slane %v6523, 5
      %v6526 = vsel %vm692, %v6521, %v6525
      %v6528 = vshrl.u32 %v6451, 16
      %v6530 = vrot.slane %v6528, 4
      %v6531 = vshll.u32 %v6451, 16
      %v6533 = vrot.slane %v6531, 5
      %v6534 = vor.u32 %v6530, %v6533
      %v6535 = vrot.slane %v6534, 4
      %v6537 = vshll.u32 %v6452, 16
      %v6539 = vrot.slane %v6537, 5
      %v6540 = vsel %vm692, %v6535, %v6539
      %v6542 = vshrl.u32 %v6453, 16
      %v6544 = vrot.slane %v6542, 4
      %v6545 = vshll.u32 %v6453, 16
      %v6547 = vrot.slane %v6545, 5
      %v6548 = vor.u32 %v6544, %v6547
      %v6549 = vrot.slane %v6548, 4
      %v6551 = vshll.u32 %v6454, 16
      %v6553 = vrot.slane %v6551, 5
      %v6554 = vsel %vm692, %v6549, %v6553
      %v6556 = vshrl.u32 %v6455, 16
      %v6558 = vrot.slane %v6556, 4
      %v6559 = vshll.u32 %v6455, 16
      %v6561 = vrot.slane %v6559, 5
      %v6562 = vor.u32 %v6558, %v6561
      %v6563 = vrot.slane %v6562, 4
      %v6565 = vshll.u32 %v6456, 16
      %v6567 = vrot.slane %v6565, 5
      %v6568 = vsel %vm692, %v6563, %v6567
      %v6569 = vld [vmem:[%s1503] sm:$0x3]
      %v6570 = vunpack.c.l.b16 %v6470
      %v6571 = vunpack.c.l.b16 %v6484
      %v6572 = vunpack.c.l.b16 %v6498
      %v6573 = vunpack.c.l.b16 %v6512
      %v6574 = vunpack.c.l.b16 %v6526
      %v6575 = vunpack.c.l.b16 %v6540
      %v6576 = vunpack.c.l.b16 %v6554
      %v6577 = vunpack.c.l.b16 %v6568
      %v6578 = vpack.c.b16 %v6571, %v6570
      %v6579 = vpack.c.b16 %v6573, %v6572
      %v6580 = vpack.c.b16 %v6575, %v6574
      %v6581 = vpack.c.b16 %v6577, %v6576
      %v6583 = vsel %vm489, %v6578, 0
      %v6586 = vsel %vm489, %v6579, 0
      %v6589 = vsel %vm489, %v6580, 0
      %v6592 = vsel %vm489, %v6581, 0
      %v6595 = vand.u32 %v6569, %v505
      %6597 = vmatprep.subr.bf16.mxu0 0
      %6598 = vmatpush1.bf16.msra.mxu0 %v6595
      %6599 = vmatprep.subr.bf16.mxu0 0
      %6600 = vmatpush1.bf16.msra.mxu0 0
      %6601 = vmatprep.subr.bf16.mxu0 0
      %6602 = vmatpush1.bf16.msra.mxu0 0
      %6603 = vmatprep.subr.bf16.mxu0 0
      %6604 = vmatpush1.bf16.msra.mxu0 0
      %6605 = vmatprep.subr.bf16.mxu0 0
      %6606 = vmatpush1.bf16.msra.mxu0 0
      %6607 = vmatprep.subr.bf16.mxu0 0
      %6608 = vmatpush1.bf16.msra.mxu0 0
      %6609 = vmatprep.subr.bf16.mxu0 0
      %6610 = vmatpush1.bf16.msra.mxu0 0
      %6611 = vmatprep.subr.bf16.mxu0 0
      %6612 = vmatpush1.bf16.msra.mxu0 0
      %6613 = vmatprep.subr.bf16.mxu0 0
      %6614 = vmatpush1.bf16.msra.mxu0 0
      %6615 = vmatprep.subr.bf16.mxu0 0
      %6616 = vmatpush1.bf16.msra.mxu0 0
      %6617 = vmatprep.subr.bf16.mxu0 0
      %6618 = vmatpush1.bf16.msra.mxu0 0
      %6619 = vmatprep.subr.bf16.mxu0 0
      %6620 = vmatpush1.bf16.msra.mxu0 0
      %6621 = vmatprep.subr.bf16.mxu0 0
      %6622 = vmatpush1.bf16.msra.mxu0 0
      %6623 = vmatprep.subr.bf16.mxu0 0
      %6624 = vmatpush1.bf16.msra.mxu0 0
      %6625 = vmatprep.subr.bf16.mxu0 0
      %6626 = vmatpush1.bf16.msra.mxu0 0
      %6627 = vmatprep.subr.bf16.mxu0 0
      %6628 = vmatpush1.bf16.msra.mxu0 0
      %6629 = vmatprep.mubr.bf16.mxu0 0
      %6630 = vmatmul.mubr.bf16.gmra.mrb[0].mxu0 %v6583
      %v6631 = vpop.f32.mrb[0].mxu0
      %v6632 = vadd.f32 0.0, %v6631
      %v6633 = vpop.f32.mrb[0].mxu0
      %v6634 = vpop.f32.mrb[0].mxu0
      %v6635 = vadd.f32 0.0, %v6634
      %v6636 = vpop.f32.mrb[0].mxu0
      %6637 = vmatprep.mubr.bf16.mxu0 0
      %6638 = vmatmul.mubr.bf16.gmra.mrb[0].mxu0 %v6586
      %v6639 = vpop.f32.mrb[0].mxu0
      %v6640 = vadd.f32 0.0, %v6639
      %v6641 = vpop.f32.mrb[0].mxu0
      %v6642 = vpop.f32.mrb[0].mxu0
      %v6643 = vadd.f32 0.0, %v6642
      %v6644 = vpop.f32.mrb[0].mxu0
      %6645 = vmatprep.mubr.bf16.mxu0 0
      %6646 = vmatmul.mubr.bf16.gmra.mrb[0].mxu0 %v6589
      %v6647 = vpop.f32.mrb[0].mxu0
      %v6648 = vadd.f32 0.0, %v6647
      %v6649 = vpop.f32.mrb[0].mxu0
      %v6650 = vpop.f32.mrb[0].mxu0
      %v6651 = vadd.f32 0.0, %v6650
      %v6652 = vpop.f32.mrb[0].mxu0
      %6653 = vmatprep.mubr.bf16.mxu0 0
      %6654 = vmatmul.mubr.bf16.gmra.mrb[0].mxu0 %v6592
      %v6655 = vpop.f32.mrb[0].mxu0
      %v6656 = vadd.f32 0.0, %v6655
      %v6657 = vpop.f32.mrb[0].mxu0
      %v6658 = vpop.f32.mrb[0].mxu0
      %v6659 = vadd.f32 0.0, %v6658
      %v6660 = vpop.f32.mrb[0].mxu0
      %6661 = vdwg.mxu0
      %v6662 = vadd.f32 %v6433, %v6632
      %v6663 = vadd.f32 %v6434, %v6635
      %v6664 = vadd.f32 %v6435, %v6640
      %v6665 = vadd.f32 %v6436, %v6643
      %v6666 = vadd.f32 %v6437, %v6648
      %v6667 = vadd.f32 %v6438, %v6651
      %v6668 = vadd.f32 %v6439, %v6656
      %v6669 = vadd.f32 %v6440, %v6659
      %v6670 = vld [vmem:[%s4755] sm:$0xf]
      %v6671 = vld [vmem:[%s4755 + $0x4] sm:$0x1]
      %v6672 = vld [vmem:[%s4755 + $0x8] sm:$0xf]
      %v6673 = vld [vmem:[%s4755 + $0xc] sm:$0x1]
      %v6674 = vld [vmem:[%s4755 + $0x10] sm:$0xf]
      %v6675 = vld [vmem:[%s4755 + $0x14] sm:$0x1]
      %v6676 = vld [vmem:[%s4755 + $0x18] sm:$0xf]
      %v6677 = vld [vmem:[%s4755 + $0x1c] sm:$0x1]
      %v6678 = vld [vmem:[%s4755 + $0x20] sm:$0xf]
      %v6679 = vld [vmem:[%s4755 + $0x24] sm:$0x1]
      %v6680 = vld [vmem:[%s4755 + $0x28] sm:$0xf]
      %v6681 = vld [vmem:[%s4755 + $0x2c] sm:$0x1]
      %v6682 = vld [vmem:[%s4755 + $0x30] sm:$0xf]
      %v6683 = vld [vmem:[%s4755 + $0x34] sm:$0x1]
      %v6684 = vld [vmem:[%s4755 + $0x38] sm:$0xf]
      %v6685 = vld [vmem:[%s4755 + $0x3c] sm:$0x1]
      %v6687 = vshrl.u32 %v6670, 16
      %v6689 = vrot.slane %v6687, 4
      %v6690 = vshll.u32 %v6670, 16
      %v6692 = vrot.slane %v6690, 5
      %v6693 = vor.u32 %v6689, %v6692
      %v6694 = vrot.slane %v6693, 4
      %v6696 = vshll.u32 %v6671, 16
      %v6698 = vrot.slane %v6696, 5
      %v6699 = vsel %vm692, %v6694, %v6698
      %v6701 = vshrl.u32 %v6672, 16
      %v6703 = vrot.slane %v6701, 4
      %v6704 = vshll.u32 %v6672, 16
      %v6706 = vrot.slane %v6704, 5
      %v6707 = vor.u32 %v6703, %v6706
      %v6708 = vrot.slane %v6707, 4
      %v6710 = vshll.u32 %v6673, 16
      %v6712 = vrot.slane %v6710, 5
      %v6713 = vsel %vm692, %v6708, %v6712
      %v6715 = vshrl.u32 %v6674, 16
      %v6717 = vrot.slane %v6715, 4
      %v6718 = vshll.u32 %v6674, 16
      %v6720 = vrot.slane %v6718, 5
      %v6721 = vor.u32 %v6717, %v6720
      %v6722 = vrot.slane %v6721, 4
      %v6724 = vshll.u32 %v6675, 16
      %v6726 = vrot.slane %v6724, 5
      %v6727 = vsel %vm692, %v6722, %v6726
      %v6729 = vshrl.u32 %v6676, 16
      %v6731 = vrot.slane %v6729, 4
      %v6732 = vshll.u32 %v6676, 16
      %v6734 = vrot.slane %v6732, 5
      %v6735 = vor.u32 %v6731, %v6734
      %v6736 = vrot.slane %v6735, 4
      %v6738 = vshll.u32 %v6677, 16
      %v6740 = vrot.slane %v6738, 5
      %v6741 = vsel %vm692, %v6736, %v6740
      %v6743 = vshrl.u32 %v6678, 16
      %v6745 = vrot.slane %v6743, 4
      %v6746 = vshll.u32 %v6678, 16
      %v6748 = vrot.slane %v6746, 5
      %v6749 = vor.u32 %v6745, %v6748
      %v6750 = vrot.slane %v6749, 4
      %v6752 = vshll.u32 %v6679, 16
      %v6754 = vrot.slane %v6752, 5
      %v6755 = vsel %vm692, %v6750, %v6754
      %v6757 = vshrl.u32 %v6680, 16
      %v6759 = vrot.slane %v6757, 4
      %v6760 = vshll.u32 %v6680, 16
      %v6762 = vrot.slane %v6760, 5
      %v6763 = vor.u32 %v6759, %v6762
      %v6764 = vrot.slane %v6763, 4
      %v6766 = vshll.u32 %v6681, 16
      %v6768 = vrot.slane %v6766, 5
      %v6769 = vsel %vm692, %v6764, %v6768
      %v6771 = vshrl.u32 %v6682, 16
      %v6773 = vrot.slane %v6771, 4
      %v6774 = vshll.u32 %v6682, 16
      %v6776 = vrot.slane %v6774, 5
      %v6777 = vor.u32 %v6773, %v6776
      %v6778 = vrot.slane %v6777, 4
      %v6780 = vshll.u32 %v6683, 16
      %v6782 = vrot.slane %v6780, 5
      %v6783 = vsel %vm692, %v6778, %v6782
      %v6785 = vshrl.u32 %v6684, 16
      %v6787 = vrot.slane %v6785, 4
      %v6788 = vshll.u32 %v6684, 16
      %v6790 = vrot.slane %v6788, 5
      %v6791 = vor.u32 %v6787, %v6790
      %v6792 = vrot.slane %v6791, 4
      %v6794 = vshll.u32 %v6685, 16
      %v6796 = vrot.slane %v6794, 5
      %v6797 = vsel %vm692, %v6792, %v6796
      %v6798 = vld [vmem:[%s1741] sm:$0x3]
      %v6799 = vunpack.c.l.b16 %v6699
      %v6800 = vunpack.c.l.b16 %v6713
      %v6801 = vunpack.c.l.b16 %v6727
      %v6802 = vunpack.c.l.b16 %v6741
      %v6803 = vunpack.c.l.b16 %v6755
      %v6804 = vunpack.c.l.b16 %v6769
      %v6805 = vunpack.c.l.b16 %v6783
      %v6806 = vunpack.c.l.b16 %v6797
      %v6807 = vpack.c.b16 %v6800, %v6799
      %v6808 = vpack.c.b16 %v6802, %v6801
      %v6809 = vpack.c.b16 %v6804, %v6803
      %v6810 = vpack.c.b16 %v6806, %v6805
      %v6812 = vsel %vm489, %v6807, 0
      %v6815 = vsel %vm489, %v6808, 0
      %v6818 = vsel %vm489, %v6809, 0
      %v6821 = vsel %vm489, %v6810, 0
      %v6824 = vand.u32 %v6798, %v505
      %6826 = vmatprep.subr.bf16.mxu0 0
      %6827 = vmatpush1.bf16.msra.mxu0 %v6824
      %6828 = vmatprep.subr.bf16.mxu0 0
      %6829 = vmatpush1.bf16.msra.mxu0 0
      %6830 = vmatprep.subr.bf16.mxu0 0
      %6831 = vmatpush1.bf16.msra.mxu0 0
      %6832 = vmatprep.subr.bf16.mxu0 0
      %6833 = vmatpush1.bf16.msra.mxu0 0
      %6834 = vmatprep.subr.bf16.mxu0 0
      %6835 = vmatpush1.bf16.msra.mxu0 0
      %6836 = vmatprep.subr.bf16.mxu0 0
      %6837 = vmatpush1.bf16.msra.mxu0 0
      %6838 = vmatprep.subr.bf16.mxu0 0
      %6839 = vmatpush1.bf16.msra.mxu0 0
      %6840 = vmatprep.subr.bf16.mxu0 0
      %6841 = vmatpush1.bf16.msra.mxu0 0
      %6842 = vmatprep.subr.bf16.mxu0 0
      %6843 = vmatpush1.bf16.msra.mxu0 0
      %6844 = vmatprep.subr.bf16.mxu0 0
      %6845 = vmatpush1.bf16.msra.mxu0 0
      %6846 = vmatprep.subr.bf16.mxu0 0
      %6847 = vmatpush1.bf16.msra.mxu0 0
      %6848 = vmatprep.subr.bf16.mxu0 0
      %6849 = vmatpush1.bf16.msra.mxu0 0
      %6850 = vmatprep.subr.bf16.mxu0 0
      %6851 = vmatpush1.bf16.msra.mxu0 0
      %6852 = vmatprep.subr.bf16.mxu0 0
      %6853 = vmatpush1.bf16.msra.mxu0 0
      %6854 = vmatprep.subr.bf16.mxu0 0
      %6855 = vmatpush1.bf16.msra.mxu0 0
      %6856 = vmatprep.subr.bf16.mxu0 0
      %6857 = vmatpush1.bf16.msra.mxu0 0
      %6858 = vmatprep.mubr.bf16.mxu0 0
      %6859 = vmatmul.mubr.bf16.gmra.mrb[0].mxu0 %v6812
      %v6860 = vpop.f32.mrb[0].mxu0
      %v6861 = vadd.f32 0.0, %v6860
      %v6862 = vpop.f32.mrb[0].mxu0
      %v6863 = vpop.f32.mrb[0].mxu0
      %v6864 = vadd.f32 0.0, %v6863
      %v6865 = vpop.f32.mrb[0].mxu0
      %6866 = vmatprep.mubr.bf16.mxu0 0
      %6867 = vmatmul.mubr.bf16.gmra.mrb[0].mxu0 %v6815
      %v6868 = vpop.f32.mrb[0].mxu0
      %v6869 = vadd.f32 0.0, %v6868
      %v6870 = vpop.f32.mrb[0].mxu0
      %v6871 = vpop.f32.mrb[0].mxu0
      %v6872 = vadd.f32 0.0, %v6871
      %v6873 = vpop.f32.mrb[0].mxu0
      %6874 = vmatprep.mubr.bf16.mxu0 0
      %6875 = vmatmul.mubr.bf16.gmra.mrb[0].mxu0 %v6818
      %v6876 = vpop.f32.mrb[0].mxu0
      %v6877 = vadd.f32 0.0, %v6876
      %v6878 = vpop.f32.mrb[0].mxu0
      %v6879 = vpop.f32.mrb[0].mxu0
      %v6880 = vadd.f32 0.0, %v6879
      %v6881 = vpop.f32.mrb[0].mxu0
      %6882 = vmatprep.mubr.bf16.mxu0 0
      %6883 = vmatmul.mubr.bf16.gmra.mrb[0].mxu0 %v6821
      %v6884 = vpop.f32.mrb[0].mxu0
      %v6885 = vadd.f32 0.0, %v6884
      %v6886 = vpop.f32.mrb[0].mxu0
      %v6887 = vpop.f32.mrb[0].mxu0
      %v6888 = vadd.f32 0.0, %v6887
      %v6889 = vpop.f32.mrb[0].mxu0
      %6890 = vdwg.mxu0
      %v6891 = vadd.f32 %v6662, %v6861
      %v6892 = vadd.f32 %v6663, %v6864
      %v6893 = vadd.f32 %v6664, %v6869
      %v6894 = vadd.f32 %v6665, %v6872
      %v6895 = vadd.f32 %v6666, %v6877
      %v6896 = vadd.f32 %v6667, %v6880
      %v6897 = vadd.f32 %v6668, %v6885
      %v6898 = vadd.f32 %v6669, %v6888
      %v6899 = vld [vmem:[%s2] sm:$0x1]
      %v6901 = vlaneseq
      %v6902 = vshrl.u32 %v6901, 7
      %v6903 = vsub.s32 0, %v6902
      %v6904 = vrot.slane %v6899, %v6903
      %v6906 = vadd.f32 %v6891, %v6904
      %v6907 = vadd.f32 %v6892, %v6904
      %v6908 = vadd.f32 %v6893, %v6904
      %v6909 = vadd.f32 %v6894, %v6904
      %v6910 = vadd.f32 %v6895, %v6904
      %v6911 = vadd.f32 %v6896, %v6904
      %v6912 = vadd.f32 %v6897, %v6904
      %v6913 = vadd.f32 %v6898, %v6904
      %v6914 = vsub.f32 0.0, %v6906
      %v6915 = vsub.f32 0.0, %v6907
      %v6916 = vsub.f32 0.0, %v6908
      %v6917 = vsub.f32 0.0, %v6909
      %v6918 = vsub.f32 0.0, %v6910
      %v6919 = vsub.f32 0.0, %v6911
      %v6920 = vsub.f32 0.0, %v6912
      %v6921 = vsub.f32 0.0, %v6913
      %v6922 = vmul.f32 %v6914, 1.442695
      %v6923 = vpow.pop %v6922
      %v6924 = vmul.f32 %v6915, 1.442695
      %v6925 = vpow.pop %v6924
      %v6926 = vmul.f32 %v6916, 1.442695
      %v6927 = vpow.pop %v6926
      %v6928 = vmul.f32 %v6917, 1.442695
      %v6929 = vpow.pop %v6928
      %v6930 = vmul.f32 %v6918, 1.442695
      %v6931 = vpow.pop %v6930
      %v6932 = vmul.f32 %v6919, 1.442695
      %v6933 = vpow.pop %v6932
      %v6934 = vmul.f32 %v6920, 1.442695
      %v6935 = vpow.pop %v6934
      %v6936 = vmul.f32 %v6921, 1.442695
      %v6937 = vpow.pop %v6936
      %v6938 = vadd.f32 %v6923, 1.0
      %v6939 = vadd.f32 %v6925, 1.0
      %v6940 = vadd.f32 %v6927, 1.0
      %v6941 = vadd.f32 %v6929, 1.0
      %v6942 = vadd.f32 %v6931, 1.0
      %v6943 = vadd.f32 %v6933, 1.0
      %v6944 = vadd.f32 %v6935, 1.0
      %v6945 = vadd.f32 %v6937, 1.0
      %v6946 = vrcp.pop %v6938
      %v6947 = vmul.f32 1.0, %v6946
      %v6948 = vrcp.pop %v6939
      %v6949 = vmul.f32 1.0, %v6948
      %v6950 = vrcp.pop %v6940
      %v6951 = vmul.f32 1.0, %v6950
      %v6952 = vrcp.pop %v6941
      %v6953 = vmul.f32 1.0, %v6952
      %v6954 = vrcp.pop %v6942
      %v6955 = vmul.f32 1.0, %v6954
      %v6956 = vrcp.pop %v6943
      %v6957 = vmul.f32 1.0, %v6956
      %v6958 = vrcp.pop %v6944
      %v6959 = vmul.f32 1.0, %v6958
      %v6960 = vrcp.pop %v6945
      %v6961 = vmul.f32 1.0, %v6960
      %v6962 = vmul.f32 %v6906, %v6947
      %v6963 = vmul.f32 %v6907, %v6949
      %v6964 = vmul.f32 %v6908, %v6951
      %v6965 = vmul.f32 %v6909, %v6953
      %v6966 = vmul.f32 %v6910, %v6955
      %v6967 = vmul.f32 %v6911, %v6957
      %v6968 = vmul.f32 %v6912, %v6959
      %v6969 = vmul.f32 %v6913, %v6961
      %v6970 = vpack.c.bf16 %v6962, %v6962
      %v6971 = vpack.c.bf16 %v6963, %v6963
      %v6972 = vpack.c.bf16 %v6964, %v6964
      %v6973 = vpack.c.bf16 %v6965, %v6965
      %v6974 = vpack.c.bf16 %v6966, %v6966
      %v6975 = vpack.c.bf16 %v6967, %v6967
      %v6976 = vpack.c.bf16 %v6968, %v6968
      %v6977 = vpack.c.bf16 %v6969, %v6969
      %s6978 = scalar_lea.vmem [#allocation2], 216
      %6979 = vst.msk [vmem:[%s6978] sm:$0xf] %vm280, %v6970
      %6980 = vst.msk [vmem:[%s6978 + $0x8] sm:$0xf] %vm280, %v6971
      %6981 = vst.msk [vmem:[%s6978 + $0x10] sm:$0xf] %vm280, %v6972
      %6982 = vst.msk [vmem:[%s6978 + $0x18] sm:$0xf] %vm280, %v6973
      %6983 = vst.msk [vmem:[%s6978 + $0x20] sm:$0xf] %vm280, %v6974
      %6984 = vst.msk [vmem:[%s6978 + $0x28] sm:$0xf] %vm280, %v6975
      %6985 = vst.msk [vmem:[%s6978 + $0x30] sm:$0xf] %vm280, %v6976
      %6986 = vst.msk [vmem:[%s6978 + $0x38] sm:$0xf] %vm280, %v6977
      %v6987 = vld [vmem:[#allocation2] sm:$0xf]
      %v6988 = vld [vmem:[#allocation2 + $0x8] sm:$0xf]
      %v6989 = vld [vmem:[#allocation2 + $0x10] sm:$0xf]
      %v6990 = vld [vmem:[#allocation2 + $0x18] sm:$0xf]
      %v6991 = vld [vmem:[#allocation2 + $0x20] sm:$0xf]
      %v6992 = vld [vmem:[#allocation2 + $0x28] sm:$0xf]
      %v6993 = vld [vmem:[#allocation2 + $0x30] sm:$0xf]
      %v6994 = vld [vmem:[#allocation2 + $0x38] sm:$0xf]
      %v6995 = vld [vmem:[%s3] sm:$0xf]
      %v6996 = vld [vmem:[%s3 + $0x4] sm:$0xf]
      %v6997 = vld [vmem:[%s3 + $0x8] sm:$0xf]
      %v6998 = vld [vmem:[%s3 + $0xc] sm:$0xf]
      %v6999 = vld [vmem:[%s3718] sm:$0xf]
      %v7000 = vld [vmem:[%s3718 + $0x8] sm:$0xf]
      %v7001 = vld [vmem:[%s3718 + $0x10] sm:$0xf]
      %v7002 = vld [vmem:[%s3718 + $0x18] sm:$0xf]
      %v7003 = vld [vmem:[%s3718 + $0x20] sm:$0xf]
      %v7004 = vld [vmem:[%s3718 + $0x28] sm:$0xf]
      %v7005 = vld [vmem:[%s3718 + $0x30] sm:$0xf]
      %v7006 = vld [vmem:[%s3718 + $0x38] sm:$0xf]
      %s7007 = scalar_lea.vmem %s3, 16
      %v7008 = vld [vmem:[%s7007] sm:$0xf]
      %v7009 = vld [vmem:[%s7007 + $0x4] sm:$0xf]
      %v7010 = vld [vmem:[%s7007 + $0x8] sm:$0xf]
      %v7011 = vld [vmem:[%s7007 + $0xc] sm:$0xf]
      %v7020 = vunpack.c.l.b16 %v6999
      %v7021 = vunpack.c.l.b16 %v7000
      %v7022 = vunpack.c.l.b16 %v7001
      %v7023 = vunpack.c.l.b16 %v7002
      %v7024 = vunpack.c.l.b16 %v7003
      %v7025 = vunpack.c.l.b16 %v7004
      %v7026 = vunpack.c.l.b16 %v7005
      %v7027 = vunpack.c.l.b16 %v7006
      %v7028 = vpack.c.b16 %v7021, %v7020
      %v7029 = vpack.c.b16 %v7023, %v7022
      %v7030 = vpack.c.b16 %v7025, %v7024
      %v7031 = vpack.c.b16 %v7027, %v7026
      %v7036 = vunpack.c.l.b16 %v7008
      %v7037 = vunpack.c.l.b16 %v7009
      %v7038 = vunpack.c.l.b16 %v7010
      %v7039 = vunpack.c.l.b16 %v7011
      %v7040 = vpack.c.b16 %v7037, %v7036
      %v7041 = vpack.c.b16 %v7039, %v7038
      %vm7044 = vcmask 261120
      %v7046 = vsel %vm7044, %v7028, 0
      %v7049 = vsel %vm7044, %v7029, 0
      %v7052 = vsel %vm7044, %v7030, 0
      %v7055 = vsel %vm7044, %v7031, 0
      %7057 = vmatprep.subr.bf16.mxu0 0
      %7058 = vmatpush1.bf16.msra.mxu0 %v7040
      %7059 = vmatprep.subr.bf16.mxu0 0
      %7060 = vmatpush1.bf16.msra.mxu0 %v7041
      %7061 = vmatprep.subr.bf16.mxu0 0
      %7062 = vmatpush1.bf16.msra.mxu0 0
      %7063 = vmatprep.subr.bf16.mxu0 0
      %7064 = vmatpush1.bf16.msra.mxu0 0
      %7065 = vmatprep.subr.bf16.mxu0 0
      %7066 = vmatpush1.bf16.msra.mxu0 0
      %7067 = vmatprep.subr.bf16.mxu0 0
      %7068 = vmatpush1.bf16.msra.mxu0 0
      %7069 = vmatprep.subr.bf16.mxu0 0
      %7070 = vmatpush1.bf16.msra.mxu0 0
      %7071 = vmatprep.subr.bf16.mxu0 0
      %7072 = vmatpush1.bf16.msra.mxu0 0
      %7073 = vmatprep.subr.bf16.mxu0 0
      %7074 = vmatpush1.bf16.msra.mxu0 0
      %7075 = vmatprep.subr.bf16.mxu0 0
      %7076 = vmatpush1.bf16.msra.mxu0 0
      %7077 = vmatprep.subr.bf16.mxu0 0
      %7078 = vmatpush1.bf16.msra.mxu0 0
      %7079 = vmatprep.subr.bf16.mxu0 0
      %7080 = vmatpush1.bf16.msra.mxu0 0
      %7081 = vmatprep.subr.bf16.mxu0 0
      %7082 = vmatpush1.bf16.msra.mxu0 0
      %7083 = vmatprep.subr.bf16.mxu0 0
      %7084 = vmatpush1.bf16.msra.mxu0 0
      %7085 = vmatprep.subr.bf16.mxu0 0
      %7086 = vmatpush1.bf16.msra.mxu0 0
      %7087 = vmatprep.subr.bf16.mxu0 0
      %7088 = vmatpush1.bf16.msra.mxu0 0
      %7089 = vmatprep.mubr.bf16.mxu0 0
      %7090 = vmatmul.mubr.bf16.gmra.mrb[0].mxu0 %v7046
      %v7091 = vpop.f32.mrb[0].mxu0
      %v7092 = vadd.f32 0.0, %v7091
      %v7093 = vpop.f32.mrb[0].mxu0
      %v7094 = vpop.f32.mrb[0].mxu0
      %v7095 = vadd.f32 0.0, %v7094
      %v7096 = vpop.f32.mrb[0].mxu0
      %7097 = vmatprep.mubr.bf16.mxu0 0
      %7098 = vmatmul.mubr.bf16.gmra.mrb[0].mxu0 %v7049
      %v7099 = vpop.f32.mrb[0].mxu0
      %v7100 = vadd.f32 0.0, %v7099
      %v7101 = vpop.f32.mrb[0].mxu0
      %v7102 = vpop.f32.mrb[0].mxu0
      %v7103 = vadd.f32 0.0, %v7102
      %v7104 = vpop.f32.mrb[0].mxu0
      %7105 = vmatprep.mubr.bf16.mxu0 0
      %7106 = vmatmul.mubr.bf16.gmra.mrb[0].mxu0 %v7052
      %v7107 = vpop.f32.mrb[0].mxu0
      %v7108 = vadd.f32 0.0, %v7107
      %v7109 = vpop.f32.mrb[0].mxu0
      %v7110 = vpop.f32.mrb[0].mxu0
      %v7111 = vadd.f32 0.0, %v7110
      %v7112 = vpop.f32.mrb[0].mxu0
      %7113 = vmatprep.mubr.bf16.mxu0 0
      %7114 = vmatmul.mubr.bf16.gmra.mrb[0].mxu0 %v7055
      %v7115 = vpop.f32.mrb[0].mxu0
      %v7116 = vadd.f32 0.0, %v7115
      %v7117 = vpop.f32.mrb[0].mxu0
      %v7118 = vpop.f32.mrb[0].mxu0
      %v7119 = vadd.f32 0.0, %v7118
      %v7120 = vpop.f32.mrb[0].mxu0
      %7121 = vdwg.mxu0
      %v7130 = vunpack.c.l.b16 %v6987
      %v7131 = vunpack.c.l.b16 %v6988
      %v7132 = vunpack.c.l.b16 %v6989
      %v7133 = vunpack.c.l.b16 %v6990
      %v7134 = vunpack.c.l.b16 %v6991
      %v7135 = vunpack.c.l.b16 %v6992
      %v7136 = vunpack.c.l.b16 %v6993
      %v7137 = vunpack.c.l.b16 %v6994
      %v7138 = vpack.c.b16 %v7131, %v7130
      %v7139 = vpack.c.b16 %v7133, %v7132
      %v7140 = vpack.c.b16 %v7135, %v7134
      %v7141 = vpack.c.b16 %v7137, %v7136
      %v7146 = vunpack.c.l.b16 %v6995
      %v7147 = vunpack.c.l.b16 %v6996
      %v7148 = vunpack.c.l.b16 %v6997
      %v7149 = vunpack.c.l.b16 %v6998
      %v7150 = vpack.c.b16 %v7147, %v7146
      %v7151 = vpack.c.b16 %v7149, %v7148
      %v7155 = vsel %vm7044, %v7138, 0
      %v7158 = vsel %vm7044, %v7139, 0
      %v7161 = vsel %vm7044, %v7140, 0
      %v7164 = vsel %vm7044, %v7141, 0
      %7166 = vmatprep.subr.bf16.mxu0 0
      %7167 = vmatpush1.bf16.msra.mxu0 %v7150
      %7168 = vmatprep.subr.bf16.mxu0 0
      %7169 = vmatpush1.bf16.msra.mxu0 %v7151
      %7170 = vmatprep.subr.bf16.mxu0 0
      %7171 = vmatpush1.bf16.msra.mxu0 0
      %7172 = vmatprep.subr.bf16.mxu0 0
      %7173 = vmatpush1.bf16.msra.mxu0 0
      %7174 = vmatprep.subr.bf16.mxu0 0
      %7175 = vmatpush1.bf16.msra.mxu0 0
      %7176 = vmatprep.subr.bf16.mxu0 0
      %7177 = vmatpush1.bf16.msra.mxu0 0
      %7178 = vmatprep.subr.bf16.mxu0 0
      %7179 = vmatpush1.bf16.msra.mxu0 0
      %7180 = vmatprep.subr.bf16.mxu0 0
      %7181 = vmatpush1.bf16.msra.mxu0 0
      %7182 = vmatprep.subr.bf16.mxu0 0
      %7183 = vmatpush1.bf16.msra.mxu0 0
      %7184 = vmatprep.subr.bf16.mxu0 0
      %7185 = vmatpush1.bf16.msra.mxu0 0
      %7186 = vmatprep.subr.bf16.mxu0 0
      %7187 = vmatpush1.bf16.msra.mxu0 0
      %7188 = vmatprep.subr.bf16.mxu0 0
      %7189 = vmatpush1.bf16.msra.mxu0 0
      %7190 = vmatprep.subr.bf16.mxu0 0
      %7191 = vmatpush1.bf16.msra.mxu0 0
      %7192 = vmatprep.subr.bf16.mxu0 0
      %7193 = vmatpush1.bf16.msra.mxu0 0
      %7194 = vmatprep.subr.bf16.mxu0 0
      %7195 = vmatpush1.bf16.msra.mxu0 0
      %7196 = vmatprep.subr.bf16.mxu0 0
      %7197 = vmatpush1.bf16.msra.mxu0 0
      %7198 = vmatprep.mubr.bf16.mxu0 0
      %7199 = vmatmul.mubr.bf16.gmra.mrb[0].mxu0 %v7155
      %v7200 = vpop.f32.mrb[0].mxu0
      %v7201 = vadd.f32 %v7092, %v7200
      %v7202 = vpop.f32.mrb[0].mxu0
      %v7203 = vpop.f32.mrb[0].mxu0
      %v7204 = vadd.f32 %v7095, %v7203
      %v7205 = vpop.f32.mrb[0].mxu0
      %7206 = vmatprep.mubr.bf16.mxu0 0
      %7207 = vmatmul.mubr.bf16.gmra.mrb[0].mxu0 %v7158
      %v7208 = vpop.f32.mrb[0].mxu0
      %v7209 = vadd.f32 %v7100, %v7208
      %v7210 = vpop.f32.mrb[0].mxu0
      %v7211 = vpop.f32.mrb[0].mxu0
      %v7212 = vadd.f32 %v7103, %v7211
      %v7213 = vpop.f32.mrb[0].mxu0
      %7214 = vmatprep.mubr.bf16.mxu0 0
      %7215 = vmatmul.mubr.bf16.gmra.mrb[0].mxu0 %v7161
      %v7216 = vpop.f32.mrb[0].mxu0
      %v7217 = vadd.f32 %v7108, %v7216
      %v7218 = vpop.f32.mrb[0].mxu0
      %v7219 = vpop.f32.mrb[0].mxu0
      %v7220 = vadd.f32 %v7111, %v7219
      %v7221 = vpop.f32.mrb[0].mxu0
      %7222 = vmatprep.mubr.bf16.mxu0 0
      %7223 = vmatmul.mubr.bf16.gmra.mrb[0].mxu0 %v7164
      %v7224 = vpop.f32.mrb[0].mxu0
      %v7225 = vadd.f32 %v7116, %v7224
      %v7226 = vpop.f32.mrb[0].mxu0
      %v7227 = vpop.f32.mrb[0].mxu0
      %v7228 = vadd.f32 %v7119, %v7227
      %v7229 = vpop.f32.mrb[0].mxu0
      %7230 = vdwg.mxu0
      %v7231 = vld [vmem:[#allocation2] sm:$0xf]
      %v7232 = vld [vmem:[#allocation2 + $0x4] sm:$0x1]
      %v7233 = vld [vmem:[#allocation2 + $0x8] sm:$0xf]
      %v7234 = vld [vmem:[#allocation2 + $0xc] sm:$0x1]
      %v7235 = vld [vmem:[#allocation2 + $0x10] sm:$0xf]
      %v7236 = vld [vmem:[#allocation2 + $0x14] sm:$0x1]
      %v7237 = vld [vmem:[#allocation2 + $0x18] sm:$0xf]
      %v7238 = vld [vmem:[#allocation2 + $0x1c] sm:$0x1]
      %v7239 = vld [vmem:[#allocation2 + $0x20] sm:$0xf]
      %v7240 = vld [vmem:[#allocation2 + $0x24] sm:$0x1]
      %v7241 = vld [vmem:[#allocation2 + $0x28] sm:$0xf]
      %v7242 = vld [vmem:[#allocation2 + $0x2c] sm:$0x1]
      %v7243 = vld [vmem:[#allocation2 + $0x30] sm:$0xf]
      %v7244 = vld [vmem:[#allocation2 + $0x34] sm:$0x1]
      %v7245 = vld [vmem:[#allocation2 + $0x38] sm:$0xf]
      %v7246 = vld [vmem:[#allocation2 + $0x3c] sm:$0x1]
      %v7248 = vshrl.u32 %v7231, 16
      %v7250 = vrot.slane %v7248, 4
      %v7251 = vshll.u32 %v7231, 16
      %v7253 = vrot.slane %v7251, 5
      %v7254 = vor.u32 %v7250, %v7253
      %v7255 = vrot.slane %v7254, 4
      %v7257 = vshll.u32 %v7232, 16
      %v7259 = vrot.slane %v7257, 5
      %v7260 = vsel %vm692, %v7255, %v7259
      %v7262 = vshrl.u32 %v7233, 16
      %v7264 = vrot.slane %v7262, 4
      %v7265 = vshll.u32 %v7233, 16
      %v7267 = vrot.slane %v7265, 5
      %v7268 = vor.u32 %v7264, %v7267
      %v7269 = vrot.slane %v7268, 4
      %v7271 = vshll.u32 %v7234, 16
      %v7273 = vrot.slane %v7271, 5
      %v7274 = vsel %vm692, %v7269, %v7273
      %v7276 = vshrl.u32 %v7235, 16
      %v7278 = vrot.slane %v7276, 4
      %v7279 = vshll.u32 %v7235, 16
      %v7281 = vrot.slane %v7279, 5
      %v7282 = vor.u32 %v7278, %v7281
      %v7283 = vrot.slane %v7282, 4
      %v7285 = vshll.u32 %v7236, 16
      %v7287 = vrot.slane %v7285, 5
      %v7288 = vsel %vm692, %v7283, %v7287
      %v7290 = vshrl.u32 %v7237, 16
      %v7292 = vrot.slane %v7290, 4
      %v7293 = vshll.u32 %v7237, 16
      %v7295 = vrot.slane %v7293, 5
      %v7296 = vor.u32 %v7292, %v7295
      %v7297 = vrot.slane %v7296, 4
      %v7299 = vshll.u32 %v7238, 16
      %v7301 = vrot.slane %v7299, 5
      %v7302 = vsel %vm692, %v7297, %v7301
      %v7304 = vshrl.u32 %v7239, 16
      %v7306 = vrot.slane %v7304, 4
      %v7307 = vshll.u32 %v7239, 16
      %v7309 = vrot.slane %v7307, 5
      %v7310 = vor.u32 %v7306, %v7309
      %v7311 = vrot.slane %v7310, 4
      %v7313 = vshll.u32 %v7240, 16
      %v7315 = vrot.slane %v7313, 5
      %v7316 = vsel %vm692, %v7311, %v7315
      %v7318 = vshrl.u32 %v7241, 16
      %v7320 = vrot.slane %v7318, 4
      %v7321 = vshll.u32 %v7241, 16
      %v7323 = vrot.slane %v7321, 5
      %v7324 = vor.u32 %v7320, %v7323
      %v7325 = vrot.slane %v7324, 4
      %v7327 = vshll.u32 %v7242, 16
      %v7329 = vrot.slane %v7327, 5
      %v7330 = vsel %vm692, %v7325, %v7329
      %v7332 = vshrl.u32 %v7243, 16
      %v7334 = vrot.slane %v7332, 4
      %v7335 = vshll.u32 %v7243, 16
      %v7337 = vrot.slane %v7335, 5
      %v7338 = vor.u32 %v7334, %v7337
      %v7339 = vrot.slane %v7338, 4
      %v7341 = vshll.u32 %v7244, 16
      %v7343 = vrot.slane %v7341, 5
      %v7344 = vsel %vm692, %v7339, %v7343
      %v7346 = vshrl.u32 %v7245, 16
      %v7348 = vrot.slane %v7346, 4
      %v7349 = vshll.u32 %v7245, 16
      %v7351 = vrot.slane %v7349, 5
      %v7352 = vor.u32 %v7348, %v7351
      %v7353 = vrot.slane %v7352, 4
      %v7355 = vshll.u32 %v7246, 16
      %v7357 = vrot.slane %v7355, 5
      %v7358 = vsel %vm692, %v7353, %v7357
      %s7359 = scalar_lea.vmem %s3, 32
      %v7360 = vld [vmem:[%s7359] sm:$0xf]
      %v7361 = vld [vmem:[%s7359 + $0x4] sm:$0xf]
      %v7362 = vld [vmem:[%s7359 + $0x8] sm:$0xf]
      %v7363 = vld [vmem:[%s7359 + $0xc] sm:$0xf]
      %v7364 = vunpack.c.l.b16 %v7260
      %v7365 = vunpack.c.l.b16 %v7274
      %v7366 = vunpack.c.l.b16 %v7288
      %v7367 = vunpack.c.l.b16 %v7302
      %v7368 = vunpack.c.l.b16 %v7316
      %v7369 = vunpack.c.l.b16 %v7330
      %v7370 = vunpack.c.l.b16 %v7344
      %v7371 = vunpack.c.l.b16 %v7358
      %v7372 = vpack.c.b16 %v7365, %v7364
      %v7373 = vpack.c.b16 %v7367, %v7366
      %v7374 = vpack.c.b16 %v7369, %v7368
      %v7375 = vpack.c.b16 %v7371, %v7370
      %v7380 = vunpack.c.l.b16 %v7360
      %v7381 = vunpack.c.l.b16 %v7361
      %v7382 = vunpack.c.l.b16 %v7362
      %v7383 = vunpack.c.l.b16 %v7363
      %v7384 = vpack.c.b16 %v7381, %v7380
      %v7385 = vpack.c.b16 %v7383, %v7382
      %v7389 = vsel %vm7044, %v7372, 0
      %v7392 = vsel %vm7044, %v7373, 0
      %v7395 = vsel %vm7044, %v7374, 0
      %v7398 = vsel %vm7044, %v7375, 0
      %7400 = vmatprep.subr.bf16.mxu0 0
      %7401 = vmatpush1.bf16.msra.mxu0 %v7384
      %7402 = vmatprep.subr.bf16.mxu0 0
      %7403 = vmatpush1.bf16.msra.mxu0 %v7385
      %7404 = vmatprep.subr.bf16.mxu0 0
      %7405 = vmatpush1.bf16.msra.mxu0 0
      %7406 = vmatprep.subr.bf16.mxu0 0
      %7407 = vmatpush1.bf16.msra.mxu0 0
      %7408 = vmatprep.subr.bf16.mxu0 0
      %7409 = vmatpush1.bf16.msra.mxu0 0
      %7410 = vmatprep.subr.bf16.mxu0 0
      %7411 = vmatpush1.bf16.msra.mxu0 0
      %7412 = vmatprep.subr.bf16.mxu0 0
      %7413 = vmatpush1.bf16.msra.mxu0 0
      %7414 = vmatprep.subr.bf16.mxu0 0
      %7415 = vmatpush1.bf16.msra.mxu0 0
      %7416 = vmatprep.subr.bf16.mxu0 0
      %7417 = vmatpush1.bf16.msra.mxu0 0
      %7418 = vmatprep.subr.bf16.mxu0 0
      %7419 = vmatpush1.bf16.msra.mxu0 0
      %7420 = vmatprep.subr.bf16.mxu0 0
      %7421 = vmatpush1.bf16.msra.mxu0 0
      %7422 = vmatprep.subr.bf16.mxu0 0
      %7423 = vmatpush1.bf16.msra.mxu0 0
      %7424 = vmatprep.subr.bf16.mxu0 0
      %7425 = vmatpush1.bf16.msra.mxu0 0
      %7426 = vmatprep.subr.bf16.mxu0 0
      %7427 = vmatpush1.bf16.msra.mxu0 0
      %7428 = vmatprep.subr.bf16.mxu0 0
      %7429 = vmatpush1.bf16.msra.mxu0 0
      %7430 = vmatprep.subr.bf16.mxu0 0
      %7431 = vmatpush1.bf16.msra.mxu0 0
      %7432 = vmatprep.mubr.bf16.mxu0 0
      %7433 = vmatmul.mubr.bf16.gmra.mrb[0].mxu0 %v7389
      %v7434 = vpop.f32.mrb[0].mxu0
      %v7435 = vadd.f32 0.0, %v7434
      %v7436 = vpop.f32.mrb[0].mxu0
      %v7437 = vpop.f32.mrb[0].mxu0
      %v7438 = vadd.f32 0.0, %v7437
      %v7439 = vpop.f32.mrb[0].mxu0
      %7440 = vmatprep.mubr.bf16.mxu0 0
      %7441 = vmatmul.mubr.bf16.gmra.mrb[0].mxu0 %v7392
      %v7442 = vpop.f32.mrb[0].mxu0
      %v7443 = vadd.f32 0.0, %v7442
      %v7444 = vpop.f32.mrb[0].mxu0
      %v7445 = vpop.f32.mrb[0].mxu0
      %v7446 = vadd.f32 0.0, %v7445
      %v7447 = vpop.f32.mrb[0].mxu0
      %7448 = vmatprep.mubr.bf16.mxu0 0
      %7449 = vmatmul.mubr.bf16.gmra.mrb[0].mxu0 %v7395
      %v7450 = vpop.f32.mrb[0].mxu0
      %v7451 = vadd.f32 0.0, %v7450
      %v7452 = vpop.f32.mrb[0].mxu0
      %v7453 = vpop.f32.mrb[0].mxu0
      %v7454 = vadd.f32 0.0, %v7453
      %v7455 = vpop.f32.mrb[0].mxu0
      %7456 = vmatprep.mubr.bf16.mxu0 0
      %7457 = vmatmul.mubr.bf16.gmra.mrb[0].mxu0 %v7398
      %v7458 = vpop.f32.mrb[0].mxu0
      %v7459 = vadd.f32 0.0, %v7458
      %v7460 = vpop.f32.mrb[0].mxu0
      %v7461 = vpop.f32.mrb[0].mxu0
      %v7462 = vadd.f32 0.0, %v7461
      %v7463 = vpop.f32.mrb[0].mxu0
      %7464 = vdwg.mxu0
      %v7465 = vadd.f32 %v7201, %v7435
      %v7466 = vadd.f32 %v7204, %v7438
      %v7467 = vadd.f32 %v7209, %v7443
      %v7468 = vadd.f32 %v7212, %v7446
      %v7469 = vadd.f32 %v7217, %v7451
      %v7470 = vadd.f32 %v7220, %v7454
      %v7471 = vadd.f32 %v7225, %v7459
      %v7472 = vadd.f32 %v7228, %v7462
      %v7473 = vld [vmem:[%s5181] sm:$0xf]
      %v7474 = vld [vmem:[%s5181 + $0x8] sm:$0xf]
      %v7475 = vld [vmem:[%s5181 + $0x10] sm:$0xf]
      %v7476 = vld [vmem:[%s5181 + $0x18] sm:$0xf]
      %v7477 = vld [vmem:[%s5181 + $0x20] sm:$0xf]
      %v7478 = vld [vmem:[%s5181 + $0x28] sm:$0xf]
      %v7479 = vld [vmem:[%s5181 + $0x30] sm:$0xf]
      %v7480 = vld [vmem:[%s5181 + $0x38] sm:$0xf]
      %s7481 = scalar_lea.vmem %s3, 48
      %v7482 = vld [vmem:[%s7481] sm:$0xf]
      %v7483 = vld [vmem:[%s7481 + $0x4] sm:$0xf]
      %v7484 = vld [vmem:[%s7481 + $0x8] sm:$0xf]
      %v7485 = vld [vmem:[%s7481 + $0xc] sm:$0xf]
      %v7494 = vunpack.c.l.b16 %v7473
      %v7495 = vunpack.c.l.b16 %v7474
      %v7496 = vunpack.c.l.b16 %v7475
      %v7497 = vunpack.c.l.b16 %v7476
      %v7498 = vunpack.c.l.b16 %v7477
      %v7499 = vunpack.c.l.b16 %v7478
      %v7500 = vunpack.c.l.b16 %v7479
      %v7501 = vunpack.c.l.b16 %v7480
      %v7502 = vpack.c.b16 %v7495, %v7494
      %v7503 = vpack.c.b16 %v7497, %v7496
      %v7504 = vpack.c.b16 %v7499, %v7498
      %v7505 = vpack.c.b16 %v7501, %v7500
      %v7510 = vunpack.c.l.b16 %v7482
      %v7511 = vunpack.c.l.b16 %v7483
      %v7512 = vunpack.c.l.b16 %v7484
      %v7513 = vunpack.c.l.b16 %v7485
      %v7514 = vpack.c.b16 %v7511, %v7510
      %v7515 = vpack.c.b16 %v7513, %v7512
      %v7519 = vsel %vm7044, %v7502, 0
      %v7522 = vsel %vm7044, %v7503, 0
      %v7525 = vsel %vm7044, %v7504, 0
      %v7528 = vsel %vm7044, %v7505, 0
      %7530 = vmatprep.subr.bf16.mxu0 0
      %7531 = vmatpush1.bf16.msra.mxu0 %v7514
      %7532 = vmatprep.subr.bf16.mxu0 0
      %7533 = vmatpush1.bf16.msra.mxu0 %v7515
      %7534 = vmatprep.subr.bf16.mxu0 0
      %7535 = vmatpush1.bf16.msra.mxu0 0
      %7536 = vmatprep.subr.bf16.mxu0 0
      %7537 = vmatpush1.bf16.msra.mxu0 0
      %7538 = vmatprep.subr.bf16.mxu0 0
      %7539 = vmatpush1.bf16.msra.mxu0 0
      %7540 = vmatprep.subr.bf16.mxu0 0
      %7541 = vmatpush1.bf16.msra.mxu0 0
      %7542 = vmatprep.subr.bf16.mxu0 0
      %7543 = vmatpush1.bf16.msra.mxu0 0
      %7544 = vmatprep.subr.bf16.mxu0 0
      %7545 = vmatpush1.bf16.msra.mxu0 0
      %7546 = vmatprep.subr.bf16.mxu0 0
      %7547 = vmatpush1.bf16.msra.mxu0 0
      %7548 = vmatprep.subr.bf16.mxu0 0
      %7549 = vmatpush1.bf16.msra.mxu0 0
      %7550 = vmatprep.subr.bf16.mxu0 0
      %7551 = vmatpush1.bf16.msra.mxu0 0
      %7552 = vmatprep.subr.bf16.mxu0 0
      %7553 = vmatpush1.bf16.msra.mxu0 0
      %7554 = vmatprep.subr.bf16.mxu0 0
      %7555 = vmatpush1.bf16.msra.mxu0 0
      %7556 = vmatprep.subr.bf16.mxu0 0
      %7557 = vmatpush1.bf16.msra.mxu0 0
      %7558 = vmatprep.subr.bf16.mxu0 0
      %7559 = vmatpush1.bf16.msra.mxu0 0
      %7560 = vmatprep.subr.bf16.mxu0 0
      %7561 = vmatpush1.bf16.msra.mxu0 0
      %7562 = vmatprep.mubr.bf16.mxu0 0
      %7563 = vmatmul.mubr.bf16.gmra.mrb[0].mxu0 %v7519
      %v7564 = vpop.f32.mrb[0].mxu0
      %v7565 = vadd.f32 0.0, %v7564
      %v7566 = vpop.f32.mrb[0].mxu0
      %v7567 = vpop.f32.mrb[0].mxu0
      %v7568 = vadd.f32 0.0, %v7567
      %v7569 = vpop.f32.mrb[0].mxu0
      %7570 = vmatprep.mubr.bf16.mxu0 0
      %7571 = vmatmul.mubr.bf16.gmra.mrb[0].mxu0 %v7522
      %v7572 = vpop.f32.mrb[0].mxu0
      %v7573 = vadd.f32 0.0, %v7572
      %v7574 = vpop.f32.mrb[0].mxu0
      %v7575 = vpop.f32.mrb[0].mxu0
      %v7576 = vadd.f32 0.0, %v7575
      %v7577 = vpop.f32.mrb[0].mxu0
      %7578 = vmatprep.mubr.bf16.mxu0 0
      %7579 = vmatmul.mubr.bf16.gmra.mrb[0].mxu0 %v7525
      %v7580 = vpop.f32.mrb[0].mxu0
      %v7581 = vadd.f32 0.0, %v7580
      %v7582 = vpop.f32.mrb[0].mxu0
      %v7583 = vpop.f32.mrb[0].mxu0
      %v7584 = vadd.f32 0.0, %v7583
      %v7585 = vpop.f32.mrb[0].mxu0
      %7586 = vmatprep.mubr.bf16.mxu0 0
      %7587 = vmatmul.mubr.bf16.gmra.mrb[0].mxu0 %v7528
      %v7588 = vpop.f32.mrb[0].mxu0
      %v7589 = vadd.f32 0.0, %v7588
      %v7590 = vpop.f32.mrb[0].mxu0
      %v7591 = vpop.f32.mrb[0].mxu0
      %v7592 = vadd.f32 0.0, %v7591
      %v7593 = vpop.f32.mrb[0].mxu0
      %7594 = vdwg.mxu0
      %v7595 = vadd.f32 %v7465, %v7565
      %v7596 = vadd.f32 %v7466, %v7568
      %v7597 = vadd.f32 %v7467, %v7573
      %v7598 = vadd.f32 %v7468, %v7576
      %v7599 = vadd.f32 %v7469, %v7581
      %v7600 = vadd.f32 %v7470, %v7584
      %v7601 = vadd.f32 %v7471, %v7589
      %v7602 = vadd.f32 %v7472, %v7592
      %v7603 = vld [vmem:[%s6978] sm:$0xf]
      %v7604 = vld [vmem:[%s6978 + $0x8] sm:$0xf]
      %v7605 = vld [vmem:[%s6978 + $0x10] sm:$0xf]
      %v7606 = vld [vmem:[%s6978 + $0x18] sm:$0xf]
      %v7607 = vld [vmem:[%s6978 + $0x20] sm:$0xf]
      %v7608 = vld [vmem:[%s6978 + $0x28] sm:$0xf]
      %v7609 = vld [vmem:[%s6978 + $0x30] sm:$0xf]
      %v7610 = vld [vmem:[%s6978 + $0x38] sm:$0xf]
      %s7611 = scalar_lea.vmem %s3, 64
      %v7612 = vld [vmem:[%s7611] sm:$0xf]
      %v7613 = vld [vmem:[%s7611 + $0x4] sm:$0xf]
      %v7614 = vld [vmem:[%s7611 + $0x8] sm:$0xf]
      %v7615 = vld [vmem:[%s7611 + $0xc] sm:$0xf]
      %v7624 = vunpack.c.l.b16 %v7603
      %v7625 = vunpack.c.l.b16 %v7604
      %v7626 = vunpack.c.l.b16 %v7605
      %v7627 = vunpack.c.l.b16 %v7606
      %v7628 = vunpack.c.l.b16 %v7607
      %v7629 = vunpack.c.l.b16 %v7608
      %v7630 = vunpack.c.l.b16 %v7609
      %v7631 = vunpack.c.l.b16 %v7610
      %v7632 = vpack.c.b16 %v7625, %v7624
      %v7633 = vpack.c.b16 %v7627, %v7626
      %v7634 = vpack.c.b16 %v7629, %v7628
      %v7635 = vpack.c.b16 %v7631, %v7630
      %v7640 = vunpack.c.l.b16 %v7612
      %v7641 = vunpack.c.l.b16 %v7613
      %v7642 = vunpack.c.l.b16 %v7614
      %v7643 = vunpack.c.l.b16 %v7615
      %v7644 = vpack.c.b16 %v7641, %v7640
      %v7645 = vpack.c.b16 %v7643, %v7642
      %v7649 = vsel %vm7044, %v7632, 0
      %v7652 = vsel %vm7044, %v7633, 0
      %v7655 = vsel %vm7044, %v7634, 0
      %v7658 = vsel %vm7044, %v7635, 0
      %7660 = vmatprep.subr.bf16.mxu0 0
      %7661 = vmatpush1.bf16.msra.mxu0 %v7644
      %7662 = vmatprep.subr.bf16.mxu0 0
      %7663 = vmatpush1.bf16.msra.mxu0 %v7645
      %7664 = vmatprep.subr.bf16.mxu0 0
      %7665 = vmatpush1.bf16.msra.mxu0 0
      %7666 = vmatprep.subr.bf16.mxu0 0
      %7667 = vmatpush1.bf16.msra.mxu0 0
      %7668 = vmatprep.subr.bf16.mxu0 0
      %7669 = vmatpush1.bf16.msra.mxu0 0
      %7670 = vmatprep.subr.bf16.mxu0 0
      %7671 = vmatpush1.bf16.msra.mxu0 0
      %7672 = vmatprep.subr.bf16.mxu0 0
      %7673 = vmatpush1.bf16.msra.mxu0 0
      %7674 = vmatprep.subr.bf16.mxu0 0
      %7675 = vmatpush1.bf16.msra.mxu0 0
      %7676 = vmatprep.subr.bf16.mxu0 0
      %7677 = vmatpush1.bf16.msra.mxu0 0
      %7678 = vmatprep.subr.bf16.mxu0 0
      %7679 = vmatpush1.bf16.msra.mxu0 0
      %7680 = vmatprep.subr.bf16.mxu0 0
      %7681 = vmatpush1.bf16.msra.mxu0 0
      %7682 = vmatprep.subr.bf16.mxu0 0
      %7683 = vmatpush1.bf16.msra.mxu0 0
      %7684 = vmatprep.subr.bf16.mxu0 0
      %7685 = vmatpush1.bf16.msra.mxu0 0
      %7686 = vmatprep.subr.bf16.mxu0 0
      %7687 = vmatpush1.bf16.msra.mxu0 0
      %7688 = vmatprep.subr.bf16.mxu0 0
      %7689 = vmatpush1.bf16.msra.mxu0 0
      %7690 = vmatprep.subr.bf16.mxu0 0
      %7691 = vmatpush1.bf16.msra.mxu0 0
      %7692 = vmatprep.mubr.bf16.mxu0 0
      %7693 = vmatmul.mubr.bf16.gmra.mrb[0].mxu0 %v7649
      %v7694 = vpop.f32.mrb[0].mxu0
      %v7695 = vadd.f32 0.0, %v7694
      %v7696 = vpop.f32.mrb[0].mxu0
      %v7697 = vpop.f32.mrb[0].mxu0
      %v7698 = vadd.f32 0.0, %v7697
      %v7699 = vpop.f32.mrb[0].mxu0
      %7700 = vmatprep.mubr.bf16.mxu0 0
      %7701 = vmatmul.mubr.bf16.gmra.mrb[0].mxu0 %v7652
      %v7702 = vpop.f32.mrb[0].mxu0
      %v7703 = vadd.f32 0.0, %v7702
      %v7704 = vpop.f32.mrb[0].mxu0
      %v7705 = vpop.f32.mrb[0].mxu0
      %v7706 = vadd.f32 0.0, %v7705
      %v7707 = vpop.f32.mrb[0].mxu0
      %7708 = vmatprep.mubr.bf16.mxu0 0
      %7709 = vmatmul.mubr.bf16.gmra.mrb[0].mxu0 %v7655
      %v7710 = vpop.f32.mrb[0].mxu0
      %v7711 = vadd.f32 0.0, %v7710
      %v7712 = vpop.f32.mrb[0].mxu0
      %v7713 = vpop.f32.mrb[0].mxu0
      %v7714 = vadd.f32 0.0, %v7713
      %v7715 = vpop.f32.mrb[0].mxu0
      %7716 = vmatprep.mubr.bf16.mxu0 0
      %7717 = vmatmul.mubr.bf16.gmra.mrb[0].mxu0 %v7658
      %v7718 = vpop.f32.mrb[0].mxu0
      %v7719 = vadd.f32 0.0, %v7718
      %v7720 = vpop.f32.mrb[0].mxu0
      %v7721 = vpop.f32.mrb[0].mxu0
      %v7722 = vadd.f32 0.0, %v7721
      %v7723 = vpop.f32.mrb[0].mxu0
      %7724 = vdwg.mxu0
      %v7725 = vadd.f32 %v7595, %v7695
      %v7726 = vadd.f32 %v7596, %v7698
      %v7727 = vadd.f32 %v7597, %v7703
      %v7728 = vadd.f32 %v7598, %v7706
      %v7729 = vadd.f32 %v7599, %v7711
      %v7730 = vadd.f32 %v7600, %v7714
      %v7731 = vadd.f32 %v7601, %v7719
      %v7732 = vadd.f32 %v7602, %v7722
      %v7733 = vld [vmem:[%s5181] sm:$0xf]
      %v7734 = vld [vmem:[%s5181 + $0x4] sm:$0x1]
      %v7735 = vld [vmem:[%s5181 + $0x8] sm:$0xf]
      %v7736 = vld [vmem:[%s5181 + $0xc] sm:$0x1]
      %v7737 = vld [vmem:[%s5181 + $0x10] sm:$0xf]
      %v7738 = vld [vmem:[%s5181 + $0x14] sm:$0x1]
      %v7739 = vld [vmem:[%s5181 + $0x18] sm:$0xf]
      %v7740 = vld [vmem:[%s5181 + $0x1c] sm:$0x1]
      %v7741 = vld [vmem:[%s5181 + $0x20] sm:$0xf]
      %v7742 = vld [vmem:[%s5181 + $0x24] sm:$0x1]
      %v7743 = vld [vmem:[%s5181 + $0x28] sm:$0xf]
      %v7744 = vld [vmem:[%s5181 + $0x2c] sm:$0x1]
      %v7745 = vld [vmem:[%s5181 + $0x30] sm:$0xf]
      %v7746 = vld [vmem:[%s5181 + $0x34] sm:$0x1]
      %v7747 = vld [vmem:[%s5181 + $0x38] sm:$0xf]
      %v7748 = vld [vmem:[%s5181 + $0x3c] sm:$0x1]
      %v7750 = vshrl.u32 %v7733, 16
      %v7752 = vrot.slane %v7750, 4
      %v7753 = vshll.u32 %v7733, 16
      %v7755 = vrot.slane %v7753, 5
      %v7756 = vor.u32 %v7752, %v7755
      %v7757 = vrot.slane %v7756, 4
      %v7759 = vshll.u32 %v7734, 16
      %v7761 = vrot.slane %v7759, 5
      %v7762 = vsel %vm692, %v7757, %v7761
      %v7764 = vshrl.u32 %v7735, 16
      %v7766 = vrot.slane %v7764, 4
      %v7767 = vshll.u32 %v7735, 16
      %v7769 = vrot.slane %v7767, 5
      %v7770 = vor.u32 %v7766, %v7769
      %v7771 = vrot.slane %v7770, 4
      %v7773 = vshll.u32 %v7736, 16
      %v7775 = vrot.slane %v7773, 5
      %v7776 = vsel %vm692, %v7771, %v7775
      %v7778 = vshrl.u32 %v7737, 16
      %v7780 = vrot.slane %v7778, 4
      %v7781 = vshll.u32 %v7737, 16
      %v7783 = vrot.slane %v7781, 5
      %v7784 = vor.u32 %v7780, %v7783
      %v7785 = vrot.slane %v7784, 4
      %v7787 = vshll.u32 %v7738, 16
      %v7789 = vrot.slane %v7787, 5
      %v7790 = vsel %vm692, %v7785, %v7789
      %v7792 = vshrl.u32 %v7739, 16
      %v7794 = vrot.slane %v7792, 4
      %v7795 = vshll.u32 %v7739, 16
      %v7797 = vrot.slane %v7795, 5
      %v7798 = vor.u32 %v7794, %v7797
      %v7799 = vrot.slane %v7798, 4
      %v7801 = vshll.u32 %v7740, 16
      %v7803 = vrot.slane %v7801, 5
      %v7804 = vsel %vm692, %v7799, %v7803
      %v7806 = vshrl.u32 %v7741, 16
      %v7808 = vrot.slane %v7806, 4
      %v7809 = vshll.u32 %v7741, 16
      %v7811 = vrot.slane %v7809, 5
      %v7812 = vor.u32 %v7808, %v7811
      %v7813 = vrot.slane %v7812, 4
      %v7815 = vshll.u32 %v7742, 16
      %v7817 = vrot.slane %v7815, 5
      %v7818 = vsel %vm692, %v7813, %v7817
      %v7820 = vshrl.u32 %v7743, 16
      %v7822 = vrot.slane %v7820, 4
      %v7823 = vshll.u32 %v7743, 16
      %v7825 = vrot.slane %v7823, 5
      %v7826 = vor.u32 %v7822, %v7825
      %v7827 = vrot.slane %v7826, 4
      %v7829 = vshll.u32 %v7744, 16
      %v7831 = vrot.slane %v7829, 5
      %v7832 = vsel %vm692, %v7827, %v7831
      %v7834 = vshrl.u32 %v7745, 16
      %v7836 = vrot.slane %v7834, 4
      %v7837 = vshll.u32 %v7745, 16
      %v7839 = vrot.slane %v7837, 5
      %v7840 = vor.u32 %v7836, %v7839
      %v7841 = vrot.slane %v7840, 4
      %v7843 = vshll.u32 %v7746, 16
      %v7845 = vrot.slane %v7843, 5
      %v7846 = vsel %vm692, %v7841, %v7845
      %v7848 = vshrl.u32 %v7747, 16
      %v7850 = vrot.slane %v7848, 4
      %v7851 = vshll.u32 %v7747, 16
      %v7853 = vrot.slane %v7851, 5
      %v7854 = vor.u32 %v7850, %v7853
      %v7855 = vrot.slane %v7854, 4
      %v7857 = vshll.u32 %v7748, 16
      %v7859 = vrot.slane %v7857, 5
      %v7860 = vsel %vm692, %v7855, %v7859
      %s7861 = scalar_lea.vmem %s3, 80
      %v7862 = vld [vmem:[%s7861] sm:$0xf]
      %v7863 = vld [vmem:[%s7861 + $0x4] sm:$0xf]
      %v7864 = vld [vmem:[%s7861 + $0x8] sm:$0xf]
      %v7865 = vld [vmem:[%s7861 + $0xc] sm:$0xf]
      %v7866 = vunpack.c.l.b16 %v7762
      %v7867 = vunpack.c.l.b16 %v7776
      %v7868 = vunpack.c.l.b16 %v7790
      %v7869 = vunpack.c.l.b16 %v7804
      %v7870 = vunpack.c.l.b16 %v7818
      %v7871 = vunpack.c.l.b16 %v7832
      %v7872 = vunpack.c.l.b16 %v7846
      %v7873 = vunpack.c.l.b16 %v7860
      %v7874 = vpack.c.b16 %v7867, %v7866
      %v7875 = vpack.c.b16 %v7869, %v7868
      %v7876 = vpack.c.b16 %v7871, %v7870
      %v7877 = vpack.c.b16 %v7873, %v7872
      %v7882 = vunpack.c.l.b16 %v7862
      %v7883 = vunpack.c.l.b16 %v7863
      %v7884 = vunpack.c.l.b16 %v7864
      %v7885 = vunpack.c.l.b16 %v7865
      %v7886 = vpack.c.b16 %v7883, %v7882
      %v7887 = vpack.c.b16 %v7885, %v7884
      %v7891 = vsel %vm7044, %v7874, 0
      %v7894 = vsel %vm7044, %v7875, 0
      %v7897 = vsel %vm7044, %v7876, 0
      %v7900 = vsel %vm7044, %v7877, 0
      %7902 = vmatprep.subr.bf16.mxu0 0
      %7903 = vmatpush1.bf16.msra.mxu0 %v7886
      %7904 = vmatprep.subr.bf16.mxu0 0
      %7905 = vmatpush1.bf16.msra.mxu0 %v7887
      %7906 = vmatprep.subr.bf16.mxu0 0
      %7907 = vmatpush1.bf16.msra.mxu0 0
      %7908 = vmatprep.subr.bf16.mxu0 0
      %7909 = vmatpush1.bf16.msra.mxu0 0
      %7910 = vmatprep.subr.bf16.mxu0 0
      %7911 = vmatpush1.bf16.msra.mxu0 0
      %7912 = vmatprep.subr.bf16.mxu0 0
      %7913 = vmatpush1.bf16.msra.mxu0 0
      %7914 = vmatprep.subr.bf16.mxu0 0
      %7915 = vmatpush1.bf16.msra.mxu0 0
      %7916 = vmatprep.subr.bf16.mxu0 0
      %7917 = vmatpush1.bf16.msra.mxu0 0
      %7918 = vmatprep.subr.bf16.mxu0 0
      %7919 = vmatpush1.bf16.msra.mxu0 0
      %7920 = vmatprep.subr.bf16.mxu0 0
      %7921 = vmatpush1.bf16.msra.mxu0 0
      %7922 = vmatprep.subr.bf16.mxu0 0
      %7923 = vmatpush1.bf16.msra.mxu0 0
      %7924 = vmatprep.subr.bf16.mxu0 0
      %7925 = vmatpush1.bf16.msra.mxu0 0
      %7926 = vmatprep.subr.bf16.mxu0 0
      %7927 = vmatpush1.bf16.msra.mxu0 0
      %7928 = vmatprep.subr.bf16.mxu0 0
      %7929 = vmatpush1.bf16.msra.mxu0 0
      %7930 = vmatprep.subr.bf16.mxu0 0
      %7931 = vmatpush1.bf16.msra.mxu0 0
      %7932 = vmatprep.subr.bf16.mxu0 0
      %7933 = vmatpush1.bf16.msra.mxu0 0
      %7934 = vmatprep.mubr.bf16.mxu0 0
      %7935 = vmatmul.mubr.bf16.gmra.mrb[0].mxu0 %v7891
      %v7936 = vpop.f32.mrb[0].mxu0
      %v7937 = vadd.f32 0.0, %v7936
      %v7938 = vpop.f32.mrb[0].mxu0
      %v7939 = vpop.f32.mrb[0].mxu0
      %v7940 = vadd.f32 0.0, %v7939
      %v7941 = vpop.f32.mrb[0].mxu0
      %7942 = vmatprep.mubr.bf16.mxu0 0
      %7943 = vmatmul.mubr.bf16.gmra.mrb[0].mxu0 %v7894
      %v7944 = vpop.f32.mrb[0].mxu0
      %v7945 = vadd.f32 0.0, %v7944
      %v7946 = vpop.f32.mrb[0].mxu0
      %v7947 = vpop.f32.mrb[0].mxu0
      %v7948 = vadd.f32 0.0, %v7947
      %v7949 = vpop.f32.mrb[0].mxu0
      %7950 = vmatprep.mubr.bf16.mxu0 0
      %7951 = vmatmul.mubr.bf16.gmra.mrb[0].mxu0 %v7897
      %v7952 = vpop.f32.mrb[0].mxu0
      %v7953 = vadd.f32 0.0, %v7952
      %v7954 = vpop.f32.mrb[0].mxu0
      %v7955 = vpop.f32.mrb[0].mxu0
      %v7956 = vadd.f32 0.0, %v7955
      %v7957 = vpop.f32.mrb[0].mxu0
      %7958 = vmatprep.mubr.bf16.mxu0 0
      %7959 = vmatmul.mubr.bf16.gmra.mrb[0].mxu0 %v7900
      %v7960 = vpop.f32.mrb[0].mxu0
      %v7961 = vadd.f32 0.0, %v7960
      %v7962 = vpop.f32.mrb[0].mxu0
      %v7963 = vpop.f32.mrb[0].mxu0
      %v7964 = vadd.f32 0.0, %v7963
      %v7965 = vpop.f32.mrb[0].mxu0
      %7966 = vdwg.mxu0
      %v7967 = vadd.f32 %v7725, %v7937
      %v7968 = vadd.f32 %v7726, %v7940
      %v7969 = vadd.f32 %v7727, %v7945
      %v7970 = vadd.f32 %v7728, %v7948
      %v7971 = vadd.f32 %v7729, %v7953
      %v7972 = vadd.f32 %v7730, %v7956
      %v7973 = vadd.f32 %v7731, %v7961
      %v7974 = vadd.f32 %v7732, %v7964
      %s7975 = scalar_lea.vmem [#allocation2], 8
      %v7976 = vld [vmem:[%s7975] sm:$0xf]
      %v7977 = vld [vmem:[%s7975 + $0x8] sm:$0xf]
      %v7978 = vld [vmem:[%s7975 + $0x10] sm:$0xf]
      %v7979 = vld [vmem:[%s7975 + $0x18] sm:$0xf]
      %v7980 = vld [vmem:[%s7975 + $0x20] sm:$0xf]
      %v7981 = vld [vmem:[%s7975 + $0x28] sm:$0xf]
      %v7982 = vld [vmem:[%s7975 + $0x30] sm:$0xf]
      %v7983 = vld [vmem:[%s7975 + $0x38] sm:$0xf]
      %s7984 = scalar_lea.vmem %s3, 96
      %v7985 = vld [vmem:[%s7984] sm:$0xf]
      %v7986 = vld [vmem:[%s7984 + $0x4] sm:$0xf]
      %v7987 = vld [vmem:[%s7984 + $0x8] sm:$0xf]
      %v7988 = vld [vmem:[%s7984 + $0xc] sm:$0xf]
      %v7997 = vunpack.c.l.b16 %v7976
      %v7998 = vunpack.c.l.b16 %v7977
      %v7999 = vunpack.c.l.b16 %v7978
      %v8000 = vunpack.c.l.b16 %v7979
      %v8001 = vunpack.c.l.b16 %v7980
      %v8002 = vunpack.c.l.b16 %v7981
      %v8003 = vunpack.c.l.b16 %v7982
      %v8004 = vunpack.c.l.b16 %v7983
      %v8005 = vpack.c.b16 %v7998, %v7997
      %v8006 = vpack.c.b16 %v8000, %v7999
      %v8007 = vpack.c.b16 %v8002, %v8001
      %v8008 = vpack.c.b16 %v8004, %v8003
      %v8013 = vunpack.c.l.b16 %v7985
      %v8014 = vunpack.c.l.b16 %v7986
      %v8015 = vunpack.c.l.b16 %v7987
      %v8016 = vunpack.c.l.b16 %v7988
      %v8017 = vpack.c.b16 %v8014, %v8013
      %v8018 = vpack.c.b16 %v8016, %v8015
      %v8022 = vsel %vm7044, %v8005, 0
      %v8025 = vsel %vm7044, %v8006, 0
      %v8028 = vsel %vm7044, %v8007, 0
      %v8031 = vsel %vm7044, %v8008, 0
      %8033 = vmatprep.subr.bf16.mxu0 0
      %8034 = vmatpush1.bf16.msra.mxu0 %v8017
      %8035 = vmatprep.subr.bf16.mxu0 0
      %8036 = vmatpush1.bf16.msra.mxu0 %v8018
      %8037 = vmatprep.subr.bf16.mxu0 0
      %8038 = vmatpush1.bf16.msra.mxu0 0
      %8039 = vmatprep.subr.bf16.mxu0 0
      %8040 = vmatpush1.bf16.msra.mxu0 0
      %8041 = vmatprep.subr.bf16.mxu0 0
      %8042 = vmatpush1.bf16.msra.mxu0 0
      %8043 = vmatprep.subr.bf16.mxu0 0
      %8044 = vmatpush1.bf16.msra.mxu0 0
      %8045 = vmatprep.subr.bf16.mxu0 0
      %8046 = vmatpush1.bf16.msra.mxu0 0
      %8047 = vmatprep.subr.bf16.mxu0 0
      %8048 = vmatpush1.bf16.msra.mxu0 0
      %8049 = vmatprep.subr.bf16.mxu0 0
      %8050 = vmatpush1.bf16.msra.mxu0 0
      %8051 = vmatprep.subr.bf16.mxu0 0
      %8052 = vmatpush1.bf16.msra.mxu0 0
      %8053 = vmatprep.subr.bf16.mxu0 0
      %8054 = vmatpush1.bf16.msra.mxu0 0
      %8055 = vmatprep.subr.bf16.mxu0 0
      %8056 = vmatpush1.bf16.msra.mxu0 0
      %8057 = vmatprep.subr.bf16.mxu0 0
      %8058 = vmatpush1.bf16.msra.mxu0 0
      %8059 = vmatprep.subr.bf16.mxu0 0
      %8060 = vmatpush1.bf16.msra.mxu0 0
      %8061 = vmatprep.subr.bf16.mxu0 0
      %8062 = vmatpush1.bf16.msra.mxu0 0
      %8063 = vmatprep.subr.bf16.mxu0 0
      %8064 = vmatpush1.bf16.msra.mxu0 0
      %8065 = vmatprep.mubr.bf16.mxu0 0
      %8066 = vmatmul.mubr.bf16.gmra.mrb[0].mxu0 %v8022
      %v8067 = vpop.f32.mrb[0].mxu0
      %v8068 = vadd.f32 0.0, %v8067
      %v8069 = vpop.f32.mrb[0].mxu0
      %v8070 = vpop.f32.mrb[0].mxu0
      %v8071 = vadd.f32 0.0, %v8070
      %v8072 = vpop.f32.mrb[0].mxu0
      %8073 = vmatprep.mubr.bf16.mxu0 0
      %8074 = vmatmul.mubr.bf16.gmra.mrb[0].mxu0 %v8025
      %v8075 = vpop.f32.mrb[0].mxu0
      %v8076 = vadd.f32 0.0, %v8075
      %v8077 = vpop.f32.mrb[0].mxu0
      %v8078 = vpop.f32.mrb[0].mxu0
      %v8079 = vadd.f32 0.0, %v8078
      %v8080 = vpop.f32.mrb[0].mxu0
      %8081 = vmatprep.mubr.bf16.mxu0 0
      %8082 = vmatmul.mubr.bf16.gmra.mrb[0].mxu0 %v8028
      %v8083 = vpop.f32.mrb[0].mxu0
      %v8084 = vadd.f32 0.0, %v8083
      %v8085 = vpop.f32.mrb[0].mxu0
      %v8086 = vpop.f32.mrb[0].mxu0
      %v8087 = vadd.f32 0.0, %v8086
      %v8088 = vpop.f32.mrb[0].mxu0
      %8089 = vmatprep.mubr.bf16.mxu0 0
      %8090 = vmatmul.mubr.bf16.gmra.mrb[0].mxu0 %v8031
      %v8091 = vpop.f32.mrb[0].mxu0
      %v8092 = vadd.f32 0.0, %v8091
      %v8093 = vpop.f32.mrb[0].mxu0
      %v8094 = vpop.f32.mrb[0].mxu0
      %v8095 = vadd.f32 0.0, %v8094
      %v8096 = vpop.f32.mrb[0].mxu0
      %8097 = vdwg.mxu0
      %v8098 = vadd.f32 %v7967, %v8068
      %v8099 = vadd.f32 %v7968, %v8071
      %v8100 = vadd.f32 %v7969, %v8076
      %v8101 = vadd.f32 %v7970, %v8079
      %v8102 = vadd.f32 %v7971, %v8084
      %v8103 = vadd.f32 %v7972, %v8087
      %v8104 = vadd.f32 %v7973, %v8092
      %v8105 = vadd.f32 %v7974, %v8095
      %s8106 = scalar_lea.vmem [#allocation2], 80
      %v8107 = vld [vmem:[%s8106] sm:$0xf]
      %v8108 = vld [vmem:[%s8106 + $0x8] sm:$0xf]
      %v8109 = vld [vmem:[%s8106 + $0x10] sm:$0xf]
      %v8110 = vld [vmem:[%s8106 + $0x18] sm:$0xf]
      %v8111 = vld [vmem:[%s8106 + $0x20] sm:$0xf]
      %v8112 = vld [vmem:[%s8106 + $0x28] sm:$0xf]
      %v8113 = vld [vmem:[%s8106 + $0x30] sm:$0xf]
      %v8114 = vld [vmem:[%s8106 + $0x38] sm:$0xf]
      %s8115 = scalar_lea.vmem %s3, 112
      %v8116 = vld [vmem:[%s8115] sm:$0xf]
      %v8117 = vld [vmem:[%s8115 + $0x4] sm:$0xf]
      %v8118 = vld [vmem:[%s8115 + $0x8] sm:$0xf]
      %v8119 = vld [vmem:[%s8115 + $0xc] sm:$0xf]
      %v8128 = vunpack.c.l.b16 %v8107
      %v8129 = vunpack.c.l.b16 %v8108
      %v8130 = vunpack.c.l.b16 %v8109
      %v8131 = vunpack.c.l.b16 %v8110
      %v8132 = vunpack.c.l.b16 %v8111
      %v8133 = vunpack.c.l.b16 %v8112
      %v8134 = vunpack.c.l.b16 %v8113
      %v8135 = vunpack.c.l.b16 %v8114
      %v8136 = vpack.c.b16 %v8129, %v8128
      %v8137 = vpack.c.b16 %v8131, %v8130
      %v8138 = vpack.c.b16 %v8133, %v8132
      %v8139 = vpack.c.b16 %v8135, %v8134
      %v8144 = vunpack.c.l.b16 %v8116
      %v8145 = vunpack.c.l.b16 %v8117
      %v8146 = vunpack.c.l.b16 %v8118
      %v8147 = vunpack.c.l.b16 %v8119
      %v8148 = vpack.c.b16 %v8145, %v8144
      %v8149 = vpack.c.b16 %v8147, %v8146
      %v8153 = vsel %vm7044, %v8136, 0
      %v8156 = vsel %vm7044, %v8137, 0
      %v8159 = vsel %vm7044, %v8138, 0
      %v8162 = vsel %vm7044, %v8139, 0
      %8164 = vmatprep.subr.bf16.mxu0 0
      %8165 = vmatpush1.bf16.msra.mxu0 %v8148
      %8166 = vmatprep.subr.bf16.mxu0 0
      %8167 = vmatpush1.bf16.msra.mxu0 %v8149
      %8168 = vmatprep.subr.bf16.mxu0 0
      %8169 = vmatpush1.bf16.msra.mxu0 0
      %8170 = vmatprep.subr.bf16.mxu0 0
      %8171 = vmatpush1.bf16.msra.mxu0 0
      %8172 = vmatprep.subr.bf16.mxu0 0
      %8173 = vmatpush1.bf16.msra.mxu0 0
      %8174 = vmatprep.subr.bf16.mxu0 0
      %8175 = vmatpush1.bf16.msra.mxu0 0
      %8176 = vmatprep.subr.bf16.mxu0 0
      %8177 = vmatpush1.bf16.msra.mxu0 0
      %8178 = vmatprep.subr.bf16.mxu0 0
      %8179 = vmatpush1.bf16.msra.mxu0 0
      %8180 = vmatprep.subr.bf16.mxu0 0
      %8181 = vmatpush1.bf16.msra.mxu0 0
      %8182 = vmatprep.subr.bf16.mxu0 0
      %8183 = vmatpush1.bf16.msra.mxu0 0
      %8184 = vmatprep.subr.bf16.mxu0 0
      %8185 = vmatpush1.bf16.msra.mxu0 0
      %8186 = vmatprep.subr.bf16.mxu0 0
      %8187 = vmatpush1.bf16.msra.mxu0 0
      %8188 = vmatprep.subr.bf16.mxu0 0
      %8189 = vmatpush1.bf16.msra.mxu0 0
      %8190 = vmatprep.subr.bf16.mxu0 0
      %8191 = vmatpush1.bf16.msra.mxu0 0
      %8192 = vmatprep.subr.bf16.mxu0 0
      %8193 = vmatpush1.bf16.msra.mxu0 0
      %8194 = vmatprep.subr.bf16.mxu0 0
      %8195 = vmatpush1.bf16.msra.mxu0 0
      %8196 = vmatprep.mubr.bf16.mxu0 0
      %8197 = vmatmul.mubr.bf16.gmra.mrb[0].mxu0 %v8153
      %v8198 = vpop.f32.mrb[0].mxu0
      %v8199 = vadd.f32 0.0, %v8198
      %v8200 = vpop.f32.mrb[0].mxu0
      %v8201 = vpop.f32.mrb[0].mxu0
      %v8202 = vadd.f32 0.0, %v8201
      %v8203 = vpop.f32.mrb[0].mxu0
      %8204 = vmatprep.mubr.bf16.mxu0 0
      %8205 = vmatmul.mubr.bf16.gmra.mrb[0].mxu0 %v8156
      %v8206 = vpop.f32.mrb[0].mxu0
      %v8207 = vadd.f32 0.0, %v8206
      %v8208 = vpop.f32.mrb[0].mxu0
      %v8209 = vpop.f32.mrb[0].mxu0
      %v8210 = vadd.f32 0.0, %v8209
      %v8211 = vpop.f32.mrb[0].mxu0
      %8212 = vmatprep.mubr.bf16.mxu0 0
      %8213 = vmatmul.mubr.bf16.gmra.mrb[0].mxu0 %v8159
      %v8214 = vpop.f32.mrb[0].mxu0
      %v8215 = vadd.f32 0.0, %v8214
      %v8216 = vpop.f32.mrb[0].mxu0
      %v8217 = vpop.f32.mrb[0].mxu0
      %v8218 = vadd.f32 0.0, %v8217
      %v8219 = vpop.f32.mrb[0].mxu0
      %8220 = vmatprep.mubr.bf16.mxu0 0
      %8221 = vmatmul.mubr.bf16.gmra.mrb[0].mxu0 %v8162
      %v8222 = vpop.f32.mrb[0].mxu0
      %v8223 = vadd.f32 0.0, %v8222
      %v8224 = vpop.f32.mrb[0].mxu0
      %v8225 = vpop.f32.mrb[0].mxu0
      %v8226 = vadd.f32 0.0, %v8225
      %v8227 = vpop.f32.mrb[0].mxu0
      %8228 = vdwg.mxu0
      %v8229 = vadd.f32 %v8098, %v8199
      %v8230 = vadd.f32 %v8099, %v8202
      %v8231 = vadd.f32 %v8100, %v8207
      %v8232 = vadd.f32 %v8101, %v8210
      %v8233 = vadd.f32 %v8102, %v8215
      %v8234 = vadd.f32 %v8103, %v8218
      %v8235 = vadd.f32 %v8104, %v8223
      %v8236 = vadd.f32 %v8105, %v8226
      %v8237 = vld [vmem:[%s7975] sm:$0xf]
      %v8238 = vld [vmem:[%s7975 + $0x4] sm:$0x1]
      %v8239 = vld [vmem:[%s7975 + $0x8] sm:$0xf]
      %v8240 = vld [vmem:[%s7975 + $0xc] sm:$0x1]
      %v8241 = vld [vmem:[%s7975 + $0x10] sm:$0xf]
      %v8242 = vld [vmem:[%s7975 + $0x14] sm:$0x1]
      %v8243 = vld [vmem:[%s7975 + $0x18] sm:$0xf]
      %v8244 = vld [vmem:[%s7975 + $0x1c] sm:$0x1]
      %v8245 = vld [vmem:[%s7975 + $0x20] sm:$0xf]
      %v8246 = vld [vmem:[%s7975 + $0x24] sm:$0x1]
      %v8247 = vld [vmem:[%s7975 + $0x28] sm:$0xf]
      %v8248 = vld [vmem:[%s7975 + $0x2c] sm:$0x1]
      %v8249 = vld [vmem:[%s7975 + $0x30] sm:$0xf]
      %v8250 = vld [vmem:[%s7975 + $0x34] sm:$0x1]
      %v8251 = vld [vmem:[%s7975 + $0x38] sm:$0xf]
      %v8252 = vld [vmem:[%s7975 + $0x3c] sm:$0x1]
      %v8254 = vshrl.u32 %v8237, 16
      %v8256 = vrot.slane %v8254, 4
      %v8257 = vshll.u32 %v8237, 16
      %v8259 = vrot.slane %v8257, 5
      %v8260 = vor.u32 %v8256, %v8259
      %v8261 = vrot.slane %v8260, 4
      %v8263 = vshll.u32 %v8238, 16
      %v8265 = vrot.slane %v8263, 5
      %v8266 = vsel %vm692, %v8261, %v8265
      %v8268 = vshrl.u32 %v8239, 16
      %v8270 = vrot.slane %v8268, 4
      %v8271 = vshll.u32 %v8239, 16
      %v8273 = vrot.slane %v8271, 5
      %v8274 = vor.u32 %v8270, %v8273
      %v8275 = vrot.slane %v8274, 4
      %v8277 = vshll.u32 %v8240, 16
      %v8279 = vrot.slane %v8277, 5
      %v8280 = vsel %vm692, %v8275, %v8279
      %v8282 = vshrl.u32 %v8241, 16
      %v8284 = vrot.slane %v8282, 4
      %v8285 = vshll.u32 %v8241, 16
      %v8287 = vrot.slane %v8285, 5
      %v8288 = vor.u32 %v8284, %v8287
      %v8289 = vrot.slane %v8288, 4
      %v8291 = vshll.u32 %v8242, 16
      %v8293 = vrot.slane %v8291, 5
      %v8294 = vsel %vm692, %v8289, %v8293
      %v8296 = vshrl.u32 %v8243, 16
      %v8298 = vrot.slane %v8296, 4
      %v8299 = vshll.u32 %v8243, 16
      %v8301 = vrot.slane %v8299, 5
      %v8302 = vor.u32 %v8298, %v8301
      %v8303 = vrot.slane %v8302, 4
      %v8305 = vshll.u32 %v8244, 16
      %v8307 = vrot.slane %v8305, 5
      %v8308 = vsel %vm692, %v8303, %v8307
      %v8310 = vshrl.u32 %v8245, 16
      %v8312 = vrot.slane %v8310, 4
      %v8313 = vshll.u32 %v8245, 16
      %v8315 = vrot.slane %v8313, 5
      %v8316 = vor.u32 %v8312, %v8315
      %v8317 = vrot.slane %v8316, 4
      %v8319 = vshll.u32 %v8246, 16
      %v8321 = vrot.slane %v8319, 5
      %v8322 = vsel %vm692, %v8317, %v8321
      %v8324 = vshrl.u32 %v8247, 16
      %v8326 = vrot.slane %v8324, 4
      %v8327 = vshll.u32 %v8247, 16
      %v8329 = vrot.slane %v8327, 5
      %v8330 = vor.u32 %v8326, %v8329
      %v8331 = vrot.slane %v8330, 4
      %v8333 = vshll.u32 %v8248, 16
      %v8335 = vrot.slane %v8333, 5
      %v8336 = vsel %vm692, %v8331, %v8335
      %v8338 = vshrl.u32 %v8249, 16
      %v8340 = vrot.slane %v8338, 4
      %v8341 = vshll.u32 %v8249, 16
      %v8343 = vrot.slane %v8341, 5
      %v8344 = vor.u32 %v8340, %v8343
      %v8345 = vrot.slane %v8344, 4
      %v8347 = vshll.u32 %v8250, 16
      %v8349 = vrot.slane %v8347, 5
      %v8350 = vsel %vm692, %v8345, %v8349
      %v8352 = vshrl.u32 %v8251, 16
      %v8354 = vrot.slane %v8352, 4
      %v8355 = vshll.u32 %v8251, 16
      %v8357 = vrot.slane %v8355, 5
      %v8358 = vor.u32 %v8354, %v8357
      %v8359 = vrot.slane %v8358, 4
      %v8361 = vshll.u32 %v8252, 16
      %v8363 = vrot.slane %v8361, 5
      %v8364 = vsel %vm692, %v8359, %v8363
      %s8365 = scalar_lea.vmem %s3, 128
      %v8366 = vld [vmem:[%s8365] sm:$0xf]
      %v8367 = vld [vmem:[%s8365 + $0x4] sm:$0xf]
      %v8368 = vld [vmem:[%s8365 + $0x8] sm:$0xf]
      %v8369 = vld [vmem:[%s8365 + $0xc] sm:$0xf]
      %v8370 = vunpack.c.l.b16 %v8266
      %v8371 = vunpack.c.l.b16 %v8280
      %v8372 = vunpack.c.l.b16 %v8294
      %v8373 = vunpack.c.l.b16 %v8308
      %v8374 = vunpack.c.l.b16 %v8322
      %v8375 = vunpack.c.l.b16 %v8336
      %v8376 = vunpack.c.l.b16 %v8350
      %v8377 = vunpack.c.l.b16 %v8364
      %v8378 = vpack.c.b16 %v8371, %v8370
      %v8379 = vpack.c.b16 %v8373, %v8372
      %v8380 = vpack.c.b16 %v8375, %v8374
      %v8381 = vpack.c.b16 %v8377, %v8376
      %v8386 = vunpack.c.l.b16 %v8366
      %v8387 = vunpack.c.l.b16 %v8367
      %v8388 = vunpack.c.l.b16 %v8368
      %v8389 = vunpack.c.l.b16 %v8369
      %v8390 = vpack.c.b16 %v8387, %v8386
      %v8391 = vpack.c.b16 %v8389, %v8388
      %v8395 = vsel %vm7044, %v8378, 0
      %v8398 = vsel %vm7044, %v8379, 0
      %v8401 = vsel %vm7044, %v8380, 0
      %v8404 = vsel %vm7044, %v8381, 0
      %8406 = vmatprep.subr.bf16.mxu0 0
      %8407 = vmatpush1.bf16.msra.mxu0 %v8390
      %8408 = vmatprep.subr.bf16.mxu0 0
      %8409 = vmatpush1.bf16.msra.mxu0 %v8391
      %8410 = vmatprep.subr.bf16.mxu0 0
      %8411 = vmatpush1.bf16.msra.mxu0 0
      %8412 = vmatprep.subr.bf16.mxu0 0
      %8413 = vmatpush1.bf16.msra.mxu0 0
      %8414 = vmatprep.subr.bf16.mxu0 0
      %8415 = vmatpush1.bf16.msra.mxu0 0
      %8416 = vmatprep.subr.bf16.mxu0 0
      %8417 = vmatpush1.bf16.msra.mxu0 0
      %8418 = vmatprep.subr.bf16.mxu0 0
      %8419 = vmatpush1.bf16.msra.mxu0 0
      %8420 = vmatprep.subr.bf16.mxu0 0
      %8421 = vmatpush1.bf16.msra.mxu0 0
      %8422 = vmatprep.subr.bf16.mxu0 0
      %8423 = vmatpush1.bf16.msra.mxu0 0
      %8424 = vmatprep.subr.bf16.mxu0 0
      %8425 = vmatpush1.bf16.msra.mxu0 0
      %8426 = vmatprep.subr.bf16.mxu0 0
      %8427 = vmatpush1.bf16.msra.mxu0 0
      %8428 = vmatprep.subr.bf16.mxu0 0
      %8429 = vmatpush1.bf16.msra.mxu0 0
      %8430 = vmatprep.subr.bf16.mxu0 0
      %8431 = vmatpush1.bf16.msra.mxu0 0
      %8432 = vmatprep.subr.bf16.mxu0 0
      %8433 = vmatpush1.bf16.msra.mxu0 0
      %8434 = vmatprep.subr.bf16.mxu0 0
      %8435 = vmatpush1.bf16.msra.mxu0 0
      %8436 = vmatprep.subr.bf16.mxu0 0
      %8437 = vmatpush1.bf16.msra.mxu0 0
      %8438 = vmatprep.mubr.bf16.mxu0 0
      %8439 = vmatmul.mubr.bf16.gmra.mrb[0].mxu0 %v8395
      %v8440 = vpop.f32.mrb[0].mxu0
      %v8441 = vadd.f32 0.0, %v8440
      %v8442 = vpop.f32.mrb[0].mxu0
      %v8443 = vpop.f32.mrb[0].mxu0
      %v8444 = vadd.f32 0.0, %v8443
      %v8445 = vpop.f32.mrb[0].mxu0
      %8446 = vmatprep.mubr.bf16.mxu0 0
      %8447 = vmatmul.mubr.bf16.gmra.mrb[0].mxu0 %v8398
      %v8448 = vpop.f32.mrb[0].mxu0
      %v8449 = vadd.f32 0.0, %v8448
      %v8450 = vpop.f32.mrb[0].mxu0
      %v8451 = vpop.f32.mrb[0].mxu0
      %v8452 = vadd.f32 0.0, %v8451
      %v8453 = vpop.f32.mrb[0].mxu0
      %8454 = vmatprep.mubr.bf16.mxu0 0
      %8455 = vmatmul.mubr.bf16.gmra.mrb[0].mxu0 %v8401
      %v8456 = vpop.f32.mrb[0].mxu0
      %v8457 = vadd.f32 0.0, %v8456
      %v8458 = vpop.f32.mrb[0].mxu0
      %v8459 = vpop.f32.mrb[0].mxu0
      %v8460 = vadd.f32 0.0, %v8459
      %v8461 = vpop.f32.mrb[0].mxu0
      %8462 = vmatprep.mubr.bf16.mxu0 0
      %8463 = vmatmul.mubr.bf16.gmra.mrb[0].mxu0 %v8404
      %v8464 = vpop.f32.mrb[0].mxu0
      %v8465 = vadd.f32 0.0, %v8464
      %v8466 = vpop.f32.mrb[0].mxu0
      %v8467 = vpop.f32.mrb[0].mxu0
      %v8468 = vadd.f32 0.0, %v8467
      %v8469 = vpop.f32.mrb[0].mxu0
      %8470 = vdwg.mxu0
      %v8471 = vadd.f32 %v8229, %v8441
      %v8472 = vadd.f32 %v8230, %v8444
      %v8473 = vadd.f32 %v8231, %v8449
      %v8474 = vadd.f32 %v8232, %v8452
      %v8475 = vadd.f32 %v8233, %v8457
      %v8476 = vadd.f32 %v8234, %v8460
      %v8477 = vadd.f32 %v8235, %v8465
      %v8478 = vadd.f32 %v8236, %v8468
      %v8479 = vld [vmem:[%s4] sm:$0x1]
      %v8481 = vlaneseq
      %v8482 = vshrl.u32 %v8481, 7
      %v8483 = vsub.s32 0, %v8482
      %v8484 = vrot.slane %v8479, %v8483
      %v8486 = vadd.f32 %v8471, %v8484
      %v8487 = vadd.f32 %v8472, %v8484
      %v8488 = vadd.f32 %v8473, %v8484
      %v8489 = vadd.f32 %v8474, %v8484
      %v8490 = vadd.f32 %v8475, %v8484
      %v8491 = vadd.f32 %v8476, %v8484
      %v8492 = vadd.f32 %v8477, %v8484
      %v8493 = vadd.f32 %v8478, %v8484
      %v8494 = vsub.f32 0.0, %v8486
      %v8495 = vsub.f32 0.0, %v8487
      %v8496 = vsub.f32 0.0, %v8488
      %v8497 = vsub.f32 0.0, %v8489
      %v8498 = vsub.f32 0.0, %v8490
      %v8499 = vsub.f32 0.0, %v8491
      %v8500 = vsub.f32 0.0, %v8492
      %v8501 = vsub.f32 0.0, %v8493
      %v8502 = vmul.f32 %v8494, 1.442695
      %v8503 = vpow.pop %v8502
      %v8504 = vmul.f32 %v8495, 1.442695
      %v8505 = vpow.pop %v8504
      %v8506 = vmul.f32 %v8496, 1.442695
      %v8507 = vpow.pop %v8506
      %v8508 = vmul.f32 %v8497, 1.442695
      %v8509 = vpow.pop %v8508
      %v8510 = vmul.f32 %v8498, 1.442695
      %v8511 = vpow.pop %v8510
      %v8512 = vmul.f32 %v8499, 1.442695
      %v8513 = vpow.pop %v8512
      %v8514 = vmul.f32 %v8500, 1.442695
      %v8515 = vpow.pop %v8514
      %v8516 = vmul.f32 %v8501, 1.442695
      %v8517 = vpow.pop %v8516
      %v8518 = vadd.f32 %v8503, 1.0
      %v8519 = vadd.f32 %v8505, 1.0
      %v8520 = vadd.f32 %v8507, 1.0
      %v8521 = vadd.f32 %v8509, 1.0
      %v8522 = vadd.f32 %v8511, 1.0
      %v8523 = vadd.f32 %v8513, 1.0
      %v8524 = vadd.f32 %v8515, 1.0
      %v8525 = vadd.f32 %v8517, 1.0
      %v8526 = vrcp.pop %v8518
      %v8527 = vmul.f32 1.0, %v8526
      %v8528 = vrcp.pop %v8519
      %v8529 = vmul.f32 1.0, %v8528
      %v8530 = vrcp.pop %v8520
      %v8531 = vmul.f32 1.0, %v8530
      %v8532 = vrcp.pop %v8521
      %v8533 = vmul.f32 1.0, %v8532
      %v8534 = vrcp.pop %v8522
      %v8535 = vmul.f32 1.0, %v8534
      %v8536 = vrcp.pop %v8523
      %v8537 = vmul.f32 1.0, %v8536
      %v8538 = vrcp.pop %v8524
      %v8539 = vmul.f32 1.0, %v8538
      %v8540 = vrcp.pop %v8525
      %v8541 = vmul.f32 1.0, %v8540
      %v8542 = vmul.f32 %v8486, %v8527
      %v8543 = vmul.f32 %v8487, %v8529
      %v8544 = vmul.f32 %v8488, %v8531
      %v8545 = vmul.f32 %v8489, %v8533
      %v8546 = vmul.f32 %v8490, %v8535
      %v8547 = vmul.f32 %v8491, %v8537
      %v8548 = vmul.f32 %v8492, %v8539
      %v8549 = vmul.f32 %v8493, %v8541
      %v8550 = vpack.c.bf16 %v8542, %v8542
      %v8551 = vpack.c.bf16 %v8543, %v8543
      %v8552 = vpack.c.bf16 %v8544, %v8544
      %v8553 = vpack.c.bf16 %v8545, %v8545
      %v8554 = vpack.c.bf16 %v8546, %v8546
      %v8555 = vpack.c.bf16 %v8547, %v8547
      %v8556 = vpack.c.bf16 %v8548, %v8548
      %v8557 = vpack.c.bf16 %v8549, %v8549
      %v8566 = vunpack.c.l.b16 %v8550
      %v8567 = vunpack.c.l.b16 %v8551
      %v8568 = vunpack.c.l.b16 %v8552
      %v8569 = vunpack.c.l.b16 %v8553
      %v8570 = vunpack.c.l.b16 %v8554
      %v8571 = vunpack.c.l.b16 %v8555
      %v8572 = vunpack.c.l.b16 %v8556
      %v8573 = vunpack.c.l.b16 %v8557
      %v8574 = vpack.c.b16 %v8566, %v8566
      %v8575 = vpack.c.b16 %v8567, %v8567
      %v8576 = vpack.c.b16 %v8568, %v8568
      %v8577 = vpack.c.b16 %v8569, %v8569
      %v8578 = vpack.c.b16 %v8570, %v8570
      %v8579 = vpack.c.b16 %v8571, %v8571
      %v8580 = vpack.c.b16 %v8572, %v8572
      %v8581 = vpack.c.b16 %v8573, %v8573
      %v8583 = vshrl.u32 %v8574, 16
      %v8585 = vrot.slane %v8583, 7
      %v8586 = vshll.u32 %v8574, 16
      %v8588 = vor.u32 %v8585, %v8586
      %v8589 = vrot.slane %v8585, 4
      %v8591 = vshrl.u32 %v8575, 16
      %v8593 = vrot.slane %v8591, 7
      %v8594 = vshll.u32 %v8575, 16
      %v8596 = vor.u32 %v8593, %v8594
      %v8597 = vrot.slane %v8593, 4
      %v8599 = vshrl.u32 %v8576, 16
      %v8601 = vrot.slane %v8599, 7
      %v8602 = vshll.u32 %v8576, 16
      %v8604 = vor.u32 %v8601, %v8602
      %v8605 = vrot.slane %v8601, 4
      %v8607 = vshrl.u32 %v8577, 16
      %v8609 = vrot.slane %v8607, 7
      %v8610 = vshll.u32 %v8577, 16
      %v8612 = vor.u32 %v8609, %v8610
      %v8613 = vrot.slane %v8609, 4
      %v8615 = vshrl.u32 %v8578, 16
      %v8617 = vrot.slane %v8615, 7
      %v8618 = vshll.u32 %v8578, 16
      %v8620 = vor.u32 %v8617, %v8618
      %v8621 = vrot.slane %v8617, 4
      %v8623 = vshrl.u32 %v8579, 16
      %v8625 = vrot.slane %v8623, 7
      %v8626 = vshll.u32 %v8579, 16
      %v8628 = vor.u32 %v8625, %v8626
      %v8629 = vrot.slane %v8625, 4
      %v8631 = vshrl.u32 %v8580, 16
      %v8633 = vrot.slane %v8631, 7
      %v8634 = vshll.u32 %v8580, 16
      %v8636 = vor.u32 %v8633, %v8634
      %v8637 = vrot.slane %v8633, 4
      %v8639 = vshrl.u32 %v8581, 16
      %v8641 = vrot.slane %v8639, 7
      %v8642 = vshll.u32 %v8581, 16
      %v8644 = vor.u32 %v8641, %v8642
      %v8645 = vrot.slane %v8641, 4
      %s8662 = scalar_lea.vmem [#allocation3], 8
      %vm8663 = vcmask 257024
      %vm8664 = vsmask.f32 7938
      %vm8665 = vmand %vm8663, %vm8664
      %v8666 = vld [vmem:[%s8662] sm:$0xf]
      %v8667 = vsel %vm8665, %v8588, %v8666
      %8668 = vst [vmem:[%s8662] sm:$0xf] %v8667
      %v8669 = vld [vmem:[%s8662 + $0x4] sm:$0x1]
      %v8670 = vsel %vm284, %v8589, %v8669
      %8671 = vst [vmem:[%s8662 + $0x4] sm:$0x1] %v8670
      %v8672 = vld [vmem:[%s8662 + $0x8] sm:$0xf]
      %v8673 = vsel %vm8665, %v8596, %v8672
      %8674 = vst [vmem:[%s8662 + $0x8] sm:$0xf] %v8673
      %v8675 = vld [vmem:[%s8662 + $0xc] sm:$0x1]
      %v8676 = vsel %vm284, %v8597, %v8675
      %8677 = vst [vmem:[%s8662 + $0xc] sm:$0x1] %v8676
      %v8678 = vld [vmem:[%s8662 + $0x10] sm:$0xf]
      %v8679 = vsel %vm8665, %v8604, %v8678
      %8680 = vst [vmem:[%s8662 + $0x10] sm:$0xf] %v8679
      %v8681 = vld [vmem:[%s8662 + $0x14] sm:$0x1]
      %v8682 = vsel %vm284, %v8605, %v8681
      %8683 = vst [vmem:[%s8662 + $0x14] sm:$0x1] %v8682
      %v8684 = vld [vmem:[%s8662 + $0x18] sm:$0xf]
      %v8685 = vsel %vm8665, %v8612, %v8684
      %8686 = vst [vmem:[%s8662 + $0x18] sm:$0xf] %v8685
      %v8687 = vld [vmem:[%s8662 + $0x1c] sm:$0x1]
      %v8688 = vsel %vm284, %v8613, %v8687
      %8689 = vst [vmem:[%s8662 + $0x1c] sm:$0x1] %v8688
      %v8690 = vld [vmem:[%s8662 + $0x20] sm:$0xf]
      %v8691 = vsel %vm8665, %v8620, %v8690
      %8692 = vst [vmem:[%s8662 + $0x20] sm:$0xf] %v8691
      %v8693 = vld [vmem:[%s8662 + $0x24] sm:$0x1]
      %v8694 = vsel %vm284, %v8621, %v8693
      %8695 = vst [vmem:[%s8662 + $0x24] sm:$0x1] %v8694
      %v8696 = vld [vmem:[%s8662 + $0x28] sm:$0xf]
      %v8697 = vsel %vm8665, %v8628, %v8696
      %8698 = vst [vmem:[%s8662 + $0x28] sm:$0xf] %v8697
      %v8699 = vld [vmem:[%s8662 + $0x2c] sm:$0x1]
      %v8700 = vsel %vm284, %v8629, %v8699
      %8701 = vst [vmem:[%s8662 + $0x2c] sm:$0x1] %v8700
      %v8702 = vld [vmem:[%s8662 + $0x30] sm:$0xf]
      %v8703 = vsel %vm8665, %v8636, %v8702
      %8704 = vst [vmem:[%s8662 + $0x30] sm:$0xf] %v8703
      %v8705 = vld [vmem:[%s8662 + $0x34] sm:$0x1]
      %v8706 = vsel %vm284, %v8637, %v8705
      %8707 = vst [vmem:[%s8662 + $0x34] sm:$0x1] %v8706
      %v8708 = vld [vmem:[%s8662 + $0x38] sm:$0xf]
      %v8709 = vsel %vm8665, %v8644, %v8708
      %8710 = vst [vmem:[%s8662 + $0x38] sm:$0xf] %v8709
      %v8711 = vld [vmem:[%s8662 + $0x3c] sm:$0x1]
      %v8712 = vsel %vm284, %v8645, %v8711
      %8713 = vst [vmem:[%s8662 + $0x3c] sm:$0x1] %v8712
      %v8714 = vld [vmem:[#allocation3] sm:$0xf]
      %v8715 = vld [vmem:[#allocation3 + $0x8] sm:$0xf]
      %v8716 = vld [vmem:[#allocation3 + $0x10] sm:$0xf]
      %v8717 = vld [vmem:[#allocation3 + $0x18] sm:$0xf]
      %v8718 = vld [vmem:[#allocation3 + $0x20] sm:$0xf]
      %v8719 = vld [vmem:[#allocation3 + $0x28] sm:$0xf]
      %v8720 = vld [vmem:[#allocation3 + $0x30] sm:$0xf]
      %v8721 = vld [vmem:[#allocation3 + $0x38] sm:$0xf]
      %v8722 = vld [vmem:[%s5] sm:$0xf]
      %v8723 = vld [vmem:[%s5 + $0x4] sm:$0xf]
      %v8724 = vld [vmem:[%s5 + $0x8] sm:$0xf]
      %v8725 = vld [vmem:[%s5 + $0xc] sm:$0xf]
      %v8726 = vld [vmem:[#allocation3 + $0x4] sm:$0x1]
      %v8727 = vld [vmem:[#allocation3 + $0xc] sm:$0x1]
      %v8728 = vld [vmem:[#allocation3 + $0x14] sm:$0x1]
      %v8729 = vld [vmem:[#allocation3 + $0x1c] sm:$0x1]
      %v8730 = vld [vmem:[#allocation3 + $0x24] sm:$0x1]
      %v8731 = vld [vmem:[#allocation3 + $0x2c] sm:$0x1]
      %v8732 = vld [vmem:[#allocation3 + $0x34] sm:$0x1]
      %v8733 = vld [vmem:[#allocation3 + $0x3c] sm:$0x1]
      %v8735 = vshrl.u32 %v8714, 16
      %v8737 = vrot.slane %v8735, 4
      %v8738 = vshll.u32 %v8714, 16
      %v8740 = vrot.slane %v8738, 5
      %v8741 = vor.u32 %v8737, %v8740
      %v8742 = vrot.slane %v8741, 4
      %v8744 = vshll.u32 %v8726, 16
      %v8746 = vrot.slane %v8744, 5
      %v8747 = vsel %vm692, %v8742, %v8746
      %v8749 = vshrl.u32 %v8715, 16
      %v8751 = vrot.slane %v8749, 4
      %v8752 = vshll.u32 %v8715, 16
      %v8754 = vrot.slane %v8752, 5
      %v8755 = vor.u32 %v8751, %v8754
      %v8756 = vrot.slane %v8755, 4
      %v8758 = vshll.u32 %v8727, 16
      %v8760 = vrot.slane %v8758, 5
      %v8761 = vsel %vm692, %v8756, %v8760
      %v8763 = vshrl.u32 %v8716, 16
      %v8765 = vrot.slane %v8763, 4
      %v8766 = vshll.u32 %v8716, 16
      %v8768 = vrot.slane %v8766, 5
      %v8769 = vor.u32 %v8765, %v8768
      %v8770 = vrot.slane %v8769, 4
      %v8772 = vshll.u32 %v8728, 16
      %v8774 = vrot.slane %v8772, 5
      %v8775 = vsel %vm692, %v8770, %v8774
      %v8777 = vshrl.u32 %v8717, 16
      %v8779 = vrot.slane %v8777, 4
      %v8780 = vshll.u32 %v8717, 16
      %v8782 = vrot.slane %v8780, 5
      %v8783 = vor.u32 %v8779, %v8782
      %v8784 = vrot.slane %v8783, 4
      %v8786 = vshll.u32 %v8729, 16
      %v8788 = vrot.slane %v8786, 5
      %v8789 = vsel %vm692, %v8784, %v8788
      %v8791 = vshrl.u32 %v8718, 16
      %v8793 = vrot.slane %v8791, 4
      %v8794 = vshll.u32 %v8718, 16
      %v8796 = vrot.slane %v8794, 5
      %v8797 = vor.u32 %v8793, %v8796
      %v8798 = vrot.slane %v8797, 4
      %v8800 = vshll.u32 %v8730, 16
      %v8802 = vrot.slane %v8800, 5
      %v8803 = vsel %vm692, %v8798, %v8802
      %v8805 = vshrl.u32 %v8719, 16
      %v8807 = vrot.slane %v8805, 4
      %v8808 = vshll.u32 %v8719, 16
      %v8810 = vrot.slane %v8808, 5
      %v8811 = vor.u32 %v8807, %v8810
      %v8812 = vrot.slane %v8811, 4
      %v8814 = vshll.u32 %v8731, 16
      %v8816 = vrot.slane %v8814, 5
      %v8817 = vsel %vm692, %v8812, %v8816
      %v8819 = vshrl.u32 %v8720, 16
      %v8821 = vrot.slane %v8819, 4
      %v8822 = vshll.u32 %v8720, 16
      %v8824 = vrot.slane %v8822, 5
      %v8825 = vor.u32 %v8821, %v8824
      %v8826 = vrot.slane %v8825, 4
      %v8828 = vshll.u32 %v8732, 16
      %v8830 = vrot.slane %v8828, 5
      %v8831 = vsel %vm692, %v8826, %v8830
      %v8833 = vshrl.u32 %v8721, 16
      %v8835 = vrot.slane %v8833, 4
      %v8836 = vshll.u32 %v8721, 16
      %v8838 = vrot.slane %v8836, 5
      %v8839 = vor.u32 %v8835, %v8838
      %v8840 = vrot.slane %v8839, 4
      %v8842 = vshll.u32 %v8733, 16
      %v8844 = vrot.slane %v8842, 5
      %v8845 = vsel %vm692, %v8840, %v8844
      %s8846 = scalar_lea.vmem %s5, 16
      %v8847 = vld [vmem:[%s8846] sm:$0xf]
      %v8848 = vld [vmem:[%s8846 + $0x4] sm:$0xf]
      %v8849 = vld [vmem:[%s8846 + $0x8] sm:$0xf]
      %v8850 = vld [vmem:[%s8846 + $0xc] sm:$0xf]
      %v8851 = vunpack.c.l.b16 %v8747
      %v8852 = vunpack.c.l.b16 %v8761
      %v8853 = vunpack.c.l.b16 %v8775
      %v8854 = vunpack.c.l.b16 %v8789
      %v8855 = vunpack.c.l.b16 %v8803
      %v8856 = vunpack.c.l.b16 %v8817
      %v8857 = vunpack.c.l.b16 %v8831
      %v8858 = vunpack.c.l.b16 %v8845
      %v8859 = vpack.c.b16 %v8852, %v8851
      %v8860 = vpack.c.b16 %v8854, %v8853
      %v8861 = vpack.c.b16 %v8856, %v8855
      %v8862 = vpack.c.b16 %v8858, %v8857
      %v8867 = vunpack.c.l.b16 %v8847
      %v8868 = vunpack.c.l.b16 %v8848
      %v8869 = vunpack.c.l.b16 %v8849
      %v8870 = vunpack.c.l.b16 %v8850
      %v8871 = vpack.c.b16 %v8868, %v8867
      %v8872 = vpack.c.b16 %v8870, %v8869
      %v8876 = vsel %vm7044, %v8859, 0
      %v8879 = vsel %vm7044, %v8860, 0
      %v8882 = vsel %vm7044, %v8861, 0
      %v8885 = vsel %vm7044, %v8862, 0
      %8887 = vmatprep.subr.bf16.mxu0 0
      %8888 = vmatpush1.bf16.msra.mxu0 %v8871
      %8889 = vmatprep.subr.bf16.mxu0 0
      %8890 = vmatpush1.bf16.msra.mxu0 %v8872
      %8891 = vmatprep.subr.bf16.mxu0 0
      %8892 = vmatpush1.bf16.msra.mxu0 0
      %8893 = vmatprep.subr.bf16.mxu0 0
      %8894 = vmatpush1.bf16.msra.mxu0 0
      %8895 = vmatprep.subr.bf16.mxu0 0
      %8896 = vmatpush1.bf16.msra.mxu0 0
      %8897 = vmatprep.subr.bf16.mxu0 0
      %8898 = vmatpush1.bf16.msra.mxu0 0
      %8899 = vmatprep.subr.bf16.mxu0 0
      %8900 = vmatpush1.bf16.msra.mxu0 0
      %8901 = vmatprep.subr.bf16.mxu0 0
      %8902 = vmatpush1.bf16.msra.mxu0 0
      %8903 = vmatprep.subr.bf16.mxu0 0
      %8904 = vmatpush1.bf16.msra.mxu0 0
      %8905 = vmatprep.subr.bf16.mxu0 0
      %8906 = vmatpush1.bf16.msra.mxu0 0
      %8907 = vmatprep.subr.bf16.mxu0 0
      %8908 = vmatpush1.bf16.msra.mxu0 0
      %8909 = vmatprep.subr.bf16.mxu0 0
      %8910 = vmatpush1.bf16.msra.mxu0 0
      %8911 = vmatprep.subr.bf16.mxu0 0
      %8912 = vmatpush1.bf16.msra.mxu0 0
      %8913 = vmatprep.subr.bf16.mxu0 0
      %8914 = vmatpush1.bf16.msra.mxu0 0
      %8915 = vmatprep.subr.bf16.mxu0 0
      %8916 = vmatpush1.bf16.msra.mxu0 0
      %8917 = vmatprep.subr.bf16.mxu0 0
      %8918 = vmatpush1.bf16.msra.mxu0 0
      %8919 = vmatprep.mubr.bf16.mxu0 0
      %8920 = vmatmul.mubr.bf16.gmra.mrb[0].mxu0 %v8876
      %v8921 = vpop.f32.mrb[0].mxu0
      %v8922 = vadd.f32 0.0, %v8921
      %v8923 = vpop.f32.mrb[0].mxu0
      %v8924 = vpop.f32.mrb[0].mxu0
      %v8925 = vadd.f32 0.0, %v8924
      %v8926 = vpop.f32.mrb[0].mxu0
      %8927 = vmatprep.mubr.bf16.mxu0 0
      %8928 = vmatmul.mubr.bf16.gmra.mrb[0].mxu0 %v8879
      %v8929 = vpop.f32.mrb[0].mxu0
      %v8930 = vadd.f32 0.0, %v8929
      %v8931 = vpop.f32.mrb[0].mxu0
      %v8932 = vpop.f32.mrb[0].mxu0
      %v8933 = vadd.f32 0.0, %v8932
      %v8934 = vpop.f32.mrb[0].mxu0
      %8935 = vmatprep.mubr.bf16.mxu0 0
      %8936 = vmatmul.mubr.bf16.gmra.mrb[0].mxu0 %v8882
      %v8937 = vpop.f32.mrb[0].mxu0
      %v8938 = vadd.f32 0.0, %v8937
      %v8939 = vpop.f32.mrb[0].mxu0
      %v8940 = vpop.f32.mrb[0].mxu0
      %v8941 = vadd.f32 0.0, %v8940
      %v8942 = vpop.f32.mrb[0].mxu0
      %8943 = vmatprep.mubr.bf16.mxu0 0
      %8944 = vmatmul.mubr.bf16.gmra.mrb[0].mxu0 %v8885
      %v8945 = vpop.f32.mrb[0].mxu0
      %v8946 = vadd.f32 0.0, %v8945
      %v8947 = vpop.f32.mrb[0].mxu0
      %v8948 = vpop.f32.mrb[0].mxu0
      %v8949 = vadd.f32 0.0, %v8948
      %v8950 = vpop.f32.mrb[0].mxu0
      %8951 = vdwg.mxu0
      %v8960 = vunpack.c.l.b16 %v8714
      %v8961 = vunpack.c.l.b16 %v8715
      %v8962 = vunpack.c.l.b16 %v8716
      %v8963 = vunpack.c.l.b16 %v8717
      %v8964 = vunpack.c.l.b16 %v8718
      %v8965 = vunpack.c.l.b16 %v8719
      %v8966 = vunpack.c.l.b16 %v8720
      %v8967 = vunpack.c.l.b16 %v8721
      %v8968 = vpack.c.b16 %v8961, %v8960
      %v8969 = vpack.c.b16 %v8963, %v8962
      %v8970 = vpack.c.b16 %v8965, %v8964
      %v8971 = vpack.c.b16 %v8967, %v8966
      %v8976 = vunpack.c.l.b16 %v8722
      %v8977 = vunpack.c.l.b16 %v8723
      %v8978 = vunpack.c.l.b16 %v8724
      %v8979 = vunpack.c.l.b16 %v8725
      %v8980 = vpack.c.b16 %v8977, %v8976
      %v8981 = vpack.c.b16 %v8979, %v8978
      %v8985 = vsel %vm7044, %v8968, 0
      %v8988 = vsel %vm7044, %v8969, 0
      %v8991 = vsel %vm7044, %v8970, 0
      %v8994 = vsel %vm7044, %v8971, 0
      %8996 = vmatprep.subr.bf16.mxu0 0
      %8997 = vmatpush1.bf16.msra.mxu0 %v8980
      %8998 = vmatprep.subr.bf16.mxu0 0
      %8999 = vmatpush1.bf16.msra.mxu0 %v8981
      %9000 = vmatprep.subr.bf16.mxu0 0
      %9001 = vmatpush1.bf16.msra.mxu0 0
      %9002 = vmatprep.subr.bf16.mxu0 0
      %9003 = vmatpush1.bf16.msra.mxu0 0
      %9004 = vmatprep.subr.bf16.mxu0 0
      %9005 = vmatpush1.bf16.msra.mxu0 0
      %9006 = vmatprep.subr.bf16.mxu0 0
      %9007 = vmatpush1.bf16.msra.mxu0 0
      %9008 = vmatprep.subr.bf16.mxu0 0
      %9009 = vmatpush1.bf16.msra.mxu0 0
      %9010 = vmatprep.subr.bf16.mxu0 0
      %9011 = vmatpush1.bf16.msra.mxu0 0
      %9012 = vmatprep.subr.bf16.mxu0 0
      %9013 = vmatpush1.bf16.msra.mxu0 0
      %9014 = vmatprep.subr.bf16.mxu0 0
      %9015 = vmatpush1.bf16.msra.mxu0 0
      %9016 = vmatprep.subr.bf16.mxu0 0
      %9017 = vmatpush1.bf16.msra.mxu0 0
      %9018 = vmatprep.subr.bf16.mxu0 0
      %9019 = vmatpush1.bf16.msra.mxu0 0
      %9020 = vmatprep.subr.bf16.mxu0 0
      %9021 = vmatpush1.bf16.msra.mxu0 0
      %9022 = vmatprep.subr.bf16.mxu0 0
      %9023 = vmatpush1.bf16.msra.mxu0 0
      %9024 = vmatprep.subr.bf16.mxu0 0
      %9025 = vmatpush1.bf16.msra.mxu0 0
      %9026 = vmatprep.subr.bf16.mxu0 0
      %9027 = vmatpush1.bf16.msra.mxu0 0
      %9028 = vmatprep.mubr.bf16.mxu0 0
      %9029 = vmatmul.mubr.bf16.gmra.mrb[0].mxu0 %v8985
      %v9030 = vpop.f32.mrb[0].mxu0
      %v9031 = vadd.f32 %v8922, %v9030
      %v9032 = vpop.f32.mrb[0].mxu0
      %v9033 = vpop.f32.mrb[0].mxu0
      %v9034 = vadd.f32 %v8925, %v9033
      %v9035 = vpop.f32.mrb[0].mxu0
      %9036 = vmatprep.mubr.bf16.mxu0 0
      %9037 = vmatmul.mubr.bf16.gmra.mrb[0].mxu0 %v8988
      %v9038 = vpop.f32.mrb[0].mxu0
      %v9039 = vadd.f32 %v8930, %v9038
      %v9040 = vpop.f32.mrb[0].mxu0
      %v9041 = vpop.f32.mrb[0].mxu0
      %v9042 = vadd.f32 %v8933, %v9041
      %v9043 = vpop.f32.mrb[0].mxu0
      %9044 = vmatprep.mubr.bf16.mxu0 0
      %9045 = vmatmul.mubr.bf16.gmra.mrb[0].mxu0 %v8991
      %v9046 = vpop.f32.mrb[0].mxu0
      %v9047 = vadd.f32 %v8938, %v9046
      %v9048 = vpop.f32.mrb[0].mxu0
      %v9049 = vpop.f32.mrb[0].mxu0
      %v9050 = vadd.f32 %v8941, %v9049
      %v9051 = vpop.f32.mrb[0].mxu0
      %9052 = vmatprep.mubr.bf16.mxu0 0
      %9053 = vmatmul.mubr.bf16.gmra.mrb[0].mxu0 %v8994
      %v9054 = vpop.f32.mrb[0].mxu0
      %v9055 = vadd.f32 %v8946, %v9054
      %v9056 = vpop.f32.mrb[0].mxu0
      %v9057 = vpop.f32.mrb[0].mxu0
      %v9058 = vadd.f32 %v8949, %v9057
      %v9059 = vpop.f32.mrb[0].mxu0
      %9060 = vdwg.mxu0
      %v9061 = vld [vmem:[#allocation3] sm:$0xe]
      %v9062 = vld [vmem:[#allocation3 + $0x8] sm:$0xe]
      %v9063 = vld [vmem:[#allocation3 + $0x10] sm:$0xe]
      %v9064 = vld [vmem:[#allocation3 + $0x18] sm:$0xe]
      %v9065 = vld [vmem:[#allocation3 + $0x20] sm:$0xe]
      %v9066 = vld [vmem:[#allocation3 + $0x28] sm:$0xe]
      %v9067 = vld [vmem:[#allocation3 + $0x30] sm:$0xe]
      %v9068 = vld [vmem:[#allocation3 + $0x38] sm:$0xe]
      %vm9085 = vcmask 1042432
      %vm9086 = vcmask 1046532
      %vm9087 = vmor %vm9085, %vm9086
      %v9088 = vrot.slane %v9061, 5
      %v9089 = vrot.slane %v9088, 4
      %v9090 = vrot.slane %v8726, 5
      %v9091 = vsel %vm9087, %v9089, %v9090
      %v9092 = vrot.slane %v9062, 5
      %v9093 = vrot.slane %v9092, 4
      %v9094 = vrot.slane %v8727, 5
      %v9095 = vsel %vm9087, %v9093, %v9094
      %v9096 = vrot.slane %v9063, 5
      %v9097 = vrot.slane %v9096, 4
      %v9098 = vrot.slane %v8728, 5
      %v9099 = vsel %vm9087, %v9097, %v9098
      %v9100 = vrot.slane %v9064, 5
      %v9101 = vrot.slane %v9100, 4
      %v9102 = vrot.slane %v8729, 5
      %v9103 = vsel %vm9087, %v9101, %v9102
      %v9104 = vrot.slane %v9065, 5
      %v9105 = vrot.slane %v9104, 4
      %v9106 = vrot.slane %v8730, 5
      %v9107 = vsel %vm9087, %v9105, %v9106
      %v9108 = vrot.slane %v9066, 5
      %v9109 = vrot.slane %v9108, 4
      %v9110 = vrot.slane %v8731, 5
      %v9111 = vsel %vm9087, %v9109, %v9110
      %v9112 = vrot.slane %v9067, 5
      %v9113 = vrot.slane %v9112, 4
      %v9114 = vrot.slane %v8732, 5
      %v9115 = vsel %vm9087, %v9113, %v9114
      %v9116 = vrot.slane %v9068, 5
      %v9117 = vrot.slane %v9116, 4
      %v9118 = vrot.slane %v8733, 5
      %v9119 = vsel %vm9087, %v9117, %v9118
      %s9120 = scalar_lea.vmem %s5, 32
      %v9121 = vld [vmem:[%s9120] sm:$0xf]
      %v9122 = vld [vmem:[%s9120 + $0x4] sm:$0xf]
      %v9123 = vld [vmem:[%s9120 + $0x8] sm:$0xf]
      %v9124 = vld [vmem:[%s9120 + $0xc] sm:$0xf]
      %v9125 = vunpack.c.l.b16 %v9091
      %v9126 = vunpack.c.l.b16 %v9095
      %v9127 = vunpack.c.l.b16 %v9099
      %v9128 = vunpack.c.l.b16 %v9103
      %v9129 = vunpack.c.l.b16 %v9107
      %v9130 = vunpack.c.l.b16 %v9111
      %v9131 = vunpack.c.l.b16 %v9115
      %v9132 = vunpack.c.l.b16 %v9119
      %v9133 = vpack.c.b16 %v9126, %v9125
      %v9134 = vpack.c.b16 %v9128, %v9127
      %v9135 = vpack.c.b16 %v9130, %v9129
      %v9136 = vpack.c.b16 %v9132, %v9131
      %v9141 = vunpack.c.l.b16 %v9121
      %v9142 = vunpack.c.l.b16 %v9122
      %v9143 = vunpack.c.l.b16 %v9123
      %v9144 = vunpack.c.l.b16 %v9124
      %v9145 = vpack.c.b16 %v9142, %v9141
      %v9146 = vpack.c.b16 %v9144, %v9143
      %v9150 = vsel %vm7044, %v9133, 0
      %v9153 = vsel %vm7044, %v9134, 0
      %v9156 = vsel %vm7044, %v9135, 0
      %v9159 = vsel %vm7044, %v9136, 0
      %9161 = vmatprep.subr.bf16.mxu0 0
      %9162 = vmatpush1.bf16.msra.mxu0 %v9145
      %9163 = vmatprep.subr.bf16.mxu0 0
      %9164 = vmatpush1.bf16.msra.mxu0 %v9146
      %9165 = vmatprep.subr.bf16.mxu0 0
      %9166 = vmatpush1.bf16.msra.mxu0 0
      %9167 = vmatprep.subr.bf16.mxu0 0
      %9168 = vmatpush1.bf16.msra.mxu0 0
      %9169 = vmatprep.subr.bf16.mxu0 0
      %9170 = vmatpush1.bf16.msra.mxu0 0
      %9171 = vmatprep.subr.bf16.mxu0 0
      %9172 = vmatpush1.bf16.msra.mxu0 0
      %9173 = vmatprep.subr.bf16.mxu0 0
      %9174 = vmatpush1.bf16.msra.mxu0 0
      %9175 = vmatprep.subr.bf16.mxu0 0
      %9176 = vmatpush1.bf16.msra.mxu0 0
      %9177 = vmatprep.subr.bf16.mxu0 0
      %9178 = vmatpush1.bf16.msra.mxu0 0
      %9179 = vmatprep.subr.bf16.mxu0 0
      %9180 = vmatpush1.bf16.msra.mxu0 0
      %9181 = vmatprep.subr.bf16.mxu0 0
      %9182 = vmatpush1.bf16.msra.mxu0 0
      %9183 = vmatprep.subr.bf16.mxu0 0
      %9184 = vmatpush1.bf16.msra.mxu0 0
      %9185 = vmatprep.subr.bf16.mxu0 0
      %9186 = vmatpush1.bf16.msra.mxu0 0
      %9187 = vmatprep.subr.bf16.mxu0 0
      %9188 = vmatpush1.bf16.msra.mxu0 0
      %9189 = vmatprep.subr.bf16.mxu0 0
      %9190 = vmatpush1.bf16.msra.mxu0 0
      %9191 = vmatprep.subr.bf16.mxu0 0
      %9192 = vmatpush1.bf16.msra.mxu0 0
      %9193 = vmatprep.mubr.bf16.mxu0 0
      %9194 = vmatmul.mubr.bf16.gmra.mrb[0].mxu0 %v9150
      %v9195 = vpop.f32.mrb[0].mxu0
      %v9196 = vadd.f32 0.0, %v9195
      %v9197 = vpop.f32.mrb[0].mxu0
      %v9198 = vpop.f32.mrb[0].mxu0
      %v9199 = vadd.f32 0.0, %v9198
      %v9200 = vpop.f32.mrb[0].mxu0
      %9201 = vmatprep.mubr.bf16.mxu0 0
      %9202 = vmatmul.mubr.bf16.gmra.mrb[0].mxu0 %v9153
      %v9203 = vpop.f32.mrb[0].mxu0
      %v9204 = vadd.f32 0.0, %v9203
      %v9205 = vpop.f32.mrb[0].mxu0
      %v9206 = vpop.f32.mrb[0].mxu0
      %v9207 = vadd.f32 0.0, %v9206
      %v9208 = vpop.f32.mrb[0].mxu0
      %9209 = vmatprep.mubr.bf16.mxu0 0
      %9210 = vmatmul.mubr.bf16.gmra.mrb[0].mxu0 %v9156
      %v9211 = vpop.f32.mrb[0].mxu0
      %v9212 = vadd.f32 0.0, %v9211
      %v9213 = vpop.f32.mrb[0].mxu0
      %v9214 = vpop.f32.mrb[0].mxu0
      %v9215 = vadd.f32 0.0, %v9214
      %v9216 = vpop.f32.mrb[0].mxu0
      %9217 = vmatprep.mubr.bf16.mxu0 0
      %9218 = vmatmul.mubr.bf16.gmra.mrb[0].mxu0 %v9159
      %v9219 = vpop.f32.mrb[0].mxu0
      %v9220 = vadd.f32 0.0, %v9219
      %v9221 = vpop.f32.mrb[0].mxu0
      %v9222 = vpop.f32.mrb[0].mxu0
      %v9223 = vadd.f32 0.0, %v9222
      %v9224 = vpop.f32.mrb[0].mxu0
      %9225 = vdwg.mxu0
      %v9226 = vadd.f32 %v9031, %v9196
      %v9227 = vadd.f32 %v9034, %v9199
      %v9228 = vadd.f32 %v9039, %v9204
      %v9229 = vadd.f32 %v9042, %v9207
      %v9230 = vadd.f32 %v9047, %v9212
      %v9231 = vadd.f32 %v9050, %v9215
      %v9232 = vadd.f32 %v9055, %v9220
      %v9233 = vadd.f32 %v9058, %v9223
      %v9234 = vld [vmem:[%s8662] sm:$0xf]
      %v9235 = vld [vmem:[%s8662 + $0x8] sm:$0xf]
      %v9236 = vld [vmem:[%s8662 + $0x10] sm:$0xf]
      %v9237 = vld [vmem:[%s8662 + $0x18] sm:$0xf]
      %v9238 = vld [vmem:[%s8662 + $0x20] sm:$0xf]
      %v9239 = vld [vmem:[%s8662 + $0x28] sm:$0xf]
      %v9240 = vld [vmem:[%s8662 + $0x30] sm:$0xf]
      %v9241 = vld [vmem:[%s8662 + $0x38] sm:$0xf]
      %s9242 = scalar_lea.vmem %s5, 48
      %v9243 = vld [vmem:[%s9242] sm:$0xf]
      %v9244 = vld [vmem:[%s9242 + $0x4] sm:$0xf]
      %v9245 = vld [vmem:[%s9242 + $0x8] sm:$0xf]
      %v9246 = vld [vmem:[%s9242 + $0xc] sm:$0xf]
      %v9255 = vunpack.c.l.b16 %v9234
      %v9256 = vunpack.c.l.b16 %v9235
      %v9257 = vunpack.c.l.b16 %v9236
      %v9258 = vunpack.c.l.b16 %v9237
      %v9259 = vunpack.c.l.b16 %v9238
      %v9260 = vunpack.c.l.b16 %v9239
      %v9261 = vunpack.c.l.b16 %v9240
      %v9262 = vunpack.c.l.b16 %v9241
      %v9263 = vpack.c.b16 %v9256, %v9255
      %v9264 = vpack.c.b16 %v9258, %v9257
      %v9265 = vpack.c.b16 %v9260, %v9259
      %v9266 = vpack.c.b16 %v9262, %v9261
      %v9271 = vunpack.c.l.b16 %v9243
      %v9272 = vunpack.c.l.b16 %v9244
      %v9273 = vunpack.c.l.b16 %v9245
      %v9274 = vunpack.c.l.b16 %v9246
      %v9275 = vpack.c.b16 %v9272, %v9271
      %v9276 = vpack.c.b16 %v9274, %v9273
      %v9280 = vsel %vm7044, %v9263, 0
      %v9283 = vsel %vm7044, %v9264, 0
      %v9286 = vsel %vm7044, %v9265, 0
      %v9289 = vsel %vm7044, %v9266, 0
      %9291 = vmatprep.subr.bf16.mxu0 0
      %9292 = vmatpush1.bf16.msra.mxu0 %v9275
      %9293 = vmatprep.subr.bf16.mxu0 0
      %9294 = vmatpush1.bf16.msra.mxu0 %v9276
      %9295 = vmatprep.subr.bf16.mxu0 0
      %9296 = vmatpush1.bf16.msra.mxu0 0
      %9297 = vmatprep.subr.bf16.mxu0 0
      %9298 = vmatpush1.bf16.msra.mxu0 0
      %9299 = vmatprep.subr.bf16.mxu0 0
      %9300 = vmatpush1.bf16.msra.mxu0 0
      %9301 = vmatprep.subr.bf16.mxu0 0
      %9302 = vmatpush1.bf16.msra.mxu0 0
      %9303 = vmatprep.subr.bf16.mxu0 0
      %9304 = vmatpush1.bf16.msra.mxu0 0
      %9305 = vmatprep.subr.bf16.mxu0 0
      %9306 = vmatpush1.bf16.msra.mxu0 0
      %9307 = vmatprep.subr.bf16.mxu0 0
      %9308 = vmatpush1.bf16.msra.mxu0 0
      %9309 = vmatprep.subr.bf16.mxu0 0
      %9310 = vmatpush1.bf16.msra.mxu0 0
      %9311 = vmatprep.subr.bf16.mxu0 0
      %9312 = vmatpush1.bf16.msra.mxu0 0
      %9313 = vmatprep.subr.bf16.mxu0 0
      %9314 = vmatpush1.bf16.msra.mxu0 0
      %9315 = vmatprep.subr.bf16.mxu0 0
      %9316 = vmatpush1.bf16.msra.mxu0 0
      %9317 = vmatprep.subr.bf16.mxu0 0
      %9318 = vmatpush1.bf16.msra.mxu0 0
      %9319 = vmatprep.subr.bf16.mxu0 0
      %9320 = vmatpush1.bf16.msra.mxu0 0
      %9321 = vmatprep.subr.bf16.mxu0 0
      %9322 = vmatpush1.bf16.msra.mxu0 0
      %9323 = vmatprep.mubr.bf16.mxu0 0
      %9324 = vmatmul.mubr.bf16.gmra.mrb[0].mxu0 %v9280
      %v9325 = vpop.f32.mrb[0].mxu0
      %v9326 = vadd.f32 0.0, %v9325
      %v9327 = vpop.f32.mrb[0].mxu0
      %v9328 = vpop.f32.mrb[0].mxu0
      %v9329 = vadd.f32 0.0, %v9328
      %v9330 = vpop.f32.mrb[0].mxu0
      %9331 = vmatprep.mubr.bf16.mxu0 0
      %9332 = vmatmul.mubr.bf16.gmra.mrb[0].mxu0 %v9283
      %v9333 = vpop.f32.mrb[0].mxu0
      %v9334 = vadd.f32 0.0, %v9333
      %v9335 = vpop.f32.mrb[0].mxu0
      %v9336 = vpop.f32.mrb[0].mxu0
      %v9337 = vadd.f32 0.0, %v9336
      %v9338 = vpop.f32.mrb[0].mxu0
      %9339 = vmatprep.mubr.bf16.mxu0 0
      %9340 = vmatmul.mubr.bf16.gmra.mrb[0].mxu0 %v9286
      %v9341 = vpop.f32.mrb[0].mxu0
      %v9342 = vadd.f32 0.0, %v9341
      %v9343 = vpop.f32.mrb[0].mxu0
      %v9344 = vpop.f32.mrb[0].mxu0
      %v9345 = vadd.f32 0.0, %v9344
      %v9346 = vpop.f32.mrb[0].mxu0
      %9347 = vmatprep.mubr.bf16.mxu0 0
      %9348 = vmatmul.mubr.bf16.gmra.mrb[0].mxu0 %v9289
      %v9349 = vpop.f32.mrb[0].mxu0
      %v9350 = vadd.f32 0.0, %v9349
      %v9351 = vpop.f32.mrb[0].mxu0
      %v9352 = vpop.f32.mrb[0].mxu0
      %v9353 = vadd.f32 0.0, %v9352
      %v9354 = vpop.f32.mrb[0].mxu0
      %9355 = vdwg.mxu0
      %v9356 = vadd.f32 %v9226, %v9326
      %v9357 = vadd.f32 %v9227, %v9329
      %v9358 = vadd.f32 %v9228, %v9334
      %v9359 = vadd.f32 %v9229, %v9337
      %v9360 = vadd.f32 %v9230, %v9342
      %v9361 = vadd.f32 %v9231, %v9345
      %v9362 = vadd.f32 %v9232, %v9350
      %v9363 = vadd.f32 %v9233, %v9353
      %v9364 = vld [vmem:[%s8662] sm:$0xf]
      %v9365 = vld [vmem:[%s8662 + $0x4] sm:$0x1]
      %v9366 = vld [vmem:[%s8662 + $0x8] sm:$0xf]
      %v9367 = vld [vmem:[%s8662 + $0xc] sm:$0x1]
      %v9368 = vld [vmem:[%s8662 + $0x10] sm:$0xf]
      %v9369 = vld [vmem:[%s8662 + $0x14] sm:$0x1]
      %v9370 = vld [vmem:[%s8662 + $0x18] sm:$0xf]
      %v9371 = vld [vmem:[%s8662 + $0x1c] sm:$0x1]
      %v9372 = vld [vmem:[%s8662 + $0x20] sm:$0xf]
      %v9373 = vld [vmem:[%s8662 + $0x24] sm:$0x1]
      %v9374 = vld [vmem:[%s8662 + $0x28] sm:$0xf]
      %v9375 = vld [vmem:[%s8662 + $0x2c] sm:$0x1]
      %v9376 = vld [vmem:[%s8662 + $0x30] sm:$0xf]
      %v9377 = vld [vmem:[%s8662 + $0x34] sm:$0x1]
      %v9378 = vld [vmem:[%s8662 + $0x38] sm:$0xf]
      %v9379 = vld [vmem:[%s8662 + $0x3c] sm:$0x1]
      %v9381 = vshrl.u32 %v9364, 16
      %v9383 = vrot.slane %v9381, 4
      %v9384 = vshll.u32 %v9364, 16
      %v9386 = vrot.slane %v9384, 5
      %v9387 = vor.u32 %v9383, %v9386
      %v9388 = vrot.slane %v9387, 4
      %v9390 = vshll.u32 %v9365, 16
      %v9392 = vrot.slane %v9390, 5
      %v9393 = vsel %vm692, %v9388, %v9392
      %v9395 = vshrl.u32 %v9366, 16
      %v9397 = vrot.slane %v9395, 4
      %v9398 = vshll.u32 %v9366, 16
      %v9400 = vrot.slane %v9398, 5
      %v9401 = vor.u32 %v9397, %v9400
      %v9402 = vrot.slane %v9401, 4
      %v9404 = vshll.u32 %v9367, 16
      %v9406 = vrot.slane %v9404, 5
      %v9407 = vsel %vm692, %v9402, %v9406
      %v9409 = vshrl.u32 %v9368, 16
      %v9411 = vrot.slane %v9409, 4
      %v9412 = vshll.u32 %v9368, 16
      %v9414 = vrot.slane %v9412, 5
      %v9415 = vor.u32 %v9411, %v9414
      %v9416 = vrot.slane %v9415, 4
      %v9418 = vshll.u32 %v9369, 16
      %v9420 = vrot.slane %v9418, 5
      %v9421 = vsel %vm692, %v9416, %v9420
      %v9423 = vshrl.u32 %v9370, 16
      %v9425 = vrot.slane %v9423, 4
      %v9426 = vshll.u32 %v9370, 16
      %v9428 = vrot.slane %v9426, 5
      %v9429 = vor.u32 %v9425, %v9428
      %v9430 = vrot.slane %v9429, 4
      %v9432 = vshll.u32 %v9371, 16
      %v9434 = vrot.slane %v9432, 5
      %v9435 = vsel %vm692, %v9430, %v9434
      %v9437 = vshrl.u32 %v9372, 16
      %v9439 = vrot.slane %v9437, 4
      %v9440 = vshll.u32 %v9372, 16
      %v9442 = vrot.slane %v9440, 5
      %v9443 = vor.u32 %v9439, %v9442
      %v9444 = vrot.slane %v9443, 4
      %v9446 = vshll.u32 %v9373, 16
      %v9448 = vrot.slane %v9446, 5
      %v9449 = vsel %vm692, %v9444, %v9448
      %v9451 = vshrl.u32 %v9374, 16
      %v9453 = vrot.slane %v9451, 4
      %v9454 = vshll.u32 %v9374, 16
      %v9456 = vrot.slane %v9454, 5
      %v9457 = vor.u32 %v9453, %v9456
      %v9458 = vrot.slane %v9457, 4
      %v9460 = vshll.u32 %v9375, 16
      %v9462 = vrot.slane %v9460, 5
      %v9463 = vsel %vm692, %v9458, %v9462
      %v9465 = vshrl.u32 %v9376, 16
      %v9467 = vrot.slane %v9465, 4
      %v9468 = vshll.u32 %v9376, 16
      %v9470 = vrot.slane %v9468, 5
      %v9471 = vor.u32 %v9467, %v9470
      %v9472 = vrot.slane %v9471, 4
      %v9474 = vshll.u32 %v9377, 16
      %v9476 = vrot.slane %v9474, 5
      %v9477 = vsel %vm692, %v9472, %v9476
      %v9479 = vshrl.u32 %v9378, 16
      %v9481 = vrot.slane %v9479, 4
      %v9482 = vshll.u32 %v9378, 16
      %v9484 = vrot.slane %v9482, 5
      %v9485 = vor.u32 %v9481, %v9484
      %v9486 = vrot.slane %v9485, 4
      %v9488 = vshll.u32 %v9379, 16
      %v9490 = vrot.slane %v9488, 5
      %v9491 = vsel %vm692, %v9486, %v9490
      %s9492 = scalar_lea.vmem %s5, 64
      %v9493 = vld [vmem:[%s9492] sm:$0xf]
      %v9494 = vld [vmem:[%s9492 + $0x4] sm:$0xf]
      %v9495 = vld [vmem:[%s9492 + $0x8] sm:$0xf]
      %v9496 = vld [vmem:[%s9492 + $0xc] sm:$0xf]
      %v9497 = vunpack.c.l.b16 %v9393
      %v9498 = vunpack.c.l.b16 %v9407
      %v9499 = vunpack.c.l.b16 %v9421
      %v9500 = vunpack.c.l.b16 %v9435
      %v9501 = vunpack.c.l.b16 %v9449
      %v9502 = vunpack.c.l.b16 %v9463
      %v9503 = vunpack.c.l.b16 %v9477
      %v9504 = vunpack.c.l.b16 %v9491
      %v9505 = vpack.c.b16 %v9498, %v9497
      %v9506 = vpack.c.b16 %v9500, %v9499
      %v9507 = vpack.c.b16 %v9502, %v9501
      %v9508 = vpack.c.b16 %v9504, %v9503
      %v9513 = vunpack.c.l.b16 %v9493
      %v9514 = vunpack.c.l.b16 %v9494
      %v9515 = vunpack.c.l.b16 %v9495
      %v9516 = vunpack.c.l.b16 %v9496
      %v9517 = vpack.c.b16 %v9514, %v9513
      %v9518 = vpack.c.b16 %v9516, %v9515
      %v9522 = vsel %vm7044, %v9505, 0
      %v9525 = vsel %vm7044, %v9506, 0
      %v9528 = vsel %vm7044, %v9507, 0
      %v9531 = vsel %vm7044, %v9508, 0
      %9533 = vmatprep.subr.bf16.mxu0 0
      %9534 = vmatpush1.bf16.msra.mxu0 %v9517
      %9535 = vmatprep.subr.bf16.mxu0 0
      %9536 = vmatpush1.bf16.msra.mxu0 %v9518
      %9537 = vmatprep.subr.bf16.mxu0 0
      %9538 = vmatpush1.bf16.msra.mxu0 0
      %9539 = vmatprep.subr.bf16.mxu0 0
      %9540 = vmatpush1.bf16.msra.mxu0 0
      %9541 = vmatprep.subr.bf16.mxu0 0
      %9542 = vmatpush1.bf16.msra.mxu0 0
      %9543 = vmatprep.subr.bf16.mxu0 0
      %9544 = vmatpush1.bf16.msra.mxu0 0
      %9545 = vmatprep.subr.bf16.mxu0 0
      %9546 = vmatpush1.bf16.msra.mxu0 0
      %9547 = vmatprep.subr.bf16.mxu0 0
      %9548 = vmatpush1.bf16.msra.mxu0 0
      %9549 = vmatprep.subr.bf16.mxu0 0
      %9550 = vmatpush1.bf16.msra.mxu0 0
      %9551 = vmatprep.subr.bf16.mxu0 0
      %9552 = vmatpush1.bf16.msra.mxu0 0
      %9553 = vmatprep.subr.bf16.mxu0 0
      %9554 = vmatpush1.bf16.msra.mxu0 0
      %9555 = vmatprep.subr.bf16.mxu0 0
      %9556 = vmatpush1.bf16.msra.mxu0 0
      %9557 = vmatprep.subr.bf16.mxu0 0
      %9558 = vmatpush1.bf16.msra.mxu0 0
      %9559 = vmatprep.subr.bf16.mxu0 0
      %9560 = vmatpush1.bf16.msra.mxu0 0
      %9561 = vmatprep.subr.bf16.mxu0 0
      %9562 = vmatpush1.bf16.msra.mxu0 0
      %9563 = vmatprep.subr.bf16.mxu0 0
      %9564 = vmatpush1.bf16.msra.mxu0 0
      %9565 = vmatprep.mubr.bf16.mxu0 0
      %9566 = vmatmul.mubr.bf16.gmra.mrb[0].mxu0 %v9522
      %v9567 = vpop.f32.mrb[0].mxu0
      %v9568 = vadd.f32 0.0, %v9567
      %v9569 = vpop.f32.mrb[0].mxu0
      %v9570 = vpop.f32.mrb[0].mxu0
      %v9571 = vadd.f32 0.0, %v9570
      %v9572 = vpop.f32.mrb[0].mxu0
      %9573 = vmatprep.mubr.bf16.mxu0 0
      %9574 = vmatmul.mubr.bf16.gmra.mrb[0].mxu0 %v9525
      %v9575 = vpop.f32.mrb[0].mxu0
      %v9576 = vadd.f32 0.0, %v9575
      %v9577 = vpop.f32.mrb[0].mxu0
      %v9578 = vpop.f32.mrb[0].mxu0
      %v9579 = vadd.f32 0.0, %v9578
      %v9580 = vpop.f32.mrb[0].mxu0
      %9581 = vmatprep.mubr.bf16.mxu0 0
      %9582 = vmatmul.mubr.bf16.gmra.mrb[0].mxu0 %v9528
      %v9583 = vpop.f32.mrb[0].mxu0
      %v9584 = vadd.f32 0.0, %v9583
      %v9585 = vpop.f32.mrb[0].mxu0
      %v9586 = vpop.f32.mrb[0].mxu0
      %v9587 = vadd.f32 0.0, %v9586
      %v9588 = vpop.f32.mrb[0].mxu0
      %9589 = vmatprep.mubr.bf16.mxu0 0
      %9590 = vmatmul.mubr.bf16.gmra.mrb[0].mxu0 %v9531
      %v9591 = vpop.f32.mrb[0].mxu0
      %v9592 = vadd.f32 0.0, %v9591
      %v9593 = vpop.f32.mrb[0].mxu0
      %v9594 = vpop.f32.mrb[0].mxu0
      %v9595 = vadd.f32 0.0, %v9594
      %v9596 = vpop.f32.mrb[0].mxu0
      %9597 = vdwg.mxu0
      %v9598 = vadd.f32 %v9356, %v9568
      %v9599 = vadd.f32 %v9357, %v9571
      %v9600 = vadd.f32 %v9358, %v9576
      %v9601 = vadd.f32 %v9359, %v9579
      %v9602 = vadd.f32 %v9360, %v9584
      %v9603 = vadd.f32 %v9361, %v9587
      %v9604 = vadd.f32 %v9362, %v9592
      %v9605 = vadd.f32 %v9363, %v9595
      %v9606 = vld [vmem:[%s8662] sm:$0xe]
      %v9607 = vld [vmem:[%s8662 + $0x8] sm:$0xe]
      %v9608 = vld [vmem:[%s8662 + $0x10] sm:$0xe]
      %v9609 = vld [vmem:[%s8662 + $0x18] sm:$0xe]
      %v9610 = vld [vmem:[%s8662 + $0x20] sm:$0xe]
      %v9611 = vld [vmem:[%s8662 + $0x28] sm:$0xe]
      %v9612 = vld [vmem:[%s8662 + $0x30] sm:$0xe]
      %v9613 = vld [vmem:[%s8662 + $0x38] sm:$0xe]
      %v9630 = vrot.slane %v9606, 5
      %v9631 = vrot.slane %v9630, 4
      %v9632 = vrot.slane %v9365, 5
      %v9633 = vsel %vm9087, %v9631, %v9632
      %v9634 = vrot.slane %v9607, 5
      %v9635 = vrot.slane %v9634, 4
      %v9636 = vrot.slane %v9367, 5
      %v9637 = vsel %vm9087, %v9635, %v9636
      %v9638 = vrot.slane %v9608, 5
      %v9639 = vrot.slane %v9638, 4
      %v9640 = vrot.slane %v9369, 5
      %v9641 = vsel %vm9087, %v9639, %v9640
      %v9642 = vrot.slane %v9609, 5
      %v9643 = vrot.slane %v9642, 4
      %v9644 = vrot.slane %v9371, 5
      %v9645 = vsel %vm9087, %v9643, %v9644
      %v9646 = vrot.slane %v9610, 5
      %v9647 = vrot.slane %v9646, 4
      %v9648 = vrot.slane %v9373, 5
      %v9649 = vsel %vm9087, %v9647, %v9648
      %v9650 = vrot.slane %v9611, 5
      %v9651 = vrot.slane %v9650, 4
      %v9652 = vrot.slane %v9375, 5
      %v9653 = vsel %vm9087, %v9651, %v9652
      %v9654 = vrot.slane %v9612, 5
      %v9655 = vrot.slane %v9654, 4
      %v9656 = vrot.slane %v9377, 5
      %v9657 = vsel %vm9087, %v9655, %v9656
      %v9658 = vrot.slane %v9613, 5
      %v9659 = vrot.slane %v9658, 4
      %v9660 = vrot.slane %v9379, 5
      %v9661 = vsel %vm9087, %v9659, %v9660
      %s9662 = scalar_lea.vmem %s5, 80
      %v9663 = vld [vmem:[%s9662] sm:$0xf]
      %v9664 = vld [vmem:[%s9662 + $0x4] sm:$0xf]
      %v9665 = vld [vmem:[%s9662 + $0x8] sm:$0xf]
      %v9666 = vld [vmem:[%s9662 + $0xc] sm:$0xf]
      %v9667 = vunpack.c.l.b16 %v9633
      %v9668 = vunpack.c.l.b16 %v9637
      %v9669 = vunpack.c.l.b16 %v9641
      %v9670 = vunpack.c.l.b16 %v9645
      %v9671 = vunpack.c.l.b16 %v9649
      %v9672 = vunpack.c.l.b16 %v9653
      %v9673 = vunpack.c.l.b16 %v9657
      %v9674 = vunpack.c.l.b16 %v9661
      %v9675 = vpack.c.b16 %v9668, %v9667
      %v9676 = vpack.c.b16 %v9670, %v9669
      %v9677 = vpack.c.b16 %v9672, %v9671
      %v9678 = vpack.c.b16 %v9674, %v9673
      %v9683 = vunpack.c.l.b16 %v9663
      %v9684 = vunpack.c.l.b16 %v9664
      %v9685 = vunpack.c.l.b16 %v9665
      %v9686 = vunpack.c.l.b16 %v9666
      %v9687 = vpack.c.b16 %v9684, %v9683
      %v9688 = vpack.c.b16 %v9686, %v9685
      %v9692 = vsel %vm7044, %v9675, 0
      %v9695 = vsel %vm7044, %v9676, 0
      %v9698 = vsel %vm7044, %v9677, 0
      %v9701 = vsel %vm7044, %v9678, 0
      %9703 = vmatprep.subr.bf16.mxu0 0
      %9704 = vmatpush1.bf16.msra.mxu0 %v9687
      %9705 = vmatprep.subr.bf16.mxu0 0
      %9706 = vmatpush1.bf16.msra.mxu0 %v9688
      %9707 = vmatprep.subr.bf16.mxu0 0
      %9708 = vmatpush1.bf16.msra.mxu0 0
      %9709 = vmatprep.subr.bf16.mxu0 0
      %9710 = vmatpush1.bf16.msra.mxu0 0
      %9711 = vmatprep.subr.bf16.mxu0 0
      %9712 = vmatpush1.bf16.msra.mxu0 0
      %9713 = vmatprep.subr.bf16.mxu0 0
      %9714 = vmatpush1.bf16.msra.mxu0 0
      %9715 = vmatprep.subr.bf16.mxu0 0
      %9716 = vmatpush1.bf16.msra.mxu0 0
      %9717 = vmatprep.subr.bf16.mxu0 0
      %9718 = vmatpush1.bf16.msra.mxu0 0
      %9719 = vmatprep.subr.bf16.mxu0 0
      %9720 = vmatpush1.bf16.msra.mxu0 0
      %9721 = vmatprep.subr.bf16.mxu0 0
      %9722 = vmatpush1.bf16.msra.mxu0 0
      %9723 = vmatprep.subr.bf16.mxu0 0
      %9724 = vmatpush1.bf16.msra.mxu0 0
      %9725 = vmatprep.subr.bf16.mxu0 0
      %9726 = vmatpush1.bf16.msra.mxu0 0
      %9727 = vmatprep.subr.bf16.mxu0 0
      %9728 = vmatpush1.bf16.msra.mxu0 0
      %9729 = vmatprep.subr.bf16.mxu0 0
      %9730 = vmatpush1.bf16.msra.mxu0 0
      %9731 = vmatprep.subr.bf16.mxu0 0
      %9732 = vmatpush1.bf16.msra.mxu0 0
      %9733 = vmatprep.subr.bf16.mxu0 0
      %9734 = vmatpush1.bf16.msra.mxu0 0
      %9735 = vmatprep.mubr.bf16.mxu0 0
      %9736 = vmatmul.mubr.bf16.gmra.mrb[0].mxu0 %v9692
      %v9737 = vpop.f32.mrb[0].mxu0
      %v9738 = vadd.f32 0.0, %v9737
      %v9739 = vpop.f32.mrb[0].mxu0
      %v9740 = vpop.f32.mrb[0].mxu0
      %v9741 = vadd.f32 0.0, %v9740
      %v9742 = vpop.f32.mrb[0].mxu0
      %9743 = vmatprep.mubr.bf16.mxu0 0
      %9744 = vmatmul.mubr.bf16.gmra.mrb[0].mxu0 %v9695
      %v9745 = vpop.f32.mrb[0].mxu0
      %v9746 = vadd.f32 0.0, %v9745
      %v9747 = vpop.f32.mrb[0].mxu0
      %v9748 = vpop.f32.mrb[0].mxu0
      %v9749 = vadd.f32 0.0, %v9748
      %v9750 = vpop.f32.mrb[0].mxu0
      %9751 = vmatprep.mubr.bf16.mxu0 0
      %9752 = vmatmul.mubr.bf16.gmra.mrb[0].mxu0 %v9698
      %v9753 = vpop.f32.mrb[0].mxu0
      %v9754 = vadd.f32 0.0, %v9753
      %v9755 = vpop.f32.mrb[0].mxu0
      %v9756 = vpop.f32.mrb[0].mxu0
      %v9757 = vadd.f32 0.0, %v9756
      %v9758 = vpop.f32.mrb[0].mxu0
      %9759 = vmatprep.mubr.bf16.mxu0 0
      %9760 = vmatmul.mubr.bf16.gmra.mrb[0].mxu0 %v9701
      %v9761 = vpop.f32.mrb[0].mxu0
      %v9762 = vadd.f32 0.0, %v9761
      %v9763 = vpop.f32.mrb[0].mxu0
      %v9764 = vpop.f32.mrb[0].mxu0
      %v9765 = vadd.f32 0.0, %v9764
      %v9766 = vpop.f32.mrb[0].mxu0
      %9767 = vdwg.mxu0
      %v9768 = vadd.f32 %v9598, %v9738
      %v9769 = vadd.f32 %v9599, %v9741
      %v9770 = vadd.f32 %v9600, %v9746
      %v9771 = vadd.f32 %v9601, %v9749
      %v9772 = vadd.f32 %v9602, %v9754
      %v9773 = vadd.f32 %v9603, %v9757
      %v9774 = vadd.f32 %v9604, %v9762
      %v9775 = vadd.f32 %v9605, %v9765
      %s9776 = scalar_lea.vmem [#allocation3], 16
      %v9777 = vld [vmem:[%s9776] sm:$0xf]
      %v9778 = vld [vmem:[%s9776 + $0x8] sm:$0xf]
      %v9779 = vld [vmem:[%s9776 + $0x10] sm:$0xf]
      %v9780 = vld [vmem:[%s9776 + $0x18] sm:$0xf]
      %v9781 = vld [vmem:[%s9776 + $0x20] sm:$0xf]
      %v9782 = vld [vmem:[%s9776 + $0x28] sm:$0xf]
      %v9783 = vld [vmem:[%s9776 + $0x30] sm:$0xf]
      %v9784 = vld [vmem:[%s9776 + $0x38] sm:$0xf]
      %s9785 = scalar_lea.vmem %s5, 96
      %v9786 = vld [vmem:[%s9785] sm:$0xf]
      %v9787 = vld [vmem:[%s9785 + $0x4] sm:$0xf]
      %v9788 = vld [vmem:[%s9785 + $0x8] sm:$0xf]
      %v9789 = vld [vmem:[%s9785 + $0xc] sm:$0xf]
      %v9798 = vunpack.c.l.b16 %v9777
      %v9799 = vunpack.c.l.b16 %v9778
      %v9800 = vunpack.c.l.b16 %v9779
      %v9801 = vunpack.c.l.b16 %v9780
      %v9802 = vunpack.c.l.b16 %v9781
      %v9803 = vunpack.c.l.b16 %v9782
      %v9804 = vunpack.c.l.b16 %v9783
      %v9805 = vunpack.c.l.b16 %v9784
      %v9806 = vpack.c.b16 %v9799, %v9798
      %v9807 = vpack.c.b16 %v9801, %v9800
      %v9808 = vpack.c.b16 %v9803, %v9802
      %v9809 = vpack.c.b16 %v9805, %v9804
      %v9814 = vunpack.c.l.b16 %v9786
      %v9815 = vunpack.c.l.b16 %v9787
      %v9816 = vunpack.c.l.b16 %v9788
      %v9817 = vunpack.c.l.b16 %v9789
      %v9818 = vpack.c.b16 %v9815, %v9814
      %v9819 = vpack.c.b16 %v9817, %v9816
      %v9823 = vsel %vm7044, %v9806, 0
      %v9826 = vsel %vm7044, %v9807, 0
      %v9829 = vsel %vm7044, %v9808, 0
      %v9832 = vsel %vm7044, %v9809, 0
      %9834 = vmatprep.subr.bf16.mxu0 0
      %9835 = vmatpush1.bf16.msra.mxu0 %v9818
      %9836 = vmatprep.subr.bf16.mxu0 0
      %9837 = vmatpush1.bf16.msra.mxu0 %v9819
      %9838 = vmatprep.subr.bf16.mxu0 0
      %9839 = vmatpush1.bf16.msra.mxu0 0
      %9840 = vmatprep.subr.bf16.mxu0 0
      %9841 = vmatpush1.bf16.msra.mxu0 0
      %9842 = vmatprep.subr.bf16.mxu0 0
      %9843 = vmatpush1.bf16.msra.mxu0 0
      %9844 = vmatprep.subr.bf16.mxu0 0
      %9845 = vmatpush1.bf16.msra.mxu0 0
      %9846 = vmatprep.subr.bf16.mxu0 0
      %9847 = vmatpush1.bf16.msra.mxu0 0
      %9848 = vmatprep.subr.bf16.mxu0 0
      %9849 = vmatpush1.bf16.msra.mxu0 0
      %9850 = vmatprep.subr.bf16.mxu0 0
      %9851 = vmatpush1.bf16.msra.mxu0 0
      %9852 = vmatprep.subr.bf16.mxu0 0
      %9853 = vmatpush1.bf16.msra.mxu0 0
      %9854 = vmatprep.subr.bf16.mxu0 0
      %9855 = vmatpush1.bf16.msra.mxu0 0
      %9856 = vmatprep.subr.bf16.mxu0 0
      %9857 = vmatpush1.bf16.msra.mxu0 0
      %9858 = vmatprep.subr.bf16.mxu0 0
      %9859 = vmatpush1.bf16.msra.mxu0 0
      %9860 = vmatprep.subr.bf16.mxu0 0
      %9861 = vmatpush1.bf16.msra.mxu0 0
      %9862 = vmatprep.subr.bf16.mxu0 0
      %9863 = vmatpush1.bf16.msra.mxu0 0
      %9864 = vmatprep.subr.bf16.mxu0 0
      %9865 = vmatpush1.bf16.msra.mxu0 0
      %9866 = vmatprep.mubr.bf16.mxu0 0
      %9867 = vmatmul.mubr.bf16.gmra.mrb[0].mxu0 %v9823
      %v9868 = vpop.f32.mrb[0].mxu0
      %v9869 = vadd.f32 0.0, %v9868
      %v9870 = vpop.f32.mrb[0].mxu0
      %v9871 = vpop.f32.mrb[0].mxu0
      %v9872 = vadd.f32 0.0, %v9871
      %v9873 = vpop.f32.mrb[0].mxu0
      %9874 = vmatprep.mubr.bf16.mxu0 0
      %9875 = vmatmul.mubr.bf16.gmra.mrb[0].mxu0 %v9826
      %v9876 = vpop.f32.mrb[0].mxu0
      %v9877 = vadd.f32 0.0, %v9876
      %v9878 = vpop.f32.mrb[0].mxu0
      %v9879 = vpop.f32.mrb[0].mxu0
      %v9880 = vadd.f32 0.0, %v9879
      %v9881 = vpop.f32.mrb[0].mxu0
      %9882 = vmatprep.mubr.bf16.mxu0 0
      %9883 = vmatmul.mubr.bf16.gmra.mrb[0].mxu0 %v9829
      %v9884 = vpop.f32.mrb[0].mxu0
      %v9885 = vadd.f32 0.0, %v9884
      %v9886 = vpop.f32.mrb[0].mxu0
      %v9887 = vpop.f32.mrb[0].mxu0
      %v9888 = vadd.f32 0.0, %v9887
      %v9889 = vpop.f32.mrb[0].mxu0
      %9890 = vmatprep.mubr.bf16.mxu0 0
      %9891 = vmatmul.mubr.bf16.gmra.mrb[0].mxu0 %v9832
      %v9892 = vpop.f32.mrb[0].mxu0
      %v9893 = vadd.f32 0.0, %v9892
      %v9894 = vpop.f32.mrb[0].mxu0
      %v9895 = vpop.f32.mrb[0].mxu0
      %v9896 = vadd.f32 0.0, %v9895
      %v9897 = vpop.f32.mrb[0].mxu0
      %9898 = vdwg.mxu0
      %v9899 = vadd.f32 %v9768, %v9869
      %v9900 = vadd.f32 %v9769, %v9872
      %v9901 = vadd.f32 %v9770, %v9877
      %v9902 = vadd.f32 %v9771, %v9880
      %v9903 = vadd.f32 %v9772, %v9885
      %v9904 = vadd.f32 %v9773, %v9888
      %v9905 = vadd.f32 %v9774, %v9893
      %v9906 = vadd.f32 %v9775, %v9896
      %v9907 = vld [vmem:[%s9776] sm:$0xf]
      %v9908 = vld [vmem:[%s9776 + $0x4] sm:$0x1]
      %v9909 = vld [vmem:[%s9776 + $0x8] sm:$0xf]
      %v9910 = vld [vmem:[%s9776 + $0xc] sm:$0x1]
      %v9911 = vld [vmem:[%s9776 + $0x10] sm:$0xf]
      %v9912 = vld [vmem:[%s9776 + $0x14] sm:$0x1]
      %v9913 = vld [vmem:[%s9776 + $0x18] sm:$0xf]
      %v9914 = vld [vmem:[%s9776 + $0x1c] sm:$0x1]
      %v9915 = vld [vmem:[%s9776 + $0x20] sm:$0xf]
      %v9916 = vld [vmem:[%s9776 + $0x24] sm:$0x1]
      %v9917 = vld [vmem:[%s9776 + $0x28] sm:$0xf]
      %v9918 = vld [vmem:[%s9776 + $0x2c] sm:$0x1]
      %v9919 = vld [vmem:[%s9776 + $0x30] sm:$0xf]
      %v9920 = vld [vmem:[%s9776 + $0x34] sm:$0x1]
      %v9921 = vld [vmem:[%s9776 + $0x38] sm:$0xf]
      %v9922 = vld [vmem:[%s9776 + $0x3c] sm:$0x1]
      %v9924 = vshrl.u32 %v9907, 16
      %v9926 = vrot.slane %v9924, 4
      %v9927 = vshll.u32 %v9907, 16
      %v9929 = vrot.slane %v9927, 5
      %v9930 = vor.u32 %v9926, %v9929
      %v9931 = vrot.slane %v9930, 4
      %v9933 = vshll.u32 %v9908, 16
      %v9935 = vrot.slane %v9933, 5
      %v9936 = vsel %vm692, %v9931, %v9935
      %v9938 = vshrl.u32 %v9909, 16
      %v9940 = vrot.slane %v9938, 4
      %v9941 = vshll.u32 %v9909, 16
      %v9943 = vrot.slane %v9941, 5
      %v9944 = vor.u32 %v9940, %v9943
      %v9945 = vrot.slane %v9944, 4
      %v9947 = vshll.u32 %v9910, 16
      %v9949 = vrot.slane %v9947, 5
      %v9950 = vsel %vm692, %v9945, %v9949
      %v9952 = vshrl.u32 %v9911, 16
      %v9954 = vrot.slane %v9952, 4
      %v9955 = vshll.u32 %v9911, 16
      %v9957 = vrot.slane %v9955, 5
      %v9958 = vor.u32 %v9954, %v9957
      %v9959 = vrot.slane %v9958, 4
      %v9961 = vshll.u32 %v9912, 16
      %v9963 = vrot.slane %v9961, 5
      %v9964 = vsel %vm692, %v9959, %v9963
      %v9966 = vshrl.u32 %v9913, 16
      %v9968 = vrot.slane %v9966, 4
      %v9969 = vshll.u32 %v9913, 16
      %v9971 = vrot.slane %v9969, 5
      %v9972 = vor.u32 %v9968, %v9971
      %v9973 = vrot.slane %v9972, 4
      %v9975 = vshll.u32 %v9914, 16
      %v9977 = vrot.slane %v9975, 5
      %v9978 = vsel %vm692, %v9973, %v9977
      %v9980 = vshrl.u32 %v9915, 16
      %v9982 = vrot.slane %v9980, 4
      %v9983 = vshll.u32 %v9915, 16
      %v9985 = vrot.slane %v9983, 5
      %v9986 = vor.u32 %v9982, %v9985
      %v9987 = vrot.slane %v9986, 4
      %v9989 = vshll.u32 %v9916, 16
      %v9991 = vrot.slane %v9989, 5
      %v9992 = vsel %vm692, %v9987, %v9991
      %v9994 = vshrl.u32 %v9917, 16
      %v9996 = vrot.slane %v9994, 4
      %v9997 = vshll.u32 %v9917, 16
      %v9999 = vrot.slane %v9997, 5
      %v10000 = vor.u32 %v9996, %v9999
      %v10001 = vrot.slane %v10000, 4
      %v10003 = vshll.u32 %v9918, 16
      %v10005 = vrot.slane %v10003, 5
      %v10006 = vsel %vm692, %v10001, %v10005
      %v10008 = vshrl.u32 %v9919, 16
      %v10010 = vrot.slane %v10008, 4
      %v10011 = vshll.u32 %v9919, 16
      %v10013 = vrot.slane %v10011, 5
      %v10014 = vor.u32 %v10010, %v10013
      %v10015 = vrot.slane %v10014, 4
      %v10017 = vshll.u32 %v9920, 16
      %v10019 = vrot.slane %v10017, 5
      %v10020 = vsel %vm692, %v10015, %v10019
      %v10022 = vshrl.u32 %v9921, 16
      %v10024 = vrot.slane %v10022, 4
      %v10025 = vshll.u32 %v9921, 16
      %v10027 = vrot.slane %v10025, 5
      %v10028 = vor.u32 %v10024, %v10027
      %v10029 = vrot.slane %v10028, 4
      %v10031 = vshll.u32 %v9922, 16
      %v10033 = vrot.slane %v10031, 5
      %v10034 = vsel %vm692, %v10029, %v10033
      %s10035 = scalar_lea.vmem %s5, 112
      %v10036 = vld [vmem:[%s10035] sm:$0xf]
      %v10037 = vld [vmem:[%s10035 + $0x4] sm:$0xf]
      %v10038 = vld [vmem:[%s10035 + $0x8] sm:$0xf]
      %v10039 = vld [vmem:[%s10035 + $0xc] sm:$0xf]
      %v10040 = vunpack.c.l.b16 %v9936
      %v10041 = vunpack.c.l.b16 %v9950
      %v10042 = vunpack.c.l.b16 %v9964
      %v10043 = vunpack.c.l.b16 %v9978
      %v10044 = vunpack.c.l.b16 %v9992
      %v10045 = vunpack.c.l.b16 %v10006
      %v10046 = vunpack.c.l.b16 %v10020
      %v10047 = vunpack.c.l.b16 %v10034
      %v10048 = vpack.c.b16 %v10041, %v10040
      %v10049 = vpack.c.b16 %v10043, %v10042
      %v10050 = vpack.c.b16 %v10045, %v10044
      %v10051 = vpack.c.b16 %v10047, %v10046
      %v10056 = vunpack.c.l.b16 %v10036
      %v10057 = vunpack.c.l.b16 %v10037
      %v10058 = vunpack.c.l.b16 %v10038
      %v10059 = vunpack.c.l.b16 %v10039
      %v10060 = vpack.c.b16 %v10057, %v10056
      %v10061 = vpack.c.b16 %v10059, %v10058
      %v10065 = vsel %vm7044, %v10048, 0
      %v10068 = vsel %vm7044, %v10049, 0
      %v10071 = vsel %vm7044, %v10050, 0
      %v10074 = vsel %vm7044, %v10051, 0
      %10076 = vmatprep.subr.bf16.mxu0 0
      %10077 = vmatpush1.bf16.msra.mxu0 %v10060
      %10078 = vmatprep.subr.bf16.mxu0 0
      %10079 = vmatpush1.bf16.msra.mxu0 %v10061
      %10080 = vmatprep.subr.bf16.mxu0 0
      %10081 = vmatpush1.bf16.msra.mxu0 0
      %10082 = vmatprep.subr.bf16.mxu0 0
      %10083 = vmatpush1.bf16.msra.mxu0 0
      %10084 = vmatprep.subr.bf16.mxu0 0
      %10085 = vmatpush1.bf16.msra.mxu0 0
      %10086 = vmatprep.subr.bf16.mxu0 0
      %10087 = vmatpush1.bf16.msra.mxu0 0
      %10088 = vmatprep.subr.bf16.mxu0 0
      %10089 = vmatpush1.bf16.msra.mxu0 0
      %10090 = vmatprep.subr.bf16.mxu0 0
      %10091 = vmatpush1.bf16.msra.mxu0 0
      %10092 = vmatprep.subr.bf16.mxu0 0
      %10093 = vmatpush1.bf16.msra.mxu0 0
      %10094 = vmatprep.subr.bf16.mxu0 0
      %10095 = vmatpush1.bf16.msra.mxu0 0
      %10096 = vmatprep.subr.bf16.mxu0 0
      %10097 = vmatpush1.bf16.msra.mxu0 0
      %10098 = vmatprep.subr.bf16.mxu0 0
      %10099 = vmatpush1.bf16.msra.mxu0 0
      %10100 = vmatprep.subr.bf16.mxu0 0
      %10101 = vmatpush1.bf16.msra.mxu0 0
      %10102 = vmatprep.subr.bf16.mxu0 0
      %10103 = vmatpush1.bf16.msra.mxu0 0
      %10104 = vmatprep.subr.bf16.mxu0 0
      %10105 = vmatpush1.bf16.msra.mxu0 0
      %10106 = vmatprep.subr.bf16.mxu0 0
      %10107 = vmatpush1.bf16.msra.mxu0 0
      %10108 = vmatprep.mubr.bf16.mxu0 0
      %10109 = vmatmul.mubr.bf16.gmra.mrb[0].mxu0 %v10065
      %v10110 = vpop.f32.mrb[0].mxu0
      %v10111 = vadd.f32 0.0, %v10110
      %v10112 = vpop.f32.mrb[0].mxu0
      %v10113 = vpop.f32.mrb[0].mxu0
      %v10114 = vadd.f32 0.0, %v10113
      %v10115 = vpop.f32.mrb[0].mxu0
      %10116 = vmatprep.mubr.bf16.mxu0 0
      %10117 = vmatmul.mubr.bf16.gmra.mrb[0].mxu0 %v10068
      %v10118 = vpop.f32.mrb[0].mxu0
      %v10119 = vadd.f32 0.0, %v10118
      %v10120 = vpop.f32.mrb[0].mxu0
      %v10121 = vpop.f32.mrb[0].mxu0
      %v10122 = vadd.f32 0.0, %v10121
      %v10123 = vpop.f32.mrb[0].mxu0
      %10124 = vmatprep.mubr.bf16.mxu0 0
      %10125 = vmatmul.mubr.bf16.gmra.mrb[0].mxu0 %v10071
      %v10126 = vpop.f32.mrb[0].mxu0
      %v10127 = vadd.f32 0.0, %v10126
      %v10128 = vpop.f32.mrb[0].mxu0
      %v10129 = vpop.f32.mrb[0].mxu0
      %v10130 = vadd.f32 0.0, %v10129
      %v10131 = vpop.f32.mrb[0].mxu0
      %10132 = vmatprep.mubr.bf16.mxu0 0
      %10133 = vmatmul.mubr.bf16.gmra.mrb[0].mxu0 %v10074
      %v10134 = vpop.f32.mrb[0].mxu0
      %v10135 = vadd.f32 0.0, %v10134
      %v10136 = vpop.f32.mrb[0].mxu0
      %v10137 = vpop.f32.mrb[0].mxu0
      %v10138 = vadd.f32 0.0, %v10137
      %v10139 = vpop.f32.mrb[0].mxu0
      %10140 = vdwg.mxu0
      %v10141 = vadd.f32 %v9899, %v10111
      %v10142 = vadd.f32 %v9900, %v10114
      %v10143 = vadd.f32 %v9901, %v10119
      %v10144 = vadd.f32 %v9902, %v10122
      %v10145 = vadd.f32 %v9903, %v10127
      %v10146 = vadd.f32 %v9904, %v10130
      %v10147 = vadd.f32 %v9905, %v10135
      %v10148 = vadd.f32 %v9906, %v10138
      %v10149 = vld [vmem:[%s9776] sm:$0xe]
      %v10150 = vld [vmem:[%s9776 + $0x8] sm:$0xe]
      %v10151 = vld [vmem:[%s9776 + $0x10] sm:$0xe]
      %v10152 = vld [vmem:[%s9776 + $0x18] sm:$0xe]
      %v10153 = vld [vmem:[%s9776 + $0x20] sm:$0xe]
      %v10154 = vld [vmem:[%s9776 + $0x28] sm:$0xe]
      %v10155 = vld [vmem:[%s9776 + $0x30] sm:$0xe]
      %v10156 = vld [vmem:[%s9776 + $0x38] sm:$0xe]
      %v10173 = vrot.slane %v10149, 5
      %v10174 = vrot.slane %v10173, 4
      %v10175 = vrot.slane %v9908, 5
      %v10176 = vsel %vm9087, %v10174, %v10175
      %v10177 = vrot.slane %v10150, 5
      %v10178 = vrot.slane %v10177, 4
      %v10179 = vrot.slane %v9910, 5
      %v10180 = vsel %vm9087, %v10178, %v10179
      %v10181 = vrot.slane %v10151, 5
      %v10182 = vrot.slane %v10181, 4
      %v10183 = vrot.slane %v9912, 5
      %v10184 = vsel %vm9087, %v10182, %v10183
      %v10185 = vrot.slane %v10152, 5
      %v10186 = vrot.slane %v10185, 4
      %v10187 = vrot.slane %v9914, 5
      %v10188 = vsel %vm9087, %v10186, %v10187
      %v10189 = vrot.slane %v10153, 5
      %v10190 = vrot.slane %v10189, 4
      %v10191 = vrot.slane %v9916, 5
      %v10192 = vsel %vm9087, %v10190, %v10191
      %v10193 = vrot.slane %v10154, 5
      %v10194 = vrot.slane %v10193, 4
      %v10195 = vrot.slane %v9918, 5
      %v10196 = vsel %vm9087, %v10194, %v10195
      %v10197 = vrot.slane %v10155, 5
      %v10198 = vrot.slane %v10197, 4
      %v10199 = vrot.slane %v9920, 5
      %v10200 = vsel %vm9087, %v10198, %v10199
      %v10201 = vrot.slane %v10156, 5
      %v10202 = vrot.slane %v10201, 4
      %v10203 = vrot.slane %v9922, 5
      %v10204 = vsel %vm9087, %v10202, %v10203
      %s10205 = scalar_lea.vmem %s5, 128
      %v10206 = vld [vmem:[%s10205] sm:$0xf]
      %v10207 = vld [vmem:[%s10205 + $0x4] sm:$0xf]
      %v10208 = vld [vmem:[%s10205 + $0x8] sm:$0xf]
      %v10209 = vld [vmem:[%s10205 + $0xc] sm:$0xf]
      %v10210 = vunpack.c.l.b16 %v10176
      %v10211 = vunpack.c.l.b16 %v10180
      %v10212 = vunpack.c.l.b16 %v10184
      %v10213 = vunpack.c.l.b16 %v10188
      %v10214 = vunpack.c.l.b16 %v10192
      %v10215 = vunpack.c.l.b16 %v10196
      %v10216 = vunpack.c.l.b16 %v10200
      %v10217 = vunpack.c.l.b16 %v10204
      %v10218 = vpack.c.b16 %v10211, %v10210
      %v10219 = vpack.c.b16 %v10213, %v10212
      %v10220 = vpack.c.b16 %v10215, %v10214
      %v10221 = vpack.c.b16 %v10217, %v10216
      %v10226 = vunpack.c.l.b16 %v10206
      %v10227 = vunpack.c.l.b16 %v10207
      %v10228 = vunpack.c.l.b16 %v10208
      %v10229 = vunpack.c.l.b16 %v10209
      %v10230 = vpack.c.b16 %v10227, %v10226
      %v10231 = vpack.c.b16 %v10229, %v10228
      %v10235 = vsel %vm7044, %v10218, 0
      %v10238 = vsel %vm7044, %v10219, 0
      %v10241 = vsel %vm7044, %v10220, 0
      %v10244 = vsel %vm7044, %v10221, 0
      %10246 = vmatprep.subr.bf16.mxu0 0
      %10247 = vmatpush1.bf16.msra.mxu0 %v10230
      %10248 = vmatprep.subr.bf16.mxu0 0
      %10249 = vmatpush1.bf16.msra.mxu0 %v10231
      %10250 = vmatprep.subr.bf16.mxu0 0
      %10251 = vmatpush1.bf16.msra.mxu0 0
      %10252 = vmatprep.subr.bf16.mxu0 0
      %10253 = vmatpush1.bf16.msra.mxu0 0
      %10254 = vmatprep.subr.bf16.mxu0 0
      %10255 = vmatpush1.bf16.msra.mxu0 0
      %10256 = vmatprep.subr.bf16.mxu0 0
      %10257 = vmatpush1.bf16.msra.mxu0 0
      %10258 = vmatprep.subr.bf16.mxu0 0
      %10259 = vmatpush1.bf16.msra.mxu0 0
      %10260 = vmatprep.subr.bf16.mxu0 0
      %10261 = vmatpush1.bf16.msra.mxu0 0
      %10262 = vmatprep.subr.bf16.mxu0 0
      %10263 = vmatpush1.bf16.msra.mxu0 0
      %10264 = vmatprep.subr.bf16.mxu0 0
      %10265 = vmatpush1.bf16.msra.mxu0 0
      %10266 = vmatprep.subr.bf16.mxu0 0
      %10267 = vmatpush1.bf16.msra.mxu0 0
      %10268 = vmatprep.subr.bf16.mxu0 0
      %10269 = vmatpush1.bf16.msra.mxu0 0
      %10270 = vmatprep.subr.bf16.mxu0 0
      %10271 = vmatpush1.bf16.msra.mxu0 0
      %10272 = vmatprep.subr.bf16.mxu0 0
      %10273 = vmatpush1.bf16.msra.mxu0 0
      %10274 = vmatprep.subr.bf16.mxu0 0
      %10275 = vmatpush1.bf16.msra.mxu0 0
      %10276 = vmatprep.subr.bf16.mxu0 0
      %10277 = vmatpush1.bf16.msra.mxu0 0
      %10278 = vmatprep.mubr.bf16.mxu0 0
      %10279 = vmatmul.mubr.bf16.gmra.mrb[0].mxu0 %v10235
      %v10280 = vpop.f32.mrb[0].mxu0
      %v10281 = vadd.f32 0.0, %v10280
      %v10282 = vpop.f32.mrb[0].mxu0
      %v10283 = vpop.f32.mrb[0].mxu0
      %v10284 = vadd.f32 0.0, %v10283
      %v10285 = vpop.f32.mrb[0].mxu0
      %10286 = vmatprep.mubr.bf16.mxu0 0
      %10287 = vmatmul.mubr.bf16.gmra.mrb[0].mxu0 %v10238
      %v10288 = vpop.f32.mrb[0].mxu0
      %v10289 = vadd.f32 0.0, %v10288
      %v10290 = vpop.f32.mrb[0].mxu0
      %v10291 = vpop.f32.mrb[0].mxu0
      %v10292 = vadd.f32 0.0, %v10291
      %v10293 = vpop.f32.mrb[0].mxu0
      %10294 = vmatprep.mubr.bf16.mxu0 0
      %10295 = vmatmul.mubr.bf16.gmra.mrb[0].mxu0 %v10241
      %v10296 = vpop.f32.mrb[0].mxu0
      %v10297 = vadd.f32 0.0, %v10296
      %v10298 = vpop.f32.mrb[0].mxu0
      %v10299 = vpop.f32.mrb[0].mxu0
      %v10300 = vadd.f32 0.0, %v10299
      %v10301 = vpop.f32.mrb[0].mxu0
      %10302 = vmatprep.mubr.bf16.mxu0 0
      %10303 = vmatmul.mubr.bf16.gmra.mrb[0].mxu0 %v10244
      %v10304 = vpop.f32.mrb[0].mxu0
      %v10305 = vadd.f32 0.0, %v10304
      %v10306 = vpop.f32.mrb[0].mxu0
      %v10307 = vpop.f32.mrb[0].mxu0
      %v10308 = vadd.f32 0.0, %v10307
      %v10309 = vpop.f32.mrb[0].mxu0
      %10310 = vdwg.mxu0
      %v10311 = vadd.f32 %v10141, %v10281
      %v10312 = vadd.f32 %v10142, %v10284
      %v10313 = vadd.f32 %v10143, %v10289
      %v10314 = vadd.f32 %v10144, %v10292
      %v10315 = vadd.f32 %v10145, %v10297
      %v10316 = vadd.f32 %v10146, %v10300
      %v10317 = vadd.f32 %v10147, %v10305
      %v10318 = vadd.f32 %v10148, %v10308
      %v10319 = vld [vmem:[%s6] sm:$0x1]
      %v10321 = vlaneseq
      %v10322 = vshrl.u32 %v10321, 7
      %v10323 = vsub.s32 0, %v10322
      %v10324 = vrot.slane %v10319, %v10323
      %v10326 = vadd.f32 %v10311, %v10324
      %v10327 = vadd.f32 %v10312, %v10324
      %v10328 = vadd.f32 %v10313, %v10324
      %v10329 = vadd.f32 %v10314, %v10324
      %v10330 = vadd.f32 %v10315, %v10324
      %v10331 = vadd.f32 %v10316, %v10324
      %v10332 = vadd.f32 %v10317, %v10324
      %v10333 = vadd.f32 %v10318, %v10324
      %vm10334 = vcmask 64512
      %10335 = vst.msk [vmem:[%s278] sm:$0xff] %vm10334, %v10326
      %10336 = vst.msk [vmem:[%s278 + $0x8] sm:$0xff] %vm10334, %v10327
      %10337 = vst.msk [vmem:[%s278 + $0x10] sm:$0xff] %vm10334, %v10328
      %10338 = vst.msk [vmem:[%s278 + $0x18] sm:$0xff] %vm10334, %v10329
      %10339 = vst.msk [vmem:[%s278 + $0x20] sm:$0xff] %vm10334, %v10330
      %10340 = vst.msk [vmem:[%s278 + $0x28] sm:$0xff] %vm10334, %v10331
      %10341 = vst.msk [vmem:[%s278 + $0x30] sm:$0xff] %vm10334, %v10332
      %10342 = vst.msk [vmem:[%s278 + $0x38] sm:$0xff] %vm10334, %v10333
      %p10343 = scmp.lt.s32.totalorder %s18, 1
      %s10344 = scalar_select %p10343, %s18, 1
      %s10345 = smul.addr %s10344, 8
      %s10346 = smul.addr %s10345, 8
      %s10347 = scalar_lea.vmem %s7, %s10346
      // Predicated region
      $region49: #{autoencoder_encode_pallas.1} parent=47 // pred_check
        %p10348 = pneg %p188
      $region50: #{autoencoder_encode_pallas.1} parent=47 // pred_check_branch
        %10350 = sbr.rel (%p10348) target = $region52
      $region51: #{autoencoder_encode_pallas.1} parent=47 // pred_region
        _
      $region52: #{autoencoder_encode_pallas.1} parent=47 // pred_fallthru
        _
    $region48: #{autoencoder_encode_pallas.1} parent=5 // pred_fallthru
      _
    %p10351 = scmp.le.s32.totalorder 2, %s13
    // Predicated region
    $region53: #{autoencoder_encode_pallas.1} parent=5 // pred_check
      %p10352 = pneg %p10351
    $region54: #{autoencoder_encode_pallas.1} parent=5 // pred_check_branch
      %10354 = sbr.rel (%p10352) target = $region56
    $region55: #{autoencoder_encode_pallas.1} parent=5 // pred_region
      %s10355 = ssub.s32 %s13, 2
      // Predicated region
      $region57: #{autoencoder_encode_pallas.1} parent=55 // pred_check
        %p10356 = pneg %p194
      $region58: #{autoencoder_encode_pallas.1} parent=55 // pred_check_branch
        %10358 = sbr.rel (%p10356) target = $region60
      $region59: #{autoencoder_encode_pallas.1} parent=55 // pred_region
        %p10359 = scmp.lt.s32.totalorder %s19, 1
        %s10360 = scalar_select %p10359, %s19, 1
        %s10361 = smul.addr %s10360, 8
        %s10362 = smul.addr %s10361, 8
        %s10363 = scalar_lea.vmem %s7, %s10362
      $region60: #{autoencoder_encode_pallas.1} parent=55 // pred_fallthru
        _
    $region56: #{autoencoder_encode_pallas.1} parent=5 // pred_fallthru
      _
  $region6: #{autoencoder_encode_pallas.1} parent=0 // loop_footer
    %s17 = sadd.s32 1, %s13
  $region7: #{autoencoder_encode_pallas.1} parent=0 // loop_footer_branch
    %12 = sbr.rel target = $region3
  $region8: #{autoencoder_encode_pallas.1} parent=0 // loop_exit
    _

</llo_original>
